<compile_context>
chip_gen: v7x
topology: tpu7x:2x2x1
jax: 0.10.0
libtpu: 0.0.40
codegen_flags: <defaults>
</compile_context>

<pallas_src>
import functools
import math

import jax
import jax.numpy as jnp
from jax.experimental import pallas as pl
from jax.experimental.pallas import tpu as pltpu


# ----------------------------- helpers ------------------------------------ #

def _round_up(x, m):
    return (x + m - 1) // m * m


MAX_TK = 2816  # >= 2304 so conv4's K is one tile; (2816, 512) bf16 = 2.75 MiB.


def _pick_tile(total, cap):
    """Largest multiple-of-128 divisor of `total` that is <= cap (total % 128 == 0)."""
    if total <= cap:
        return total
    t = (cap // 128) * 128
    while t >= 128:
        if total % t == 0:
            return t
        t -= 128
    return 128


# --------------------------- Pallas kernels -------------------------------- #

def _mm_epilogue_kernel(a_ref, w_ref, scale_ref, shift_ref, o_ref, *, relu):
    """out = maybe_relu((A @ W) * scale + shift); whole K in one tile, no scratch."""
    y = jnp.dot(a_ref[...], w_ref[...], preferred_element_type=jnp.float32)
    y = y * scale_ref[...] + shift_ref[...]
    if relu:
        y = jnp.maximum(y, 0.0)
    o_ref[...] = y.astype(o_ref.dtype)


def _mm_epilogue_acc_kernel(a_ref, w_ref, scale_ref, shift_ref, o_ref, acc_ref,
                            *, relu):
    """General fallback: accumulate over a K grid axis in an f32 VMEM scratch."""
    @pl.when(pl.program_id(2) == 0)
    def _():
        acc_ref[...] = jnp.zeros_like(acc_ref)

    acc_ref[...] += jnp.dot(a_ref[...], w_ref[...],
                            preferred_element_type=jnp.float32)

    @pl.when(pl.program_id(2) == pl.num_programs(2) - 1)
    def _():
        y = acc_ref[...] * scale_ref[...] + shift_ref[...]
        if relu:
            y = jnp.maximum(y, 0.0)
        o_ref[...] = y.astype(o_ref.dtype)


def _linear_tail_kernel(x_ref, w5_ref, s5_ref, b5_ref,
                        w6_ref, s6_ref, b6_ref,
                        w7_ref, s7_ref, b7_ref, o_ref, *, n_classes):
    """relu(bn(lin5)) -> relu(bn(lin6)) -> lin7 -> softmax, all in one kernel."""
    h = jnp.dot(x_ref[...], w5_ref[...], preferred_element_type=jnp.float32)
    h = jnp.maximum(h * s5_ref[...] + b5_ref[...], 0.0)

    h = jnp.dot(h.astype(w6_ref.dtype), w6_ref[...],
                preferred_element_type=jnp.float32)
    h = jnp.maximum(h * s6_ref[...] + b6_ref[...], 0.0)

    logits = jnp.dot(h.astype(w7_ref.dtype), w7_ref[...],
                     preferred_element_type=jnp.float32)
    logits = logits * s7_ref[...] + b7_ref[...]

    # Mask padded class lanes (Python literal, not a captured array constant),
    # then a standard f32 softmax; exp goes to the EUP.
    col = jax.lax.broadcasted_iota(jnp.int32, logits.shape, 1)
    logits = jnp.where(col < n_classes, logits, -1e30)
    m = jnp.max(logits, axis=-1, keepdims=True)
    e = jnp.exp(logits - m)
    o_ref[...] = (e / jnp.sum(e, axis=-1, keepdims=True)).astype(o_ref.dtype)


# --------------------------- Pallas wrappers ------------------------------- #

def fused_matmul_scale_shift(a, w_pad, scale_pad, shift_pad, n_out, *, relu,
                             out_dtype=jnp.bfloat16):
    """maybe_relu((a @ w) * scale + shift).

    a:         (M, K) activation (cast to bf16 here; usually already bf16).
    w_pad:     (Kp, Np) bf16, pre-transposed/padded at init.
    scale_pad: (1, Np) f32, pre-padded.
    shift_pad: (1, Np) f32, pre-padded.
    n_out:     true (unpadded) number of output features.
    """
    M, K = a.shape
    Kp, Np = w_pad.shape

    tm = min(_round_up(M, 16), 512)
    Mp = _round_up(M, tm)
    tn = _pick_tile(Np, 512)
    tk = _pick_tile(Kp, MAX_TK)
    nk = Kp // tk

    a_p = jnp.pad(a.astype(jnp.bfloat16), ((0, Mp - M), (0, Kp - K)))

    if nk == 1:
        # Single K step for every layer of this network: no accumulator scratch,
        # direct dot -> BN/ReLU epilogue -> bf16 store.
        kernel = functools.partial(_mm_epilogue_kernel, relu=relu)
        out = pl.pallas_call(
            kernel,
            out_shape=jax.ShapeDtypeStruct((Mp, Np), out_dtype),
            grid=(Mp // tm, Np // tn),
            in_specs=[
                pl.BlockSpec((tm, Kp), lambda i, j: (i, 0)),
                pl.BlockSpec((Kp, tn), lambda i, j: (0, j)),
                pl.BlockSpec((1, tn), lambda i, j: (0, j)),
                pl.BlockSpec((1, tn), lambda i, j: (0, j)),
            ],
            out_specs=pl.BlockSpec((tm, tn), lambda i, j: (i, j)),
            compiler_params=pltpu.CompilerParams(
                dimension_semantics=("parallel", "parallel"),
                vmem_limit_bytes=32 * 1024 * 1024),
        )(a_p, w_pad, scale_pad, shift_pad)
    else:
        # General fallback for K too large for one tile.
        kernel = functools.partial(_mm_epilogue_acc_kernel, relu=relu)
        out = pl.pallas_call(
            kernel,
            out_shape=jax.ShapeDtypeStruct((Mp, Np), out_dtype),
            grid=(Mp // tm, Np // tn, nk),
            in_specs=[
                pl.BlockSpec((tm, tk), lambda i, j, k: (i, k)),
                pl.BlockSpec((tk, tn), lambda i, j, k: (k, j)),
                pl.BlockSpec((1, tn), lambda i, j, k: (0, j)),
                pl.BlockSpec((1, tn), lambda i, j, k: (0, j)),
            ],
            out_specs=pl.BlockSpec((tm, tn), lambda i, j, k: (i, j)),
            scratch_shapes=[pltpu.VMEM((tm, tn), jnp.float32)],
            compiler_params=pltpu.CompilerParams(
                dimension_semantics=("parallel", "parallel", "arbitrary"),
                vmem_limit_bytes=32 * 1024 * 1024),
        )(a_p, w_pad, scale_pad, shift_pad)
    return out[:M, :n_out]


def linear_tail_softmax(x, p5, p6, p7):
    """Fused linear5->linear6->linear7->softmax. Weights pre-padded, VMEM-resident."""
    M, K5 = x.shape
    K5p = p5["w_pad"].shape[0]
    N7p = p7["w_pad"].shape[1]
    n_classes = p7["n_out"]

    Mp = _round_up(max(M, 8), 16)
    x_p = jnp.pad(x.astype(jnp.bfloat16), ((0, Mp - M), (0, K5p - K5)))

    args = [x_p,
            p5["w_pad"], p5["scale_pad"], p5["shift_pad"],
            p6["w_pad"], p6["scale_pad"], p6["shift_pad"],
            p7["w_pad"], p7["scale_pad"], p7["shift_pad"]]
    in_specs = [pl.BlockSpec(a.shape, lambda i: (0, 0)) for a in args]

    kernel = functools.partial(_linear_tail_kernel, n_classes=n_classes)
    out = pl.pallas_call(
        kernel,
        out_shape=jax.ShapeDtypeStruct((Mp, N7p), jnp.float32),
        grid=(1,),
        in_specs=in_specs,
        out_specs=pl.BlockSpec((Mp, N7p), lambda i: (0, 0)),
        compiler_params=pltpu.CompilerParams(
            dimension_semantics=("arbitrary",),
            vmem_limit_bytes=32 * 1024 * 1024),
    )(*args)
    return out[:M, :n_classes]


# ------------------------- conv / pool building blocks --------------------- #

def _extract_conv_patches(x, k, s, p):
    """im2col on NHWC input (pure data movement, bf16). Returns (B*Ho*Wo, k*k*C)."""
    B, H, W, C = x.shape
    Ho = (H + 2 * p - k) // s + 1
    Wo = (W + 2 * p - k) // s + 1
    xp = jnp.pad(x, ((0, 0), (p, p), (p, p), (0, 0)))
    slices = []
    for dy in range(k):
        for dx in range(k):
            slices.append(
                xp[:, dy:dy + (Ho - 1) * s + 1:s, dx:dx + (Wo - 1) * s + 1:s, :])
    patches = jnp.stack(slices, axis=3)          # (B, Ho, Wo, k*k, C)
    return patches.reshape(B * Ho * Wo, k * k * C), Ho, Wo


def conv_bn_relu(x, layer):
    """Conv2d (im2col + Pallas matmul) fused with folded-BN affine and ReLU. NHWC."""
    B = x.shape[0]
    k, s, p = layer["k"], layer["s"], layer["p"]
    patches, Ho, Wo = _extract_conv_patches(x, k, s, p)
    y = fused_matmul_scale_shift(patches, layer["w_pad"], layer["scale_pad"],
                                 layer["shift_pad"], layer["n_out"], relu=True)
    return y.reshape(B, Ho, Wo, layer["n_out"])


def maxpool2d(x, k, s, p):
    """MaxPool2d, PyTorch semantics (-inf padding). Left to XLA/VPU fusion; a
    dedicated Pallas launch for this tiny elementwise reduction is pure overhead."""
    B, H, W, C = x.shape
    Ho = (H + 2 * p - k) // s + 1
    Wo = (W + 2 * p - k) // s + 1
    xp = jnp.pad(x, ((0, 0), (p, p), (p, p), (0, 0)), constant_values=-jnp.inf)
    out = None
    for dy in range(k):
        for dx in range(k):
            sl = xp[:, dy:dy + (Ho - 1) * s + 1:s, dx:dx + (Wo - 1) * s + 1:s, :]
            out = sl if out is None else jnp.maximum(out, sl)
    return out


# ------------------------- parameter construction -------------------------- #

def _bn_fold(gamma, beta, mean, var, bias, eps=1e-5):
    s = gamma / jnp.sqrt(var + eps)
    return s, (bias - mean) * s + beta


def init_params(key, input_shape, feat_dim):
    """Deterministic synthetic parameters, pre-laid-out for the Pallas kernels."""
    cin, width, height = input_shape
    conv_cfg = [  # (Cout, k, s, p)
        (64, 5, 3, 2), (128, 3, 1, 1), (256, 3, 1, 1), (512, 3, 1, 1)]
    pool_cfg = [(3, 3, 1), (2, 2, 1), (2, 2, 1), (2, 2, 1)]

    # Spatial size after the conv/pool chain (same formula as the module).
    kernel_sizes = [5, 3, 3, 2, 3, 2, 3, 2]
    strides = [3, 3, 1, 2, 1, 2, 1, 2]
    paddings = [2, 1, 1, 1, 1, 1, 1, 1]
    w_sz, h_sz = width, height
    for ks, st, pd in zip(kernel_sizes, strides, paddings):
        w_sz = math.floor((w_sz + 2 * pd - (ks - 1) - 1) / st + 1)
        h_sz = math.floor((h_sz + 2 * pd - (ks - 1) - 1) / st + 1)
    flat_dim = 512 * w_sz * h_sz

    keys = iter(jax.random.split(key, 64))
    params = {"conv": [], "pool": pool_cfg}
    c_prev = cin
    for (cout, k, s, p) in conv_cfg:
        fan_in = c_prev * k * k
        bound = 1.0 / math.sqrt(fan_in)
        w = jax.random.uniform(next(keys), (cout, c_prev, k, k), jnp.float32,
                               -bound, bound)
        b = jax.random.uniform(next(keys), (cout,), jnp.float32, -bound, bound)
        gamma = jax.random.uniform(next(keys), (cout,), jnp.float32, 0.5, 1.5)
        beta = jax.random.uniform(next(keys), (cout,), jnp.float32, -0.1, 0.1)
        mean = 0.1 * jax.random.normal(next(keys), (cout,), jnp.float32)
        var = jax.random.uniform(next(keys), (cout,), jnp.float32, 0.5, 1.5)
        sc, sh = _bn_fold(gamma, beta, mean, var, b)

        # Pre-laid-out matmul weight: (Cout,Cin,kH,kW) -> (kH*kW*Cin, Cout),
        # padded to lane multiples and cast to bf16 ONCE here.
        kdim = c_prev * k * k
        w_mat = jnp.transpose(w, (2, 3, 1, 0)).reshape(kdim, cout)
        Kp = _round_up(kdim, 128)
        Np = _round_up(cout, 128)
        w_pad = jnp.pad(w_mat, ((0, Kp - kdim), (0, Np - cout))).astype(jnp.bfloat16)
        sc_pad = jnp.pad(sc.astype(jnp.float32), (0, Np - cout)).reshape(1, Np)
        sh_pad = jnp.pad(sh.astype(jnp.float32), (0, Np - cout)).reshape(1, Np)
        params["conv"].append({"w_pad": w_pad, "scale_pad": sc_pad,
                               "shift_pad": sh_pad, "n_out": cout,
                               "k": k, "s": s, "p": p})
        c_prev = cout

    def linear_raw(kit, din, dout):
        bound = 1.0 / math.sqrt(din)
        w = jax.random.uniform(next(kit), (din, dout), jnp.float32, -bound, bound)
        b = jax.random.uniform(next(kit), (dout,), jnp.float32, -bound, bound)
        return w, b

    def prep_linear(w, sc, sh):
        K, N = w.shape
        Kp, Np = _round_up(K, 128), _round_up(N, 128)
        return {"w_pad": jnp.pad(w, ((0, Kp - K), (0, Np - N))).astype(jnp.bfloat16),
                "scale_pad": jnp.pad(sc.astype(jnp.float32), (0, Np - N)).reshape(1, Np),
                "shift_pad": jnp.pad(sh.astype(jnp.float32), (0, Np - N)).reshape(1, Np),
                "n_in": K, "n_out": N}

    for name, din, dout, has_bn in [("lin5", flat_dim, feat_dim, True),
                                    ("lin6", feat_dim, feat_dim, True),
                                    ("lin7", feat_dim, 4, False)]:
        w, b = linear_raw(keys, din, dout)
        if name == "lin5":
            # One-time row permutation so an NHWC flatten of the activations
            # matches torch.flatten on NCHW (absorbs the per-forward transpose).
            perm = jnp.transpose(
                jnp.arange(512 * w_sz * h_sz).reshape(512, w_sz, h_sz),
                (1, 2, 0)).reshape(-1)
            w = w[perm]
        if has_bn:
            gamma = jax.random.uniform(next(keys), (dout,), jnp.float32, 0.5, 1.5)
            beta = jax.random.uniform(next(keys), (dout,), jnp.float32, -0.1, 0.1)
            mean = 0.1 * jax.random.normal(next(keys), (dout,), jnp.float32)
            var = jax.random.uniform(next(keys), (dout,), jnp.float32, 0.5, 1.5)
            sc, sh = _bn_fold(gamma, beta, mean, var, b)
        else:
            sc, sh = jnp.ones((dout,), jnp.float32), b
        params[name] = prep_linear(w, sc, sh)
    return params


# ------------------------------ forward ------------------------------------ #

def tone_eval_forward(x_nchw, params):
    # NCHW -> NHWC, single cast to bf16 for the whole activation path.
    x = jnp.transpose(x_nchw, (0, 2, 3, 1)).astype(jnp.bfloat16)
    for cp, (pk, ps, pp) in zip(params["conv"], params["pool"]):
        x = conv_bn_relu(x, cp)
        x = maxpool2d(x, pk, ps, pp)
    B = x.shape[0]
    # NHWC flatten; linear5's weight rows were permuted at init to match
    # torch.flatten(NCHW, start_dim=1).
    x = x.reshape(B, -1)
    return linear_tail_softmax(x, params["lin5"], params["lin6"], params["lin7"])


# ------------------------------- driver ------------------------------------ #

if __name__ == "__main__":
    key = jax.random.PRNGKey(0)
    k_params, k_input = jax.random.split(key)

    input_shape = (2, 48, 48)   # (C, W, H) as the module constructor expects
    feat_dim = 256
    batch = 4

    params = init_params(k_params, input_shape, feat_dim)
    x = jax.random.normal(k_input, (batch,) + input_shape, jnp.float32)

    fwd = jax.jit(lambda inp: tone_eval_forward(inp, params))
    out = jax.block_until_ready(fwd(x))

    assert out.shape == (batch, 4), out.shape
    assert bool(jnp.all(jnp.isfinite(out)))
    assert bool(jnp.allclose(jnp.sum(out, axis=1), 1.0, atol=1e-3))
    print("KERNEL_OK")
</pallas_src>

<mosaic_0001>
module attributes {stable_mosaic.version = 11 : i64} {
  func.func @_mm_epilogue_kernel(%arg0: i32, %arg1: i32, %arg2: memref<512x128xbf16, #tpu.memory_space<vmem>>, %arg3: memref<128x128xbf16, #tpu.memory_space<vmem>>, %arg4: memref<1x128xf32, #tpu.memory_space<vmem>>, %arg5: memref<1x128xf32, #tpu.memory_space<vmem>>, %arg6: memref<512x128xbf16, #tpu.memory_space<vmem>>) attributes {dimension_semantics = [#tpu.dimension_semantics<parallel>, #tpu.dimension_semantics<parallel>], iteration_bounds = array<i64: 2, 1>, scalar_prefetch = 0 : i64, scratch_operands = 0 : i64, tpu.core_type = #tpu.core_type<tc>, window_params = [{transform_indices = @transform_0, window_bounds = array<i64: 512, 128>}, {transform_indices = @transform_1, window_bounds = array<i64: 128, 128>}, {transform_indices = @transform_2, window_bounds = array<i64: 1, 128>}, {transform_indices = @transform_3, window_bounds = array<i64: 1, 128>}, {transform_indices = @transform_4, window_bounds = array<i64: 512, 128>}]} {
    %c0 = arith.constant 0 : index
    %c0_0 = arith.constant 0 : index
    %0 = vector.load %arg2[%c0, %c0_0] : memref<512x128xbf16, #tpu.memory_space<vmem>>, vector<512x128xbf16>
    %c0_1 = arith.constant 0 : index
    %c0_2 = arith.constant 0 : index
    %1 = vector.load %arg3[%c0_1, %c0_2] : memref<128x128xbf16, #tpu.memory_space<vmem>>, vector<128x128xbf16>
    %cst = arith.constant dense<0.000000e+00> : vector<512x128xf32>
    %2 = tpu.matmul %0, %1, %cst {dimension_numbers = #tpu.dot_dimension_numbers<[1], [0], [0], [1], [0, 0, 1, 1], [], []>} : vector<512x128xbf16>, vector<128x128xbf16>, vector<512x128xf32> -> vector<512x128xf32>
    %c0_3 = arith.constant 0 : index
    %c0_4 = arith.constant 0 : index
    %3 = vector.load %arg4[%c0_3, %c0_4] : memref<1x128xf32, #tpu.memory_space<vmem>>, vector<1x128xf32>
    %4 = vector.broadcast %3 : vector<1x128xf32> to vector<512x128xf32>
    %5 = arith.mulf %2, %4 : vector<512x128xf32>
    %c0_5 = arith.constant 0 : index
    %c0_6 = arith.constant 0 : index
    %6 = vector.load %arg5[%c0_5, %c0_6] : memref<1x128xf32, #tpu.memory_space<vmem>>, vector<1x128xf32>
    %7 = vector.broadcast %6 : vector<1x128xf32> to vector<512x128xf32>
    %8 = arith.addf %5, %7 : vector<512x128xf32>
    %cst_7 = arith.constant 0.000000e+00 : f32
    %9 = vector.broadcast %cst_7 : f32 to vector<512x128xf32>
    %10 = arith.maximumf %8, %9 : vector<512x128xf32>
    %11 = arith.truncf %10 : vector<512x128xf32> to vector<512x128xbf16>
    %c0_8 = arith.constant 0 : index
    %c0_9 = arith.constant 0 : index
    %12 = vector.load %arg6[%c0_8, %c0_9] : memref<512x128xbf16, #tpu.memory_space<vmem>>, vector<512x128xbf16>
    tpu.vector_store %arg6[%c0_8, %c0_9], %11 {strides = array<i32>} : memref<512x128xbf16, #tpu.memory_space<vmem>>, vector<512x128xbf16>,
    return
  }
  func.func @transform_0(%arg0: i32, %arg1: i32) -> (i32, i32) {
    %c0_i32 = arith.constant 0 : i32
    %c0_i32_0 = arith.constant 0 : i32
    return %arg0, %c0_i32 : i32, i32
  }
  func.func @transform_1(%arg0: i32, %arg1: i32) -> (i32, i32) {
    %c0_i32 = arith.constant 0 : i32
    %c0_i32_0 = arith.constant 0 : i32
    return %c0_i32, %arg1 : i32, i32
  }
  func.func @transform_2(%arg0: i32, %arg1: i32) -> (i32, i32) {
    %c0_i32 = arith.constant 0 : i32
    %c0_i32_0 = arith.constant 0 : i32
    return %c0_i32, %arg1 : i32, i32
  }
  func.func @transform_3(%arg0: i32, %arg1: i32) -> (i32, i32) {
    %c0_i32 = arith.constant 0 : i32
    %c0_i32_0 = arith.constant 0 : i32
    return %c0_i32, %arg1 : i32, i32
  }
  func.func @transform_4(%arg0: i32, %arg1: i32) -> (i32, i32) {
    %c0_i32 = arith.constant 0 : i32
    return %arg0, %arg1 : i32, i32
  }
}

module attributes {stable_mosaic.version = 11 : i64} {
  func.func @_mm_epilogue_kernel(%arg0: i32, %arg1: i32, %arg2: memref<144x640xbf16, #tpu.memory_space<vmem>>, %arg3: memref<640x128xbf16, #tpu.memory_space<vmem>>, %arg4: memref<1x128xf32, #tpu.memory_space<vmem>>, %arg5: memref<1x128xf32, #tpu.memory_space<vmem>>, %arg6: memref<144x128xbf16, #tpu.memory_space<vmem>>) attributes {dimension_semantics = [#tpu.dimension_semantics<parallel>, #tpu.dimension_semantics<parallel>], iteration_bounds = array<i64: 1, 1>, scalar_prefetch = 0 : i64, scratch_operands = 0 : i64, tpu.core_type = #tpu.core_type<tc>, window_params = [{transform_indices = @transform_0, window_bounds = array<i64: 144, 640>}, {transform_indices = @transform_1, window_bounds = array<i64: 640, 128>}, {transform_indices = @transform_2, window_bounds = array<i64: 1, 128>}, {transform_indices = @transform_3, window_bounds = array<i64: 1, 128>}, {transform_indices = @transform_4, window_bounds = array<i64: 144, 128>}]} {
    %c0 = arith.constant 0 : index
    %c0_0 = arith.constant 0 : index
    %0 = vector.load %arg2[%c0, %c0_0] : memref<144x640xbf16, #tpu.memory_space<vmem>>, vector<144x640xbf16>
    %c0_1 = arith.constant 0 : index
    %c0_2 = arith.constant 0 : index
    %1 = vector.load %arg3[%c0_1, %c0_2] : memref<640x128xbf16, #tpu.memory_space<vmem>>, vector<640x128xbf16>
    %cst = arith.constant dense<0.000000e+00> : vector<144x128xf32>
    %2 = tpu.matmul %0, %1, %cst {dimension_numbers = #tpu.dot_dimension_numbers<[1], [0], [0], [1], [0, 0, 1, 1], [], []>} : vector<144x640xbf16>, vector<640x128xbf16>, vector<144x128xf32> -> vector<144x128xf32>
    %c0_3 = arith.constant 0 : index
    %c0_4 = arith.constant 0 : index
    %3 = vector.load %arg4[%c0_3, %c0_4] : memref<1x128xf32, #tpu.memory_space<vmem>>, vector<1x128xf32>
    %4 = vector.broadcast %3 : vector<1x128xf32> to vector<144x128xf32>
    %5 = arith.mulf %2, %4 : vector<144x128xf32>
    %c0_5 = arith.constant 0 : index
    %c0_6 = arith.constant 0 : index
    %6 = vector.load %arg5[%c0_5, %c0_6] : memref<1x128xf32, #tpu.memory_space<vmem>>, vector<1x128xf32>
    %7 = vector.broadcast %6 : vector<1x128xf32> to vector<144x128xf32>
    %8 = arith.addf %5, %7 : vector<144x128xf32>
    %cst_7 = arith.constant 0.000000e+00 : f32
    %9 = vector.broadcast %cst_7 : f32 to vector<144x128xf32>
    %10 = arith.maximumf %8, %9 : vector<144x128xf32>
    %11 = arith.truncf %10 : vector<144x128xf32> to vector<144x128xbf16>
    %c0_8 = arith.constant 0 : index
    %c0_9 = arith.constant 0 : index
    %12 = vector.load %arg6[%c0_8, %c0_9] : memref<144x128xbf16, #tpu.memory_space<vmem>>, vector<144x128xbf16>
    tpu.vector_store %arg6[%c0_8, %c0_9], %11 {strides = array<i32>} : memref<144x128xbf16, #tpu.memory_space<vmem>>, vector<144x128xbf16>,
    return
  }
  func.func @transform_0(%arg0: i32, %arg1: i32) -> (i32, i32) {
    %c0_i32 = arith.constant 0 : i32
    %c0_i32_0 = arith.constant 0 : i32
    return %arg0, %c0_i32 : i32, i32
  }
  func.func @transform_1(%arg0: i32, %arg1: i32) -> (i32, i32) {
    %c0_i32 = arith.constant 0 : i32
    %c0_i32_0 = arith.constant 0 : i32
    return %c0_i32, %arg1 : i32, i32
  }
  func.func @transform_2(%arg0: i32, %arg1: i32) -> (i32, i32) {
    %c0_i32 = arith.constant 0 : i32
    %c0_i32_0 = arith.constant 0 : i32
    return %c0_i32, %arg1 : i32, i32
  }
  func.func @transform_3(%arg0: i32, %arg1: i32) -> (i32, i32) {
    %c0_i32 = arith.constant 0 : i32
    %c0_i32_0 = arith.constant 0 : i32
    return %c0_i32, %arg1 : i32, i32
  }
  func.func @transform_4(%arg0: i32, %arg1: i32) -> (i32, i32) {
    %c0_i32 = arith.constant 0 : i32
    return %arg0, %arg1 : i32, i32
  }
}

module attributes {stable_mosaic.version = 11 : i64} {
  func.func @_mm_epilogue_kernel(%arg0: i32, %arg1: i32, %arg2: memref<64x1152xbf16, #tpu.memory_space<vmem>>, %arg3: memref<1152x256xbf16, #tpu.memory_space<vmem>>, %arg4: memref<1x256xf32, #tpu.memory_space<vmem>>, %arg5: memref<1x256xf32, #tpu.memory_space<vmem>>, %arg6: memref<64x256xbf16, #tpu.memory_space<vmem>>) attributes {dimension_semantics = [#tpu.dimension_semantics<parallel>, #tpu.dimension_semantics<parallel>], iteration_bounds = array<i64: 1, 1>, scalar_prefetch = 0 : i64, scratch_operands = 0 : i64, tpu.core_type = #tpu.core_type<tc>, window_params = [{transform_indices = @transform_0, window_bounds = array<i64: 64, 1152>}, {transform_indices = @transform_1, window_bounds = array<i64: 1152, 256>}, {transform_indices = @transform_2, window_bounds = array<i64: 1, 256>}, {transform_indices = @transform_3, window_bounds = array<i64: 1, 256>}, {transform_indices = @transform_4, window_bounds = array<i64: 64, 256>}]} {
    %c0 = arith.constant 0 : index
    %c0_0 = arith.constant 0 : index
    %0 = vector.load %arg2[%c0, %c0_0] : memref<64x1152xbf16, #tpu.memory_space<vmem>>, vector<64x1152xbf16>
    %c0_1 = arith.constant 0 : index
    %c0_2 = arith.constant 0 : index
    %1 = vector.load %arg3[%c0_1, %c0_2] : memref<1152x256xbf16, #tpu.memory_space<vmem>>, vector<1152x256xbf16>
    %cst = arith.constant dense<0.000000e+00> : vector<64x256xf32>
    %2 = tpu.matmul %0, %1, %cst {dimension_numbers = #tpu.dot_dimension_numbers<[1], [0], [0], [1], [0, 0, 1, 1], [], []>} : vector<64x1152xbf16>, vector<1152x256xbf16>, vector<64x256xf32> -> vector<64x256xf32>
    %c0_3 = arith.constant 0 : index
    %c0_4 = arith.constant 0 : index
    %3 = vector.load %arg4[%c0_3, %c0_4] : memref<1x256xf32, #tpu.memory_space<vmem>>, vector<1x256xf32>
    %4 = vector.broadcast %3 : vector<1x256xf32> to vector<64x256xf32>
    %5 = arith.mulf %2, %4 : vector<64x256xf32>
    %c0_5 = arith.constant 0 : index
    %c0_6 = arith.constant 0 : index
    %6 = vector.load %arg5[%c0_5, %c0_6] : memref<1x256xf32, #tpu.memory_space<vmem>>, vector<1x256xf32>
    %7 = vector.broadcast %6 : vector<1x256xf32> to vector<64x256xf32>
    %8 = arith.addf %5, %7 : vector<64x256xf32>
    %cst_7 = arith.constant 0.000000e+00 : f32
    %9 = vector.broadcast %cst_7 : f32 to vector<64x256xf32>
    %10 = arith.maximumf %8, %9 : vector<64x256xf32>
    %11 = arith.truncf %10 : vector<64x256xf32> to vector<64x256xbf16>
    %c0_8 = arith.constant 0 : index
    %c0_9 = arith.constant 0 : index
    %12 = vector.load %arg6[%c0_8, %c0_9] : memref<64x256xbf16, #tpu.memory_space<vmem>>, vector<64x256xbf16>
    tpu.vector_store %arg6[%c0_8, %c0_9], %11 {strides = array<i32>} : memref<64x256xbf16, #tpu.memory_space<vmem>>, vector<64x256xbf16>,
    return
  }
  func.func @transform_0(%arg0: i32, %arg1: i32) -> (i32, i32) {
    %c0_i32 = arith.constant 0 : i32
    %c0_i32_0 = arith.constant 0 : i32
    return %arg0, %c0_i32 : i32, i32
  }
  func.func @transform_1(%arg0: i32, %arg1: i32) -> (i32, i32) {
    %c0_i32 = arith.constant 0 : i32
    %c0_i32_0 = arith.constant 0 : i32
    return %c0_i32, %arg1 : i32, i32
  }
  func.func @transform_2(%arg0: i32, %arg1: i32) -> (i32, i32) {
    %c0_i32 = arith.constant 0 : i32
    %c0_i32_0 = arith.constant 0 : i32
    return %c0_i32, %arg1 : i32, i32
  }
  func.func @transform_3(%arg0: i32, %arg1: i32) -> (i32, i32) {
    %c0_i32 = arith.constant 0 : i32
    %c0_i32_0 = arith.constant 0 : i32
    return %c0_i32, %arg1 : i32, i32
  }
  func.func @transform_4(%arg0: i32, %arg1: i32) -> (i32, i32) {
    %c0_i32 = arith.constant 0 : i32
    return %arg0, %arg1 : i32, i32
  }
}

module attributes {stable_mosaic.version = 11 : i64} {
  func.func @_mm_epilogue_kernel(%arg0: i32, %arg1: i32, %arg2: memref<48x2304xbf16, #tpu.memory_space<vmem>>, %arg3: memref<2304x512xbf16, #tpu.memory_space<vmem>>, %arg4: memref<1x512xf32, #tpu.memory_space<vmem>>, %arg5: memref<1x512xf32, #tpu.memory_space<vmem>>, %arg6: memref<48x512xbf16, #tpu.memory_space<vmem>>) attributes {dimension_semantics = [#tpu.dimension_semantics<parallel>, #tpu.dimension_semantics<parallel>], iteration_bounds = array<i64: 1, 1>, scalar_prefetch = 0 : i64, scratch_operands = 0 : i64, tpu.core_type = #tpu.core_type<tc>, window_params = [{transform_indices = @transform_0, window_bounds = array<i64: 48, 2304>}, {transform_indices = @transform_1, window_bounds = array<i64: 2304, 512>}, {transform_indices = @transform_2, window_bounds = array<i64: 1, 512>}, {transform_indices = @transform_3, window_bounds = array<i64: 1, 512>}, {transform_indices = @transform_4, window_bounds = array<i64: 48, 512>}]} {
    %c0 = arith.constant 0 : index
    %c0_0 = arith.constant 0 : index
    %0 = vector.load %arg2[%c0, %c0_0] : memref<48x2304xbf16, #tpu.memory_space<vmem>>, vector<48x2304xbf16>
    %c0_1 = arith.constant 0 : index
    %c0_2 = arith.constant 0 : index
    %1 = vector.load %arg3[%c0_1, %c0_2] : memref<2304x512xbf16, #tpu.memory_space<vmem>>, vector<2304x512xbf16>
    %cst = arith.constant dense<0.000000e+00> : vector<48x512xf32>
    %2 = tpu.matmul %0, %1, %cst {dimension_numbers = #tpu.dot_dimension_numbers<[1], [0], [0], [1], [0, 0, 1, 1], [], []>} : vector<48x2304xbf16>, vector<2304x512xbf16>, vector<48x512xf32> -> vector<48x512xf32>
    %c0_3 = arith.constant 0 : index
    %c0_4 = arith.constant 0 : index
    %3 = vector.load %arg4[%c0_3, %c0_4] : memref<1x512xf32, #tpu.memory_space<vmem>>, vector<1x512xf32>
    %4 = vector.broadcast %3 : vector<1x512xf32> to vector<48x512xf32>
    %5 = arith.mulf %2, %4 : vector<48x512xf32>
    %c0_5 = arith.constant 0 : index
    %c0_6 = arith.constant 0 : index
    %6 = vector.load %arg5[%c0_5, %c0_6] : memref<1x512xf32, #tpu.memory_space<vmem>>, vector<1x512xf32>
    %7 = vector.broadcast %6 : vector<1x512xf32> to vector<48x512xf32>
    %8 = arith.addf %5, %7 : vector<48x512xf32>
    %cst_7 = arith.constant 0.000000e+00 : f32
    %9 = vector.broadcast %cst_7 : f32 to vector<48x512xf32>
    %10 = arith.maximumf %8, %9 : vector<48x512xf32>
    %11 = arith.truncf %10 : vector<48x512xf32> to vector<48x512xbf16>
    %c0_8 = arith.constant 0 : index
    %c0_9 = arith.constant 0 : index
    %12 = vector.load %arg6[%c0_8, %c0_9] : memref<48x512xbf16, #tpu.memory_space<vmem>>, vector<48x512xbf16>
    tpu.vector_store %arg6[%c0_8, %c0_9], %11 {strides = array<i32>} : memref<48x512xbf16, #tpu.memory_space<vmem>>, vector<48x512xbf16>,
    return
  }
  func.func @transform_0(%arg0: i32, %arg1: i32) -> (i32, i32) {
    %c0_i32 = arith.constant 0 : i32
    %c0_i32_0 = arith.constant 0 : i32
    return %arg0, %c0_i32 : i32, i32
  }
  func.func @transform_1(%arg0: i32, %arg1: i32) -> (i32, i32) {
    %c0_i32 = arith.constant 0 : i32
    %c0_i32_0 = arith.constant 0 : i32
    return %c0_i32, %arg1 : i32, i32
  }
  func.func @transform_2(%arg0: i32, %arg1: i32) -> (i32, i32) {
    %c0_i32 = arith.constant 0 : i32
    %c0_i32_0 = arith.constant 0 : i32
    return %c0_i32, %arg1 : i32, i32
  }
  func.func @transform_3(%arg0: i32, %arg1: i32) -> (i32, i32) {
    %c0_i32 = arith.constant 0 : i32
    %c0_i32_0 = arith.constant 0 : i32
    return %c0_i32, %arg1 : i32, i32
  }
  func.func @transform_4(%arg0: i32, %arg1: i32) -> (i32, i32) {
    %c0_i32 = arith.constant 0 : i32
    return %arg0, %arg1 : i32, i32
  }
}

module attributes {stable_mosaic.version = 11 : i64} {
  func.func @_linear_tail_kernel(%arg0: i32, %arg1: memref<16x2048xbf16, #tpu.memory_space<vmem>>, %arg2: memref<2048x256xbf16, #tpu.memory_space<vmem>>, %arg3: memref<1x256xf32, #tpu.memory_space<vmem>>, %arg4: memref<1x256xf32, #tpu.memory_space<vmem>>, %arg5: memref<256x256xbf16, #tpu.memory_space<vmem>>, %arg6: memref<1x256xf32, #tpu.memory_space<vmem>>, %arg7: memref<1x256xf32, #tpu.memory_space<vmem>>, %arg8: memref<256x128xbf16, #tpu.memory_space<vmem>>, %arg9: memref<1x128xf32, #tpu.memory_space<vmem>>, %arg10: memref<1x128xf32, #tpu.memory_space<vmem>>, %arg11: memref<16x128xf32, #tpu.memory_space<vmem>>) attributes {dimension_semantics = [#tpu.dimension_semantics<arbitrary>], iteration_bounds = array<i64: 1>, scalar_prefetch = 0 : i64, scratch_operands = 0 : i64, tpu.core_type = #tpu.core_type<tc>, window_params = [{pipeline_mode = #tpu.pipeline_mode<synchronous>, transform_indices = @transform_0, window_bounds = array<i64: 16, 2048>}, {pipeline_mode = #tpu.pipeline_mode<synchronous>, transform_indices = @transform_1, window_bounds = array<i64: 2048, 256>}, {pipeline_mode = #tpu.pipeline_mode<synchronous>, transform_indices = @transform_2, window_bounds = array<i64: 1, 256>}, {pipeline_mode = #tpu.pipeline_mode<synchronous>, transform_indices = @transform_3, window_bounds = array<i64: 1, 256>}, {pipeline_mode = #tpu.pipeline_mode<synchronous>, transform_indices = @transform_4, window_bounds = array<i64: 256, 256>}, {pipeline_mode = #tpu.pipeline_mode<synchronous>, transform_indices = @transform_5, window_bounds = array<i64: 1, 256>}, {pipeline_mode = #tpu.pipeline_mode<synchronous>, transform_indices = @transform_6, window_bounds = array<i64: 1, 256>}, {pipeline_mode = #tpu.pipeline_mode<synchronous>, transform_indices = @transform_7, window_bounds = array<i64: 256, 128>}, {pipeline_mode = #tpu.pipeline_mode<synchronous>, transform_indices = @transform_8, window_bounds = array<i64: 1, 128>}, {pipeline_mode = #tpu.pipeline_mode<synchronous>, transform_indices = @transform_9, window_bounds = array<i64: 1, 128>}, {pipeline_mode = #tpu.pipeline_mode<synchronous>, transform_indices = @transform_10, window_bounds = array<i64: 16, 128>}]} {
    %c0 = arith.constant 0 : index
    %c0_0 = arith.constant 0 : index
    %0 = vector.load %arg1[%c0, %c0_0] : memref<16x2048xbf16, #tpu.memory_space<vmem>>, vector<16x2048xbf16>
    %c0_1 = arith.constant 0 : index
    %c0_2 = arith.constant 0 : index
    %1 = vector.load %arg2[%c0_1, %c0_2] : memref<2048x256xbf16, #tpu.memory_space<vmem>>, vector<2048x256xbf16>
    %cst = arith.constant dense<0.000000e+00> : vector<16x256xf32>
    %2 = tpu.matmul %0, %1, %cst {dimension_numbers = #tpu.dot_dimension_numbers<[1], [0], [0], [1], [0, 0, 1, 1], [], []>} : vector<16x2048xbf16>, vector<2048x256xbf16>, vector<16x256xf32> -> vector<16x256xf32>
    %c0_3 = arith.constant 0 : index
    %c0_4 = arith.constant 0 : index
    %3 = vector.load %arg3[%c0_3, %c0_4] : memref<1x256xf32, #tpu.memory_space<vmem>>, vector<1x256xf32>
    %4 = vector.broadcast %3 : vector<1x256xf32> to vector<16x256xf32>
    %5 = arith.mulf %2, %4 : vector<16x256xf32>
    %c0_5 = arith.constant 0 : index
    %c0_6 = arith.constant 0 : index
    %6 = vector.load %arg4[%c0_5, %c0_6] : memref<1x256xf32, #tpu.memory_space<vmem>>, vector<1x256xf32>
    %7 = vector.broadcast %6 : vector<1x256xf32> to vector<16x256xf32>
    %8 = arith.addf %5, %7 : vector<16x256xf32>
    %cst_7 = arith.constant 0.000000e+00 : f32
    %9 = vector.broadcast %cst_7 : f32 to vector<16x256xf32>
    %10 = arith.maximumf %8, %9 : vector<16x256xf32>
    %11 = arith.truncf %10 : vector<16x256xf32> to vector<16x256xbf16>
    %c0_8 = arith.constant 0 : index
    %c0_9 = arith.constant 0 : index
    %12 = vector.load %arg5[%c0_8, %c0_9] : memref<256x256xbf16, #tpu.memory_space<vmem>>, vector<256x256xbf16>
    %cst_10 = arith.constant dense<0.000000e+00> : vector<16x256xf32>
    %13 = tpu.matmul %11, %12, %cst_10 {dimension_numbers = #tpu.dot_dimension_numbers<[1], [0], [0], [1], [0, 0, 1, 1], [], []>} : vector<16x256xbf16>, vector<256x256xbf16>, vector<16x256xf32> -> vector<16x256xf32>
    %c0_11 = arith.constant 0 : index
    %c0_12 = arith.constant 0 : index
    %14 = vector.load %arg6[%c0_11, %c0_12] : memref<1x256xf32, #tpu.memory_space<vmem>>, vector<1x256xf32>
    %15 = vector.broadcast %14 : vector<1x256xf32> to vector<16x256xf32>
    %16 = arith.mulf %13, %15 : vector<16x256xf32>
    %c0_13 = arith.constant 0 : index
    %c0_14 = arith.constant 0 : index
    %17 = vector.load %arg7[%c0_13, %c0_14] : memref<1x256xf32, #tpu.memory_space<vmem>>, vector<1x256xf32>
    %18 = vector.broadcast %17 : vector<1x256xf32> to vector<16x256xf32>
    %19 = arith.addf %16, %18 : vector<16x256xf32>
    %cst_15 = arith.constant 0.000000e+00 : f32
    %20 = vector.broadcast %cst_15 : f32 to vector<16x256xf32>
    %21 = arith.maximumf %19, %20 : vector<16x256xf32>
    %22 = arith.truncf %21 : vector<16x256xf32> to vector<16x256xbf16>
    %c0_16 = arith.constant 0 : index
    %c0_17 = arith.constant 0 : index
    %23 = vector.load %arg8[%c0_16, %c0_17] : memref<256x128xbf16, #tpu.memory_space<vmem>>, vector<256x128xbf16>
    %cst_18 = arith.constant dense<0.000000e+00> : vector<16x128xf32>
    %24 = tpu.matmul %22, %23, %cst_18 {dimension_numbers = #tpu.dot_dimension_numbers<[1], [0], [0], [1], [0, 0, 1, 1], [], []>} : vector<16x256xbf16>, vector<256x128xbf16>, vector<16x128xf32> -> vector<16x128xf32>
    %c0_19 = arith.constant 0 : index
    %c0_20 = arith.constant 0 : index
    %25 = vector.load %arg9[%c0_19, %c0_20] : memref<1x128xf32, #tpu.memory_space<vmem>>, vector<1x128xf32>
    %26 = vector.broadcast %25 : vector<1x128xf32> to vector<16x128xf32>
    %27 = arith.mulf %24, %26 : vector<16x128xf32>
    %c0_21 = arith.constant 0 : index
    %c0_22 = arith.constant 0 : index
    %28 = vector.load %arg10[%c0_21, %c0_22] : memref<1x128xf32, #tpu.memory_space<vmem>>, vector<1x128xf32>
    %29 = vector.broadcast %28 : vector<1x128xf32> to vector<16x128xf32>
    %30 = arith.addf %27, %29 : vector<16x128xf32>
    %31 = tpu.iota {dimensions = array<i32: 1>} : vector<16x128xi32>
    %c4_i32 = arith.constant 4 : i32
    %32 = vector.broadcast %c4_i32 : i32 to vector<16x128xi32>
    %33 = arith.cmpi slt, %31, %32 : vector<16x128xi32>
    %cst_23 = arith.constant -1.000000e+30 : f32
    %34 = vector.broadcast %cst_23 : f32 to vector<16x128xf32>
    %35 = arith.select %33, %30, %34 : vector<16x128xi1>, vector<16x128xf32>
    %cst_24 = arith.constant dense<0xFF800000> : vector<16xf32>
    %36 = vector.multi_reduction <maximumf>, %35, %cst_24 [1] : vector<16x128xf32> to vector<16xf32>
    %37 = vector.shape_cast %36 : vector<16xf32> to vector<16x1xf32>
    %38 = vector.broadcast %37 : vector<16x1xf32> to vector<16x128xf32>
    %39 = arith.subf %35, %38 : vector<16x128xf32>
    %40 = math.exp %39 : vector<16x128xf32>
    %cst_25 = arith.constant dense<0.000000e+00> : vector<16xf32>
    %41 = vector.multi_reduction <add>, %40, %cst_25 [1] : vector<16x128xf32> to vector<16xf32>
    %42 = vector.shape_cast %41 : vector<16xf32> to vector<16x1xf32>
    %43 = vector.broadcast %42 : vector<16x1xf32> to vector<16x128xf32>
    %44 = arith.divf %40, %43 : vector<16x128xf32>
    %c0_26 = arith.constant 0 : index
    %c0_27 = arith.constant 0 : index
    %45 = vector.load %arg11[%c0_26, %c0_27] : memref<16x128xf32, #tpu.memory_space<vmem>>, vector<16x128xf32>
    tpu.vector_store %arg11[%c0_26, %c0_27], %44 {strides = array<i32>} : memref<16x128xf32, #tpu.memory_space<vmem>>, vector<16x128xf32>,
    return
  }
  func.func @transform_0(%arg0: i32) -> (i32, i32) {
    %c0_i32 = arith.constant 0 : i32
    %c0_i32_0 = arith.constant 0 : i32
    %c0_i32_1 = arith.constant 0 : i32
    return %c0_i32, %c0_i32_0 : i32, i32
  }
  func.func @transform_1(%arg0: i32) -> (i32, i32) {
    %c0_i32 = arith.constant 0 : i32
    %c0_i32_0 = arith.constant 0 : i32
    %c0_i32_1 = arith.constant 0 : i32
    return %c0_i32, %c0_i32_0 : i32, i32
  }
  func.func @transform_2(%arg0: i32) -> (i32, i32) {
    %c0_i32 = arith.constant 0 : i32
    %c0_i32_0 = arith.constant 0 : i32
    %c0_i32_1 = arith.constant 0 : i32
    return %c0_i32, %c0_i32_0 : i32, i32
  }
  func.func @transform_3(%arg0: i32) -> (i32, i32) {
    %c0_i32 = arith.constant 0 : i32
    %c0_i32_0 = arith.constant 0 : i32
    %c0_i32_1 = arith.constant 0 : i32
    return %c0_i32, %c0_i32_0 : i32, i32
  }
  func.func @transform_4(%arg0: i32) -> (i32, i32) {
    %c0_i32 = arith.constant 0 : i32
    %c0_i32_0 = arith.constant 0 : i32
    %c0_i32_1 = arith.constant 0 : i32
    return %c0_i32, %c0_i32_0 : i32, i32
  }
  func.func @transform_5(%arg0: i32) -> (i32, i32) {
    %c0_i32 = arith.constant 0 : i32
    %c0_i32_0 = arith.constant 0 : i32
    %c0_i32_1 = arith.constant 0 : i32
    return %c0_i32, %c0_i32_0 : i32, i32
  }
  func.func @transform_6(%arg0: i32) -> (i32, i32) {
    %c0_i32 = arith.constant 0 : i32
    %c0_i32_0 = arith.constant 0 : i32
    %c0_i32_1 = arith.constant 0 : i32
    return %c0_i32, %c0_i32_0 : i32, i32
  }
  func.func @transform_7(%arg0: i32) -> (i32, i32) {
    %c0_i32 = arith.constant 0 : i32
    %c0_i32_0 = arith.constant 0 : i32
    %c0_i32_1 = arith.constant 0 : i32
    return %c0_i32, %c0_i32_0 : i32, i32
  }
  func.func @transform_8(%arg0: i32) -> (i32, i32) {
    %c0_i32 = arith.constant 0 : i32
    %c0_i32_0 = arith.constant 0 : i32
    %c0_i32_1 = arith.constant 0 : i32
    return %c0_i32, %c0_i32_0 : i32, i32
  }
  func.func @transform_9(%arg0: i32) -> (i32, i32) {
    %c0_i32 = arith.constant 0 : i32
    %c0_i32_0 = arith.constant 0 : i32
    %c0_i32_1 = arith.constant 0 : i32
    return %c0_i32, %c0_i32_0 : i32, i32
  }
  func.func @transform_10(%arg0: i32) -> (i32, i32) {
    %c0_i32 = arith.constant 0 : i32
    %c0_i32_0 = arith.constant 0 : i32
    %c0_i32_1 = arith.constant 0 : i32
    return %c0_i32, %c0_i32_0 : i32, i32
  }
}

</mosaic_0001>

<llo_original>
// kernel: _lambda_.5
$region0: #{_lambda_.5}
  #allocation0 [shape = 'u32[]', space=smem, size = 0x4, offset = 0x4, fixed_abs, tag = 'smem constant byte address 0x4 - core index']
  #allocation1 [shape = 'u32[144,128]{1,0:T(1,128)}', space=vmem, size = 0x12000, scoped, tag = 'internal scratch']
  %s0 = inlined_call_operand.vmem [shape: bf16[1024,128], index: 0, kind: input, shape index: {}]
  %s1 = inlined_call_operand.vmem [shape: bf16[128,128], index: 1, kind: input, shape index: {}]
  %s2 = inlined_call_operand.vmem [shape: f32[1,128], index: 2, kind: input, shape index: {}]
  %s3 = inlined_call_operand.vmem [shape: f32[1,128], index: 3, kind: input, shape index: {}]
  %s4 = inlined_call_operand.vmem [shape: bf16[1024,128], index: 4, kind: output, shape index: {}]
  %s5 = sld [smem:[#allocation0]]
  $region49: #{_lambda_.5} parent=0
    _
  %s7 = ssub.s32 1, %s5
  %s8 = scalar_select 0, %s7, %s5
  loop: start=0, step=1, limit=4
  $region2: #{_lambda_.5} parent=0 // loop_pre_header
    _
  $region3: #{_lambda_.5} parent=0 // loop_header
    %s10 = sphi 0, %s14
    %p11 = scmp.ge.s32.totalorder %s10, 4
    %s17 = sphi 0, %s29
    %s18 = sphi 0, %s25
    %s19 = sphi 0, %s17
    %s20 = sphi 0, %s18
    %s21 = sphi 0, %s19
    %s22 = sphi 0, %s20
    %s32 = sphi 0, %s34
    %s35 = sphi 0, %s32
    %s36 = sphi 0, %s35
    %s52 = sphi 0, %s36
    %s58 = sphi 0, %s60
    %s61 = sphi 0, %s58
    %s62 = sphi 0, %s61
    %s78 = sphi 0, %s62
    %s84 = sphi 0, %s86
    %s87 = sphi 0, %s84
    %s88 = sphi 0, %s87
    %s104 = sphi 0, %s88
    %s110 = sphi 0, %s112
    %s113 = sphi 0, %s110
    %s114 = sphi 0, %s113
    %s130 = sphi 0, %s114
    %s138 = sphi 0, %s140
    %s141 = sphi 0, %s138
    %s142 = sphi 0, %s141
    %s158 = sphi 0, %s142
  $region4: #{_lambda_.5} parent=0 // loop_header_branch
    %13 = sbr.rel (%p11) target = $region8
  $region5: #{_lambda_.5} parent=0 // loop_body
    %s15 = ssub.s32 %s10, 1
    %s16 = ssub.s32 %s10, 2
    %s23 = sadd.s32 1, %s18
    %p24 = scmp.ge.s32.totalorder %s23, 1
    %s25 = scalar_select %p24, 0, %s23
    %s26 = sadd.s32 1, %s17
    %s27 = scalar_select %p24, %s26, %s17
    %p28 = scmp.ge.s32.totalorder %s27, 2
    %s29 = scalar_select %p28, 0, %s27
    %s30 = ssub.s32 %s17, %s29
    %p31 = scmp.eq.s32.totalorder %s30, 0
    %s33 = sadd.s32 %s32, 1
    %s34 = scalar_select %p31, %s32, %s33
    %p37 = pneg %p31
    %p38 = scmp.eq.s32.totalorder %s10, 1
    %p39 = por %p37, %p38
    %p40 = scmp.ne.s32.totalorder %s32, %s35
    %p41 = scmp.eq.s32.totalorder %s10, 0
    %p42 = por %p40, %p41
    %p43 = scmp.ne.s32.totalorder %s32, %s35
    %p44 = scmp.eq.s32.totalorder %s15, 1
    %p45 = por %p43, %p44
    %p46 = scmp.ne.s32.totalorder %s35, %s36
    %p47 = scmp.eq.s32.totalorder %s15, 0
    %p48 = por %p46, %p47
    %p49 = scmp.ne.s32.totalorder %s35, %s36
    %p50 = scmp.eq.s32.totalorder %s16, 1
    %p51 = por %p49, %p50
    %p53 = scmp.ne.s32.totalorder %s36, %s52
    %p54 = scmp.eq.s32.totalorder %s16, 0
    %p55 = por %p53, %p54
    %s56 = ssub.s32 %s18, %s25
    %p57 = scmp.eq.s32.totalorder %s56, 0
    %s59 = sadd.s32 %s58, 1
    %s60 = scalar_select %p57, %s58, %s59
    %p63 = pneg %p57
    %p64 = scmp.eq.s32.totalorder %s10, 1
    %p65 = por %p63, %p64
    %p66 = scmp.ne.s32.totalorder %s58, %s61
    %p67 = scmp.eq.s32.totalorder %s10, 0
    %p68 = por %p66, %p67
    %p69 = scmp.ne.s32.totalorder %s58, %s61
    %p70 = scmp.eq.s32.totalorder %s15, 1
    %p71 = por %p69, %p70
    %p72 = scmp.ne.s32.totalorder %s61, %s62
    %p73 = scmp.eq.s32.totalorder %s15, 0
    %p74 = por %p72, %p73
    %p75 = scmp.ne.s32.totalorder %s61, %s62
    %p76 = scmp.eq.s32.totalorder %s16, 1
    %p77 = por %p75, %p76
    %p79 = scmp.ne.s32.totalorder %s62, %s78
    %p80 = scmp.eq.s32.totalorder %s16, 0
    %p81 = por %p79, %p80
    %s82 = ssub.s32 %s18, %s25
    %p83 = scmp.eq.s32.totalorder %s82, 0
    %s85 = sadd.s32 %s84, 1
    %s86 = scalar_select %p83, %s84, %s85
    %p89 = pneg %p83
    %p90 = scmp.eq.s32.totalorder %s10, 1
    %p91 = por %p89, %p90
    %p92 = scmp.ne.s32.totalorder %s84, %s87
    %p93 = scmp.eq.s32.totalorder %s10, 0
    %p94 = por %p92, %p93
    %p95 = scmp.ne.s32.totalorder %s84, %s87
    %p96 = scmp.eq.s32.totalorder %s15, 1
    %p97 = por %p95, %p96
    %p98 = scmp.ne.s32.totalorder %s87, %s88
    %p99 = scmp.eq.s32.totalorder %s15, 0
    %p100 = por %p98, %p99
    %p101 = scmp.ne.s32.totalorder %s87, %s88
    %p102 = scmp.eq.s32.totalorder %s16, 1
    %p103 = por %p101, %p102
    %p105 = scmp.ne.s32.totalorder %s88, %s104
    %p106 = scmp.eq.s32.totalorder %s16, 0
    %p107 = por %p105, %p106
    %s108 = ssub.s32 %s18, %s25
    %p109 = scmp.eq.s32.totalorder %s108, 0
    %s111 = sadd.s32 %s110, 1
    %s112 = scalar_select %p109, %s110, %s111
    %p115 = pneg %p109
    %p116 = scmp.eq.s32.totalorder %s10, 1
    %p117 = por %p115, %p116
    %p118 = scmp.ne.s32.totalorder %s110, %s113
    %p119 = scmp.eq.s32.totalorder %s10, 0
    %p120 = por %p118, %p119
    %p121 = scmp.ne.s32.totalorder %s110, %s113
    %p122 = scmp.eq.s32.totalorder %s15, 1
    %p123 = por %p121, %p122
    %p124 = scmp.ne.s32.totalorder %s113, %s114
    %p125 = scmp.eq.s32.totalorder %s15, 0
    %p126 = por %p124, %p125
    %p127 = scmp.ne.s32.totalorder %s113, %s114
    %p128 = scmp.eq.s32.totalorder %s16, 1
    %p129 = por %p127, %p128
    %p131 = scmp.ne.s32.totalorder %s114, %s130
    %p132 = scmp.eq.s32.totalorder %s16, 0
    %p133 = por %p131, %p132
    %s134 = ssub.s32 %s17, %s29
    %s135 = ssub.s32 %s18, %s25
    %s136 = sor.u32 %s134, %s135
    %p137 = scmp.eq.s32.totalorder %s136, 0
    %s139 = sadd.s32 %s138, 1
    %s140 = scalar_select %p137, %s138, %s139
    %p143 = pneg %p137
    %p144 = scmp.eq.s32.totalorder %s10, 1
    %p145 = por %p143, %p144
    %p146 = scmp.ne.s32.totalorder %s138, %s141
    %p147 = scmp.eq.s32.totalorder %s10, 0
    %p148 = por %p146, %p147
    %p149 = scmp.ne.s32.totalorder %s138, %s141
    %p150 = scmp.eq.s32.totalorder %s15, 1
    %p151 = por %p149, %p150
    %p152 = scmp.ne.s32.totalorder %s141, %s142
    %p153 = scmp.eq.s32.totalorder %s15, 0
    %p154 = por %p152, %p153
    %p155 = scmp.ne.s32.totalorder %s141, %s142
    %p156 = scmp.eq.s32.totalorder %s16, 1
    %p157 = por %p155, %p156
    %p159 = scmp.ne.s32.totalorder %s142, %s158
    %p160 = scmp.eq.s32.totalorder %s16, 0
    %p161 = por %p159, %p160
    %p162 = scmp.le.s32.totalorder 1, %s10
    %p163 = scmp.lt.s32.totalorder %s10, 3
    %p164 = pnand %p162, %p163
    %p165 = pneg %p164
    // Predicated region
    $region9: #{_lambda_.5} parent=5 // pred_check
      _
    $region10: #{_lambda_.5} parent=5 // pred_check_branch
      %167 = sbr.rel (%p164) target = $region12
    $region11: #{_lambda_.5} parent=5 // pred_region
      %s168 = ssub.s32 %s10, 1
      // Predicated region
      $region13: #{_lambda_.5} parent=11 // pred_check
        %p169 = pneg %p74
      $region14: #{_lambda_.5} parent=11 // pred_check_branch
        %171 = sbr.rel (%p169) target = $region16
      $region15: #{_lambda_.5} parent=11 // pred_region
        %p172 = scmp.lt.s32.totalorder %s20, 0
        %s173 = scalar_select %p172, %s20, 0
        %s174 = smul.addr %s173, 4
        %s175 = scalar_lea.vmem %s1, %s174
      $region16: #{_lambda_.5} parent=11 // pred_fallthru
        _
      // Predicated region
      $region17: #{_lambda_.5} parent=11 // pred_check
        %p176 = pneg %p100
      $region18: #{_lambda_.5} parent=11 // pred_check_branch
        %178 = sbr.rel (%p176) target = $region20
      $region19: #{_lambda_.5} parent=11 // pred_region
        %p179 = scmp.lt.s32.totalorder %s20, 0
        %s180 = scalar_select %p179, %s20, 0
        %s181 = scalar_lea.vmem %s2, %s180
      $region20: #{_lambda_.5} parent=11 // pred_fallthru
        _
      // Predicated region
      $region21: #{_lambda_.5} parent=11 // pred_check
        %p182 = pneg %p126
      $region22: #{_lambda_.5} parent=11 // pred_check_branch
        %184 = sbr.rel (%p182) target = $region24
      $region23: #{_lambda_.5} parent=11 // pred_region
        %p185 = scmp.lt.s32.totalorder %s20, 0
        %s186 = scalar_select %p185, %s20, 0
        %s187 = scalar_lea.vmem %s3, %s186
      $region24: #{_lambda_.5} parent=11 // pred_fallthru
        _
    $region12: #{_lambda_.5} parent=5 // pred_fallthru
      _
    %p188 = scmp.lt.s32.totalorder %s10, 2
    // Predicated region
    $region25: #{_lambda_.5} parent=5 // pred_check
      %p189 = pneg %p188
    $region26: #{_lambda_.5} parent=5 // pred_check_branch
      %191 = sbr.rel (%p189) target = $region28
    $region27: #{_lambda_.5} parent=5 // pred_region
      // Predicated region
      $region29: #{_lambda_.5} parent=27 // pred_check
        %p192 = pneg %p42
      $region30: #{_lambda_.5} parent=27 // pred_check_branch
        %194 = sbr.rel (%p192) target = $region32
      $region31: #{_lambda_.5} parent=27 // pred_region
        %s195 = smul.u32 64, %s17
        %p196 = scmp.lt.s32.totalorder %s195, 127
        %s197 = scalar_select %p196, %s195, 127
        %s198 = smul.addr %s197, 4
        %s199 = scalar_lea.vmem %s0, %s198
        %s200 = smul.u32 64, %s17
      $region32: #{_lambda_.5} parent=27 // pred_fallthru
        _
    $region28: #{_lambda_.5} parent=5 // pred_fallthru
      _
    %p201 = scmp.le.s32.totalorder 1, %s10
    %p202 = scmp.lt.s32.totalorder %s10, 3
    %p203 = pnand %p201, %p202
    %p204 = pneg %p203
    // Predicated region
    $region33: #{_lambda_.5} parent=5 // pred_check
      _
    $region34: #{_lambda_.5} parent=5 // pred_check_branch
      %206 = sbr.rel (%p203) target = $region36
    $region35: #{_lambda_.5} parent=5 // pred_region
      %s207 = ssub.s32 %s10, 1
      %s208 = smul.u32 64, %s19
      %p209 = scmp.lt.s32.totalorder %s208, 127
      %s210 = scalar_select %p209, %s208, 127
      %s211 = smul.addr %s210, 4
      %s212 = scalar_lea.vmem %s0, %s211
      %p213 = pneg %p48
      %p214 = pneg %p45
      %p215 = scmp.lt.s32.totalorder %s20, 0
      %s216 = scalar_select %p215, %s20, 0
      %s217 = smul.addr %s216, 4
      %s218 = scalar_lea.vmem %s1, %s217
      %p219 = pneg %p74
      %p220 = pneg %p71
      %p221 = scmp.lt.s32.totalorder %s20, 0
      %s222 = scalar_select %p221, %s20, 0
      %s223 = scalar_lea.vmem %s2, %s222
      %p224 = pneg %p100
      %p225 = pneg %p97
      %p226 = scmp.lt.s32.totalorder %s20, 0
      %s227 = scalar_select %p226, %s20, 0
      %s228 = scalar_lea.vmem %s3, %s227
      %p229 = pneg %p126
      %p230 = pneg %p123
      %p231 = pneg %p154
      %p232 = pneg %p151
      %s233 = smul.u32 64, %s19
      %p234 = scmp.lt.s32.totalorder %s233, 127
      %s235 = scalar_select %p234, %s233, 127
      %p236 = scmp.lt.s32.totalorder %s20, 0
      %s237 = scalar_select %p236, %s20, 0
      %s238 = sadd.s32 %s237, %s235
      %s239 = smul.addr %s238, 4
      %s240 = scalar_lea.vmem %s4, %s239
      %s241 = smul.u32 64, %s19
      %p242 = scmp.lt.s32.totalorder %s241, 127
      %s243 = scalar_select %p242, %s241, 127
      %s244 = smul.addr %s243, 4
      %s245 = scalar_lea.vmem %s0, %s244
      %s246 = smul.u32 64, %s19
      %p247 = scmp.lt.s32.totalorder %s20, 0
      %s248 = scalar_select %p247, %s20, 0
      %s249 = smul.addr %s248, 4
      %s250 = scalar_lea.vmem %s1, %s249
      %p251 = scmp.lt.s32.totalorder %s20, 0
      %s252 = scalar_select %p251, %s20, 0
      %s253 = scalar_lea.vmem %s2, %s252
      %p254 = scmp.lt.s32.totalorder %s20, 0
      %s255 = scalar_select %p254, %s20, 0
      %s256 = scalar_lea.vmem %s3, %s255
      %s257 = smul.u32 64, %s19
      %p258 = scmp.lt.s32.totalorder %s257, 127
      %s259 = scalar_select %p258, %s257, 127
      %p260 = scmp.lt.s32.totalorder %s20, 0
      %s261 = scalar_select %p260, %s20, 0
      %s262 = sadd.s32 %s261, %s259
      %s263 = smul.addr %s262, 4
      %s264 = scalar_lea.vmem %s4, %s263
      %s265 = smul.u32 64, %s19
      %v267 = vld [vmem:[%s245] sm:$0xf]
      %v268 = vld [vmem:[%s245 + $0x4] sm:$0xf]
      %v269 = vld [vmem:[%s245 + $0x8] sm:$0xf]
      %v270 = vld [vmem:[%s245 + $0xc] sm:$0xf]
      %v271 = vld [vmem:[%s245 + $0x10] sm:$0xf]
      %v272 = vld [vmem:[%s245 + $0x14] sm:$0xf]
      %v273 = vld [vmem:[%s245 + $0x18] sm:$0xf]
      %v274 = vld [vmem:[%s245 + $0x1c] sm:$0xf]
      %v275 = vld [vmem:[%s245 + $0x20] sm:$0xf]
      %v276 = vld [vmem:[%s245 + $0x24] sm:$0xf]
      %v277 = vld [vmem:[%s245 + $0x28] sm:$0xf]
      %v278 = vld [vmem:[%s245 + $0x2c] sm:$0xf]
      %v279 = vld [vmem:[%s245 + $0x30] sm:$0xf]
      %v280 = vld [vmem:[%s245 + $0x34] sm:$0xf]
      %v281 = vld [vmem:[%s245 + $0x38] sm:$0xf]
      %v282 = vld [vmem:[%s245 + $0x3c] sm:$0xf]
      %v283 = vld [vmem:[%s245 + $0x40] sm:$0xf]
      %v284 = vld [vmem:[%s245 + $0x44] sm:$0xf]
      %v285 = vld [vmem:[%s245 + $0x48] sm:$0xf]
      %v286 = vld [vmem:[%s245 + $0x4c] sm:$0xf]
      %v287 = vld [vmem:[%s245 + $0x50] sm:$0xf]
      %v288 = vld [vmem:[%s245 + $0x54] sm:$0xf]
      %v289 = vld [vmem:[%s245 + $0x58] sm:$0xf]
      %v290 = vld [vmem:[%s245 + $0x5c] sm:$0xf]
      %v291 = vld [vmem:[%s245 + $0x60] sm:$0xf]
      %v292 = vld [vmem:[%s245 + $0x64] sm:$0xf]
      %v293 = vld [vmem:[%s245 + $0x68] sm:$0xf]
      %v294 = vld [vmem:[%s245 + $0x6c] sm:$0xf]
      %v295 = vld [vmem:[%s245 + $0x70] sm:$0xf]
      %v296 = vld [vmem:[%s245 + $0x74] sm:$0xf]
      %v297 = vld [vmem:[%s245 + $0x78] sm:$0xf]
      %v298 = vld [vmem:[%s245 + $0x7c] sm:$0xf]
      %v299 = vld [vmem:[%s245 + $0x80] sm:$0xf]
      %v300 = vld [vmem:[%s245 + $0x84] sm:$0xf]
      %v301 = vld [vmem:[%s245 + $0x88] sm:$0xf]
      %v302 = vld [vmem:[%s245 + $0x8c] sm:$0xf]
      %v303 = vld [vmem:[%s245 + $0x90] sm:$0xf]
      %v304 = vld [vmem:[%s245 + $0x94] sm:$0xf]
      %v305 = vld [vmem:[%s245 + $0x98] sm:$0xf]
      %v306 = vld [vmem:[%s245 + $0x9c] sm:$0xf]
      %v307 = vld [vmem:[%s245 + $0xa0] sm:$0xf]
      %v308 = vld [vmem:[%s245 + $0xa4] sm:$0xf]
      %v309 = vld [vmem:[%s245 + $0xa8] sm:$0xf]
      %v310 = vld [vmem:[%s245 + $0xac] sm:$0xf]
      %v311 = vld [vmem:[%s245 + $0xb0] sm:$0xf]
      %v312 = vld [vmem:[%s245 + $0xb4] sm:$0xf]
      %v313 = vld [vmem:[%s245 + $0xb8] sm:$0xf]
      %v314 = vld [vmem:[%s245 + $0xbc] sm:$0xf]
      %v315 = vld [vmem:[%s245 + $0xc0] sm:$0xf]
      %v316 = vld [vmem:[%s245 + $0xc4] sm:$0xf]
      %v317 = vld [vmem:[%s245 + $0xc8] sm:$0xf]
      %v318 = vld [vmem:[%s245 + $0xcc] sm:$0xf]
      %v319 = vld [vmem:[%s245 + $0xd0] sm:$0xf]
      %v320 = vld [vmem:[%s245 + $0xd4] sm:$0xf]
      %v321 = vld [vmem:[%s245 + $0xd8] sm:$0xf]
      %v322 = vld [vmem:[%s245 + $0xdc] sm:$0xf]
      %v323 = vld [vmem:[%s245 + $0xe0] sm:$0xf]
      %v324 = vld [vmem:[%s245 + $0xe4] sm:$0xf]
      %v325 = vld [vmem:[%s245 + $0xe8] sm:$0xf]
      %v326 = vld [vmem:[%s245 + $0xec] sm:$0xf]
      %v327 = vld [vmem:[%s245 + $0xf0] sm:$0xf]
      %v328 = vld [vmem:[%s245 + $0xf4] sm:$0xf]
      %v329 = vld [vmem:[%s245 + $0xf8] sm:$0xf]
      %v330 = vld [vmem:[%s245 + $0xfc] sm:$0xf]
      %v331 = vld [vmem:[%s250] sm:$0xf]
      %v332 = vld [vmem:[%s250 + $0x4] sm:$0xf]
      %v333 = vld [vmem:[%s250 + $0x8] sm:$0xf]
      %v334 = vld [vmem:[%s250 + $0xc] sm:$0xf]
      %v335 = vld [vmem:[%s250 + $0x10] sm:$0xf]
      %v336 = vld [vmem:[%s250 + $0x14] sm:$0xf]
      %v337 = vld [vmem:[%s250 + $0x18] sm:$0xf]
      %v338 = vld [vmem:[%s250 + $0x1c] sm:$0xf]
      %v339 = vld [vmem:[%s250 + $0x20] sm:$0xf]
      %v340 = vld [vmem:[%s250 + $0x24] sm:$0xf]
      %v341 = vld [vmem:[%s250 + $0x28] sm:$0xf]
      %v342 = vld [vmem:[%s250 + $0x2c] sm:$0xf]
      %v343 = vld [vmem:[%s250 + $0x30] sm:$0xf]
      %v344 = vld [vmem:[%s250 + $0x34] sm:$0xf]
      %v345 = vld [vmem:[%s250 + $0x38] sm:$0xf]
      %v346 = vld [vmem:[%s250 + $0x3c] sm:$0xf]
      %v411 = vunpack.c.l.b16 %v267
      %v412 = vunpack.c.l.b16 %v268
      %v413 = vunpack.c.l.b16 %v269
      %v414 = vunpack.c.l.b16 %v270
      %v415 = vunpack.c.l.b16 %v271
      %v416 = vunpack.c.l.b16 %v272
      %v417 = vunpack.c.l.b16 %v273
      %v418 = vunpack.c.l.b16 %v274
      %v419 = vunpack.c.l.b16 %v275
      %v420 = vunpack.c.l.b16 %v276
      %v421 = vunpack.c.l.b16 %v277
      %v422 = vunpack.c.l.b16 %v278
      %v423 = vunpack.c.l.b16 %v279
      %v424 = vunpack.c.l.b16 %v280
      %v425 = vunpack.c.l.b16 %v281
      %v426 = vunpack.c.l.b16 %v282
      %v427 = vunpack.c.l.b16 %v283
      %v428 = vunpack.c.l.b16 %v284
      %v429 = vunpack.c.l.b16 %v285
      %v430 = vunpack.c.l.b16 %v286
      %v431 = vunpack.c.l.b16 %v287
      %v432 = vunpack.c.l.b16 %v288
      %v433 = vunpack.c.l.b16 %v289
      %v434 = vunpack.c.l.b16 %v290
      %v435 = vunpack.c.l.b16 %v291
      %v436 = vunpack.c.l.b16 %v292
      %v437 = vunpack.c.l.b16 %v293
      %v438 = vunpack.c.l.b16 %v294
      %v439 = vunpack.c.l.b16 %v295
      %v440 = vunpack.c.l.b16 %v296
      %v441 = vunpack.c.l.b16 %v297
      %v442 = vunpack.c.l.b16 %v298
      %v443 = vunpack.c.l.b16 %v299
      %v444 = vunpack.c.l.b16 %v300
      %v445 = vunpack.c.l.b16 %v301
      %v446 = vunpack.c.l.b16 %v302
      %v447 = vunpack.c.l.b16 %v303
      %v448 = vunpack.c.l.b16 %v304
      %v449 = vunpack.c.l.b16 %v305
      %v450 = vunpack.c.l.b16 %v306
      %v451 = vunpack.c.l.b16 %v307
      %v452 = vunpack.c.l.b16 %v308
      %v453 = vunpack.c.l.b16 %v309
      %v454 = vunpack.c.l.b16 %v310
      %v455 = vunpack.c.l.b16 %v311
      %v456 = vunpack.c.l.b16 %v312
      %v457 = vunpack.c.l.b16 %v313
      %v458 = vunpack.c.l.b16 %v314
      %v459 = vunpack.c.l.b16 %v315
      %v460 = vunpack.c.l.b16 %v316
      %v461 = vunpack.c.l.b16 %v317
      %v462 = vunpack.c.l.b16 %v318
      %v463 = vunpack.c.l.b16 %v319
      %v464 = vunpack.c.l.b16 %v320
      %v465 = vunpack.c.l.b16 %v321
      %v466 = vunpack.c.l.b16 %v322
      %v467 = vunpack.c.l.b16 %v323
      %v468 = vunpack.c.l.b16 %v324
      %v469 = vunpack.c.l.b16 %v325
      %v470 = vunpack.c.l.b16 %v326
      %v471 = vunpack.c.l.b16 %v327
      %v472 = vunpack.c.l.b16 %v328
      %v473 = vunpack.c.l.b16 %v329
      %v474 = vunpack.c.l.b16 %v330
      %v475 = vpack.c.b16 %v412, %v411
      %v476 = vpack.c.b16 %v414, %v413
      %v477 = vpack.c.b16 %v416, %v415
      %v478 = vpack.c.b16 %v418, %v417
      %v479 = vpack.c.b16 %v420, %v419
      %v480 = vpack.c.b16 %v422, %v421
      %v481 = vpack.c.b16 %v424, %v423
      %v482 = vpack.c.b16 %v426, %v425
      %v483 = vpack.c.b16 %v428, %v427
      %v484 = vpack.c.b16 %v430, %v429
      %v485 = vpack.c.b16 %v432, %v431
      %v486 = vpack.c.b16 %v434, %v433
      %v487 = vpack.c.b16 %v436, %v435
      %v488 = vpack.c.b16 %v438, %v437
      %v489 = vpack.c.b16 %v440, %v439
      %v490 = vpack.c.b16 %v442, %v441
      %v491 = vpack.c.b16 %v444, %v443
      %v492 = vpack.c.b16 %v446, %v445
      %v493 = vpack.c.b16 %v448, %v447
      %v494 = vpack.c.b16 %v450, %v449
      %v495 = vpack.c.b16 %v452, %v451
      %v496 = vpack.c.b16 %v454, %v453
      %v497 = vpack.c.b16 %v456, %v455
      %v498 = vpack.c.b16 %v458, %v457
      %v499 = vpack.c.b16 %v460, %v459
      %v500 = vpack.c.b16 %v462, %v461
      %v501 = vpack.c.b16 %v464, %v463
      %v502 = vpack.c.b16 %v466, %v465
      %v503 = vpack.c.b16 %v468, %v467
      %v504 = vpack.c.b16 %v470, %v469
      %v505 = vpack.c.b16 %v472, %v471
      %v506 = vpack.c.b16 %v474, %v473
      %v555 = vunpack.c.l.b16 %v331
      %v556 = vunpack.c.l.b16 %v332
      %v557 = vunpack.c.l.b16 %v333
      %v558 = vunpack.c.l.b16 %v334
      %v559 = vunpack.c.l.b16 %v335
      %v560 = vunpack.c.l.b16 %v336
      %v561 = vunpack.c.l.b16 %v337
      %v562 = vunpack.c.l.b16 %v338
      %v563 = vunpack.c.l.b16 %v339
      %v564 = vunpack.c.l.b16 %v340
      %v565 = vunpack.c.l.b16 %v341
      %v566 = vunpack.c.l.b16 %v342
      %v567 = vunpack.c.l.b16 %v343
      %v568 = vunpack.c.l.b16 %v344
      %v569 = vunpack.c.l.b16 %v345
      %v570 = vunpack.c.l.b16 %v346
      %v571 = vpack.c.b16 %v556, %v555
      %v572 = vpack.c.b16 %v558, %v557
      %v573 = vpack.c.b16 %v560, %v559
      %v574 = vpack.c.b16 %v562, %v561
      %v575 = vpack.c.b16 %v564, %v563
      %v576 = vpack.c.b16 %v566, %v565
      %v577 = vpack.c.b16 %v568, %v567
      %v578 = vpack.c.b16 %v570, %v569
      %587 = vmatprep.subr.bf16.mxu0 0
      %588 = vmatpush1.bf16.msra.mxu0 %v571
      %589 = vmatprep.subr.bf16.mxu0 0
      %590 = vmatpush1.bf16.msra.mxu0 %v572
      %591 = vmatprep.subr.bf16.mxu0 0
      %592 = vmatpush1.bf16.msra.mxu0 %v573
      %593 = vmatprep.subr.bf16.mxu0 0
      %594 = vmatpush1.bf16.msra.mxu0 %v574
      %595 = vmatprep.subr.bf16.mxu0 0
      %596 = vmatpush1.bf16.msra.mxu0 %v575
      %597 = vmatprep.subr.bf16.mxu0 0
      %598 = vmatpush1.bf16.msra.mxu0 %v576
      %599 = vmatprep.subr.bf16.mxu0 0
      %600 = vmatpush1.bf16.msra.mxu0 %v577
      %601 = vmatprep.subr.bf16.mxu0 0
      %602 = vmatpush1.bf16.msra.mxu0 %v578
      %603 = vmatprep.subr.bf16.mxu0 0
      %604 = vmatpush1.bf16.msra.mxu0 0
      %605 = vmatprep.subr.bf16.mxu0 0
      %606 = vmatpush1.bf16.msra.mxu0 0
      %607 = vmatprep.subr.bf16.mxu0 0
      %608 = vmatpush1.bf16.msra.mxu0 0
      %609 = vmatprep.subr.bf16.mxu0 0
      %610 = vmatpush1.bf16.msra.mxu0 0
      %611 = vmatprep.subr.bf16.mxu0 0
      %612 = vmatpush1.bf16.msra.mxu0 0
      %613 = vmatprep.subr.bf16.mxu0 0
      %614 = vmatpush1.bf16.msra.mxu0 0
      %615 = vmatprep.subr.bf16.mxu0 0
      %616 = vmatpush1.bf16.msra.mxu0 0
      %617 = vmatprep.subr.bf16.mxu0 0
      %618 = vmatpush1.bf16.msra.mxu0 0
      %619 = vmatprep.mubr.bf16.mxu0 0
      %620 = vmatmul.mubr.bf16.gmra.mrb[0].mxu0 %v475
      %v621 = vpop.f32.mrb[0].mxu0
      %v622 = vadd.f32 0.0, %v621
      %v623 = vpop.f32.mrb[0].mxu0
      %v624 = vpop.f32.mrb[0].mxu0
      %v625 = vadd.f32 0.0, %v624
      %v626 = vpop.f32.mrb[0].mxu0
      %627 = vmatprep.mubr.bf16.mxu0 0
      %628 = vmatmul.mubr.bf16.gmra.mrb[0].mxu0 %v476
      %v629 = vpop.f32.mrb[0].mxu0
      %v630 = vadd.f32 0.0, %v629
      %v631 = vpop.f32.mrb[0].mxu0
      %v632 = vpop.f32.mrb[0].mxu0
      %v633 = vadd.f32 0.0, %v632
      %v634 = vpop.f32.mrb[0].mxu0
      %635 = vmatprep.mubr.bf16.mxu0 0
      %636 = vmatmul.mubr.bf16.gmra.mrb[0].mxu0 %v477
      %v637 = vpop.f32.mrb[0].mxu0
      %v638 = vadd.f32 0.0, %v637
      %v639 = vpop.f32.mrb[0].mxu0
      %v640 = vpop.f32.mrb[0].mxu0
      %v641 = vadd.f32 0.0, %v640
      %v642 = vpop.f32.mrb[0].mxu0
      %643 = vmatprep.mubr.bf16.mxu0 0
      %644 = vmatmul.mubr.bf16.gmra.mrb[0].mxu0 %v478
      %v645 = vpop.f32.mrb[0].mxu0
      %v646 = vadd.f32 0.0, %v645
      %v647 = vpop.f32.mrb[0].mxu0
      %v648 = vpop.f32.mrb[0].mxu0
      %v649 = vadd.f32 0.0, %v648
      %v650 = vpop.f32.mrb[0].mxu0
      %651 = vmatprep.mubr.bf16.mxu0 0
      %652 = vmatmul.mubr.bf16.gmra.mrb[0].mxu0 %v479
      %v653 = vpop.f32.mrb[0].mxu0
      %v654 = vadd.f32 0.0, %v653
      %v655 = vpop.f32.mrb[0].mxu0
      %v656 = vpop.f32.mrb[0].mxu0
      %v657 = vadd.f32 0.0, %v656
      %v658 = vpop.f32.mrb[0].mxu0
      %659 = vmatprep.mubr.bf16.mxu0 0
      %660 = vmatmul.mubr.bf16.gmra.mrb[0].mxu0 %v480
      %v661 = vpop.f32.mrb[0].mxu0
      %v662 = vadd.f32 0.0, %v661
      %v663 = vpop.f32.mrb[0].mxu0
      %v664 = vpop.f32.mrb[0].mxu0
      %v665 = vadd.f32 0.0, %v664
      %v666 = vpop.f32.mrb[0].mxu0
      %667 = vmatprep.mubr.bf16.mxu0 0
      %668 = vmatmul.mubr.bf16.gmra.mrb[0].mxu0 %v481
      %v669 = vpop.f32.mrb[0].mxu0
      %v670 = vadd.f32 0.0, %v669
      %v671 = vpop.f32.mrb[0].mxu0
      %v672 = vpop.f32.mrb[0].mxu0
      %v673 = vadd.f32 0.0, %v672
      %v674 = vpop.f32.mrb[0].mxu0
      %675 = vmatprep.mubr.bf16.mxu0 0
      %676 = vmatmul.mubr.bf16.gmra.mrb[0].mxu0 %v482
      %v677 = vpop.f32.mrb[0].mxu0
      %v678 = vadd.f32 0.0, %v677
      %v679 = vpop.f32.mrb[0].mxu0
      %v680 = vpop.f32.mrb[0].mxu0
      %v681 = vadd.f32 0.0, %v680
      %v682 = vpop.f32.mrb[0].mxu0
      %683 = vmatprep.mubr.bf16.mxu0 0
      %684 = vmatmul.mubr.bf16.gmra.mrb[0].mxu0 %v483
      %v685 = vpop.f32.mrb[0].mxu0
      %v686 = vadd.f32 0.0, %v685
      %v687 = vpop.f32.mrb[0].mxu0
      %v688 = vpop.f32.mrb[0].mxu0
      %v689 = vadd.f32 0.0, %v688
      %v690 = vpop.f32.mrb[0].mxu0
      %691 = vmatprep.mubr.bf16.mxu0 0
      %692 = vmatmul.mubr.bf16.gmra.mrb[0].mxu0 %v484
      %v693 = vpop.f32.mrb[0].mxu0
      %v694 = vadd.f32 0.0, %v693
      %v695 = vpop.f32.mrb[0].mxu0
      %v696 = vpop.f32.mrb[0].mxu0
      %v697 = vadd.f32 0.0, %v696
      %v698 = vpop.f32.mrb[0].mxu0
      %699 = vmatprep.mubr.bf16.mxu0 0
      %700 = vmatmul.mubr.bf16.gmra.mrb[0].mxu0 %v485
      %v701 = vpop.f32.mrb[0].mxu0
      %v702 = vadd.f32 0.0, %v701
      %v703 = vpop.f32.mrb[0].mxu0
      %v704 = vpop.f32.mrb[0].mxu0
      %v705 = vadd.f32 0.0, %v704
      %v706 = vpop.f32.mrb[0].mxu0
      %707 = vmatprep.mubr.bf16.mxu0 0
      %708 = vmatmul.mubr.bf16.gmra.mrb[0].mxu0 %v486
      %v709 = vpop.f32.mrb[0].mxu0
      %v710 = vadd.f32 0.0, %v709
      %v711 = vpop.f32.mrb[0].mxu0
      %v712 = vpop.f32.mrb[0].mxu0
      %v713 = vadd.f32 0.0, %v712
      %v714 = vpop.f32.mrb[0].mxu0
      %715 = vmatprep.mubr.bf16.mxu0 0
      %716 = vmatmul.mubr.bf16.gmra.mrb[0].mxu0 %v487
      %v717 = vpop.f32.mrb[0].mxu0
      %v718 = vadd.f32 0.0, %v717
      %v719 = vpop.f32.mrb[0].mxu0
      %v720 = vpop.f32.mrb[0].mxu0
      %v721 = vadd.f32 0.0, %v720
      %v722 = vpop.f32.mrb[0].mxu0
      %723 = vmatprep.mubr.bf16.mxu0 0
      %724 = vmatmul.mubr.bf16.gmra.mrb[0].mxu0 %v488
      %v725 = vpop.f32.mrb[0].mxu0
      %v726 = vadd.f32 0.0, %v725
      %v727 = vpop.f32.mrb[0].mxu0
      %v728 = vpop.f32.mrb[0].mxu0
      %v729 = vadd.f32 0.0, %v728
      %v730 = vpop.f32.mrb[0].mxu0
      %731 = vmatprep.mubr.bf16.mxu0 0
      %732 = vmatmul.mubr.bf16.gmra.mrb[0].mxu0 %v489
      %v733 = vpop.f32.mrb[0].mxu0
      %v734 = vadd.f32 0.0, %v733
      %v735 = vpop.f32.mrb[0].mxu0
      %v736 = vpop.f32.mrb[0].mxu0
      %v737 = vadd.f32 0.0, %v736
      %v738 = vpop.f32.mrb[0].mxu0
      %739 = vmatprep.mubr.bf16.mxu0 0
      %740 = vmatmul.mubr.bf16.gmra.mrb[0].mxu0 %v490
      %v741 = vpop.f32.mrb[0].mxu0
      %v742 = vadd.f32 0.0, %v741
      %v743 = vpop.f32.mrb[0].mxu0
      %v744 = vpop.f32.mrb[0].mxu0
      %v745 = vadd.f32 0.0, %v744
      %v746 = vpop.f32.mrb[0].mxu0
      %747 = vmatprep.mubr.bf16.mxu0 0
      %748 = vmatmul.mubr.bf16.gmra.mrb[0].mxu0 %v491
      %v749 = vpop.f32.mrb[0].mxu0
      %v750 = vadd.f32 0.0, %v749
      %v751 = vpop.f32.mrb[0].mxu0
      %v752 = vpop.f32.mrb[0].mxu0
      %v753 = vadd.f32 0.0, %v752
      %v754 = vpop.f32.mrb[0].mxu0
      %755 = vmatprep.mubr.bf16.mxu0 0
      %756 = vmatmul.mubr.bf16.gmra.mrb[0].mxu0 %v492
      %v757 = vpop.f32.mrb[0].mxu0
      %v758 = vadd.f32 0.0, %v757
      %v759 = vpop.f32.mrb[0].mxu0
      %v760 = vpop.f32.mrb[0].mxu0
      %v761 = vadd.f32 0.0, %v760
      %v762 = vpop.f32.mrb[0].mxu0
      %763 = vmatprep.mubr.bf16.mxu0 0
      %764 = vmatmul.mubr.bf16.gmra.mrb[0].mxu0 %v493
      %v765 = vpop.f32.mrb[0].mxu0
      %v766 = vadd.f32 0.0, %v765
      %v767 = vpop.f32.mrb[0].mxu0
      %v768 = vpop.f32.mrb[0].mxu0
      %v769 = vadd.f32 0.0, %v768
      %v770 = vpop.f32.mrb[0].mxu0
      %771 = vmatprep.mubr.bf16.mxu0 0
      %772 = vmatmul.mubr.bf16.gmra.mrb[0].mxu0 %v494
      %v773 = vpop.f32.mrb[0].mxu0
      %v774 = vadd.f32 0.0, %v773
      %v775 = vpop.f32.mrb[0].mxu0
      %v776 = vpop.f32.mrb[0].mxu0
      %v777 = vadd.f32 0.0, %v776
      %v778 = vpop.f32.mrb[0].mxu0
      %779 = vmatprep.mubr.bf16.mxu0 0
      %780 = vmatmul.mubr.bf16.gmra.mrb[0].mxu0 %v495
      %v781 = vpop.f32.mrb[0].mxu0
      %v782 = vadd.f32 0.0, %v781
      %v783 = vpop.f32.mrb[0].mxu0
      %v784 = vpop.f32.mrb[0].mxu0
      %v785 = vadd.f32 0.0, %v784
      %v786 = vpop.f32.mrb[0].mxu0
      %787 = vmatprep.mubr.bf16.mxu0 0
      %788 = vmatmul.mubr.bf16.gmra.mrb[0].mxu0 %v496
      %v789 = vpop.f32.mrb[0].mxu0
      %v790 = vadd.f32 0.0, %v789
      %v791 = vpop.f32.mrb[0].mxu0
      %v792 = vpop.f32.mrb[0].mxu0
      %v793 = vadd.f32 0.0, %v792
      %v794 = vpop.f32.mrb[0].mxu0
      %795 = vmatprep.mubr.bf16.mxu0 0
      %796 = vmatmul.mubr.bf16.gmra.mrb[0].mxu0 %v497
      %v797 = vpop.f32.mrb[0].mxu0
      %v798 = vadd.f32 0.0, %v797
      %v799 = vpop.f32.mrb[0].mxu0
      %v800 = vpop.f32.mrb[0].mxu0
      %v801 = vadd.f32 0.0, %v800
      %v802 = vpop.f32.mrb[0].mxu0
      %803 = vmatprep.mubr.bf16.mxu0 0
      %804 = vmatmul.mubr.bf16.gmra.mrb[0].mxu0 %v498
      %v805 = vpop.f32.mrb[0].mxu0
      %v806 = vadd.f32 0.0, %v805
      %v807 = vpop.f32.mrb[0].mxu0
      %v808 = vpop.f32.mrb[0].mxu0
      %v809 = vadd.f32 0.0, %v808
      %v810 = vpop.f32.mrb[0].mxu0
      %811 = vmatprep.mubr.bf16.mxu0 0
      %812 = vmatmul.mubr.bf16.gmra.mrb[0].mxu0 %v499
      %v813 = vpop.f32.mrb[0].mxu0
      %v814 = vadd.f32 0.0, %v813
      %v815 = vpop.f32.mrb[0].mxu0
      %v816 = vpop.f32.mrb[0].mxu0
      %v817 = vadd.f32 0.0, %v816
      %v818 = vpop.f32.mrb[0].mxu0
      %819 = vmatprep.mubr.bf16.mxu0 0
      %820 = vmatmul.mubr.bf16.gmra.mrb[0].mxu0 %v500
      %v821 = vpop.f32.mrb[0].mxu0
      %v822 = vadd.f32 0.0, %v821
      %v823 = vpop.f32.mrb[0].mxu0
      %v824 = vpop.f32.mrb[0].mxu0
      %v825 = vadd.f32 0.0, %v824
      %v826 = vpop.f32.mrb[0].mxu0
      %827 = vmatprep.mubr.bf16.mxu0 0
      %828 = vmatmul.mubr.bf16.gmra.mrb[0].mxu0 %v501
      %v829 = vpop.f32.mrb[0].mxu0
      %v830 = vadd.f32 0.0, %v829
      %v831 = vpop.f32.mrb[0].mxu0
      %v832 = vpop.f32.mrb[0].mxu0
      %v833 = vadd.f32 0.0, %v832
      %v834 = vpop.f32.mrb[0].mxu0
      %835 = vmatprep.mubr.bf16.mxu0 0
      %836 = vmatmul.mubr.bf16.gmra.mrb[0].mxu0 %v502
      %v837 = vpop.f32.mrb[0].mxu0
      %v838 = vadd.f32 0.0, %v837
      %v839 = vpop.f32.mrb[0].mxu0
      %v840 = vpop.f32.mrb[0].mxu0
      %v841 = vadd.f32 0.0, %v840
      %v842 = vpop.f32.mrb[0].mxu0
      %843 = vmatprep.mubr.bf16.mxu0 0
      %844 = vmatmul.mubr.bf16.gmra.mrb[0].mxu0 %v503
      %v845 = vpop.f32.mrb[0].mxu0
      %v846 = vadd.f32 0.0, %v845
      %v847 = vpop.f32.mrb[0].mxu0
      %v848 = vpop.f32.mrb[0].mxu0
      %v849 = vadd.f32 0.0, %v848
      %v850 = vpop.f32.mrb[0].mxu0
      %851 = vmatprep.mubr.bf16.mxu0 0
      %852 = vmatmul.mubr.bf16.gmra.mrb[0].mxu0 %v504
      %v853 = vpop.f32.mrb[0].mxu0
      %v854 = vadd.f32 0.0, %v853
      %v855 = vpop.f32.mrb[0].mxu0
      %v856 = vpop.f32.mrb[0].mxu0
      %v857 = vadd.f32 0.0, %v856
      %v858 = vpop.f32.mrb[0].mxu0
      %859 = vmatprep.mubr.bf16.mxu0 0
      %860 = vmatmul.mubr.bf16.gmra.mrb[0].mxu0 %v505
      %v861 = vpop.f32.mrb[0].mxu0
      %v862 = vadd.f32 0.0, %v861
      %v863 = vpop.f32.mrb[0].mxu0
      %v864 = vpop.f32.mrb[0].mxu0
      %v865 = vadd.f32 0.0, %v864
      %v866 = vpop.f32.mrb[0].mxu0
      %867 = vmatprep.mubr.bf16.mxu0 0
      %868 = vmatmul.mubr.bf16.gmra.mrb[0].mxu0 %v506
      %v869 = vpop.f32.mrb[0].mxu0
      %v870 = vadd.f32 0.0, %v869
      %v871 = vpop.f32.mrb[0].mxu0
      %v872 = vpop.f32.mrb[0].mxu0
      %v873 = vadd.f32 0.0, %v872
      %v874 = vpop.f32.mrb[0].mxu0
      %875 = vdwg.mxu0
      %v876 = vld [vmem:[%s253] sm:$0x1]
      %v878 = vlaneseq
      %v879 = vshrl.u32 %v878, 7
      %v880 = vsub.s32 0, %v879
      %v881 = vrot.slane %v876, %v880
      %v883 = vmul.f32 %v622, %v881
      %v884 = vmul.f32 %v625, %v881
      %v885 = vmul.f32 %v630, %v881
      %v886 = vmul.f32 %v633, %v881
      %v887 = vmul.f32 %v638, %v881
      %v888 = vmul.f32 %v641, %v881
      %v889 = vmul.f32 %v646, %v881
      %v890 = vmul.f32 %v649, %v881
      %v891 = vmul.f32 %v654, %v881
      %v892 = vmul.f32 %v657, %v881
      %v893 = vmul.f32 %v662, %v881
      %v894 = vmul.f32 %v665, %v881
      %v895 = vmul.f32 %v670, %v881
      %v896 = vmul.f32 %v673, %v881
      %v897 = vmul.f32 %v678, %v881
      %v898 = vmul.f32 %v681, %v881
      %v899 = vmul.f32 %v686, %v881
      %v900 = vmul.f32 %v689, %v881
      %v901 = vmul.f32 %v694, %v881
      %v902 = vmul.f32 %v697, %v881
      %v903 = vmul.f32 %v702, %v881
      %v904 = vmul.f32 %v705, %v881
      %v905 = vmul.f32 %v710, %v881
      %v906 = vmul.f32 %v713, %v881
      %v907 = vmul.f32 %v718, %v881
      %v908 = vmul.f32 %v721, %v881
      %v909 = vmul.f32 %v726, %v881
      %v910 = vmul.f32 %v729, %v881
      %v911 = vmul.f32 %v734, %v881
      %v912 = vmul.f32 %v737, %v881
      %v913 = vmul.f32 %v742, %v881
      %v914 = vmul.f32 %v745, %v881
      %v915 = vmul.f32 %v750, %v881
      %v916 = vmul.f32 %v753, %v881
      %v917 = vmul.f32 %v758, %v881
      %v918 = vmul.f32 %v761, %v881
      %v919 = vmul.f32 %v766, %v881
      %v920 = vmul.f32 %v769, %v881
      %v921 = vmul.f32 %v774, %v881
      %v922 = vmul.f32 %v777, %v881
      %v923 = vmul.f32 %v782, %v881
      %v924 = vmul.f32 %v785, %v881
      %v925 = vmul.f32 %v790, %v881
      %v926 = vmul.f32 %v793, %v881
      %v927 = vmul.f32 %v798, %v881
      %v928 = vmul.f32 %v801, %v881
      %v929 = vmul.f32 %v806, %v881
      %v930 = vmul.f32 %v809, %v881
      %v931 = vmul.f32 %v814, %v881
      %v932 = vmul.f32 %v817, %v881
      %v933 = vmul.f32 %v822, %v881
      %v934 = vmul.f32 %v825, %v881
      %v935 = vmul.f32 %v830, %v881
      %v936 = vmul.f32 %v833, %v881
      %v937 = vmul.f32 %v838, %v881
      %v938 = vmul.f32 %v841, %v881
      %v939 = vmul.f32 %v846, %v881
      %v940 = vmul.f32 %v849, %v881
      %v941 = vmul.f32 %v854, %v881
      %v942 = vmul.f32 %v857, %v881
      %v943 = vmul.f32 %v862, %v881
      %v944 = vmul.f32 %v865, %v881
      %v945 = vmul.f32 %v870, %v881
      %v946 = vmul.f32 %v873, %v881
      %v947 = vld [vmem:[%s256] sm:$0x1]
      %v949 = vlaneseq
      %v950 = vshrl.u32 %v949, 7
      %v951 = vsub.s32 0, %v950
      %v952 = vrot.slane %v947, %v951
      %v954 = vadd.f32 %v883, %v952
      %v955 = vadd.f32 %v884, %v952
      %v956 = vadd.f32 %v885, %v952
      %v957 = vadd.f32 %v886, %v952
      %v958 = vadd.f32 %v887, %v952
      %v959 = vadd.f32 %v888, %v952
      %v960 = vadd.f32 %v889, %v952
      %v961 = vadd.f32 %v890, %v952
      %v962 = vadd.f32 %v891, %v952
      %v963 = vadd.f32 %v892, %v952
      %v964 = vadd.f32 %v893, %v952
      %v965 = vadd.f32 %v894, %v952
      %v966 = vadd.f32 %v895, %v952
      %v967 = vadd.f32 %v896, %v952
      %v968 = vadd.f32 %v897, %v952
      %v969 = vadd.f32 %v898, %v952
      %v970 = vadd.f32 %v899, %v952
      %v971 = vadd.f32 %v900, %v952
      %v972 = vadd.f32 %v901, %v952
      %v973 = vadd.f32 %v902, %v952
      %v974 = vadd.f32 %v903, %v952
      %v975 = vadd.f32 %v904, %v952
      %v976 = vadd.f32 %v905, %v952
      %v977 = vadd.f32 %v906, %v952
      %v978 = vadd.f32 %v907, %v952
      %v979 = vadd.f32 %v908, %v952
      %v980 = vadd.f32 %v909, %v952
      %v981 = vadd.f32 %v910, %v952
      %v982 = vadd.f32 %v911, %v952
      %v983 = vadd.f32 %v912, %v952
      %v984 = vadd.f32 %v913, %v952
      %v985 = vadd.f32 %v914, %v952
      %v986 = vadd.f32 %v915, %v952
      %v987 = vadd.f32 %v916, %v952
      %v988 = vadd.f32 %v917, %v952
      %v989 = vadd.f32 %v918, %v952
      %v990 = vadd.f32 %v919, %v952
      %v991 = vadd.f32 %v920, %v952
      %v992 = vadd.f32 %v921, %v952
      %v993 = vadd.f32 %v922, %v952
      %v994 = vadd.f32 %v923, %v952
      %v995 = vadd.f32 %v924, %v952
      %v996 = vadd.f32 %v925, %v952
      %v997 = vadd.f32 %v926, %v952
      %v998 = vadd.f32 %v927, %v952
      %v999 = vadd.f32 %v928, %v952
      %v1000 = vadd.f32 %v929, %v952
      %v1001 = vadd.f32 %v930, %v952
      %v1002 = vadd.f32 %v931, %v952
      %v1003 = vadd.f32 %v932, %v952
      %v1004 = vadd.f32 %v933, %v952
      %v1005 = vadd.f32 %v934, %v952
      %v1006 = vadd.f32 %v935, %v952
      %v1007 = vadd.f32 %v936, %v952
      %v1008 = vadd.f32 %v937, %v952
      %v1009 = vadd.f32 %v938, %v952
      %v1010 = vadd.f32 %v939, %v952
      %v1011 = vadd.f32 %v940, %v952
      %v1012 = vadd.f32 %v941, %v952
      %v1013 = vadd.f32 %v942, %v952
      %v1014 = vadd.f32 %v943, %v952
      %v1015 = vadd.f32 %v944, %v952
      %v1016 = vadd.f32 %v945, %v952
      %v1017 = vadd.f32 %v946, %v952
      %v1018 = vmax.f32 %v954, 0.0
      %v1019 = vmax.f32 %v955, 0.0
      %v1020 = vmax.f32 %v956, 0.0
      %v1021 = vmax.f32 %v957, 0.0
      %v1022 = vmax.f32 %v958, 0.0
      %v1023 = vmax.f32 %v959, 0.0
      %v1024 = vmax.f32 %v960, 0.0
      %v1025 = vmax.f32 %v961, 0.0
      %v1026 = vmax.f32 %v962, 0.0
      %v1027 = vmax.f32 %v963, 0.0
      %v1028 = vmax.f32 %v964, 0.0
      %v1029 = vmax.f32 %v965, 0.0
      %v1030 = vmax.f32 %v966, 0.0
      %v1031 = vmax.f32 %v967, 0.0
      %v1032 = vmax.f32 %v968, 0.0
      %v1033 = vmax.f32 %v969, 0.0
      %v1034 = vmax.f32 %v970, 0.0
      %v1035 = vmax.f32 %v971, 0.0
      %v1036 = vmax.f32 %v972, 0.0
      %v1037 = vmax.f32 %v973, 0.0
      %v1038 = vmax.f32 %v974, 0.0
      %v1039 = vmax.f32 %v975, 0.0
      %v1040 = vmax.f32 %v976, 0.0
      %v1041 = vmax.f32 %v977, 0.0
      %v1042 = vmax.f32 %v978, 0.0
      %v1043 = vmax.f32 %v979, 0.0
      %v1044 = vmax.f32 %v980, 0.0
      %v1045 = vmax.f32 %v981, 0.0
      %v1046 = vmax.f32 %v982, 0.0
      %v1047 = vmax.f32 %v983, 0.0
      %v1048 = vmax.f32 %v984, 0.0
      %v1049 = vmax.f32 %v985, 0.0
      %v1050 = vmax.f32 %v986, 0.0
      %v1051 = vmax.f32 %v987, 0.0
      %v1052 = vmax.f32 %v988, 0.0
      %v1053 = vmax.f32 %v989, 0.0
      %v1054 = vmax.f32 %v990, 0.0
      %v1055 = vmax.f32 %v991, 0.0
      %v1056 = vmax.f32 %v992, 0.0
      %v1057 = vmax.f32 %v993, 0.0
      %v1058 = vmax.f32 %v994, 0.0
      %v1059 = vmax.f32 %v995, 0.0
      %v1060 = vmax.f32 %v996, 0.0
      %v1061 = vmax.f32 %v997, 0.0
      %v1062 = vmax.f32 %v998, 0.0
      %v1063 = vmax.f32 %v999, 0.0
      %v1064 = vmax.f32 %v1000, 0.0
      %v1065 = vmax.f32 %v1001, 0.0
      %v1066 = vmax.f32 %v1002, 0.0
      %v1067 = vmax.f32 %v1003, 0.0
      %v1068 = vmax.f32 %v1004, 0.0
      %v1069 = vmax.f32 %v1005, 0.0
      %v1070 = vmax.f32 %v1006, 0.0
      %v1071 = vmax.f32 %v1007, 0.0
      %v1072 = vmax.f32 %v1008, 0.0
      %v1073 = vmax.f32 %v1009, 0.0
      %v1074 = vmax.f32 %v1010, 0.0
      %v1075 = vmax.f32 %v1011, 0.0
      %v1076 = vmax.f32 %v1012, 0.0
      %v1077 = vmax.f32 %v1013, 0.0
      %v1078 = vmax.f32 %v1014, 0.0
      %v1079 = vmax.f32 %v1015, 0.0
      %v1080 = vmax.f32 %v1016, 0.0
      %v1081 = vmax.f32 %v1017, 0.0
      %v1082 = vpack.c.bf16 %v1019, %v1018
      %v1083 = vpack.c.bf16 %v1021, %v1020
      %v1084 = vpack.c.bf16 %v1023, %v1022
      %v1085 = vpack.c.bf16 %v1025, %v1024
      %v1086 = vpack.c.bf16 %v1027, %v1026
      %v1087 = vpack.c.bf16 %v1029, %v1028
      %v1088 = vpack.c.bf16 %v1031, %v1030
      %v1089 = vpack.c.bf16 %v1033, %v1032
      %v1090 = vpack.c.bf16 %v1035, %v1034
      %v1091 = vpack.c.bf16 %v1037, %v1036
      %v1092 = vpack.c.bf16 %v1039, %v1038
      %v1093 = vpack.c.bf16 %v1041, %v1040
      %v1094 = vpack.c.bf16 %v1043, %v1042
      %v1095 = vpack.c.bf16 %v1045, %v1044
      %v1096 = vpack.c.bf16 %v1047, %v1046
      %v1097 = vpack.c.bf16 %v1049, %v1048
      %v1098 = vpack.c.bf16 %v1051, %v1050
      %v1099 = vpack.c.bf16 %v1053, %v1052
      %v1100 = vpack.c.bf16 %v1055, %v1054
      %v1101 = vpack.c.bf16 %v1057, %v1056
      %v1102 = vpack.c.bf16 %v1059, %v1058
      %v1103 = vpack.c.bf16 %v1061, %v1060
      %v1104 = vpack.c.bf16 %v1063, %v1062
      %v1105 = vpack.c.bf16 %v1065, %v1064
      %v1106 = vpack.c.bf16 %v1067, %v1066
      %v1107 = vpack.c.bf16 %v1069, %v1068
      %v1108 = vpack.c.bf16 %v1071, %v1070
      %v1109 = vpack.c.bf16 %v1073, %v1072
      %v1110 = vpack.c.bf16 %v1075, %v1074
      %v1111 = vpack.c.bf16 %v1077, %v1076
      %v1112 = vpack.c.bf16 %v1079, %v1078
      %v1113 = vpack.c.bf16 %v1081, %v1080
      %v1146 = vunpack.c.l.b16 %v1082
      %v1147 = vunpack.c.h.b16 %v1082
      %v1148 = vunpack.c.l.b16 %v1083
      %v1149 = vunpack.c.h.b16 %v1083
      %v1150 = vunpack.c.l.b16 %v1084
      %v1151 = vunpack.c.h.b16 %v1084
      %v1152 = vunpack.c.l.b16 %v1085
      %v1153 = vunpack.c.h.b16 %v1085
      %v1154 = vunpack.c.l.b16 %v1086
      %v1155 = vunpack.c.h.b16 %v1086
      %v1156 = vunpack.c.l.b16 %v1087
      %v1157 = vunpack.c.h.b16 %v1087
      %v1158 = vunpack.c.l.b16 %v1088
      %v1159 = vunpack.c.h.b16 %v1088
      %v1160 = vunpack.c.l.b16 %v1089
      %v1161 = vunpack.c.h.b16 %v1089
      %v1162 = vunpack.c.l.b16 %v1090
      %v1163 = vunpack.c.h.b16 %v1090
      %v1164 = vunpack.c.l.b16 %v1091
      %v1165 = vunpack.c.h.b16 %v1091
      %v1166 = vunpack.c.l.b16 %v1092
      %v1167 = vunpack.c.h.b16 %v1092
      %v1168 = vunpack.c.l.b16 %v1093
      %v1169 = vunpack.c.h.b16 %v1093
      %v1170 = vunpack.c.l.b16 %v1094
      %v1171 = vunpack.c.h.b16 %v1094
      %v1172 = vunpack.c.l.b16 %v1095
      %v1173 = vunpack.c.h.b16 %v1095
      %v1174 = vunpack.c.l.b16 %v1096
      %v1175 = vunpack.c.h.b16 %v1096
      %v1176 = vunpack.c.l.b16 %v1097
      %v1177 = vunpack.c.h.b16 %v1097
      %v1178 = vunpack.c.l.b16 %v1098
      %v1179 = vunpack.c.h.b16 %v1098
      %v1180 = vunpack.c.l.b16 %v1099
      %v1181 = vunpack.c.h.b16 %v1099
      %v1182 = vunpack.c.l.b16 %v1100
      %v1183 = vunpack.c.h.b16 %v1100
      %v1184 = vunpack.c.l.b16 %v1101
      %v1185 = vunpack.c.h.b16 %v1101
      %v1186 = vunpack.c.l.b16 %v1102
      %v1187 = vunpack.c.h.b16 %v1102
      %v1188 = vunpack.c.l.b16 %v1103
      %v1189 = vunpack.c.h.b16 %v1103
      %v1190 = vunpack.c.l.b16 %v1104
      %v1191 = vunpack.c.h.b16 %v1104
      %v1192 = vunpack.c.l.b16 %v1105
      %v1193 = vunpack.c.h.b16 %v1105
      %v1194 = vunpack.c.l.b16 %v1106
      %v1195 = vunpack.c.h.b16 %v1106
      %v1196 = vunpack.c.l.b16 %v1107
      %v1197 = vunpack.c.h.b16 %v1107
      %v1198 = vunpack.c.l.b16 %v1108
      %v1199 = vunpack.c.h.b16 %v1108
      %v1200 = vunpack.c.l.b16 %v1109
      %v1201 = vunpack.c.h.b16 %v1109
      %v1202 = vunpack.c.l.b16 %v1110
      %v1203 = vunpack.c.h.b16 %v1110
      %v1204 = vunpack.c.l.b16 %v1111
      %v1205 = vunpack.c.h.b16 %v1111
      %v1206 = vunpack.c.l.b16 %v1112
      %v1207 = vunpack.c.h.b16 %v1112
      %v1208 = vunpack.c.l.b16 %v1113
      %v1209 = vunpack.c.h.b16 %v1113
      %v1210 = vpack.c.b16 %v1146, %v1146
      %v1211 = vpack.c.b16 %v1147, %v1147
      %v1212 = vpack.c.b16 %v1148, %v1148
      %v1213 = vpack.c.b16 %v1149, %v1149
      %v1214 = vpack.c.b16 %v1150, %v1150
      %v1215 = vpack.c.b16 %v1151, %v1151
      %v1216 = vpack.c.b16 %v1152, %v1152
      %v1217 = vpack.c.b16 %v1153, %v1153
      %v1218 = vpack.c.b16 %v1154, %v1154
      %v1219 = vpack.c.b16 %v1155, %v1155
      %v1220 = vpack.c.b16 %v1156, %v1156
      %v1221 = vpack.c.b16 %v1157, %v1157
      %v1222 = vpack.c.b16 %v1158, %v1158
      %v1223 = vpack.c.b16 %v1159, %v1159
      %v1224 = vpack.c.b16 %v1160, %v1160
      %v1225 = vpack.c.b16 %v1161, %v1161
      %v1226 = vpack.c.b16 %v1162, %v1162
      %v1227 = vpack.c.b16 %v1163, %v1163
      %v1228 = vpack.c.b16 %v1164, %v1164
      %v1229 = vpack.c.b16 %v1165, %v1165
      %v1230 = vpack.c.b16 %v1166, %v1166
      %v1231 = vpack.c.b16 %v1167, %v1167
      %v1232 = vpack.c.b16 %v1168, %v1168
      %v1233 = vpack.c.b16 %v1169, %v1169
      %v1234 = vpack.c.b16 %v1170, %v1170
      %v1235 = vpack.c.b16 %v1171, %v1171
      %v1236 = vpack.c.b16 %v1172, %v1172
      %v1237 = vpack.c.b16 %v1173, %v1173
      %v1238 = vpack.c.b16 %v1174, %v1174
      %v1239 = vpack.c.b16 %v1175, %v1175
      %v1240 = vpack.c.b16 %v1176, %v1176
      %v1241 = vpack.c.b16 %v1177, %v1177
      %v1242 = vpack.c.b16 %v1178, %v1178
      %v1243 = vpack.c.b16 %v1179, %v1179
      %v1244 = vpack.c.b16 %v1180, %v1180
      %v1245 = vpack.c.b16 %v1181, %v1181
      %v1246 = vpack.c.b16 %v1182, %v1182
      %v1247 = vpack.c.b16 %v1183, %v1183
      %v1248 = vpack.c.b16 %v1184, %v1184
      %v1249 = vpack.c.b16 %v1185, %v1185
      %v1250 = vpack.c.b16 %v1186, %v1186
      %v1251 = vpack.c.b16 %v1187, %v1187
      %v1252 = vpack.c.b16 %v1188, %v1188
      %v1253 = vpack.c.b16 %v1189, %v1189
      %v1254 = vpack.c.b16 %v1190, %v1190
      %v1255 = vpack.c.b16 %v1191, %v1191
      %v1256 = vpack.c.b16 %v1192, %v1192
      %v1257 = vpack.c.b16 %v1193, %v1193
      %v1258 = vpack.c.b16 %v1194, %v1194
      %v1259 = vpack.c.b16 %v1195, %v1195
      %v1260 = vpack.c.b16 %v1196, %v1196
      %v1261 = vpack.c.b16 %v1197, %v1197
      %v1262 = vpack.c.b16 %v1198, %v1198
      %v1263 = vpack.c.b16 %v1199, %v1199
      %v1264 = vpack.c.b16 %v1200, %v1200
      %v1265 = vpack.c.b16 %v1201, %v1201
      %v1266 = vpack.c.b16 %v1202, %v1202
      %v1267 = vpack.c.b16 %v1203, %v1203
      %v1268 = vpack.c.b16 %v1204, %v1204
      %v1269 = vpack.c.b16 %v1205, %v1205
      %v1270 = vpack.c.b16 %v1206, %v1206
      %v1271 = vpack.c.b16 %v1207, %v1207
      %v1272 = vpack.c.b16 %v1208, %v1208
      %v1273 = vpack.c.b16 %v1209, %v1209
      %1338 = vst [vmem:[%s264] sm:$0xf] %v1210
      %1339 = vst [vmem:[%s264 + $0x4] sm:$0xf] %v1211
      %1340 = vst [vmem:[%s264 + $0x8] sm:$0xf] %v1212
      %1341 = vst [vmem:[%s264 + $0xc] sm:$0xf] %v1213
      %1342 = vst [vmem:[%s264 + $0x10] sm:$0xf] %v1214
      %1343 = vst [vmem:[%s264 + $0x14] sm:$0xf] %v1215
      %1344 = vst [vmem:[%s264 + $0x18] sm:$0xf] %v1216
      %1345 = vst [vmem:[%s264 + $0x1c] sm:$0xf] %v1217
      %1346 = vst [vmem:[%s264 + $0x20] sm:$0xf] %v1218
      %1347 = vst [vmem:[%s264 + $0x24] sm:$0xf] %v1219
      %1348 = vst [vmem:[%s264 + $0x28] sm:$0xf] %v1220
      %1349 = vst [vmem:[%s264 + $0x2c] sm:$0xf] %v1221
      %1350 = vst [vmem:[%s264 + $0x30] sm:$0xf] %v1222
      %1351 = vst [vmem:[%s264 + $0x34] sm:$0xf] %v1223
      %1352 = vst [vmem:[%s264 + $0x38] sm:$0xf] %v1224
      %1353 = vst [vmem:[%s264 + $0x3c] sm:$0xf] %v1225
      %1354 = vst [vmem:[%s264 + $0x40] sm:$0xf] %v1226
      %1355 = vst [vmem:[%s264 + $0x44] sm:$0xf] %v1227
      %1356 = vst [vmem:[%s264 + $0x48] sm:$0xf] %v1228
      %1357 = vst [vmem:[%s264 + $0x4c] sm:$0xf] %v1229
      %1358 = vst [vmem:[%s264 + $0x50] sm:$0xf] %v1230
      %1359 = vst [vmem:[%s264 + $0x54] sm:$0xf] %v1231
      %1360 = vst [vmem:[%s264 + $0x58] sm:$0xf] %v1232
      %1361 = vst [vmem:[%s264 + $0x5c] sm:$0xf] %v1233
      %1362 = vst [vmem:[%s264 + $0x60] sm:$0xf] %v1234
      %1363 = vst [vmem:[%s264 + $0x64] sm:$0xf] %v1235
      %1364 = vst [vmem:[%s264 + $0x68] sm:$0xf] %v1236
      %1365 = vst [vmem:[%s264 + $0x6c] sm:$0xf] %v1237
      %1366 = vst [vmem:[%s264 + $0x70] sm:$0xf] %v1238
      %1367 = vst [vmem:[%s264 + $0x74] sm:$0xf] %v1239
      %1368 = vst [vmem:[%s264 + $0x78] sm:$0xf] %v1240
      %1369 = vst [vmem:[%s264 + $0x7c] sm:$0xf] %v1241
      %1370 = vst [vmem:[%s264 + $0x80] sm:$0xf] %v1242
      %1371 = vst [vmem:[%s264 + $0x84] sm:$0xf] %v1243
      %1372 = vst [vmem:[%s264 + $0x88] sm:$0xf] %v1244
      %1373 = vst [vmem:[%s264 + $0x8c] sm:$0xf] %v1245
      %1374 = vst [vmem:[%s264 + $0x90] sm:$0xf] %v1246
      %1375 = vst [vmem:[%s264 + $0x94] sm:$0xf] %v1247
      %1376 = vst [vmem:[%s264 + $0x98] sm:$0xf] %v1248
      %1377 = vst [vmem:[%s264 + $0x9c] sm:$0xf] %v1249
      %1378 = vst [vmem:[%s264 + $0xa0] sm:$0xf] %v1250
      %1379 = vst [vmem:[%s264 + $0xa4] sm:$0xf] %v1251
      %1380 = vst [vmem:[%s264 + $0xa8] sm:$0xf] %v1252
      %1381 = vst [vmem:[%s264 + $0xac] sm:$0xf] %v1253
      %1382 = vst [vmem:[%s264 + $0xb0] sm:$0xf] %v1254
      %1383 = vst [vmem:[%s264 + $0xb4] sm:$0xf] %v1255
      %1384 = vst [vmem:[%s264 + $0xb8] sm:$0xf] %v1256
      %1385 = vst [vmem:[%s264 + $0xbc] sm:$0xf] %v1257
      %1386 = vst [vmem:[%s264 + $0xc0] sm:$0xf] %v1258
      %1387 = vst [vmem:[%s264 + $0xc4] sm:$0xf] %v1259
      %1388 = vst [vmem:[%s264 + $0xc8] sm:$0xf] %v1260
      %1389 = vst [vmem:[%s264 + $0xcc] sm:$0xf] %v1261
      %1390 = vst [vmem:[%s264 + $0xd0] sm:$0xf] %v1262
      %1391 = vst [vmem:[%s264 + $0xd4] sm:$0xf] %v1263
      %1392 = vst [vmem:[%s264 + $0xd8] sm:$0xf] %v1264
      %1393 = vst [vmem:[%s264 + $0xdc] sm:$0xf] %v1265
      %1394 = vst [vmem:[%s264 + $0xe0] sm:$0xf] %v1266
      %1395 = vst [vmem:[%s264 + $0xe4] sm:$0xf] %v1267
      %1396 = vst [vmem:[%s264 + $0xe8] sm:$0xf] %v1268
      %1397 = vst [vmem:[%s264 + $0xec] sm:$0xf] %v1269
      %1398 = vst [vmem:[%s264 + $0xf0] sm:$0xf] %v1270
      %1399 = vst [vmem:[%s264 + $0xf4] sm:$0xf] %v1271
      %1400 = vst [vmem:[%s264 + $0xf8] sm:$0xf] %v1272
      %1401 = vst [vmem:[%s264 + $0xfc] sm:$0xf] %v1273
      %s1402 = smul.u32 64, %s19
      %p1403 = scmp.lt.s32.totalorder %s1402, 127
      %s1404 = scalar_select %p1403, %s1402, 127
      %p1405 = scmp.lt.s32.totalorder %s20, 0
      %s1406 = scalar_select %p1405, %s20, 0
      %s1407 = sadd.s32 %s1406, %s1404
      %s1408 = smul.addr %s1407, 4
      %s1409 = scalar_lea.vmem %s4, %s1408
      // Predicated region
      $region37: #{_lambda_.5} parent=35 // pred_check
        %p1410 = pneg %p151
      $region38: #{_lambda_.5} parent=35 // pred_check_branch
        %1412 = sbr.rel (%p1410) target = $region40
      $region39: #{_lambda_.5} parent=35 // pred_region
        %s1413 = smul.u32 64, %s19
      $region40: #{_lambda_.5} parent=35 // pred_fallthru
        _
    $region36: #{_lambda_.5} parent=5 // pred_fallthru
      _
    %p1414 = scmp.le.s32.totalorder 2, %s10
    // Predicated region
    $region41: #{_lambda_.5} parent=5 // pred_check
      %p1415 = pneg %p1414
    $region42: #{_lambda_.5} parent=5 // pred_check_branch
      %1417 = sbr.rel (%p1415) target = $region44
    $region43: #{_lambda_.5} parent=5 // pred_region
      %s1418 = ssub.s32 %s10, 2
      // Predicated region
      $region45: #{_lambda_.5} parent=43 // pred_check
        %p1419 = pneg %p157
      $region46: #{_lambda_.5} parent=43 // pred_check_branch
        %1421 = sbr.rel (%p1419) target = $region48
      $region47: #{_lambda_.5} parent=43 // pred_region
        %s1422 = smul.u32 64, %s21
        %p1423 = scmp.lt.s32.totalorder %s1422, 127
        %s1424 = scalar_select %p1423, %s1422, 127
        %p1425 = scmp.lt.s32.totalorder %s22, 0
        %s1426 = scalar_select %p1425, %s22, 0
        %s1427 = sadd.s32 %s1426, %s1424
        %s1428 = smul.addr %s1427, 4
        %s1429 = scalar_lea.vmem %s4, %s1428
      $region48: #{_lambda_.5} parent=43 // pred_fallthru
        _
    $region44: #{_lambda_.5} parent=5 // pred_fallthru
      _
  $region6: #{_lambda_.5} parent=0 // loop_footer
    %s14 = sadd.s32 1, %s10
  $region7: #{_lambda_.5} parent=0 // loop_footer_branch
    %9 = sbr.rel target = $region3
  $region8: #{_lambda_.5} parent=0 // loop_exit
    _

// kernel: _lambda_.6
$region0: #{_lambda_.6}
  #allocation0 [shape = 'u32[]', space=smem, size = 0x4, offset = 0x4, fixed_abs, tag = 'smem constant byte address 0x4 - core index']
  #allocation1 [shape = 'u32[144,128]{1,0:T(1,128)}', space=vmem, size = 0x12000, scoped, tag = 'internal scratch']
  %s0 = inlined_call_operand.vmem [shape: bf16[144,640], index: 0, kind: input, shape index: {}]
  %s1 = inlined_call_operand.vmem [shape: bf16[640,128], index: 1, kind: input, shape index: {}]
  %s2 = inlined_call_operand.vmem [shape: f32[1,128], index: 2, kind: input, shape index: {}]
  %s3 = inlined_call_operand.vmem [shape: f32[1,128], index: 3, kind: input, shape index: {}]
  %s4 = inlined_call_operand.vmem [shape: bf16[144,128], index: 4, kind: output, shape index: {}]
  %s5 = sld [smem:[#allocation0]]
  $region26: #{_lambda_.6} parent=0
    _
  %s7 = ssub.s32 1, %s5
  %s8 = scalar_select 0, %s7, %s5
  // Predicated region
  $region2: #{_lambda_.6} parent=0 // pred_check
    _
  $region3: #{_lambda_.6} parent=0 // pred_check_branch
    %10 = sbr.rel (0) target = $region5
  $region4: #{_lambda_.6} parent=0 // pred_region
    _
  $region5: #{_lambda_.6} parent=0 // pred_fallthru
    _
  // Predicated region
  $region6: #{_lambda_.6} parent=0 // pred_check
    _
  $region7: #{_lambda_.6} parent=0 // pred_check_branch
    %12 = sbr.rel (0) target = $region9
  $region8: #{_lambda_.6} parent=0 // pred_region
    _
  $region9: #{_lambda_.6} parent=0 // pred_fallthru
    _
  // Predicated region
  $region10: #{_lambda_.6} parent=0 // pred_check
    _
  $region11: #{_lambda_.6} parent=0 // pred_check_branch
    %14 = sbr.rel (0) target = $region13
  $region12: #{_lambda_.6} parent=0 // pred_region
    _
  $region13: #{_lambda_.6} parent=0 // pred_fallthru
    _
  // Predicated region
  $region14: #{_lambda_.6} parent=0 // pred_check
    _
  $region15: #{_lambda_.6} parent=0 // pred_check_branch
    %16 = sbr.rel (0) target = $region17
  $region16: #{_lambda_.6} parent=0 // pred_region
    _
  $region17: #{_lambda_.6} parent=0 // pred_fallthru
    _
  %v18 = vld [vmem:[%s0] sm:$0xff]
  %v19 = vld [vmem:[%s0 + $0x8] sm:$0xff]
  %v20 = vld [vmem:[%s0 + $0x10] sm:$0xf]
  %v21 = vld [vmem:[%s0 + $0x14] sm:$0xff]
  %v22 = vld [vmem:[%s0 + $0x1c] sm:$0xff]
  %v23 = vld [vmem:[%s0 + $0x24] sm:$0xf]
  %v24 = vld [vmem:[%s0 + $0x28] sm:$0xff]
  %v25 = vld [vmem:[%s0 + $0x30] sm:$0xff]
  %v26 = vld [vmem:[%s0 + $0x38] sm:$0xf]
  %v27 = vld [vmem:[%s0 + $0x3c] sm:$0xff]
  %v28 = vld [vmem:[%s0 + $0x44] sm:$0xff]
  %v29 = vld [vmem:[%s0 + $0x4c] sm:$0xf]
  %v30 = vld [vmem:[%s0 + $0x50] sm:$0xff]
  %v31 = vld [vmem:[%s0 + $0x58] sm:$0xff]
  %v32 = vld [vmem:[%s0 + $0x60] sm:$0xf]
  %v33 = vld [vmem:[%s0 + $0x64] sm:$0xff]
  %v34 = vld [vmem:[%s0 + $0x6c] sm:$0xff]
  %v35 = vld [vmem:[%s0 + $0x74] sm:$0xf]
  %v36 = vld [vmem:[%s0 + $0x78] sm:$0xff]
  %v37 = vld [vmem:[%s0 + $0x80] sm:$0xff]
  %v38 = vld [vmem:[%s0 + $0x88] sm:$0xf]
  %v39 = vld [vmem:[%s0 + $0x8c] sm:$0xff]
  %v40 = vld [vmem:[%s0 + $0x94] sm:$0xff]
  %v41 = vld [vmem:[%s0 + $0x9c] sm:$0xf]
  %v42 = vld [vmem:[%s0 + $0xa0] sm:$0xff]
  %v43 = vld [vmem:[%s0 + $0xa8] sm:$0xff]
  %v44 = vld [vmem:[%s0 + $0xb0] sm:$0xf]
  %v45 = vld [vmem:[%s0 + $0xb4] sm:$0xff]
  %v46 = vld [vmem:[%s0 + $0xbc] sm:$0xff]
  %v47 = vld [vmem:[%s0 + $0xc4] sm:$0xf]
  %v48 = vld [vmem:[%s0 + $0xc8] sm:$0xff]
  %v49 = vld [vmem:[%s0 + $0xd0] sm:$0xff]
  %v50 = vld [vmem:[%s0 + $0xd8] sm:$0xf]
  %v51 = vld [vmem:[%s0 + $0xdc] sm:$0xff]
  %v52 = vld [vmem:[%s0 + $0xe4] sm:$0xff]
  %v53 = vld [vmem:[%s0 + $0xec] sm:$0xf]
  %v54 = vld [vmem:[%s0 + $0xf0] sm:$0xff]
  %v55 = vld [vmem:[%s0 + $0xf8] sm:$0xff]
  %v56 = vld [vmem:[%s0 + $0x100] sm:$0xf]
  %v57 = vld [vmem:[%s0 + $0x104] sm:$0xff]
  %v58 = vld [vmem:[%s0 + $0x10c] sm:$0xff]
  %v59 = vld [vmem:[%s0 + $0x114] sm:$0xf]
  %v60 = vld [vmem:[%s0 + $0x118] sm:$0xff]
  %v61 = vld [vmem:[%s0 + $0x120] sm:$0xff]
  %v62 = vld [vmem:[%s0 + $0x128] sm:$0xf]
  %v63 = vld [vmem:[%s0 + $0x12c] sm:$0xff]
  %v64 = vld [vmem:[%s0 + $0x134] sm:$0xff]
  %v65 = vld [vmem:[%s0 + $0x13c] sm:$0xf]
  %v66 = vld [vmem:[%s0 + $0x140] sm:$0xff]
  %v67 = vld [vmem:[%s0 + $0x148] sm:$0xff]
  %v68 = vld [vmem:[%s0 + $0x150] sm:$0xf]
  %v69 = vld [vmem:[%s0 + $0x154] sm:$0xff]
  %v70 = vld [vmem:[%s0 + $0x15c] sm:$0xff]
  %v71 = vld [vmem:[%s0 + $0x164] sm:$0xf]
  %v72 = vld [vmem:[%s1] sm:$0xf]
  %v73 = vld [vmem:[%s1 + $0x4] sm:$0xf]
  %v74 = vld [vmem:[%s1 + $0x8] sm:$0xf]
  %v75 = vld [vmem:[%s1 + $0xc] sm:$0xf]
  %v76 = vld [vmem:[%s1 + $0x10] sm:$0xf]
  %v77 = vld [vmem:[%s1 + $0x14] sm:$0xf]
  %v78 = vld [vmem:[%s1 + $0x18] sm:$0xf]
  %v79 = vld [vmem:[%s1 + $0x1c] sm:$0xf]
  %v80 = vld [vmem:[%s1 + $0x20] sm:$0xf]
  %v81 = vld [vmem:[%s1 + $0x24] sm:$0xf]
  %v82 = vld [vmem:[%s1 + $0x28] sm:$0xf]
  %v83 = vld [vmem:[%s1 + $0x2c] sm:$0xf]
  %v84 = vld [vmem:[%s1 + $0x30] sm:$0xf]
  %v85 = vld [vmem:[%s1 + $0x34] sm:$0xf]
  %v86 = vld [vmem:[%s1 + $0x38] sm:$0xf]
  %v87 = vld [vmem:[%s1 + $0x3c] sm:$0xf]
  %v88 = vld [vmem:[%s1 + $0x40] sm:$0xf]
  %v89 = vld [vmem:[%s1 + $0x44] sm:$0xf]
  %v90 = vld [vmem:[%s1 + $0x48] sm:$0xf]
  %v91 = vld [vmem:[%s1 + $0x4c] sm:$0xf]
  %v92 = vld [vmem:[%s1 + $0x50] sm:$0xf]
  %v93 = vld [vmem:[%s1 + $0x54] sm:$0xf]
  %v94 = vld [vmem:[%s1 + $0x58] sm:$0xf]
  %v95 = vld [vmem:[%s1 + $0x5c] sm:$0xf]
  %v96 = vld [vmem:[%s1 + $0x60] sm:$0xf]
  %v97 = vld [vmem:[%s1 + $0x64] sm:$0xf]
  %v98 = vld [vmem:[%s1 + $0x68] sm:$0xf]
  %v99 = vld [vmem:[%s1 + $0x6c] sm:$0xf]
  %v100 = vld [vmem:[%s1 + $0x70] sm:$0xf]
  %v101 = vld [vmem:[%s1 + $0x74] sm:$0xf]
  %v102 = vld [vmem:[%s1 + $0x78] sm:$0xf]
  %v103 = vld [vmem:[%s1 + $0x7c] sm:$0xf]
  %v104 = vld [vmem:[%s1 + $0x80] sm:$0xf]
  %v105 = vld [vmem:[%s1 + $0x84] sm:$0xf]
  %v106 = vld [vmem:[%s1 + $0x88] sm:$0xf]
  %v107 = vld [vmem:[%s1 + $0x8c] sm:$0xf]
  %v108 = vld [vmem:[%s1 + $0x90] sm:$0xf]
  %v109 = vld [vmem:[%s1 + $0x94] sm:$0xf]
  %v110 = vld [vmem:[%s1 + $0x98] sm:$0xf]
  %v111 = vld [vmem:[%s1 + $0x9c] sm:$0xf]
  %v112 = vld [vmem:[%s1 + $0xa0] sm:$0xf]
  %v113 = vld [vmem:[%s1 + $0xa4] sm:$0xf]
  %v114 = vld [vmem:[%s1 + $0xa8] sm:$0xf]
  %v115 = vld [vmem:[%s1 + $0xac] sm:$0xf]
  %v116 = vld [vmem:[%s1 + $0xb0] sm:$0xf]
  %v117 = vld [vmem:[%s1 + $0xb4] sm:$0xf]
  %v118 = vld [vmem:[%s1 + $0xb8] sm:$0xf]
  %v119 = vld [vmem:[%s1 + $0xbc] sm:$0xf]
  %v120 = vld [vmem:[%s1 + $0xc0] sm:$0xf]
  %v121 = vld [vmem:[%s1 + $0xc4] sm:$0xf]
  %v122 = vld [vmem:[%s1 + $0xc8] sm:$0xf]
  %v123 = vld [vmem:[%s1 + $0xcc] sm:$0xf]
  %v124 = vld [vmem:[%s1 + $0xd0] sm:$0xf]
  %v125 = vld [vmem:[%s1 + $0xd4] sm:$0xf]
  %v126 = vld [vmem:[%s1 + $0xd8] sm:$0xf]
  %v127 = vld [vmem:[%s1 + $0xdc] sm:$0xf]
  %v128 = vld [vmem:[%s1 + $0xe0] sm:$0xf]
  %v129 = vld [vmem:[%s1 + $0xe4] sm:$0xf]
  %v130 = vld [vmem:[%s1 + $0xe8] sm:$0xf]
  %v131 = vld [vmem:[%s1 + $0xec] sm:$0xf]
  %v132 = vld [vmem:[%s1 + $0xf0] sm:$0xf]
  %v133 = vld [vmem:[%s1 + $0xf4] sm:$0xf]
  %v134 = vld [vmem:[%s1 + $0xf8] sm:$0xf]
  %v135 = vld [vmem:[%s1 + $0xfc] sm:$0xf]
  %v136 = vld [vmem:[%s1 + $0x100] sm:$0xf]
  %v137 = vld [vmem:[%s1 + $0x104] sm:$0xf]
  %v138 = vld [vmem:[%s1 + $0x108] sm:$0xf]
  %v139 = vld [vmem:[%s1 + $0x10c] sm:$0xf]
  %v140 = vld [vmem:[%s1 + $0x110] sm:$0xf]
  %v141 = vld [vmem:[%s1 + $0x114] sm:$0xf]
  %v142 = vld [vmem:[%s1 + $0x118] sm:$0xf]
  %v143 = vld [vmem:[%s1 + $0x11c] sm:$0xf]
  %v144 = vld [vmem:[%s1 + $0x120] sm:$0xf]
  %v145 = vld [vmem:[%s1 + $0x124] sm:$0xf]
  %v146 = vld [vmem:[%s1 + $0x128] sm:$0xf]
  %v147 = vld [vmem:[%s1 + $0x12c] sm:$0xf]
  %v148 = vld [vmem:[%s1 + $0x130] sm:$0xf]
  %v149 = vld [vmem:[%s1 + $0x134] sm:$0xf]
  %v150 = vld [vmem:[%s1 + $0x138] sm:$0xf]
  %v151 = vld [vmem:[%s1 + $0x13c] sm:$0xf]
  %v206 = vunpack.c.l.b16 %v18
  %v207 = vunpack.c.h.b16 %v18
  %v208 = vunpack.c.l.b16 %v19
  %v209 = vunpack.c.h.b16 %v19
  %v210 = vunpack.c.l.b16 %v20
  %v211 = vunpack.c.l.b16 %v21
  %v212 = vunpack.c.h.b16 %v21
  %v213 = vunpack.c.l.b16 %v22
  %v214 = vunpack.c.h.b16 %v22
  %v215 = vunpack.c.l.b16 %v23
  %v216 = vunpack.c.l.b16 %v24
  %v217 = vunpack.c.h.b16 %v24
  %v218 = vunpack.c.l.b16 %v25
  %v219 = vunpack.c.h.b16 %v25
  %v220 = vunpack.c.l.b16 %v26
  %v221 = vunpack.c.l.b16 %v27
  %v222 = vunpack.c.h.b16 %v27
  %v223 = vunpack.c.l.b16 %v28
  %v224 = vunpack.c.h.b16 %v28
  %v225 = vunpack.c.l.b16 %v29
  %v226 = vunpack.c.l.b16 %v30
  %v227 = vunpack.c.h.b16 %v30
  %v228 = vunpack.c.l.b16 %v31
  %v229 = vunpack.c.h.b16 %v31
  %v230 = vunpack.c.l.b16 %v32
  %v231 = vunpack.c.l.b16 %v33
  %v232 = vunpack.c.h.b16 %v33
  %v233 = vunpack.c.l.b16 %v34
  %v234 = vunpack.c.h.b16 %v34
  %v235 = vunpack.c.l.b16 %v35
  %v236 = vunpack.c.l.b16 %v36
  %v237 = vunpack.c.h.b16 %v36
  %v238 = vunpack.c.l.b16 %v37
  %v239 = vunpack.c.h.b16 %v37
  %v240 = vunpack.c.l.b16 %v38
  %v241 = vunpack.c.l.b16 %v39
  %v242 = vunpack.c.h.b16 %v39
  %v243 = vunpack.c.l.b16 %v40
  %v244 = vunpack.c.h.b16 %v40
  %v245 = vunpack.c.l.b16 %v41
  %v246 = vunpack.c.l.b16 %v42
  %v247 = vunpack.c.h.b16 %v42
  %v248 = vunpack.c.l.b16 %v43
  %v249 = vunpack.c.h.b16 %v43
  %v250 = vunpack.c.l.b16 %v44
  %v251 = vunpack.c.l.b16 %v45
  %v252 = vunpack.c.h.b16 %v45
  %v253 = vunpack.c.l.b16 %v46
  %v254 = vunpack.c.h.b16 %v46
  %v255 = vunpack.c.l.b16 %v47
  %v256 = vunpack.c.l.b16 %v48
  %v257 = vunpack.c.h.b16 %v48
  %v258 = vunpack.c.l.b16 %v49
  %v259 = vunpack.c.h.b16 %v49
  %v260 = vunpack.c.l.b16 %v50
  %v261 = vunpack.c.l.b16 %v51
  %v262 = vunpack.c.h.b16 %v51
  %v263 = vunpack.c.l.b16 %v52
  %v264 = vunpack.c.h.b16 %v52
  %v265 = vunpack.c.l.b16 %v53
  %v266 = vunpack.c.l.b16 %v54
  %v267 = vunpack.c.h.b16 %v54
  %v268 = vunpack.c.l.b16 %v55
  %v269 = vunpack.c.h.b16 %v55
  %v270 = vunpack.c.l.b16 %v56
  %v271 = vunpack.c.l.b16 %v57
  %v272 = vunpack.c.h.b16 %v57
  %v273 = vunpack.c.l.b16 %v58
  %v274 = vunpack.c.h.b16 %v58
  %v275 = vunpack.c.l.b16 %v59
  %v276 = vunpack.c.l.b16 %v60
  %v277 = vunpack.c.h.b16 %v60
  %v278 = vunpack.c.l.b16 %v61
  %v279 = vunpack.c.h.b16 %v61
  %v280 = vunpack.c.l.b16 %v62
  %v281 = vunpack.c.l.b16 %v63
  %v282 = vunpack.c.h.b16 %v63
  %v283 = vunpack.c.l.b16 %v64
  %v284 = vunpack.c.h.b16 %v64
  %v285 = vunpack.c.l.b16 %v65
  %v286 = vunpack.c.l.b16 %v66
  %v287 = vunpack.c.h.b16 %v66
  %v288 = vunpack.c.l.b16 %v67
  %v289 = vunpack.c.h.b16 %v67
  %v290 = vunpack.c.l.b16 %v68
  %v291 = vunpack.c.l.b16 %v69
  %v292 = vunpack.c.h.b16 %v69
  %v293 = vunpack.c.l.b16 %v70
  %v294 = vunpack.c.h.b16 %v70
  %v295 = vunpack.c.l.b16 %v71
  %v296 = vpack.c.b16 %v211, %v206
  %v297 = vpack.c.b16 %v212, %v207
  %v298 = vpack.c.b16 %v213, %v208
  %v299 = vpack.c.b16 %v214, %v209
  %v300 = vpack.c.b16 %v215, %v210
  %v301 = vpack.c.b16 %v221, %v216
  %v302 = vpack.c.b16 %v222, %v217
  %v303 = vpack.c.b16 %v223, %v218
  %v304 = vpack.c.b16 %v224, %v219
  %v305 = vpack.c.b16 %v225, %v220
  %v306 = vpack.c.b16 %v231, %v226
  %v307 = vpack.c.b16 %v232, %v227
  %v308 = vpack.c.b16 %v233, %v228
  %v309 = vpack.c.b16 %v234, %v229
  %v310 = vpack.c.b16 %v235, %v230
  %v311 = vpack.c.b16 %v241, %v236
  %v312 = vpack.c.b16 %v242, %v237
  %v313 = vpack.c.b16 %v243, %v238
  %v314 = vpack.c.b16 %v244, %v239
  %v315 = vpack.c.b16 %v245, %v240
  %v316 = vpack.c.b16 %v251, %v246
  %v317 = vpack.c.b16 %v252, %v247
  %v318 = vpack.c.b16 %v253, %v248
  %v319 = vpack.c.b16 %v254, %v249
  %v320 = vpack.c.b16 %v255, %v250
  %v321 = vpack.c.b16 %v261, %v256
  %v322 = vpack.c.b16 %v262, %v257
  %v323 = vpack.c.b16 %v263, %v258
  %v324 = vpack.c.b16 %v264, %v259
  %v325 = vpack.c.b16 %v265, %v260
  %v326 = vpack.c.b16 %v271, %v266
  %v327 = vpack.c.b16 %v272, %v267
  %v328 = vpack.c.b16 %v273, %v268
  %v329 = vpack.c.b16 %v274, %v269
  %v330 = vpack.c.b16 %v275, %v270
  %v331 = vpack.c.b16 %v281, %v276
  %v332 = vpack.c.b16 %v282, %v277
  %v333 = vpack.c.b16 %v283, %v278
  %v334 = vpack.c.b16 %v284, %v279
  %v335 = vpack.c.b16 %v285, %v280
  %v336 = vpack.c.b16 %v291, %v286
  %v337 = vpack.c.b16 %v292, %v287
  %v338 = vpack.c.b16 %v293, %v288
  %v339 = vpack.c.b16 %v294, %v289
  %v340 = vpack.c.b16 %v295, %v290
  %v466 = vunpack.c.l.b16 %v72
  %v467 = vunpack.c.l.b16 %v73
  %v468 = vunpack.c.l.b16 %v74
  %v469 = vunpack.c.l.b16 %v75
  %v470 = vunpack.c.l.b16 %v76
  %v471 = vunpack.c.l.b16 %v77
  %v472 = vunpack.c.l.b16 %v78
  %v473 = vunpack.c.l.b16 %v79
  %v474 = vunpack.c.l.b16 %v80
  %v475 = vunpack.c.l.b16 %v81
  %v476 = vunpack.c.l.b16 %v82
  %v477 = vunpack.c.l.b16 %v83
  %v478 = vunpack.c.l.b16 %v84
  %v479 = vunpack.c.l.b16 %v85
  %v480 = vunpack.c.l.b16 %v86
  %v481 = vunpack.c.l.b16 %v87
  %v482 = vunpack.c.l.b16 %v88
  %v483 = vunpack.c.l.b16 %v89
  %v484 = vunpack.c.l.b16 %v90
  %v485 = vunpack.c.l.b16 %v91
  %v486 = vunpack.c.l.b16 %v92
  %v487 = vunpack.c.l.b16 %v93
  %v488 = vunpack.c.l.b16 %v94
  %v489 = vunpack.c.l.b16 %v95
  %v490 = vunpack.c.l.b16 %v96
  %v491 = vunpack.c.l.b16 %v97
  %v492 = vunpack.c.l.b16 %v98
  %v493 = vunpack.c.l.b16 %v99
  %v494 = vunpack.c.l.b16 %v100
  %v495 = vunpack.c.l.b16 %v101
  %v496 = vunpack.c.l.b16 %v102
  %v497 = vunpack.c.l.b16 %v103
  %v498 = vunpack.c.l.b16 %v104
  %v499 = vunpack.c.l.b16 %v105
  %v500 = vunpack.c.l.b16 %v106
  %v501 = vunpack.c.l.b16 %v107
  %v502 = vunpack.c.l.b16 %v108
  %v503 = vunpack.c.l.b16 %v109
  %v504 = vunpack.c.l.b16 %v110
  %v505 = vunpack.c.l.b16 %v111
  %v506 = vunpack.c.l.b16 %v112
  %v507 = vunpack.c.l.b16 %v113
  %v508 = vunpack.c.l.b16 %v114
  %v509 = vunpack.c.l.b16 %v115
  %v510 = vunpack.c.l.b16 %v116
  %v511 = vunpack.c.l.b16 %v117
  %v512 = vunpack.c.l.b16 %v118
  %v513 = vunpack.c.l.b16 %v119
  %v514 = vunpack.c.l.b16 %v120
  %v515 = vunpack.c.l.b16 %v121
  %v516 = vunpack.c.l.b16 %v122
  %v517 = vunpack.c.l.b16 %v123
  %v518 = vunpack.c.l.b16 %v124
  %v519 = vunpack.c.l.b16 %v125
  %v520 = vunpack.c.l.b16 %v126
  %v521 = vunpack.c.l.b16 %v127
  %v522 = vunpack.c.l.b16 %v128
  %v523 = vunpack.c.l.b16 %v129
  %v524 = vunpack.c.l.b16 %v130
  %v525 = vunpack.c.l.b16 %v131
  %v526 = vunpack.c.l.b16 %v132
  %v527 = vunpack.c.l.b16 %v133
  %v528 = vunpack.c.l.b16 %v134
  %v529 = vunpack.c.l.b16 %v135
  %v530 = vunpack.c.l.b16 %v136
  %v531 = vunpack.c.l.b16 %v137
  %v532 = vunpack.c.l.b16 %v138
  %v533 = vunpack.c.l.b16 %v139
  %v534 = vunpack.c.l.b16 %v140
  %v535 = vunpack.c.l.b16 %v141
  %v536 = vunpack.c.l.b16 %v142
  %v537 = vunpack.c.l.b16 %v143
  %v538 = vunpack.c.l.b16 %v144
  %v539 = vunpack.c.l.b16 %v145
  %v540 = vunpack.c.l.b16 %v146
  %v541 = vunpack.c.l.b16 %v147
  %v542 = vunpack.c.l.b16 %v148
  %v543 = vunpack.c.l.b16 %v149
  %v544 = vunpack.c.l.b16 %v150
  %v545 = vunpack.c.l.b16 %v151
  %v546 = vpack.c.b16 %v467, %v466
  %v547 = vpack.c.b16 %v469, %v468
  %v548 = vpack.c.b16 %v471, %v470
  %v549 = vpack.c.b16 %v473, %v472
  %v550 = vpack.c.b16 %v475, %v474
  %v551 = vpack.c.b16 %v477, %v476
  %v552 = vpack.c.b16 %v479, %v478
  %v553 = vpack.c.b16 %v481, %v480
  %v554 = vpack.c.b16 %v483, %v482
  %v555 = vpack.c.b16 %v485, %v484
  %v556 = vpack.c.b16 %v487, %v486
  %v557 = vpack.c.b16 %v489, %v488
  %v558 = vpack.c.b16 %v491, %v490
  %v559 = vpack.c.b16 %v493, %v492
  %v560 = vpack.c.b16 %v495, %v494
  %v561 = vpack.c.b16 %v497, %v496
  %v562 = vpack.c.b16 %v499, %v498
  %v563 = vpack.c.b16 %v501, %v500
  %v564 = vpack.c.b16 %v503, %v502
  %v565 = vpack.c.b16 %v505, %v504
  %v566 = vpack.c.b16 %v507, %v506
  %v567 = vpack.c.b16 %v509, %v508
  %v568 = vpack.c.b16 %v511, %v510
  %v569 = vpack.c.b16 %v513, %v512
  %v570 = vpack.c.b16 %v515, %v514
  %v571 = vpack.c.b16 %v517, %v516
  %v572 = vpack.c.b16 %v519, %v518
  %v573 = vpack.c.b16 %v521, %v520
  %v574 = vpack.c.b16 %v523, %v522
  %v575 = vpack.c.b16 %v525, %v524
  %v576 = vpack.c.b16 %v527, %v526
  %v577 = vpack.c.b16 %v529, %v528
  %v578 = vpack.c.b16 %v531, %v530
  %v579 = vpack.c.b16 %v533, %v532
  %v580 = vpack.c.b16 %v535, %v534
  %v581 = vpack.c.b16 %v537, %v536
  %v582 = vpack.c.b16 %v539, %v538
  %v583 = vpack.c.b16 %v541, %v540
  %v584 = vpack.c.b16 %v543, %v542
  %v585 = vpack.c.b16 %v545, %v544
  %626 = vmatprep.subr.bf16.mxu0 0
  %627 = vmatpush1.bf16.msra.mxu0 %v546
  %628 = vmatprep.subr.bf16.mxu0 0
  %629 = vmatpush1.bf16.msra.mxu0 %v547
  %630 = vmatprep.subr.bf16.mxu0 0
  %631 = vmatpush1.bf16.msra.mxu0 %v548
  %632 = vmatprep.subr.bf16.mxu0 0
  %633 = vmatpush1.bf16.msra.mxu0 %v549
  %634 = vmatprep.subr.bf16.mxu0 0
  %635 = vmatpush1.bf16.msra.mxu0 %v550
  %636 = vmatprep.subr.bf16.mxu0 0
  %637 = vmatpush1.bf16.msra.mxu0 %v551
  %638 = vmatprep.subr.bf16.mxu0 0
  %639 = vmatpush1.bf16.msra.mxu0 %v552
  %640 = vmatprep.subr.bf16.mxu0 0
  %641 = vmatpush1.bf16.msra.mxu0 %v553
  %642 = vmatprep.subr.bf16.mxu0 0
  %643 = vmatpush1.bf16.msra.mxu0 %v554
  %644 = vmatprep.subr.bf16.mxu0 0
  %645 = vmatpush1.bf16.msra.mxu0 %v555
  %646 = vmatprep.subr.bf16.mxu0 0
  %647 = vmatpush1.bf16.msra.mxu0 %v556
  %648 = vmatprep.subr.bf16.mxu0 0
  %649 = vmatpush1.bf16.msra.mxu0 %v557
  %650 = vmatprep.subr.bf16.mxu0 0
  %651 = vmatpush1.bf16.msra.mxu0 %v558
  %652 = vmatprep.subr.bf16.mxu0 0
  %653 = vmatpush1.bf16.msra.mxu0 %v559
  %654 = vmatprep.subr.bf16.mxu0 0
  %655 = vmatpush1.bf16.msra.mxu0 %v560
  %656 = vmatprep.subr.bf16.mxu0 0
  %657 = vmatpush1.bf16.msra.mxu0 %v561
  %658 = vmatprep.mubr.bf16.mxu0 %v297
  %659 = vmatmul.mubr.bf16.gmra.mrb[0].mxu0 %v296
  %v660 = vpop.f32.mrb[0].mxu0
  %v661 = vadd.f32 0.0, %v660
  %v662 = vpop.f32.mrb[0].mxu0
  %v663 = vpop.f32.mrb[0].mxu0
  %v664 = vadd.f32 0.0, %v663
  %v665 = vpop.f32.mrb[0].mxu0
  %666 = vmatprep.mubr.bf16.mxu0 %v302
  %667 = vmatmul.mubr.bf16.gmra.mrb[0].mxu0 %v301
  %v668 = vpop.f32.mrb[0].mxu0
  %v669 = vadd.f32 0.0, %v668
  %v670 = vpop.f32.mrb[0].mxu0
  %v671 = vpop.f32.mrb[0].mxu0
  %v672 = vadd.f32 0.0, %v671
  %v673 = vpop.f32.mrb[0].mxu0
  %674 = vmatprep.mubr.bf16.mxu0 %v307
  %675 = vmatmul.mubr.bf16.gmra.mrb[0].mxu0 %v306
  %v676 = vpop.f32.mrb[0].mxu0
  %v677 = vadd.f32 0.0, %v676
  %v678 = vpop.f32.mrb[0].mxu0
  %v679 = vpop.f32.mrb[0].mxu0
  %v680 = vadd.f32 0.0, %v679
  %v681 = vpop.f32.mrb[0].mxu0
  %682 = vmatprep.mubr.bf16.mxu0 %v312
  %683 = vmatmul.mubr.bf16.gmra.mrb[0].mxu0 %v311
  %v684 = vpop.f32.mrb[0].mxu0
  %v685 = vadd.f32 0.0, %v684
  %v686 = vpop.f32.mrb[0].mxu0
  %v687 = vpop.f32.mrb[0].mxu0
  %v688 = vadd.f32 0.0, %v687
  %v689 = vpop.f32.mrb[0].mxu0
  %690 = vmatprep.mubr.bf16.mxu0 %v317
  %691 = vmatmul.mubr.bf16.gmra.mrb[0].mxu0 %v316
  %v692 = vpop.f32.mrb[0].mxu0
  %v693 = vadd.f32 0.0, %v692
  %v694 = vpop.f32.mrb[0].mxu0
  %v695 = vpop.f32.mrb[0].mxu0
  %v696 = vadd.f32 0.0, %v695
  %v697 = vpop.f32.mrb[0].mxu0
  %698 = vmatprep.mubr.bf16.mxu0 %v322
  %699 = vmatmul.mubr.bf16.gmra.mrb[0].mxu0 %v321
  %v700 = vpop.f32.mrb[0].mxu0
  %v701 = vadd.f32 0.0, %v700
  %v702 = vpop.f32.mrb[0].mxu0
  %v703 = vpop.f32.mrb[0].mxu0
  %v704 = vadd.f32 0.0, %v703
  %v705 = vpop.f32.mrb[0].mxu0
  %706 = vmatprep.mubr.bf16.mxu0 %v327
  %707 = vmatmul.mubr.bf16.gmra.mrb[0].mxu0 %v326
  %v708 = vpop.f32.mrb[0].mxu0
  %v709 = vadd.f32 0.0, %v708
  %v710 = vpop.f32.mrb[0].mxu0
  %v711 = vpop.f32.mrb[0].mxu0
  %v712 = vadd.f32 0.0, %v711
  %v713 = vpop.f32.mrb[0].mxu0
  %714 = vmatprep.mubr.bf16.mxu0 %v332
  %715 = vmatmul.mubr.bf16.gmra.mrb[0].mxu0 %v331
  %v716 = vpop.f32.mrb[0].mxu0
  %v717 = vadd.f32 0.0, %v716
  %v718 = vpop.f32.mrb[0].mxu0
  %v719 = vpop.f32.mrb[0].mxu0
  %v720 = vadd.f32 0.0, %v719
  %v721 = vpop.f32.mrb[0].mxu0
  %722 = vmatprep.mubr.bf16.mxu0 %v337
  %723 = vmatmul.mubr.bf16.gmra.mrb[0].mxu0 %v336
  %v724 = vpop.f32.mrb[0].mxu0
  %v725 = vadd.f32 0.0, %v724
  %v726 = vpop.f32.mrb[0].mxu0
  %v727 = vpop.f32.mrb[0].mxu0
  %v728 = vadd.f32 0.0, %v727
  %v729 = vpop.f32.mrb[0].mxu0
  %730 = vdwg.mxu0
  %731 = vmatprep.subr.bf16.mxu0 0
  %732 = vmatpush1.bf16.msra.mxu0 %v562
  %733 = vmatprep.subr.bf16.mxu0 0
  %734 = vmatpush1.bf16.msra.mxu0 %v563
  %735 = vmatprep.subr.bf16.mxu0 0
  %736 = vmatpush1.bf16.msra.mxu0 %v564
  %737 = vmatprep.subr.bf16.mxu0 0
  %738 = vmatpush1.bf16.msra.mxu0 %v565
  %739 = vmatprep.subr.bf16.mxu0 0
  %740 = vmatpush1.bf16.msra.mxu0 %v566
  %741 = vmatprep.subr.bf16.mxu0 0
  %742 = vmatpush1.bf16.msra.mxu0 %v567
  %743 = vmatprep.subr.bf16.mxu0 0
  %744 = vmatpush1.bf16.msra.mxu0 %v568
  %745 = vmatprep.subr.bf16.mxu0 0
  %746 = vmatpush1.bf16.msra.mxu0 %v569
  %747 = vmatprep.subr.bf16.mxu0 0
  %748 = vmatpush1.bf16.msra.mxu0 %v570
  %749 = vmatprep.subr.bf16.mxu0 0
  %750 = vmatpush1.bf16.msra.mxu0 %v571
  %751 = vmatprep.subr.bf16.mxu0 0
  %752 = vmatpush1.bf16.msra.mxu0 %v572
  %753 = vmatprep.subr.bf16.mxu0 0
  %754 = vmatpush1.bf16.msra.mxu0 %v573
  %755 = vmatprep.subr.bf16.mxu0 0
  %756 = vmatpush1.bf16.msra.mxu0 %v574
  %757 = vmatprep.subr.bf16.mxu0 0
  %758 = vmatpush1.bf16.msra.mxu0 %v575
  %759 = vmatprep.subr.bf16.mxu0 0
  %760 = vmatpush1.bf16.msra.mxu0 %v576
  %761 = vmatprep.subr.bf16.mxu0 0
  %762 = vmatpush1.bf16.msra.mxu0 %v577
  %763 = vmatprep.mubr.bf16.mxu0 %v299
  %764 = vmatmul.mubr.bf16.gmra.mrb[0].mxu0 %v298
  %v765 = vpop.f32.mrb[0].mxu0
  %v766 = vadd.f32 %v661, %v765
  %v767 = vpop.f32.mrb[0].mxu0
  %v768 = vpop.f32.mrb[0].mxu0
  %v769 = vadd.f32 %v664, %v768
  %v770 = vpop.f32.mrb[0].mxu0
  %771 = vmatprep.mubr.bf16.mxu0 %v304
  %772 = vmatmul.mubr.bf16.gmra.mrb[0].mxu0 %v303
  %v773 = vpop.f32.mrb[0].mxu0
  %v774 = vadd.f32 %v669, %v773
  %v775 = vpop.f32.mrb[0].mxu0
  %v776 = vpop.f32.mrb[0].mxu0
  %v777 = vadd.f32 %v672, %v776
  %v778 = vpop.f32.mrb[0].mxu0
  %779 = vmatprep.mubr.bf16.mxu0 %v309
  %780 = vmatmul.mubr.bf16.gmra.mrb[0].mxu0 %v308
  %v781 = vpop.f32.mrb[0].mxu0
  %v782 = vadd.f32 %v677, %v781
  %v783 = vpop.f32.mrb[0].mxu0
  %v784 = vpop.f32.mrb[0].mxu0
  %v785 = vadd.f32 %v680, %v784
  %v786 = vpop.f32.mrb[0].mxu0
  %787 = vmatprep.mubr.bf16.mxu0 %v314
  %788 = vmatmul.mubr.bf16.gmra.mrb[0].mxu0 %v313
  %v789 = vpop.f32.mrb[0].mxu0
  %v790 = vadd.f32 %v685, %v789
  %v791 = vpop.f32.mrb[0].mxu0
  %v792 = vpop.f32.mrb[0].mxu0
  %v793 = vadd.f32 %v688, %v792
  %v794 = vpop.f32.mrb[0].mxu0
  %795 = vmatprep.mubr.bf16.mxu0 %v319
  %796 = vmatmul.mubr.bf16.gmra.mrb[0].mxu0 %v318
  %v797 = vpop.f32.mrb[0].mxu0
  %v798 = vadd.f32 %v693, %v797
  %v799 = vpop.f32.mrb[0].mxu0
  %v800 = vpop.f32.mrb[0].mxu0
  %v801 = vadd.f32 %v696, %v800
  %v802 = vpop.f32.mrb[0].mxu0
  %803 = vmatprep.mubr.bf16.mxu0 %v324
  %804 = vmatmul.mubr.bf16.gmra.mrb[0].mxu0 %v323
  %v805 = vpop.f32.mrb[0].mxu0
  %v806 = vadd.f32 %v701, %v805
  %v807 = vpop.f32.mrb[0].mxu0
  %v808 = vpop.f32.mrb[0].mxu0
  %v809 = vadd.f32 %v704, %v808
  %v810 = vpop.f32.mrb[0].mxu0
  %811 = vmatprep.mubr.bf16.mxu0 %v329
  %812 = vmatmul.mubr.bf16.gmra.mrb[0].mxu0 %v328
  %v813 = vpop.f32.mrb[0].mxu0
  %v814 = vadd.f32 %v709, %v813
  %v815 = vpop.f32.mrb[0].mxu0
  %v816 = vpop.f32.mrb[0].mxu0
  %v817 = vadd.f32 %v712, %v816
  %v818 = vpop.f32.mrb[0].mxu0
  %819 = vmatprep.mubr.bf16.mxu0 %v334
  %820 = vmatmul.mubr.bf16.gmra.mrb[0].mxu0 %v333
  %v821 = vpop.f32.mrb[0].mxu0
  %v822 = vadd.f32 %v717, %v821
  %v823 = vpop.f32.mrb[0].mxu0
  %v824 = vpop.f32.mrb[0].mxu0
  %v825 = vadd.f32 %v720, %v824
  %v826 = vpop.f32.mrb[0].mxu0
  %827 = vmatprep.mubr.bf16.mxu0 %v339
  %828 = vmatmul.mubr.bf16.gmra.mrb[0].mxu0 %v338
  %v829 = vpop.f32.mrb[0].mxu0
  %v830 = vadd.f32 %v725, %v829
  %v831 = vpop.f32.mrb[0].mxu0
  %v832 = vpop.f32.mrb[0].mxu0
  %v833 = vadd.f32 %v728, %v832
  %v834 = vpop.f32.mrb[0].mxu0
  %835 = vdwg.mxu0
  %836 = vmatprep.subr.bf16.mxu0 0
  %837 = vmatpush1.bf16.msra.mxu0 %v578
  %838 = vmatprep.subr.bf16.mxu0 0
  %839 = vmatpush1.bf16.msra.mxu0 %v579
  %840 = vmatprep.subr.bf16.mxu0 0
  %841 = vmatpush1.bf16.msra.mxu0 %v580
  %842 = vmatprep.subr.bf16.mxu0 0
  %843 = vmatpush1.bf16.msra.mxu0 %v581
  %844 = vmatprep.subr.bf16.mxu0 0
  %845 = vmatpush1.bf16.msra.mxu0 %v582
  %846 = vmatprep.subr.bf16.mxu0 0
  %847 = vmatpush1.bf16.msra.mxu0 %v583
  %848 = vmatprep.subr.bf16.mxu0 0
  %849 = vmatpush1.bf16.msra.mxu0 %v584
  %850 = vmatprep.subr.bf16.mxu0 0
  %851 = vmatpush1.bf16.msra.mxu0 %v585
  %852 = vmatprep.subr.bf16.mxu0 0
  %853 = vmatpush1.bf16.msra.mxu0 0
  %854 = vmatprep.subr.bf16.mxu0 0
  %855 = vmatpush1.bf16.msra.mxu0 0
  %856 = vmatprep.subr.bf16.mxu0 0
  %857 = vmatpush1.bf16.msra.mxu0 0
  %858 = vmatprep.subr.bf16.mxu0 0
  %859 = vmatpush1.bf16.msra.mxu0 0
  %860 = vmatprep.subr.bf16.mxu0 0
  %861 = vmatpush1.bf16.msra.mxu0 0
  %862 = vmatprep.subr.bf16.mxu0 0
  %863 = vmatpush1.bf16.msra.mxu0 0
  %864 = vmatprep.subr.bf16.mxu0 0
  %865 = vmatpush1.bf16.msra.mxu0 0
  %866 = vmatprep.subr.bf16.mxu0 0
  %867 = vmatpush1.bf16.msra.mxu0 0
  %868 = vmatprep.mubr.bf16.mxu0 0
  %869 = vmatmul.mubr.bf16.gmra.mrb[0].mxu0 %v300
  %v870 = vpop.f32.mrb[0].mxu0
  %v871 = vadd.f32 %v766, %v870
  %v872 = vpop.f32.mrb[0].mxu0
  %v873 = vpop.f32.mrb[0].mxu0
  %v874 = vadd.f32 %v769, %v873
  %v875 = vpop.f32.mrb[0].mxu0
  %876 = vmatprep.mubr.bf16.mxu0 0
  %877 = vmatmul.mubr.bf16.gmra.mrb[0].mxu0 %v305
  %v878 = vpop.f32.mrb[0].mxu0
  %v879 = vadd.f32 %v774, %v878
  %v880 = vpop.f32.mrb[0].mxu0
  %v881 = vpop.f32.mrb[0].mxu0
  %v882 = vadd.f32 %v777, %v881
  %v883 = vpop.f32.mrb[0].mxu0
  %884 = vmatprep.mubr.bf16.mxu0 0
  %885 = vmatmul.mubr.bf16.gmra.mrb[0].mxu0 %v310
  %v886 = vpop.f32.mrb[0].mxu0
  %v887 = vadd.f32 %v782, %v886
  %v888 = vpop.f32.mrb[0].mxu0
  %v889 = vpop.f32.mrb[0].mxu0
  %v890 = vadd.f32 %v785, %v889
  %v891 = vpop.f32.mrb[0].mxu0
  %892 = vmatprep.mubr.bf16.mxu0 0
  %893 = vmatmul.mubr.bf16.gmra.mrb[0].mxu0 %v315
  %v894 = vpop.f32.mrb[0].mxu0
  %v895 = vadd.f32 %v790, %v894
  %v896 = vpop.f32.mrb[0].mxu0
  %v897 = vpop.f32.mrb[0].mxu0
  %v898 = vadd.f32 %v793, %v897
  %v899 = vpop.f32.mrb[0].mxu0
  %900 = vmatprep.mubr.bf16.mxu0 0
  %901 = vmatmul.mubr.bf16.gmra.mrb[0].mxu0 %v320
  %v902 = vpop.f32.mrb[0].mxu0
  %v903 = vadd.f32 %v798, %v902
  %v904 = vpop.f32.mrb[0].mxu0
  %v905 = vpop.f32.mrb[0].mxu0
  %v906 = vadd.f32 %v801, %v905
  %v907 = vpop.f32.mrb[0].mxu0
  %908 = vmatprep.mubr.bf16.mxu0 0
  %909 = vmatmul.mubr.bf16.gmra.mrb[0].mxu0 %v325
  %v910 = vpop.f32.mrb[0].mxu0
  %v911 = vadd.f32 %v806, %v910
  %v912 = vpop.f32.mrb[0].mxu0
  %v913 = vpop.f32.mrb[0].mxu0
  %v914 = vadd.f32 %v809, %v913
  %v915 = vpop.f32.mrb[0].mxu0
  %916 = vmatprep.mubr.bf16.mxu0 0
  %917 = vmatmul.mubr.bf16.gmra.mrb[0].mxu0 %v330
  %v918 = vpop.f32.mrb[0].mxu0
  %v919 = vadd.f32 %v814, %v918
  %v920 = vpop.f32.mrb[0].mxu0
  %v921 = vpop.f32.mrb[0].mxu0
  %v922 = vadd.f32 %v817, %v921
  %v923 = vpop.f32.mrb[0].mxu0
  %924 = vmatprep.mubr.bf16.mxu0 0
  %925 = vmatmul.mubr.bf16.gmra.mrb[0].mxu0 %v335
  %v926 = vpop.f32.mrb[0].mxu0
  %v927 = vadd.f32 %v822, %v926
  %v928 = vpop.f32.mrb[0].mxu0
  %v929 = vpop.f32.mrb[0].mxu0
  %v930 = vadd.f32 %v825, %v929
  %v931 = vpop.f32.mrb[0].mxu0
  %932 = vmatprep.mubr.bf16.mxu0 0
  %933 = vmatmul.mubr.bf16.gmra.mrb[0].mxu0 %v340
  %v934 = vpop.f32.mrb[0].mxu0
  %v935 = vadd.f32 %v830, %v934
  %v936 = vpop.f32.mrb[0].mxu0
  %v937 = vpop.f32.mrb[0].mxu0
  %v938 = vadd.f32 %v833, %v937
  %v939 = vpop.f32.mrb[0].mxu0
  %940 = vdwg.mxu0
  %v941 = vld [vmem:[%s2] sm:$0x1]
  %v943 = vlaneseq
  %v944 = vshrl.u32 %v943, 7
  %v945 = vsub.s32 0, %v944
  %v946 = vrot.slane %v941, %v945
  %v948 = vmul.f32 %v871, %v946
  %v949 = vmul.f32 %v874, %v946
  %v950 = vmul.f32 %v879, %v946
  %v951 = vmul.f32 %v882, %v946
  %v952 = vmul.f32 %v887, %v946
  %v953 = vmul.f32 %v890, %v946
  %v954 = vmul.f32 %v895, %v946
  %v955 = vmul.f32 %v898, %v946
  %v956 = vmul.f32 %v903, %v946
  %v957 = vmul.f32 %v906, %v946
  %v958 = vmul.f32 %v911, %v946
  %v959 = vmul.f32 %v914, %v946
  %v960 = vmul.f32 %v919, %v946
  %v961 = vmul.f32 %v922, %v946
  %v962 = vmul.f32 %v927, %v946
  %v963 = vmul.f32 %v930, %v946
  %v964 = vmul.f32 %v935, %v946
  %v965 = vmul.f32 %v938, %v946
  %v966 = vld [vmem:[%s3] sm:$0x1]
  %v968 = vlaneseq
  %v969 = vshrl.u32 %v968, 7
  %v970 = vsub.s32 0, %v969
  %v971 = vrot.slane %v966, %v970
  %v973 = vadd.f32 %v948, %v971
  %v974 = vadd.f32 %v949, %v971
  %v975 = vadd.f32 %v950, %v971
  %v976 = vadd.f32 %v951, %v971
  %v977 = vadd.f32 %v952, %v971
  %v978 = vadd.f32 %v953, %v971
  %v979 = vadd.f32 %v954, %v971
  %v980 = vadd.f32 %v955, %v971
  %v981 = vadd.f32 %v956, %v971
  %v982 = vadd.f32 %v957, %v971
  %v983 = vadd.f32 %v958, %v971
  %v984 = vadd.f32 %v959, %v971
  %v985 = vadd.f32 %v960, %v971
  %v986 = vadd.f32 %v961, %v971
  %v987 = vadd.f32 %v962, %v971
  %v988 = vadd.f32 %v963, %v971
  %v989 = vadd.f32 %v964, %v971
  %v990 = vadd.f32 %v965, %v971
  %v991 = vmax.f32 %v973, 0.0
  %v992 = vmax.f32 %v974, 0.0
  %v993 = vmax.f32 %v975, 0.0
  %v994 = vmax.f32 %v976, 0.0
  %v995 = vmax.f32 %v977, 0.0
  %v996 = vmax.f32 %v978, 0.0
  %v997 = vmax.f32 %v979, 0.0
  %v998 = vmax.f32 %v980, 0.0
  %v999 = vmax.f32 %v981, 0.0
  %v1000 = vmax.f32 %v982, 0.0
  %v1001 = vmax.f32 %v983, 0.0
  %v1002 = vmax.f32 %v984, 0.0
  %v1003 = vmax.f32 %v985, 0.0
  %v1004 = vmax.f32 %v986, 0.0
  %v1005 = vmax.f32 %v987, 0.0
  %v1006 = vmax.f32 %v988, 0.0
  %v1007 = vmax.f32 %v989, 0.0
  %v1008 = vmax.f32 %v990, 0.0
  %v1009 = vpack.c.bf16 %v992, %v991
  %v1010 = vpack.c.bf16 %v994, %v993
  %v1011 = vpack.c.bf16 %v996, %v995
  %v1012 = vpack.c.bf16 %v998, %v997
  %v1013 = vpack.c.bf16 %v1000, %v999
  %v1014 = vpack.c.bf16 %v1002, %v1001
  %v1015 = vpack.c.bf16 %v1004, %v1003
  %v1016 = vpack.c.bf16 %v1006, %v1005
  %v1017 = vpack.c.bf16 %v1008, %v1007
  %v1027 = vunpack.c.l.b16 %v1009
  %v1028 = vunpack.c.h.b16 %v1009
  %v1029 = vunpack.c.l.b16 %v1010
  %v1030 = vunpack.c.h.b16 %v1010
  %v1031 = vunpack.c.l.b16 %v1011
  %v1032 = vunpack.c.h.b16 %v1011
  %v1033 = vunpack.c.l.b16 %v1012
  %v1034 = vunpack.c.h.b16 %v1012
  %v1035 = vunpack.c.l.b16 %v1013
  %v1036 = vunpack.c.h.b16 %v1013
  %v1037 = vunpack.c.l.b16 %v1014
  %v1038 = vunpack.c.h.b16 %v1014
  %v1039 = vunpack.c.l.b16 %v1015
  %v1040 = vunpack.c.h.b16 %v1015
  %v1041 = vunpack.c.l.b16 %v1016
  %v1042 = vunpack.c.h.b16 %v1016
  %v1043 = vunpack.c.l.b16 %v1017
  %v1044 = vunpack.c.h.b16 %v1017
  %v1045 = vpack.c.b16 %v1027, %v1027
  %v1046 = vpack.c.b16 %v1028, %v1028
  %v1047 = vpack.c.b16 %v1029, %v1029
  %v1048 = vpack.c.b16 %v1030, %v1030
  %v1049 = vpack.c.b16 %v1031, %v1031
  %v1050 = vpack.c.b16 %v1032, %v1032
  %v1051 = vpack.c.b16 %v1033, %v1033
  %v1052 = vpack.c.b16 %v1034, %v1034
  %v1053 = vpack.c.b16 %v1035, %v1035
  %v1054 = vpack.c.b16 %v1036, %v1036
  %v1055 = vpack.c.b16 %v1037, %v1037
  %v1056 = vpack.c.b16 %v1038, %v1038
  %v1057 = vpack.c.b16 %v1039, %v1039
  %v1058 = vpack.c.b16 %v1040, %v1040
  %v1059 = vpack.c.b16 %v1041, %v1041
  %v1060 = vpack.c.b16 %v1042, %v1042
  %v1061 = vpack.c.b16 %v1043, %v1043
  %v1062 = vpack.c.b16 %v1044, %v1044
  %1081 = vst [vmem:[%s4] sm:$0xf] %v1045
  %1082 = vst [vmem:[%s4 + $0x4] sm:$0xf] %v1046
  %1083 = vst [vmem:[%s4 + $0x8] sm:$0xf] %v1047
  %1084 = vst [vmem:[%s4 + $0xc] sm:$0xf] %v1048
  %1085 = vst [vmem:[%s4 + $0x10] sm:$0xf] %v1049
  %1086 = vst [vmem:[%s4 + $0x14] sm:$0xf] %v1050
  %1087 = vst [vmem:[%s4 + $0x18] sm:$0xf] %v1051
  %1088 = vst [vmem:[%s4 + $0x1c] sm:$0xf] %v1052
  %1089 = vst [vmem:[%s4 + $0x20] sm:$0xf] %v1053
  %1090 = vst [vmem:[%s4 + $0x24] sm:$0xf] %v1054
  %1091 = vst [vmem:[%s4 + $0x28] sm:$0xf] %v1055
  %1092 = vst [vmem:[%s4 + $0x2c] sm:$0xf] %v1056
  %1093 = vst [vmem:[%s4 + $0x30] sm:$0xf] %v1057
  %1094 = vst [vmem:[%s4 + $0x34] sm:$0xf] %v1058
  %1095 = vst [vmem:[%s4 + $0x38] sm:$0xf] %v1059
  %1096 = vst [vmem:[%s4 + $0x3c] sm:$0xf] %v1060
  %1097 = vst [vmem:[%s4 + $0x40] sm:$0xf] %v1061
  %1098 = vst [vmem:[%s4 + $0x44] sm:$0xf] %v1062
  // Predicated region
  $region18: #{_lambda_.6} parent=0 // pred_check
    _
  $region19: #{_lambda_.6} parent=0 // pred_check_branch
    %1100 = sbr.rel (0) target = $region21
  $region20: #{_lambda_.6} parent=0 // pred_region
    _
  $region21: #{_lambda_.6} parent=0 // pred_fallthru
    _
  // Predicated region
  $region22: #{_lambda_.6} parent=0 // pred_check
    _
  $region23: #{_lambda_.6} parent=0 // pred_check_branch
    %1102 = sbr.rel (0) target = $region25
  $region24: #{_lambda_.6} parent=0 // pred_region
    _
  $region25: #{_lambda_.6} parent=0 // pred_fallthru
    _

// kernel: _lambda_.7
$region0: #{_lambda_.7}
  #allocation0 [shape = 'u32[]', space=smem, size = 0x4, offset = 0x4, fixed_abs, tag = 'smem constant byte address 0x4 - core index']
  #allocation1 [shape = 'u32[144,128]{1,0:T(1,128)}', space=vmem, size = 0x12000, scoped, tag = 'internal scratch']
  %s0 = inlined_call_operand.vmem [shape: bf16[64,1152], index: 0, kind: input, shape index: {}]
  %s1 = inlined_call_operand.vmem [shape: bf16[1152,256], index: 1, kind: input, shape index: {}]
  %s2 = inlined_call_operand.vmem [shape: f32[1,256], index: 2, kind: input, shape index: {}]
  %s3 = inlined_call_operand.vmem [shape: f32[1,256], index: 3, kind: input, shape index: {}]
  %s4 = inlined_call_operand.vmem [shape: bf16[64,256], index: 4, kind: output, shape index: {}]
  %s5 = sld [smem:[#allocation0]]
  $region26: #{_lambda_.7} parent=0
    _
  %s7 = ssub.s32 1, %s5
  %s8 = scalar_select 0, %s7, %s5
  // Predicated region
  $region2: #{_lambda_.7} parent=0 // pred_check
    _
  $region3: #{_lambda_.7} parent=0 // pred_check_branch
    %10 = sbr.rel (0) target = $region5
  $region4: #{_lambda_.7} parent=0 // pred_region
    _
  $region5: #{_lambda_.7} parent=0 // pred_fallthru
    _
  // Predicated region
  $region6: #{_lambda_.7} parent=0 // pred_check
    _
  $region7: #{_lambda_.7} parent=0 // pred_check_branch
    %12 = sbr.rel (0) target = $region9
  $region8: #{_lambda_.7} parent=0 // pred_region
    _
  $region9: #{_lambda_.7} parent=0 // pred_fallthru
    _
  // Predicated region
  $region10: #{_lambda_.7} parent=0 // pred_check
    _
  $region11: #{_lambda_.7} parent=0 // pred_check_branch
    %14 = sbr.rel (0) target = $region13
  $region12: #{_lambda_.7} parent=0 // pred_region
    _
  $region13: #{_lambda_.7} parent=0 // pred_fallthru
    _
  // Predicated region
  $region14: #{_lambda_.7} parent=0 // pred_check
    _
  $region15: #{_lambda_.7} parent=0 // pred_check_branch
    %16 = sbr.rel (0) target = $region17
  $region16: #{_lambda_.7} parent=0 // pred_region
    _
  $region17: #{_lambda_.7} parent=0 // pred_fallthru
    _
  %v18 = vld [vmem:[%s0] sm:$0xff]
  %v19 = vld [vmem:[%s0 + $0x8] sm:$0xff]
  %v20 = vld [vmem:[%s0 + $0x10] sm:$0xff]
  %v21 = vld [vmem:[%s0 + $0x18] sm:$0xff]
  %v22 = vld [vmem:[%s0 + $0x20] sm:$0xf]
  %v23 = vld [vmem:[%s0 + $0x24] sm:$0xff]
  %v24 = vld [vmem:[%s0 + $0x2c] sm:$0xff]
  %v25 = vld [vmem:[%s0 + $0x34] sm:$0xff]
  %v26 = vld [vmem:[%s0 + $0x3c] sm:$0xff]
  %v27 = vld [vmem:[%s0 + $0x44] sm:$0xf]
  %v28 = vld [vmem:[%s0 + $0x48] sm:$0xff]
  %v29 = vld [vmem:[%s0 + $0x50] sm:$0xff]
  %v30 = vld [vmem:[%s0 + $0x58] sm:$0xff]
  %v31 = vld [vmem:[%s0 + $0x60] sm:$0xff]
  %v32 = vld [vmem:[%s0 + $0x68] sm:$0xf]
  %v33 = vld [vmem:[%s0 + $0x6c] sm:$0xff]
  %v34 = vld [vmem:[%s0 + $0x74] sm:$0xff]
  %v35 = vld [vmem:[%s0 + $0x7c] sm:$0xff]
  %v36 = vld [vmem:[%s0 + $0x84] sm:$0xff]
  %v37 = vld [vmem:[%s0 + $0x8c] sm:$0xf]
  %v38 = vld [vmem:[%s0 + $0x90] sm:$0xff]
  %v39 = vld [vmem:[%s0 + $0x98] sm:$0xff]
  %v40 = vld [vmem:[%s0 + $0xa0] sm:$0xff]
  %v41 = vld [vmem:[%s0 + $0xa8] sm:$0xff]
  %v42 = vld [vmem:[%s0 + $0xb0] sm:$0xf]
  %v43 = vld [vmem:[%s0 + $0xb4] sm:$0xff]
  %v44 = vld [vmem:[%s0 + $0xbc] sm:$0xff]
  %v45 = vld [vmem:[%s0 + $0xc4] sm:$0xff]
  %v46 = vld [vmem:[%s0 + $0xcc] sm:$0xff]
  %v47 = vld [vmem:[%s0 + $0xd4] sm:$0xf]
  %v48 = vld [vmem:[%s0 + $0xd8] sm:$0xff]
  %v49 = vld [vmem:[%s0 + $0xe0] sm:$0xff]
  %v50 = vld [vmem:[%s0 + $0xe8] sm:$0xff]
  %v51 = vld [vmem:[%s0 + $0xf0] sm:$0xff]
  %v52 = vld [vmem:[%s0 + $0xf8] sm:$0xf]
  %v53 = vld [vmem:[%s0 + $0xfc] sm:$0xff]
  %v54 = vld [vmem:[%s0 + $0x104] sm:$0xff]
  %v55 = vld [vmem:[%s0 + $0x10c] sm:$0xff]
  %v56 = vld [vmem:[%s0 + $0x114] sm:$0xff]
  %v57 = vld [vmem:[%s0 + $0x11c] sm:$0xf]
  %v58 = vld [vmem:[%s1] sm:$0xff]
  %v59 = vld [vmem:[%s1 + $0x8] sm:$0xff]
  %v60 = vld [vmem:[%s1 + $0x10] sm:$0xff]
  %v61 = vld [vmem:[%s1 + $0x18] sm:$0xff]
  %v62 = vld [vmem:[%s1 + $0x20] sm:$0xff]
  %v63 = vld [vmem:[%s1 + $0x28] sm:$0xff]
  %v64 = vld [vmem:[%s1 + $0x30] sm:$0xff]
  %v65 = vld [vmem:[%s1 + $0x38] sm:$0xff]
  %v66 = vld [vmem:[%s1 + $0x40] sm:$0xff]
  %v67 = vld [vmem:[%s1 + $0x48] sm:$0xff]
  %v68 = vld [vmem:[%s1 + $0x50] sm:$0xff]
  %v69 = vld [vmem:[%s1 + $0x58] sm:$0xff]
  %v70 = vld [vmem:[%s1 + $0x60] sm:$0xff]
  %v71 = vld [vmem:[%s1 + $0x68] sm:$0xff]
  %v72 = vld [vmem:[%s1 + $0x70] sm:$0xff]
  %v73 = vld [vmem:[%s1 + $0x78] sm:$0xff]
  %v74 = vld [vmem:[%s1 + $0x80] sm:$0xff]
  %v75 = vld [vmem:[%s1 + $0x88] sm:$0xff]
  %v76 = vld [vmem:[%s1 + $0x90] sm:$0xff]
  %v77 = vld [vmem:[%s1 + $0x98] sm:$0xff]
  %v78 = vld [vmem:[%s1 + $0xa0] sm:$0xff]
  %v79 = vld [vmem:[%s1 + $0xa8] sm:$0xff]
  %v80 = vld [vmem:[%s1 + $0xb0] sm:$0xff]
  %v81 = vld [vmem:[%s1 + $0xb8] sm:$0xff]
  %v82 = vld [vmem:[%s1 + $0xc0] sm:$0xff]
  %v83 = vld [vmem:[%s1 + $0xc8] sm:$0xff]
  %v84 = vld [vmem:[%s1 + $0xd0] sm:$0xff]
  %v85 = vld [vmem:[%s1 + $0xd8] sm:$0xff]
  %v86 = vld [vmem:[%s1 + $0xe0] sm:$0xff]
  %v87 = vld [vmem:[%s1 + $0xe8] sm:$0xff]
  %v88 = vld [vmem:[%s1 + $0xf0] sm:$0xff]
  %v89 = vld [vmem:[%s1 + $0xf8] sm:$0xff]
  %v90 = vld [vmem:[%s1 + $0x100] sm:$0xff]
  %v91 = vld [vmem:[%s1 + $0x108] sm:$0xff]
  %v92 = vld [vmem:[%s1 + $0x110] sm:$0xff]
  %v93 = vld [vmem:[%s1 + $0x118] sm:$0xff]
  %v94 = vld [vmem:[%s1 + $0x120] sm:$0xff]
  %v95 = vld [vmem:[%s1 + $0x128] sm:$0xff]
  %v96 = vld [vmem:[%s1 + $0x130] sm:$0xff]
  %v97 = vld [vmem:[%s1 + $0x138] sm:$0xff]
  %v98 = vld [vmem:[%s1 + $0x140] sm:$0xff]
  %v99 = vld [vmem:[%s1 + $0x148] sm:$0xff]
  %v100 = vld [vmem:[%s1 + $0x150] sm:$0xff]
  %v101 = vld [vmem:[%s1 + $0x158] sm:$0xff]
  %v102 = vld [vmem:[%s1 + $0x160] sm:$0xff]
  %v103 = vld [vmem:[%s1 + $0x168] sm:$0xff]
  %v104 = vld [vmem:[%s1 + $0x170] sm:$0xff]
  %v105 = vld [vmem:[%s1 + $0x178] sm:$0xff]
  %v106 = vld [vmem:[%s1 + $0x180] sm:$0xff]
  %v107 = vld [vmem:[%s1 + $0x188] sm:$0xff]
  %v108 = vld [vmem:[%s1 + $0x190] sm:$0xff]
  %v109 = vld [vmem:[%s1 + $0x198] sm:$0xff]
  %v110 = vld [vmem:[%s1 + $0x1a0] sm:$0xff]
  %v111 = vld [vmem:[%s1 + $0x1a8] sm:$0xff]
  %v112 = vld [vmem:[%s1 + $0x1b0] sm:$0xff]
  %v113 = vld [vmem:[%s1 + $0x1b8] sm:$0xff]
  %v114 = vld [vmem:[%s1 + $0x1c0] sm:$0xff]
  %v115 = vld [vmem:[%s1 + $0x1c8] sm:$0xff]
  %v116 = vld [vmem:[%s1 + $0x1d0] sm:$0xff]
  %v117 = vld [vmem:[%s1 + $0x1d8] sm:$0xff]
  %v118 = vld [vmem:[%s1 + $0x1e0] sm:$0xff]
  %v119 = vld [vmem:[%s1 + $0x1e8] sm:$0xff]
  %v120 = vld [vmem:[%s1 + $0x1f0] sm:$0xff]
  %v121 = vld [vmem:[%s1 + $0x1f8] sm:$0xff]
  %v122 = vld [vmem:[%s1 + $0x200] sm:$0xff]
  %v123 = vld [vmem:[%s1 + $0x208] sm:$0xff]
  %v124 = vld [vmem:[%s1 + $0x210] sm:$0xff]
  %v125 = vld [vmem:[%s1 + $0x218] sm:$0xff]
  %v126 = vld [vmem:[%s1 + $0x220] sm:$0xff]
  %v127 = vld [vmem:[%s1 + $0x228] sm:$0xff]
  %v128 = vld [vmem:[%s1 + $0x230] sm:$0xff]
  %v129 = vld [vmem:[%s1 + $0x238] sm:$0xff]
  %v130 = vld [vmem:[%s1 + $0x240] sm:$0xff]
  %v131 = vld [vmem:[%s1 + $0x248] sm:$0xff]
  %v132 = vld [vmem:[%s1 + $0x250] sm:$0xff]
  %v133 = vld [vmem:[%s1 + $0x258] sm:$0xff]
  %v134 = vld [vmem:[%s1 + $0x260] sm:$0xff]
  %v135 = vld [vmem:[%s1 + $0x268] sm:$0xff]
  %v136 = vld [vmem:[%s1 + $0x270] sm:$0xff]
  %v137 = vld [vmem:[%s1 + $0x278] sm:$0xff]
  %v138 = vld [vmem:[%s1 + $0x280] sm:$0xff]
  %v139 = vld [vmem:[%s1 + $0x288] sm:$0xff]
  %v140 = vld [vmem:[%s1 + $0x290] sm:$0xff]
  %v141 = vld [vmem:[%s1 + $0x298] sm:$0xff]
  %v142 = vld [vmem:[%s1 + $0x2a0] sm:$0xff]
  %v143 = vld [vmem:[%s1 + $0x2a8] sm:$0xff]
  %v144 = vld [vmem:[%s1 + $0x2b0] sm:$0xff]
  %v145 = vld [vmem:[%s1 + $0x2b8] sm:$0xff]
  %v146 = vld [vmem:[%s1 + $0x2c0] sm:$0xff]
  %v147 = vld [vmem:[%s1 + $0x2c8] sm:$0xff]
  %v148 = vld [vmem:[%s1 + $0x2d0] sm:$0xff]
  %v149 = vld [vmem:[%s1 + $0x2d8] sm:$0xff]
  %v150 = vld [vmem:[%s1 + $0x2e0] sm:$0xff]
  %v151 = vld [vmem:[%s1 + $0x2e8] sm:$0xff]
  %v152 = vld [vmem:[%s1 + $0x2f0] sm:$0xff]
  %v153 = vld [vmem:[%s1 + $0x2f8] sm:$0xff]
  %v154 = vld [vmem:[%s1 + $0x300] sm:$0xff]
  %v155 = vld [vmem:[%s1 + $0x308] sm:$0xff]
  %v156 = vld [vmem:[%s1 + $0x310] sm:$0xff]
  %v157 = vld [vmem:[%s1 + $0x318] sm:$0xff]
  %v158 = vld [vmem:[%s1 + $0x320] sm:$0xff]
  %v159 = vld [vmem:[%s1 + $0x328] sm:$0xff]
  %v160 = vld [vmem:[%s1 + $0x330] sm:$0xff]
  %v161 = vld [vmem:[%s1 + $0x338] sm:$0xff]
  %v162 = vld [vmem:[%s1 + $0x340] sm:$0xff]
  %v163 = vld [vmem:[%s1 + $0x348] sm:$0xff]
  %v164 = vld [vmem:[%s1 + $0x350] sm:$0xff]
  %v165 = vld [vmem:[%s1 + $0x358] sm:$0xff]
  %v166 = vld [vmem:[%s1 + $0x360] sm:$0xff]
  %v167 = vld [vmem:[%s1 + $0x368] sm:$0xff]
  %v168 = vld [vmem:[%s1 + $0x370] sm:$0xff]
  %v169 = vld [vmem:[%s1 + $0x378] sm:$0xff]
  %v170 = vld [vmem:[%s1 + $0x380] sm:$0xff]
  %v171 = vld [vmem:[%s1 + $0x388] sm:$0xff]
  %v172 = vld [vmem:[%s1 + $0x390] sm:$0xff]
  %v173 = vld [vmem:[%s1 + $0x398] sm:$0xff]
  %v174 = vld [vmem:[%s1 + $0x3a0] sm:$0xff]
  %v175 = vld [vmem:[%s1 + $0x3a8] sm:$0xff]
  %v176 = vld [vmem:[%s1 + $0x3b0] sm:$0xff]
  %v177 = vld [vmem:[%s1 + $0x3b8] sm:$0xff]
  %v178 = vld [vmem:[%s1 + $0x3c0] sm:$0xff]
  %v179 = vld [vmem:[%s1 + $0x3c8] sm:$0xff]
  %v180 = vld [vmem:[%s1 + $0x3d0] sm:$0xff]
  %v181 = vld [vmem:[%s1 + $0x3d8] sm:$0xff]
  %v182 = vld [vmem:[%s1 + $0x3e0] sm:$0xff]
  %v183 = vld [vmem:[%s1 + $0x3e8] sm:$0xff]
  %v184 = vld [vmem:[%s1 + $0x3f0] sm:$0xff]
  %v185 = vld [vmem:[%s1 + $0x3f8] sm:$0xff]
  %v186 = vld [vmem:[%s1 + $0x400] sm:$0xff]
  %v187 = vld [vmem:[%s1 + $0x408] sm:$0xff]
  %v188 = vld [vmem:[%s1 + $0x410] sm:$0xff]
  %v189 = vld [vmem:[%s1 + $0x418] sm:$0xff]
  %v190 = vld [vmem:[%s1 + $0x420] sm:$0xff]
  %v191 = vld [vmem:[%s1 + $0x428] sm:$0xff]
  %v192 = vld [vmem:[%s1 + $0x430] sm:$0xff]
  %v193 = vld [vmem:[%s1 + $0x438] sm:$0xff]
  %v194 = vld [vmem:[%s1 + $0x440] sm:$0xff]
  %v195 = vld [vmem:[%s1 + $0x448] sm:$0xff]
  %v196 = vld [vmem:[%s1 + $0x450] sm:$0xff]
  %v197 = vld [vmem:[%s1 + $0x458] sm:$0xff]
  %v198 = vld [vmem:[%s1 + $0x460] sm:$0xff]
  %v199 = vld [vmem:[%s1 + $0x468] sm:$0xff]
  %v200 = vld [vmem:[%s1 + $0x470] sm:$0xff]
  %v201 = vld [vmem:[%s1 + $0x478] sm:$0xff]
  %v242 = vunpack.c.l.b16 %v18
  %v243 = vunpack.c.h.b16 %v18
  %v244 = vunpack.c.l.b16 %v19
  %v245 = vunpack.c.h.b16 %v19
  %v246 = vunpack.c.l.b16 %v20
  %v247 = vunpack.c.h.b16 %v20
  %v248 = vunpack.c.l.b16 %v21
  %v249 = vunpack.c.h.b16 %v21
  %v250 = vunpack.c.l.b16 %v22
  %v251 = vunpack.c.l.b16 %v23
  %v252 = vunpack.c.h.b16 %v23
  %v253 = vunpack.c.l.b16 %v24
  %v254 = vunpack.c.h.b16 %v24
  %v255 = vunpack.c.l.b16 %v25
  %v256 = vunpack.c.h.b16 %v25
  %v257 = vunpack.c.l.b16 %v26
  %v258 = vunpack.c.h.b16 %v26
  %v259 = vunpack.c.l.b16 %v27
  %v260 = vunpack.c.l.b16 %v28
  %v261 = vunpack.c.h.b16 %v28
  %v262 = vunpack.c.l.b16 %v29
  %v263 = vunpack.c.h.b16 %v29
  %v264 = vunpack.c.l.b16 %v30
  %v265 = vunpack.c.h.b16 %v30
  %v266 = vunpack.c.l.b16 %v31
  %v267 = vunpack.c.h.b16 %v31
  %v268 = vunpack.c.l.b16 %v32
  %v269 = vunpack.c.l.b16 %v33
  %v270 = vunpack.c.h.b16 %v33
  %v271 = vunpack.c.l.b16 %v34
  %v272 = vunpack.c.h.b16 %v34
  %v273 = vunpack.c.l.b16 %v35
  %v274 = vunpack.c.h.b16 %v35
  %v275 = vunpack.c.l.b16 %v36
  %v276 = vunpack.c.h.b16 %v36
  %v277 = vunpack.c.l.b16 %v37
  %v278 = vunpack.c.l.b16 %v38
  %v279 = vunpack.c.h.b16 %v38
  %v280 = vunpack.c.l.b16 %v39
  %v281 = vunpack.c.h.b16 %v39
  %v282 = vunpack.c.l.b16 %v40
  %v283 = vunpack.c.h.b16 %v40
  %v284 = vunpack.c.l.b16 %v41
  %v285 = vunpack.c.h.b16 %v41
  %v286 = vunpack.c.l.b16 %v42
  %v287 = vunpack.c.l.b16 %v43
  %v288 = vunpack.c.h.b16 %v43
  %v289 = vunpack.c.l.b16 %v44
  %v290 = vunpack.c.h.b16 %v44
  %v291 = vunpack.c.l.b16 %v45
  %v292 = vunpack.c.h.b16 %v45
  %v293 = vunpack.c.l.b16 %v46
  %v294 = vunpack.c.h.b16 %v46
  %v295 = vunpack.c.l.b16 %v47
  %v296 = vunpack.c.l.b16 %v48
  %v297 = vunpack.c.h.b16 %v48
  %v298 = vunpack.c.l.b16 %v49
  %v299 = vunpack.c.h.b16 %v49
  %v300 = vunpack.c.l.b16 %v50
  %v301 = vunpack.c.h.b16 %v50
  %v302 = vunpack.c.l.b16 %v51
  %v303 = vunpack.c.h.b16 %v51
  %v304 = vunpack.c.l.b16 %v52
  %v305 = vunpack.c.l.b16 %v53
  %v306 = vunpack.c.h.b16 %v53
  %v307 = vunpack.c.l.b16 %v54
  %v308 = vunpack.c.h.b16 %v54
  %v309 = vunpack.c.l.b16 %v55
  %v310 = vunpack.c.h.b16 %v55
  %v311 = vunpack.c.l.b16 %v56
  %v312 = vunpack.c.h.b16 %v56
  %v313 = vunpack.c.l.b16 %v57
  %v314 = vpack.c.b16 %v251, %v242
  %v315 = vpack.c.b16 %v252, %v243
  %v316 = vpack.c.b16 %v253, %v244
  %v317 = vpack.c.b16 %v254, %v245
  %v318 = vpack.c.b16 %v255, %v246
  %v319 = vpack.c.b16 %v256, %v247
  %v320 = vpack.c.b16 %v257, %v248
  %v321 = vpack.c.b16 %v258, %v249
  %v322 = vpack.c.b16 %v259, %v250
  %v323 = vpack.c.b16 %v269, %v260
  %v324 = vpack.c.b16 %v270, %v261
  %v325 = vpack.c.b16 %v271, %v262
  %v326 = vpack.c.b16 %v272, %v263
  %v327 = vpack.c.b16 %v273, %v264
  %v328 = vpack.c.b16 %v274, %v265
  %v329 = vpack.c.b16 %v275, %v266
  %v330 = vpack.c.b16 %v276, %v267
  %v331 = vpack.c.b16 %v277, %v268
  %v332 = vpack.c.b16 %v287, %v278
  %v333 = vpack.c.b16 %v288, %v279
  %v334 = vpack.c.b16 %v289, %v280
  %v335 = vpack.c.b16 %v290, %v281
  %v336 = vpack.c.b16 %v291, %v282
  %v337 = vpack.c.b16 %v292, %v283
  %v338 = vpack.c.b16 %v293, %v284
  %v339 = vpack.c.b16 %v294, %v285
  %v340 = vpack.c.b16 %v295, %v286
  %v341 = vpack.c.b16 %v305, %v296
  %v342 = vpack.c.b16 %v306, %v297
  %v343 = vpack.c.b16 %v307, %v298
  %v344 = vpack.c.b16 %v308, %v299
  %v345 = vpack.c.b16 %v309, %v300
  %v346 = vpack.c.b16 %v310, %v301
  %v347 = vpack.c.b16 %v311, %v302
  %v348 = vpack.c.b16 %v312, %v303
  %v349 = vpack.c.b16 %v313, %v304
  %v530 = vunpack.c.l.b16 %v58
  %v531 = vunpack.c.h.b16 %v58
  %v532 = vunpack.c.l.b16 %v59
  %v533 = vunpack.c.h.b16 %v59
  %v534 = vunpack.c.l.b16 %v60
  %v535 = vunpack.c.h.b16 %v60
  %v536 = vunpack.c.l.b16 %v61
  %v537 = vunpack.c.h.b16 %v61
  %v538 = vunpack.c.l.b16 %v62
  %v539 = vunpack.c.h.b16 %v62
  %v540 = vunpack.c.l.b16 %v63
  %v541 = vunpack.c.h.b16 %v63
  %v542 = vunpack.c.l.b16 %v64
  %v543 = vunpack.c.h.b16 %v64
  %v544 = vunpack.c.l.b16 %v65
  %v545 = vunpack.c.h.b16 %v65
  %v546 = vunpack.c.l.b16 %v66
  %v547 = vunpack.c.h.b16 %v66
  %v548 = vunpack.c.l.b16 %v67
  %v549 = vunpack.c.h.b16 %v67
  %v550 = vunpack.c.l.b16 %v68
  %v551 = vunpack.c.h.b16 %v68
  %v552 = vunpack.c.l.b16 %v69
  %v553 = vunpack.c.h.b16 %v69
  %v554 = vunpack.c.l.b16 %v70
  %v555 = vunpack.c.h.b16 %v70
  %v556 = vunpack.c.l.b16 %v71
  %v557 = vunpack.c.h.b16 %v71
  %v558 = vunpack.c.l.b16 %v72
  %v559 = vunpack.c.h.b16 %v72
  %v560 = vunpack.c.l.b16 %v73
  %v561 = vunpack.c.h.b16 %v73
  %v562 = vunpack.c.l.b16 %v74
  %v563 = vunpack.c.h.b16 %v74
  %v564 = vunpack.c.l.b16 %v75
  %v565 = vunpack.c.h.b16 %v75
  %v566 = vunpack.c.l.b16 %v76
  %v567 = vunpack.c.h.b16 %v76
  %v568 = vunpack.c.l.b16 %v77
  %v569 = vunpack.c.h.b16 %v77
  %v570 = vunpack.c.l.b16 %v78
  %v571 = vunpack.c.h.b16 %v78
  %v572 = vunpack.c.l.b16 %v79
  %v573 = vunpack.c.h.b16 %v79
  %v574 = vunpack.c.l.b16 %v80
  %v575 = vunpack.c.h.b16 %v80
  %v576 = vunpack.c.l.b16 %v81
  %v577 = vunpack.c.h.b16 %v81
  %v578 = vunpack.c.l.b16 %v82
  %v579 = vunpack.c.h.b16 %v82
  %v580 = vunpack.c.l.b16 %v83
  %v581 = vunpack.c.h.b16 %v83
  %v582 = vunpack.c.l.b16 %v84
  %v583 = vunpack.c.h.b16 %v84
  %v584 = vunpack.c.l.b16 %v85
  %v585 = vunpack.c.h.b16 %v85
  %v586 = vunpack.c.l.b16 %v86
  %v587 = vunpack.c.h.b16 %v86
  %v588 = vunpack.c.l.b16 %v87
  %v589 = vunpack.c.h.b16 %v87
  %v590 = vunpack.c.l.b16 %v88
  %v591 = vunpack.c.h.b16 %v88
  %v592 = vunpack.c.l.b16 %v89
  %v593 = vunpack.c.h.b16 %v89
  %v594 = vunpack.c.l.b16 %v90
  %v595 = vunpack.c.h.b16 %v90
  %v596 = vunpack.c.l.b16 %v91
  %v597 = vunpack.c.h.b16 %v91
  %v598 = vunpack.c.l.b16 %v92
  %v599 = vunpack.c.h.b16 %v92
  %v600 = vunpack.c.l.b16 %v93
  %v601 = vunpack.c.h.b16 %v93
  %v602 = vunpack.c.l.b16 %v94
  %v603 = vunpack.c.h.b16 %v94
  %v604 = vunpack.c.l.b16 %v95
  %v605 = vunpack.c.h.b16 %v95
  %v606 = vunpack.c.l.b16 %v96
  %v607 = vunpack.c.h.b16 %v96
  %v608 = vunpack.c.l.b16 %v97
  %v609 = vunpack.c.h.b16 %v97
  %v610 = vunpack.c.l.b16 %v98
  %v611 = vunpack.c.h.b16 %v98
  %v612 = vunpack.c.l.b16 %v99
  %v613 = vunpack.c.h.b16 %v99
  %v614 = vunpack.c.l.b16 %v100
  %v615 = vunpack.c.h.b16 %v100
  %v616 = vunpack.c.l.b16 %v101
  %v617 = vunpack.c.h.b16 %v101
  %v618 = vunpack.c.l.b16 %v102
  %v619 = vunpack.c.h.b16 %v102
  %v620 = vunpack.c.l.b16 %v103
  %v621 = vunpack.c.h.b16 %v103
  %v622 = vunpack.c.l.b16 %v104
  %v623 = vunpack.c.h.b16 %v104
  %v624 = vunpack.c.l.b16 %v105
  %v625 = vunpack.c.h.b16 %v105
  %v626 = vunpack.c.l.b16 %v106
  %v627 = vunpack.c.h.b16 %v106
  %v628 = vunpack.c.l.b16 %v107
  %v629 = vunpack.c.h.b16 %v107
  %v630 = vunpack.c.l.b16 %v108
  %v631 = vunpack.c.h.b16 %v108
  %v632 = vunpack.c.l.b16 %v109
  %v633 = vunpack.c.h.b16 %v109
  %v634 = vunpack.c.l.b16 %v110
  %v635 = vunpack.c.h.b16 %v110
  %v636 = vunpack.c.l.b16 %v111
  %v637 = vunpack.c.h.b16 %v111
  %v638 = vunpack.c.l.b16 %v112
  %v639 = vunpack.c.h.b16 %v112
  %v640 = vunpack.c.l.b16 %v113
  %v641 = vunpack.c.h.b16 %v113
  %v642 = vunpack.c.l.b16 %v114
  %v643 = vunpack.c.h.b16 %v114
  %v644 = vunpack.c.l.b16 %v115
  %v645 = vunpack.c.h.b16 %v115
  %v646 = vunpack.c.l.b16 %v116
  %v647 = vunpack.c.h.b16 %v116
  %v648 = vunpack.c.l.b16 %v117
  %v649 = vunpack.c.h.b16 %v117
  %v650 = vunpack.c.l.b16 %v118
  %v651 = vunpack.c.h.b16 %v118
  %v652 = vunpack.c.l.b16 %v119
  %v653 = vunpack.c.h.b16 %v119
  %v654 = vunpack.c.l.b16 %v120
  %v655 = vunpack.c.h.b16 %v120
  %v656 = vunpack.c.l.b16 %v121
  %v657 = vunpack.c.h.b16 %v121
  %v658 = vunpack.c.l.b16 %v122
  %v659 = vunpack.c.h.b16 %v122
  %v660 = vunpack.c.l.b16 %v123
  %v661 = vunpack.c.h.b16 %v123
  %v662 = vunpack.c.l.b16 %v124
  %v663 = vunpack.c.h.b16 %v124
  %v664 = vunpack.c.l.b16 %v125
  %v665 = vunpack.c.h.b16 %v125
  %v666 = vunpack.c.l.b16 %v126
  %v667 = vunpack.c.h.b16 %v126
  %v668 = vunpack.c.l.b16 %v127
  %v669 = vunpack.c.h.b16 %v127
  %v670 = vunpack.c.l.b16 %v128
  %v671 = vunpack.c.h.b16 %v128
  %v672 = vunpack.c.l.b16 %v129
  %v673 = vunpack.c.h.b16 %v129
  %v674 = vunpack.c.l.b16 %v130
  %v675 = vunpack.c.h.b16 %v130
  %v676 = vunpack.c.l.b16 %v131
  %v677 = vunpack.c.h.b16 %v131
  %v678 = vunpack.c.l.b16 %v132
  %v679 = vunpack.c.h.b16 %v132
  %v680 = vunpack.c.l.b16 %v133
  %v681 = vunpack.c.h.b16 %v133
  %v682 = vunpack.c.l.b16 %v134
  %v683 = vunpack.c.h.b16 %v134
  %v684 = vunpack.c.l.b16 %v135
  %v685 = vunpack.c.h.b16 %v135
  %v686 = vunpack.c.l.b16 %v136
  %v687 = vunpack.c.h.b16 %v136
  %v688 = vunpack.c.l.b16 %v137
  %v689 = vunpack.c.h.b16 %v137
  %v690 = vunpack.c.l.b16 %v138
  %v691 = vunpack.c.h.b16 %v138
  %v692 = vunpack.c.l.b16 %v139
  %v693 = vunpack.c.h.b16 %v139
  %v694 = vunpack.c.l.b16 %v140
  %v695 = vunpack.c.h.b16 %v140
  %v696 = vunpack.c.l.b16 %v141
  %v697 = vunpack.c.h.b16 %v141
  %v698 = vunpack.c.l.b16 %v142
  %v699 = vunpack.c.h.b16 %v142
  %v700 = vunpack.c.l.b16 %v143
  %v701 = vunpack.c.h.b16 %v143
  %v702 = vunpack.c.l.b16 %v144
  %v703 = vunpack.c.h.b16 %v144
  %v704 = vunpack.c.l.b16 %v145
  %v705 = vunpack.c.h.b16 %v145
  %v706 = vunpack.c.l.b16 %v146
  %v707 = vunpack.c.h.b16 %v146
  %v708 = vunpack.c.l.b16 %v147
  %v709 = vunpack.c.h.b16 %v147
  %v710 = vunpack.c.l.b16 %v148
  %v711 = vunpack.c.h.b16 %v148
  %v712 = vunpack.c.l.b16 %v149
  %v713 = vunpack.c.h.b16 %v149
  %v714 = vunpack.c.l.b16 %v150
  %v715 = vunpack.c.h.b16 %v150
  %v716 = vunpack.c.l.b16 %v151
  %v717 = vunpack.c.h.b16 %v151
  %v718 = vunpack.c.l.b16 %v152
  %v719 = vunpack.c.h.b16 %v152
  %v720 = vunpack.c.l.b16 %v153
  %v721 = vunpack.c.h.b16 %v153
  %v722 = vunpack.c.l.b16 %v154
  %v723 = vunpack.c.h.b16 %v154
  %v724 = vunpack.c.l.b16 %v155
  %v725 = vunpack.c.h.b16 %v155
  %v726 = vunpack.c.l.b16 %v156
  %v727 = vunpack.c.h.b16 %v156
  %v728 = vunpack.c.l.b16 %v157
  %v729 = vunpack.c.h.b16 %v157
  %v730 = vunpack.c.l.b16 %v158
  %v731 = vunpack.c.h.b16 %v158
  %v732 = vunpack.c.l.b16 %v159
  %v733 = vunpack.c.h.b16 %v159
  %v734 = vunpack.c.l.b16 %v160
  %v735 = vunpack.c.h.b16 %v160
  %v736 = vunpack.c.l.b16 %v161
  %v737 = vunpack.c.h.b16 %v161
  %v738 = vunpack.c.l.b16 %v162
  %v739 = vunpack.c.h.b16 %v162
  %v740 = vunpack.c.l.b16 %v163
  %v741 = vunpack.c.h.b16 %v163
  %v742 = vunpack.c.l.b16 %v164
  %v743 = vunpack.c.h.b16 %v164
  %v744 = vunpack.c.l.b16 %v165
  %v745 = vunpack.c.h.b16 %v165
  %v746 = vunpack.c.l.b16 %v166
  %v747 = vunpack.c.h.b16 %v166
  %v748 = vunpack.c.l.b16 %v167
  %v749 = vunpack.c.h.b16 %v167
  %v750 = vunpack.c.l.b16 %v168
  %v751 = vunpack.c.h.b16 %v168
  %v752 = vunpack.c.l.b16 %v169
  %v753 = vunpack.c.h.b16 %v169
  %v754 = vunpack.c.l.b16 %v170
  %v755 = vunpack.c.h.b16 %v170
  %v756 = vunpack.c.l.b16 %v171
  %v757 = vunpack.c.h.b16 %v171
  %v758 = vunpack.c.l.b16 %v172
  %v759 = vunpack.c.h.b16 %v172
  %v760 = vunpack.c.l.b16 %v173
  %v761 = vunpack.c.h.b16 %v173
  %v762 = vunpack.c.l.b16 %v174
  %v763 = vunpack.c.h.b16 %v174
  %v764 = vunpack.c.l.b16 %v175
  %v765 = vunpack.c.h.b16 %v175
  %v766 = vunpack.c.l.b16 %v176
  %v767 = vunpack.c.h.b16 %v176
  %v768 = vunpack.c.l.b16 %v177
  %v769 = vunpack.c.h.b16 %v177
  %v770 = vunpack.c.l.b16 %v178
  %v771 = vunpack.c.h.b16 %v178
  %v772 = vunpack.c.l.b16 %v179
  %v773 = vunpack.c.h.b16 %v179
  %v774 = vunpack.c.l.b16 %v180
  %v775 = vunpack.c.h.b16 %v180
  %v776 = vunpack.c.l.b16 %v181
  %v777 = vunpack.c.h.b16 %v181
  %v778 = vunpack.c.l.b16 %v182
  %v779 = vunpack.c.h.b16 %v182
  %v780 = vunpack.c.l.b16 %v183
  %v781 = vunpack.c.h.b16 %v183
  %v782 = vunpack.c.l.b16 %v184
  %v783 = vunpack.c.h.b16 %v184
  %v784 = vunpack.c.l.b16 %v185
  %v785 = vunpack.c.h.b16 %v185
  %v786 = vunpack.c.l.b16 %v186
  %v787 = vunpack.c.h.b16 %v186
  %v788 = vunpack.c.l.b16 %v187
  %v789 = vunpack.c.h.b16 %v187
  %v790 = vunpack.c.l.b16 %v188
  %v791 = vunpack.c.h.b16 %v188
  %v792 = vunpack.c.l.b16 %v189
  %v793 = vunpack.c.h.b16 %v189
  %v794 = vunpack.c.l.b16 %v190
  %v795 = vunpack.c.h.b16 %v190
  %v796 = vunpack.c.l.b16 %v191
  %v797 = vunpack.c.h.b16 %v191
  %v798 = vunpack.c.l.b16 %v192
  %v799 = vunpack.c.h.b16 %v192
  %v800 = vunpack.c.l.b16 %v193
  %v801 = vunpack.c.h.b16 %v193
  %v802 = vunpack.c.l.b16 %v194
  %v803 = vunpack.c.h.b16 %v194
  %v804 = vunpack.c.l.b16 %v195
  %v805 = vunpack.c.h.b16 %v195
  %v806 = vunpack.c.l.b16 %v196
  %v807 = vunpack.c.h.b16 %v196
  %v808 = vunpack.c.l.b16 %v197
  %v809 = vunpack.c.h.b16 %v197
  %v810 = vunpack.c.l.b16 %v198
  %v811 = vunpack.c.h.b16 %v198
  %v812 = vunpack.c.l.b16 %v199
  %v813 = vunpack.c.h.b16 %v199
  %v814 = vunpack.c.l.b16 %v200
  %v815 = vunpack.c.h.b16 %v200
  %v816 = vunpack.c.l.b16 %v201
  %v817 = vunpack.c.h.b16 %v201
  %v818 = vpack.c.b16 %v532, %v530
  %v819 = vpack.c.b16 %v533, %v531
  %v820 = vpack.c.b16 %v536, %v534
  %v821 = vpack.c.b16 %v537, %v535
  %v822 = vpack.c.b16 %v540, %v538
  %v823 = vpack.c.b16 %v541, %v539
  %v824 = vpack.c.b16 %v544, %v542
  %v825 = vpack.c.b16 %v545, %v543
  %v826 = vpack.c.b16 %v548, %v546
  %v827 = vpack.c.b16 %v549, %v547
  %v828 = vpack.c.b16 %v552, %v550
  %v829 = vpack.c.b16 %v553, %v551
  %v830 = vpack.c.b16 %v556, %v554
  %v831 = vpack.c.b16 %v557, %v555
  %v832 = vpack.c.b16 %v560, %v558
  %v833 = vpack.c.b16 %v561, %v559
  %v834 = vpack.c.b16 %v564, %v562
  %v835 = vpack.c.b16 %v565, %v563
  %v836 = vpack.c.b16 %v568, %v566
  %v837 = vpack.c.b16 %v569, %v567
  %v838 = vpack.c.b16 %v572, %v570
  %v839 = vpack.c.b16 %v573, %v571
  %v840 = vpack.c.b16 %v576, %v574
  %v841 = vpack.c.b16 %v577, %v575
  %v842 = vpack.c.b16 %v580, %v578
  %v843 = vpack.c.b16 %v581, %v579
  %v844 = vpack.c.b16 %v584, %v582
  %v845 = vpack.c.b16 %v585, %v583
  %v846 = vpack.c.b16 %v588, %v586
  %v847 = vpack.c.b16 %v589, %v587
  %v848 = vpack.c.b16 %v592, %v590
  %v849 = vpack.c.b16 %v593, %v591
  %v850 = vpack.c.b16 %v596, %v594
  %v851 = vpack.c.b16 %v597, %v595
  %v852 = vpack.c.b16 %v600, %v598
  %v853 = vpack.c.b16 %v601, %v599
  %v854 = vpack.c.b16 %v604, %v602
  %v855 = vpack.c.b16 %v605, %v603
  %v856 = vpack.c.b16 %v608, %v606
  %v857 = vpack.c.b16 %v609, %v607
  %v858 = vpack.c.b16 %v612, %v610
  %v859 = vpack.c.b16 %v613, %v611
  %v860 = vpack.c.b16 %v616, %v614
  %v861 = vpack.c.b16 %v617, %v615
  %v862 = vpack.c.b16 %v620, %v618
  %v863 = vpack.c.b16 %v621, %v619
  %v864 = vpack.c.b16 %v624, %v622
  %v865 = vpack.c.b16 %v625, %v623
  %v866 = vpack.c.b16 %v628, %v626
  %v867 = vpack.c.b16 %v629, %v627
  %v868 = vpack.c.b16 %v632, %v630
  %v869 = vpack.c.b16 %v633, %v631
  %v870 = vpack.c.b16 %v636, %v634
  %v871 = vpack.c.b16 %v637, %v635
  %v872 = vpack.c.b16 %v640, %v638
  %v873 = vpack.c.b16 %v641, %v639
  %v874 = vpack.c.b16 %v644, %v642
  %v875 = vpack.c.b16 %v645, %v643
  %v876 = vpack.c.b16 %v648, %v646
  %v877 = vpack.c.b16 %v649, %v647
  %v878 = vpack.c.b16 %v652, %v650
  %v879 = vpack.c.b16 %v653, %v651
  %v880 = vpack.c.b16 %v656, %v654
  %v881 = vpack.c.b16 %v657, %v655
  %v882 = vpack.c.b16 %v660, %v658
  %v883 = vpack.c.b16 %v661, %v659
  %v884 = vpack.c.b16 %v664, %v662
  %v885 = vpack.c.b16 %v665, %v663
  %v886 = vpack.c.b16 %v668, %v666
  %v887 = vpack.c.b16 %v669, %v667
  %v888 = vpack.c.b16 %v672, %v670
  %v889 = vpack.c.b16 %v673, %v671
  %v890 = vpack.c.b16 %v676, %v674
  %v891 = vpack.c.b16 %v677, %v675
  %v892 = vpack.c.b16 %v680, %v678
  %v893 = vpack.c.b16 %v681, %v679
  %v894 = vpack.c.b16 %v684, %v682
  %v895 = vpack.c.b16 %v685, %v683
  %v896 = vpack.c.b16 %v688, %v686
  %v897 = vpack.c.b16 %v689, %v687
  %v898 = vpack.c.b16 %v692, %v690
  %v899 = vpack.c.b16 %v693, %v691
  %v900 = vpack.c.b16 %v696, %v694
  %v901 = vpack.c.b16 %v697, %v695
  %v902 = vpack.c.b16 %v700, %v698
  %v903 = vpack.c.b16 %v701, %v699
  %v904 = vpack.c.b16 %v704, %v702
  %v905 = vpack.c.b16 %v705, %v703
  %v906 = vpack.c.b16 %v708, %v706
  %v907 = vpack.c.b16 %v709, %v707
  %v908 = vpack.c.b16 %v712, %v710
  %v909 = vpack.c.b16 %v713, %v711
  %v910 = vpack.c.b16 %v716, %v714
  %v911 = vpack.c.b16 %v717, %v715
  %v912 = vpack.c.b16 %v720, %v718
  %v913 = vpack.c.b16 %v721, %v719
  %v914 = vpack.c.b16 %v724, %v722
  %v915 = vpack.c.b16 %v725, %v723
  %v916 = vpack.c.b16 %v728, %v726
  %v917 = vpack.c.b16 %v729, %v727
  %v918 = vpack.c.b16 %v732, %v730
  %v919 = vpack.c.b16 %v733, %v731
  %v920 = vpack.c.b16 %v736, %v734
  %v921 = vpack.c.b16 %v737, %v735
  %v922 = vpack.c.b16 %v740, %v738
  %v923 = vpack.c.b16 %v741, %v739
  %v924 = vpack.c.b16 %v744, %v742
  %v925 = vpack.c.b16 %v745, %v743
  %v926 = vpack.c.b16 %v748, %v746
  %v927 = vpack.c.b16 %v749, %v747
  %v928 = vpack.c.b16 %v752, %v750
  %v929 = vpack.c.b16 %v753, %v751
  %v930 = vpack.c.b16 %v756, %v754
  %v931 = vpack.c.b16 %v757, %v755
  %v932 = vpack.c.b16 %v760, %v758
  %v933 = vpack.c.b16 %v761, %v759
  %v934 = vpack.c.b16 %v764, %v762
  %v935 = vpack.c.b16 %v765, %v763
  %v936 = vpack.c.b16 %v768, %v766
  %v937 = vpack.c.b16 %v769, %v767
  %v938 = vpack.c.b16 %v772, %v770
  %v939 = vpack.c.b16 %v773, %v771
  %v940 = vpack.c.b16 %v776, %v774
  %v941 = vpack.c.b16 %v777, %v775
  %v942 = vpack.c.b16 %v780, %v778
  %v943 = vpack.c.b16 %v781, %v779
  %v944 = vpack.c.b16 %v784, %v782
  %v945 = vpack.c.b16 %v785, %v783
  %v946 = vpack.c.b16 %v788, %v786
  %v947 = vpack.c.b16 %v789, %v787
  %v948 = vpack.c.b16 %v792, %v790
  %v949 = vpack.c.b16 %v793, %v791
  %v950 = vpack.c.b16 %v796, %v794
  %v951 = vpack.c.b16 %v797, %v795
  %v952 = vpack.c.b16 %v800, %v798
  %v953 = vpack.c.b16 %v801, %v799
  %v954 = vpack.c.b16 %v804, %v802
  %v955 = vpack.c.b16 %v805, %v803
  %v956 = vpack.c.b16 %v808, %v806
  %v957 = vpack.c.b16 %v809, %v807
  %v958 = vpack.c.b16 %v812, %v810
  %v959 = vpack.c.b16 %v813, %v811
  %v960 = vpack.c.b16 %v816, %v814
  %v961 = vpack.c.b16 %v817, %v815
  %1106 = vmatprep.subr.bf16.mxu0 %v819
  %1107 = vmatpush1.bf16.msra.mxu0 %v818
  %1108 = vmatprep.subr.bf16.mxu0 %v821
  %1109 = vmatpush1.bf16.msra.mxu0 %v820
  %1110 = vmatprep.subr.bf16.mxu0 %v823
  %1111 = vmatpush1.bf16.msra.mxu0 %v822
  %1112 = vmatprep.subr.bf16.mxu0 %v825
  %1113 = vmatpush1.bf16.msra.mxu0 %v824
  %1114 = vmatprep.subr.bf16.mxu0 %v827
  %1115 = vmatpush1.bf16.msra.mxu0 %v826
  %1116 = vmatprep.subr.bf16.mxu0 %v829
  %1117 = vmatpush1.bf16.msra.mxu0 %v828
  %1118 = vmatprep.subr.bf16.mxu0 %v831
  %1119 = vmatpush1.bf16.msra.mxu0 %v830
  %1120 = vmatprep.subr.bf16.mxu0 %v833
  %1121 = vmatpush1.bf16.msra.mxu0 %v832
  %1122 = vmatprep.subr.bf16.mxu0 %v835
  %1123 = vmatpush1.bf16.msra.mxu0 %v834
  %1124 = vmatprep.subr.bf16.mxu0 %v837
  %1125 = vmatpush1.bf16.msra.mxu0 %v836
  %1126 = vmatprep.subr.bf16.mxu0 %v839
  %1127 = vmatpush1.bf16.msra.mxu0 %v838
  %1128 = vmatprep.subr.bf16.mxu0 %v841
  %1129 = vmatpush1.bf16.msra.mxu0 %v840
  %1130 = vmatprep.subr.bf16.mxu0 %v843
  %1131 = vmatpush1.bf16.msra.mxu0 %v842
  %1132 = vmatprep.subr.bf16.mxu0 %v845
  %1133 = vmatpush1.bf16.msra.mxu0 %v844
  %1134 = vmatprep.subr.bf16.mxu0 %v847
  %1135 = vmatpush1.bf16.msra.mxu0 %v846
  %1136 = vmatprep.subr.bf16.mxu0 %v849
  %1137 = vmatpush1.bf16.msra.mxu0 %v848
  %1138 = vmatprep.mubr.bf16.mxu0 %v315
  %1139 = vmatmul.mubr.bf16.gmra.mrb[0].mxu0 %v314
  %v1140 = vpop.f32.mrb[0].mxu0
  %v1141 = vadd.f32 0.0, %v1140
  %v1142 = vpop.f32.mrb[0].mxu0
  %v1143 = vadd.f32 0.0, %v1142
  %v1144 = vpop.f32.mrb[0].mxu0
  %v1145 = vadd.f32 0.0, %v1144
  %v1146 = vpop.f32.mrb[0].mxu0
  %v1147 = vadd.f32 0.0, %v1146
  %1148 = vmatprep.mubr.bf16.mxu0 %v324
  %1149 = vmatmul.mubr.bf16.gmra.mrb[0].mxu0 %v323
  %v1150 = vpop.f32.mrb[0].mxu0
  %v1151 = vadd.f32 0.0, %v1150
  %v1152 = vpop.f32.mrb[0].mxu0
  %v1153 = vadd.f32 0.0, %v1152
  %v1154 = vpop.f32.mrb[0].mxu0
  %v1155 = vadd.f32 0.0, %v1154
  %v1156 = vpop.f32.mrb[0].mxu0
  %v1157 = vadd.f32 0.0, %v1156
  %1158 = vmatprep.mubr.bf16.mxu0 %v333
  %1159 = vmatmul.mubr.bf16.gmra.mrb[0].mxu0 %v332
  %v1160 = vpop.f32.mrb[0].mxu0
  %v1161 = vadd.f32 0.0, %v1160
  %v1162 = vpop.f32.mrb[0].mxu0
  %v1163 = vadd.f32 0.0, %v1162
  %v1164 = vpop.f32.mrb[0].mxu0
  %v1165 = vadd.f32 0.0, %v1164
  %v1166 = vpop.f32.mrb[0].mxu0
  %v1167 = vadd.f32 0.0, %v1166
  %1168 = vmatprep.mubr.bf16.mxu0 %v342
  %1169 = vmatmul.mubr.bf16.gmra.mrb[0].mxu0 %v341
  %v1170 = vpop.f32.mrb[0].mxu0
  %v1171 = vadd.f32 0.0, %v1170
  %v1172 = vpop.f32.mrb[0].mxu0
  %v1173 = vadd.f32 0.0, %v1172
  %v1174 = vpop.f32.mrb[0].mxu0
  %v1175 = vadd.f32 0.0, %v1174
  %v1176 = vpop.f32.mrb[0].mxu0
  %v1177 = vadd.f32 0.0, %v1176
  %1178 = vdwg.mxu0
  %1179 = vmatprep.subr.bf16.mxu0 %v851
  %1180 = vmatpush1.bf16.msra.mxu0 %v850
  %1181 = vmatprep.subr.bf16.mxu0 %v853
  %1182 = vmatpush1.bf16.msra.mxu0 %v852
  %1183 = vmatprep.subr.bf16.mxu0 %v855
  %1184 = vmatpush1.bf16.msra.mxu0 %v854
  %1185 = vmatprep.subr.bf16.mxu0 %v857
  %1186 = vmatpush1.bf16.msra.mxu0 %v856
  %1187 = vmatprep.subr.bf16.mxu0 %v859
  %1188 = vmatpush1.bf16.msra.mxu0 %v858
  %1189 = vmatprep.subr.bf16.mxu0 %v861
  %1190 = vmatpush1.bf16.msra.mxu0 %v860
  %1191 = vmatprep.subr.bf16.mxu0 %v863
  %1192 = vmatpush1.bf16.msra.mxu0 %v862
  %1193 = vmatprep.subr.bf16.mxu0 %v865
  %1194 = vmatpush1.bf16.msra.mxu0 %v864
  %1195 = vmatprep.subr.bf16.mxu0 %v867
  %1196 = vmatpush1.bf16.msra.mxu0 %v866
  %1197 = vmatprep.subr.bf16.mxu0 %v869
  %1198 = vmatpush1.bf16.msra.mxu0 %v868
  %1199 = vmatprep.subr.bf16.mxu0 %v871
  %1200 = vmatpush1.bf16.msra.mxu0 %v870
  %1201 = vmatprep.subr.bf16.mxu0 %v873
  %1202 = vmatpush1.bf16.msra.mxu0 %v872
  %1203 = vmatprep.subr.bf16.mxu0 %v875
  %1204 = vmatpush1.bf16.msra.mxu0 %v874
  %1205 = vmatprep.subr.bf16.mxu0 %v877
  %1206 = vmatpush1.bf16.msra.mxu0 %v876
  %1207 = vmatprep.subr.bf16.mxu0 %v879
  %1208 = vmatpush1.bf16.msra.mxu0 %v878
  %1209 = vmatprep.subr.bf16.mxu0 %v881
  %1210 = vmatpush1.bf16.msra.mxu0 %v880
  %1211 = vmatprep.mubr.bf16.mxu0 %v317
  %1212 = vmatmul.mubr.bf16.gmra.mrb[0].mxu0 %v316
  %v1213 = vpop.f32.mrb[0].mxu0
  %v1214 = vadd.f32 %v1141, %v1213
  %v1215 = vpop.f32.mrb[0].mxu0
  %v1216 = vadd.f32 %v1143, %v1215
  %v1217 = vpop.f32.mrb[0].mxu0
  %v1218 = vadd.f32 %v1145, %v1217
  %v1219 = vpop.f32.mrb[0].mxu0
  %v1220 = vadd.f32 %v1147, %v1219
  %1221 = vmatprep.mubr.bf16.mxu0 %v326
  %1222 = vmatmul.mubr.bf16.gmra.mrb[0].mxu0 %v325
  %v1223 = vpop.f32.mrb[0].mxu0
  %v1224 = vadd.f32 %v1151, %v1223
  %v1225 = vpop.f32.mrb[0].mxu0
  %v1226 = vadd.f32 %v1153, %v1225
  %v1227 = vpop.f32.mrb[0].mxu0
  %v1228 = vadd.f32 %v1155, %v1227
  %v1229 = vpop.f32.mrb[0].mxu0
  %v1230 = vadd.f32 %v1157, %v1229
  %1231 = vmatprep.mubr.bf16.mxu0 %v335
  %1232 = vmatmul.mubr.bf16.gmra.mrb[0].mxu0 %v334
  %v1233 = vpop.f32.mrb[0].mxu0
  %v1234 = vadd.f32 %v1161, %v1233
  %v1235 = vpop.f32.mrb[0].mxu0
  %v1236 = vadd.f32 %v1163, %v1235
  %v1237 = vpop.f32.mrb[0].mxu0
  %v1238 = vadd.f32 %v1165, %v1237
  %v1239 = vpop.f32.mrb[0].mxu0
  %v1240 = vadd.f32 %v1167, %v1239
  %1241 = vmatprep.mubr.bf16.mxu0 %v344
  %1242 = vmatmul.mubr.bf16.gmra.mrb[0].mxu0 %v343
  %v1243 = vpop.f32.mrb[0].mxu0
  %v1244 = vadd.f32 %v1171, %v1243
  %v1245 = vpop.f32.mrb[0].mxu0
  %v1246 = vadd.f32 %v1173, %v1245
  %v1247 = vpop.f32.mrb[0].mxu0
  %v1248 = vadd.f32 %v1175, %v1247
  %v1249 = vpop.f32.mrb[0].mxu0
  %v1250 = vadd.f32 %v1177, %v1249
  %1251 = vdwg.mxu0
  %1252 = vmatprep.subr.bf16.mxu0 %v883
  %1253 = vmatpush1.bf16.msra.mxu0 %v882
  %1254 = vmatprep.subr.bf16.mxu0 %v885
  %1255 = vmatpush1.bf16.msra.mxu0 %v884
  %1256 = vmatprep.subr.bf16.mxu0 %v887
  %1257 = vmatpush1.bf16.msra.mxu0 %v886
  %1258 = vmatprep.subr.bf16.mxu0 %v889
  %1259 = vmatpush1.bf16.msra.mxu0 %v888
  %1260 = vmatprep.subr.bf16.mxu0 %v891
  %1261 = vmatpush1.bf16.msra.mxu0 %v890
  %1262 = vmatprep.subr.bf16.mxu0 %v893
  %1263 = vmatpush1.bf16.msra.mxu0 %v892
  %1264 = vmatprep.subr.bf16.mxu0 %v895
  %1265 = vmatpush1.bf16.msra.mxu0 %v894
  %1266 = vmatprep.subr.bf16.mxu0 %v897
  %1267 = vmatpush1.bf16.msra.mxu0 %v896
  %1268 = vmatprep.subr.bf16.mxu0 %v899
  %1269 = vmatpush1.bf16.msra.mxu0 %v898
  %1270 = vmatprep.subr.bf16.mxu0 %v901
  %1271 = vmatpush1.bf16.msra.mxu0 %v900
  %1272 = vmatprep.subr.bf16.mxu0 %v903
  %1273 = vmatpush1.bf16.msra.mxu0 %v902
  %1274 = vmatprep.subr.bf16.mxu0 %v905
  %1275 = vmatpush1.bf16.msra.mxu0 %v904
  %1276 = vmatprep.subr.bf16.mxu0 %v907
  %1277 = vmatpush1.bf16.msra.mxu0 %v906
  %1278 = vmatprep.subr.bf16.mxu0 %v909
  %1279 = vmatpush1.bf16.msra.mxu0 %v908
  %1280 = vmatprep.subr.bf16.mxu0 %v911
  %1281 = vmatpush1.bf16.msra.mxu0 %v910
  %1282 = vmatprep.subr.bf16.mxu0 %v913
  %1283 = vmatpush1.bf16.msra.mxu0 %v912
  %1284 = vmatprep.mubr.bf16.mxu0 %v319
  %1285 = vmatmul.mubr.bf16.gmra.mrb[0].mxu0 %v318
  %v1286 = vpop.f32.mrb[0].mxu0
  %v1287 = vadd.f32 %v1214, %v1286
  %v1288 = vpop.f32.mrb[0].mxu0
  %v1289 = vadd.f32 %v1216, %v1288
  %v1290 = vpop.f32.mrb[0].mxu0
  %v1291 = vadd.f32 %v1218, %v1290
  %v1292 = vpop.f32.mrb[0].mxu0
  %v1293 = vadd.f32 %v1220, %v1292
  %1294 = vmatprep.mubr.bf16.mxu0 %v328
  %1295 = vmatmul.mubr.bf16.gmra.mrb[0].mxu0 %v327
  %v1296 = vpop.f32.mrb[0].mxu0
  %v1297 = vadd.f32 %v1224, %v1296
  %v1298 = vpop.f32.mrb[0].mxu0
  %v1299 = vadd.f32 %v1226, %v1298
  %v1300 = vpop.f32.mrb[0].mxu0
  %v1301 = vadd.f32 %v1228, %v1300
  %v1302 = vpop.f32.mrb[0].mxu0
  %v1303 = vadd.f32 %v1230, %v1302
  %1304 = vmatprep.mubr.bf16.mxu0 %v337
  %1305 = vmatmul.mubr.bf16.gmra.mrb[0].mxu0 %v336
  %v1306 = vpop.f32.mrb[0].mxu0
  %v1307 = vadd.f32 %v1234, %v1306
  %v1308 = vpop.f32.mrb[0].mxu0
  %v1309 = vadd.f32 %v1236, %v1308
  %v1310 = vpop.f32.mrb[0].mxu0
  %v1311 = vadd.f32 %v1238, %v1310
  %v1312 = vpop.f32.mrb[0].mxu0
  %v1313 = vadd.f32 %v1240, %v1312
  %1314 = vmatprep.mubr.bf16.mxu0 %v346
  %1315 = vmatmul.mubr.bf16.gmra.mrb[0].mxu0 %v345
  %v1316 = vpop.f32.mrb[0].mxu0
  %v1317 = vadd.f32 %v1244, %v1316
  %v1318 = vpop.f32.mrb[0].mxu0
  %v1319 = vadd.f32 %v1246, %v1318
  %v1320 = vpop.f32.mrb[0].mxu0
  %v1321 = vadd.f32 %v1248, %v1320
  %v1322 = vpop.f32.mrb[0].mxu0
  %v1323 = vadd.f32 %v1250, %v1322
  %1324 = vdwg.mxu0
  %1325 = vmatprep.subr.bf16.mxu0 %v915
  %1326 = vmatpush1.bf16.msra.mxu0 %v914
  %1327 = vmatprep.subr.bf16.mxu0 %v917
  %1328 = vmatpush1.bf16.msra.mxu0 %v916
  %1329 = vmatprep.subr.bf16.mxu0 %v919
  %1330 = vmatpush1.bf16.msra.mxu0 %v918
  %1331 = vmatprep.subr.bf16.mxu0 %v921
  %1332 = vmatpush1.bf16.msra.mxu0 %v920
  %1333 = vmatprep.subr.bf16.mxu0 %v923
  %1334 = vmatpush1.bf16.msra.mxu0 %v922
  %1335 = vmatprep.subr.bf16.mxu0 %v925
  %1336 = vmatpush1.bf16.msra.mxu0 %v924
  %1337 = vmatprep.subr.bf16.mxu0 %v927
  %1338 = vmatpush1.bf16.msra.mxu0 %v926
  %1339 = vmatprep.subr.bf16.mxu0 %v929
  %1340 = vmatpush1.bf16.msra.mxu0 %v928
  %1341 = vmatprep.subr.bf16.mxu0 %v931
  %1342 = vmatpush1.bf16.msra.mxu0 %v930
  %1343 = vmatprep.subr.bf16.mxu0 %v933
  %1344 = vmatpush1.bf16.msra.mxu0 %v932
  %1345 = vmatprep.subr.bf16.mxu0 %v935
  %1346 = vmatpush1.bf16.msra.mxu0 %v934
  %1347 = vmatprep.subr.bf16.mxu0 %v937
  %1348 = vmatpush1.bf16.msra.mxu0 %v936
  %1349 = vmatprep.subr.bf16.mxu0 %v939
  %1350 = vmatpush1.bf16.msra.mxu0 %v938
  %1351 = vmatprep.subr.bf16.mxu0 %v941
  %1352 = vmatpush1.bf16.msra.mxu0 %v940
  %1353 = vmatprep.subr.bf16.mxu0 %v943
  %1354 = vmatpush1.bf16.msra.mxu0 %v942
  %1355 = vmatprep.subr.bf16.mxu0 %v945
  %1356 = vmatpush1.bf16.msra.mxu0 %v944
  %1357 = vmatprep.mubr.bf16.mxu0 %v321
  %1358 = vmatmul.mubr.bf16.gmra.mrb[0].mxu0 %v320
  %v1359 = vpop.f32.mrb[0].mxu0
  %v1360 = vadd.f32 %v1287, %v1359
  %v1361 = vpop.f32.mrb[0].mxu0
  %v1362 = vadd.f32 %v1289, %v1361
  %v1363 = vpop.f32.mrb[0].mxu0
  %v1364 = vadd.f32 %v1291, %v1363
  %v1365 = vpop.f32.mrb[0].mxu0
  %v1366 = vadd.f32 %v1293, %v1365
  %1367 = vmatprep.mubr.bf16.mxu0 %v330
  %1368 = vmatmul.mubr.bf16.gmra.mrb[0].mxu0 %v329
  %v1369 = vpop.f32.mrb[0].mxu0
  %v1370 = vadd.f32 %v1297, %v1369
  %v1371 = vpop.f32.mrb[0].mxu0
  %v1372 = vadd.f32 %v1299, %v1371
  %v1373 = vpop.f32.mrb[0].mxu0
  %v1374 = vadd.f32 %v1301, %v1373
  %v1375 = vpop.f32.mrb[0].mxu0
  %v1376 = vadd.f32 %v1303, %v1375
  %1377 = vmatprep.mubr.bf16.mxu0 %v339
  %1378 = vmatmul.mubr.bf16.gmra.mrb[0].mxu0 %v338
  %v1379 = vpop.f32.mrb[0].mxu0
  %v1380 = vadd.f32 %v1307, %v1379
  %v1381 = vpop.f32.mrb[0].mxu0
  %v1382 = vadd.f32 %v1309, %v1381
  %v1383 = vpop.f32.mrb[0].mxu0
  %v1384 = vadd.f32 %v1311, %v1383
  %v1385 = vpop.f32.mrb[0].mxu0
  %v1386 = vadd.f32 %v1313, %v1385
  %1387 = vmatprep.mubr.bf16.mxu0 %v348
  %1388 = vmatmul.mubr.bf16.gmra.mrb[0].mxu0 %v347
  %v1389 = vpop.f32.mrb[0].mxu0
  %v1390 = vadd.f32 %v1317, %v1389
  %v1391 = vpop.f32.mrb[0].mxu0
  %v1392 = vadd.f32 %v1319, %v1391
  %v1393 = vpop.f32.mrb[0].mxu0
  %v1394 = vadd.f32 %v1321, %v1393
  %v1395 = vpop.f32.mrb[0].mxu0
  %v1396 = vadd.f32 %v1323, %v1395
  %1397 = vdwg.mxu0
  %1398 = vmatprep.subr.bf16.mxu0 %v947
  %1399 = vmatpush1.bf16.msra.mxu0 %v946
  %1400 = vmatprep.subr.bf16.mxu0 %v949
  %1401 = vmatpush1.bf16.msra.mxu0 %v948
  %1402 = vmatprep.subr.bf16.mxu0 %v951
  %1403 = vmatpush1.bf16.msra.mxu0 %v950
  %1404 = vmatprep.subr.bf16.mxu0 %v953
  %1405 = vmatpush1.bf16.msra.mxu0 %v952
  %1406 = vmatprep.subr.bf16.mxu0 %v955
  %1407 = vmatpush1.bf16.msra.mxu0 %v954
  %1408 = vmatprep.subr.bf16.mxu0 %v957
  %1409 = vmatpush1.bf16.msra.mxu0 %v956
  %1410 = vmatprep.subr.bf16.mxu0 %v959
  %1411 = vmatpush1.bf16.msra.mxu0 %v958
  %1412 = vmatprep.subr.bf16.mxu0 %v961
  %1413 = vmatpush1.bf16.msra.mxu0 %v960
  %1414 = vmatprep.subr.bf16.mxu0 0
  %1415 = vmatpush1.bf16.msra.mxu0 0
  %1416 = vmatprep.subr.bf16.mxu0 0
  %1417 = vmatpush1.bf16.msra.mxu0 0
  %1418 = vmatprep.subr.bf16.mxu0 0
  %1419 = vmatpush1.bf16.msra.mxu0 0
  %1420 = vmatprep.subr.bf16.mxu0 0
  %1421 = vmatpush1.bf16.msra.mxu0 0
  %1422 = vmatprep.subr.bf16.mxu0 0
  %1423 = vmatpush1.bf16.msra.mxu0 0
  %1424 = vmatprep.subr.bf16.mxu0 0
  %1425 = vmatpush1.bf16.msra.mxu0 0
  %1426 = vmatprep.subr.bf16.mxu0 0
  %1427 = vmatpush1.bf16.msra.mxu0 0
  %1428 = vmatprep.subr.bf16.mxu0 0
  %1429 = vmatpush1.bf16.msra.mxu0 0
  %1430 = vmatprep.mubr.bf16.mxu0 0
  %1431 = vmatmul.mubr.bf16.gmra.mrb[0].mxu0 %v322
  %v1432 = vpop.f32.mrb[0].mxu0
  %v1433 = vadd.f32 %v1360, %v1432
  %v1434 = vpop.f32.mrb[0].mxu0
  %v1435 = vadd.f32 %v1362, %v1434
  %v1436 = vpop.f32.mrb[0].mxu0
  %v1437 = vadd.f32 %v1364, %v1436
  %v1438 = vpop.f32.mrb[0].mxu0
  %v1439 = vadd.f32 %v1366, %v1438
  %1440 = vmatprep.mubr.bf16.mxu0 0
  %1441 = vmatmul.mubr.bf16.gmra.mrb[0].mxu0 %v331
  %v1442 = vpop.f32.mrb[0].mxu0
  %v1443 = vadd.f32 %v1370, %v1442
  %v1444 = vpop.f32.mrb[0].mxu0
  %v1445 = vadd.f32 %v1372, %v1444
  %v1446 = vpop.f32.mrb[0].mxu0
  %v1447 = vadd.f32 %v1374, %v1446
  %v1448 = vpop.f32.mrb[0].mxu0
  %v1449 = vadd.f32 %v1376, %v1448
  %1450 = vmatprep.mubr.bf16.mxu0 0
  %1451 = vmatmul.mubr.bf16.gmra.mrb[0].mxu0 %v340
  %v1452 = vpop.f32.mrb[0].mxu0
  %v1453 = vadd.f32 %v1380, %v1452
  %v1454 = vpop.f32.mrb[0].mxu0
  %v1455 = vadd.f32 %v1382, %v1454
  %v1456 = vpop.f32.mrb[0].mxu0
  %v1457 = vadd.f32 %v1384, %v1456
  %v1458 = vpop.f32.mrb[0].mxu0
  %v1459 = vadd.f32 %v1386, %v1458
  %1460 = vmatprep.mubr.bf16.mxu0 0
  %1461 = vmatmul.mubr.bf16.gmra.mrb[0].mxu0 %v349
  %v1462 = vpop.f32.mrb[0].mxu0
  %v1463 = vadd.f32 %v1390, %v1462
  %v1464 = vpop.f32.mrb[0].mxu0
  %v1465 = vadd.f32 %v1392, %v1464
  %v1466 = vpop.f32.mrb[0].mxu0
  %v1467 = vadd.f32 %v1394, %v1466
  %v1468 = vpop.f32.mrb[0].mxu0
  %v1469 = vadd.f32 %v1396, %v1468
  %1470 = vdwg.mxu0
  %v1471 = vld [vmem:[%s2] sm:$0x3]
  %v1473 = vlaneseq
  %v1474 = vshrl.u32 %v1473, 7
  %v1475 = vsub.s32 0, %v1474
  %v1476 = vrot.slane %v1471, %v1475
  %v1477 = vlaneseq
  %v1478 = vshrl.u32 %v1477, 7
  %v1479 = vsub.s32 1, %v1478
  %v1480 = vrot.slane %v1471, %v1479
  %v1483 = vmul.f32 %v1433, %v1476
  %v1484 = vmul.f32 %v1435, %v1480
  %v1485 = vmul.f32 %v1437, %v1476
  %v1486 = vmul.f32 %v1439, %v1480
  %v1487 = vmul.f32 %v1443, %v1476
  %v1488 = vmul.f32 %v1445, %v1480
  %v1489 = vmul.f32 %v1447, %v1476
  %v1490 = vmul.f32 %v1449, %v1480
  %v1491 = vmul.f32 %v1453, %v1476
  %v1492 = vmul.f32 %v1455, %v1480
  %v1493 = vmul.f32 %v1457, %v1476
  %v1494 = vmul.f32 %v1459, %v1480
  %v1495 = vmul.f32 %v1463, %v1476
  %v1496 = vmul.f32 %v1465, %v1480
  %v1497 = vmul.f32 %v1467, %v1476
  %v1498 = vmul.f32 %v1469, %v1480
  %v1499 = vld [vmem:[%s3] sm:$0x3]
  %v1501 = vlaneseq
  %v1502 = vshrl.u32 %v1501, 7
  %v1503 = vsub.s32 0, %v1502
  %v1504 = vrot.slane %v1499, %v1503
  %v1505 = vlaneseq
  %v1506 = vshrl.u32 %v1505, 7
  %v1507 = vsub.s32 1, %v1506
  %v1508 = vrot.slane %v1499, %v1507
  %v1511 = vadd.f32 %v1483, %v1504
  %v1512 = vadd.f32 %v1484, %v1508
  %v1513 = vadd.f32 %v1485, %v1504
  %v1514 = vadd.f32 %v1486, %v1508
  %v1515 = vadd.f32 %v1487, %v1504
  %v1516 = vadd.f32 %v1488, %v1508
  %v1517 = vadd.f32 %v1489, %v1504
  %v1518 = vadd.f32 %v1490, %v1508
  %v1519 = vadd.f32 %v1491, %v1504
  %v1520 = vadd.f32 %v1492, %v1508
  %v1521 = vadd.f32 %v1493, %v1504
  %v1522 = vadd.f32 %v1494, %v1508
  %v1523 = vadd.f32 %v1495, %v1504
  %v1524 = vadd.f32 %v1496, %v1508
  %v1525 = vadd.f32 %v1497, %v1504
  %v1526 = vadd.f32 %v1498, %v1508
  %v1527 = vmax.f32 %v1511, 0.0
  %v1528 = vmax.f32 %v1512, 0.0
  %v1529 = vmax.f32 %v1513, 0.0
  %v1530 = vmax.f32 %v1514, 0.0
  %v1531 = vmax.f32 %v1515, 0.0
  %v1532 = vmax.f32 %v1516, 0.0
  %v1533 = vmax.f32 %v1517, 0.0
  %v1534 = vmax.f32 %v1518, 0.0
  %v1535 = vmax.f32 %v1519, 0.0
  %v1536 = vmax.f32 %v1520, 0.0
  %v1537 = vmax.f32 %v1521, 0.0
  %v1538 = vmax.f32 %v1522, 0.0
  %v1539 = vmax.f32 %v1523, 0.0
  %v1540 = vmax.f32 %v1524, 0.0
  %v1541 = vmax.f32 %v1525, 0.0
  %v1542 = vmax.f32 %v1526, 0.0
  %v1543 = vpack.c.bf16 %v1529, %v1527
  %v1544 = vpack.c.bf16 %v1530, %v1528
  %v1545 = vpack.c.bf16 %v1533, %v1531
  %v1546 = vpack.c.bf16 %v1534, %v1532
  %v1547 = vpack.c.bf16 %v1537, %v1535
  %v1548 = vpack.c.bf16 %v1538, %v1536
  %v1549 = vpack.c.bf16 %v1541, %v1539
  %v1550 = vpack.c.bf16 %v1542, %v1540
  %v1559 = vunpack.c.l.b16 %v1543
  %v1560 = vunpack.c.l.b16 %v1544
  %v1561 = vunpack.c.h.b16 %v1543
  %v1562 = vunpack.c.h.b16 %v1544
  %v1563 = vunpack.c.l.b16 %v1545
  %v1564 = vunpack.c.l.b16 %v1546
  %v1565 = vunpack.c.h.b16 %v1545
  %v1566 = vunpack.c.h.b16 %v1546
  %v1567 = vunpack.c.l.b16 %v1547
  %v1568 = vunpack.c.l.b16 %v1548
  %v1569 = vunpack.c.h.b16 %v1547
  %v1570 = vunpack.c.h.b16 %v1548
  %v1571 = vunpack.c.l.b16 %v1549
  %v1572 = vunpack.c.l.b16 %v1550
  %v1573 = vunpack.c.h.b16 %v1549
  %v1574 = vunpack.c.h.b16 %v1550
  %v1575 = vpack.c.b16 %v1560, %v1559
  %v1576 = vpack.c.b16 %v1562, %v1561
  %v1577 = vpack.c.b16 %v1564, %v1563
  %v1578 = vpack.c.b16 %v1566, %v1565
  %v1579 = vpack.c.b16 %v1568, %v1567
  %v1580 = vpack.c.b16 %v1570, %v1569
  %v1581 = vpack.c.b16 %v1572, %v1571
  %v1582 = vpack.c.b16 %v1574, %v1573
  %1591 = vst [vmem:[%s4] sm:$0xff] %v1575
  %1592 = vst [vmem:[%s4 + $0x8] sm:$0xff] %v1576
  %1593 = vst [vmem:[%s4 + $0x10] sm:$0xff] %v1577
  %1594 = vst [vmem:[%s4 + $0x18] sm:$0xff] %v1578
  %1595 = vst [vmem:[%s4 + $0x20] sm:$0xff] %v1579
  %1596 = vst [vmem:[%s4 + $0x28] sm:$0xff] %v1580
  %1597 = vst [vmem:[%s4 + $0x30] sm:$0xff] %v1581
  %1598 = vst [vmem:[%s4 + $0x38] sm:$0xff] %v1582
  // Predicated region
  $region18: #{_lambda_.7} parent=0 // pred_check
    _
  $region19: #{_lambda_.7} parent=0 // pred_check_branch
    %1600 = sbr.rel (0) target = $region21
  $region20: #{_lambda_.7} parent=0 // pred_region
    _
  $region21: #{_lambda_.7} parent=0 // pred_fallthru
    _
  // Predicated region
  $region22: #{_lambda_.7} parent=0 // pred_check
    _
  $region23: #{_lambda_.7} parent=0 // pred_check_branch
    %1602 = sbr.rel (0) target = $region25
  $region24: #{_lambda_.7} parent=0 // pred_region
    _
  $region25: #{_lambda_.7} parent=0 // pred_fallthru
    _

// kernel: _lambda_.8
$region0: #{_lambda_.8}
  #allocation0 [shape = 'u32[]', space=smem, size = 0x4, offset = 0x4, fixed_abs, tag = 'smem constant byte address 0x4 - core index']
  #allocation1 [shape = 'u32[144,128]{1,0:T(1,128)}', space=vmem, size = 0x12000, scoped, tag = 'internal scratch']
  %s0 = inlined_call_operand.vmem [shape: bf16[48,2304], index: 0, kind: input, shape index: {}]
  %s1 = inlined_call_operand.vmem [shape: bf16[2304,512], index: 1, kind: input, shape index: {}]
  %s2 = inlined_call_operand.vmem [shape: f32[1,512], index: 2, kind: input, shape index: {}]
  %s3 = inlined_call_operand.vmem [shape: f32[1,512], index: 3, kind: input, shape index: {}]
  %s4 = inlined_call_operand.vmem [shape: bf16[48,512], index: 4, kind: output, shape index: {}]
  %s5 = sld [smem:[#allocation0]]
  $region26: #{_lambda_.8} parent=0
    _
  %s7 = ssub.s32 1, %s5
  %s8 = scalar_select 0, %s7, %s5
  // Predicated region
  $region2: #{_lambda_.8} parent=0 // pred_check
    _
  $region3: #{_lambda_.8} parent=0 // pred_check_branch
    %10 = sbr.rel (0) target = $region5
  $region4: #{_lambda_.8} parent=0 // pred_region
    _
  $region5: #{_lambda_.8} parent=0 // pred_fallthru
    _
  // Predicated region
  $region6: #{_lambda_.8} parent=0 // pred_check
    _
  $region7: #{_lambda_.8} parent=0 // pred_check_branch
    %12 = sbr.rel (0) target = $region9
  $region8: #{_lambda_.8} parent=0 // pred_region
    _
  $region9: #{_lambda_.8} parent=0 // pred_fallthru
    _
  // Predicated region
  $region10: #{_lambda_.8} parent=0 // pred_check
    _
  $region11: #{_lambda_.8} parent=0 // pred_check_branch
    %14 = sbr.rel (0) target = $region13
  $region12: #{_lambda_.8} parent=0 // pred_region
    _
  $region13: #{_lambda_.8} parent=0 // pred_fallthru
    _
  // Predicated region
  $region14: #{_lambda_.8} parent=0 // pred_check
    _
  $region15: #{_lambda_.8} parent=0 // pred_check_branch
    %16 = sbr.rel (0) target = $region17
  $region16: #{_lambda_.8} parent=0 // pred_region
    _
  $region17: #{_lambda_.8} parent=0 // pred_fallthru
    _
  %v17 = vld [vmem:[%s0] sm:$0xff]
  %v18 = vld [vmem:[%s0 + $0x8] sm:$0xff]
  %v19 = vld [vmem:[%s0 + $0x10] sm:$0xff]
  %v20 = vld [vmem:[%s0 + $0x18] sm:$0xff]
  %v21 = vld [vmem:[%s0 + $0x20] sm:$0xff]
  %v22 = vld [vmem:[%s0 + $0x28] sm:$0xff]
  %v23 = vld [vmem:[%s0 + $0x30] sm:$0xff]
  %v24 = vld [vmem:[%s0 + $0x38] sm:$0xff]
  %v25 = vld [vmem:[%s0 + $0x40] sm:$0xff]
  %v26 = vld [vmem:[%s0 + $0x48] sm:$0xff]
  %v27 = vld [vmem:[%s0 + $0x50] sm:$0xff]
  %v28 = vld [vmem:[%s0 + $0x58] sm:$0xff]
  %v29 = vld [vmem:[%s0 + $0x60] sm:$0xff]
  %v30 = vld [vmem:[%s0 + $0x68] sm:$0xff]
  %v31 = vld [vmem:[%s0 + $0x70] sm:$0xff]
  %v32 = vld [vmem:[%s0 + $0x78] sm:$0xff]
  %v33 = vld [vmem:[%s0 + $0x80] sm:$0xff]
  %v34 = vld [vmem:[%s0 + $0x88] sm:$0xff]
  %v35 = vld [vmem:[%s0 + $0x90] sm:$0xff]
  %v36 = vld [vmem:[%s0 + $0x98] sm:$0xff]
  %v37 = vld [vmem:[%s0 + $0xa0] sm:$0xff]
  %v38 = vld [vmem:[%s0 + $0xa8] sm:$0xff]
  %v39 = vld [vmem:[%s0 + $0xb0] sm:$0xff]
  %v40 = vld [vmem:[%s0 + $0xb8] sm:$0xff]
  %v41 = vld [vmem:[%s0 + $0xc0] sm:$0xff]
  %v42 = vld [vmem:[%s0 + $0xc8] sm:$0xff]
  %v43 = vld [vmem:[%s0 + $0xd0] sm:$0xff]
  %v44 = vld [vmem:[%s0 + $0xd8] sm:$0xff]
  %v45 = vld [vmem:[%s0 + $0xe0] sm:$0xff]
  %v46 = vld [vmem:[%s0 + $0xe8] sm:$0xff]
  %v47 = vld [vmem:[%s0 + $0xf0] sm:$0xff]
  %v48 = vld [vmem:[%s0 + $0xf8] sm:$0xff]
  %v49 = vld [vmem:[%s0 + $0x100] sm:$0xff]
  %v50 = vld [vmem:[%s0 + $0x108] sm:$0xff]
  %v51 = vld [vmem:[%s0 + $0x110] sm:$0xff]
  %v52 = vld [vmem:[%s0 + $0x118] sm:$0xff]
  %v53 = vld [vmem:[%s0 + $0x120] sm:$0xff]
  %v54 = vld [vmem:[%s0 + $0x128] sm:$0xff]
  %v55 = vld [vmem:[%s0 + $0x130] sm:$0xff]
  %v56 = vld [vmem:[%s0 + $0x138] sm:$0xff]
  %v57 = vld [vmem:[%s0 + $0x140] sm:$0xff]
  %v58 = vld [vmem:[%s0 + $0x148] sm:$0xff]
  %v59 = vld [vmem:[%s0 + $0x150] sm:$0xff]
  %v60 = vld [vmem:[%s0 + $0x158] sm:$0xff]
  %v61 = vld [vmem:[%s0 + $0x160] sm:$0xff]
  %v62 = vld [vmem:[%s0 + $0x168] sm:$0xff]
  %v63 = vld [vmem:[%s0 + $0x170] sm:$0xff]
  %v64 = vld [vmem:[%s0 + $0x178] sm:$0xff]
  %v65 = vld [vmem:[%s0 + $0x180] sm:$0xff]
  %v66 = vld [vmem:[%s0 + $0x188] sm:$0xff]
  %v67 = vld [vmem:[%s0 + $0x190] sm:$0xff]
  %v68 = vld [vmem:[%s0 + $0x198] sm:$0xff]
  %v69 = vld [vmem:[%s0 + $0x1a0] sm:$0xff]
  %v70 = vld [vmem:[%s0 + $0x1a8] sm:$0xff]
  %v71 = vld [vmem:[%s1] sm:$0xff]
  %v72 = vld [vmem:[%s1 + $0x8] sm:$0xff]
  %v73 = vld [vmem:[%s1 + $0x10] sm:$0xff]
  %v74 = vld [vmem:[%s1 + $0x18] sm:$0xff]
  %v75 = vld [vmem:[%s1 + $0x20] sm:$0xff]
  %v76 = vld [vmem:[%s1 + $0x28] sm:$0xff]
  %v77 = vld [vmem:[%s1 + $0x30] sm:$0xff]
  %v78 = vld [vmem:[%s1 + $0x38] sm:$0xff]
  %v79 = vld [vmem:[%s1 + $0x40] sm:$0xff]
  %v80 = vld [vmem:[%s1 + $0x48] sm:$0xff]
  %v81 = vld [vmem:[%s1 + $0x50] sm:$0xff]
  %v82 = vld [vmem:[%s1 + $0x58] sm:$0xff]
  %v83 = vld [vmem:[%s1 + $0x60] sm:$0xff]
  %v84 = vld [vmem:[%s1 + $0x68] sm:$0xff]
  %v85 = vld [vmem:[%s1 + $0x70] sm:$0xff]
  %v86 = vld [vmem:[%s1 + $0x78] sm:$0xff]
  %v87 = vld [vmem:[%s1 + $0x80] sm:$0xff]
  %v88 = vld [vmem:[%s1 + $0x88] sm:$0xff]
  %v89 = vld [vmem:[%s1 + $0x90] sm:$0xff]
  %v90 = vld [vmem:[%s1 + $0x98] sm:$0xff]
  %v91 = vld [vmem:[%s1 + $0xa0] sm:$0xff]
  %v92 = vld [vmem:[%s1 + $0xa8] sm:$0xff]
  %v93 = vld [vmem:[%s1 + $0xb0] sm:$0xff]
  %v94 = vld [vmem:[%s1 + $0xb8] sm:$0xff]
  %v95 = vld [vmem:[%s1 + $0xc0] sm:$0xff]
  %v96 = vld [vmem:[%s1 + $0xc8] sm:$0xff]
  %v97 = vld [vmem:[%s1 + $0xd0] sm:$0xff]
  %v98 = vld [vmem:[%s1 + $0xd8] sm:$0xff]
  %v99 = vld [vmem:[%s1 + $0xe0] sm:$0xff]
  %v100 = vld [vmem:[%s1 + $0xe8] sm:$0xff]
  %v101 = vld [vmem:[%s1 + $0xf0] sm:$0xff]
  %v102 = vld [vmem:[%s1 + $0xf8] sm:$0xff]
  %v103 = vld [vmem:[%s1 + $0x100] sm:$0xff]
  %v104 = vld [vmem:[%s1 + $0x108] sm:$0xff]
  %v105 = vld [vmem:[%s1 + $0x110] sm:$0xff]
  %v106 = vld [vmem:[%s1 + $0x118] sm:$0xff]
  %v107 = vld [vmem:[%s1 + $0x120] sm:$0xff]
  %v108 = vld [vmem:[%s1 + $0x128] sm:$0xff]
  %v109 = vld [vmem:[%s1 + $0x130] sm:$0xff]
  %v110 = vld [vmem:[%s1 + $0x138] sm:$0xff]
  %v111 = vld [vmem:[%s1 + $0x140] sm:$0xff]
  %v112 = vld [vmem:[%s1 + $0x148] sm:$0xff]
  %v113 = vld [vmem:[%s1 + $0x150] sm:$0xff]
  %v114 = vld [vmem:[%s1 + $0x158] sm:$0xff]
  %v115 = vld [vmem:[%s1 + $0x160] sm:$0xff]
  %v116 = vld [vmem:[%s1 + $0x168] sm:$0xff]
  %v117 = vld [vmem:[%s1 + $0x170] sm:$0xff]
  %v118 = vld [vmem:[%s1 + $0x178] sm:$0xff]
  %v119 = vld [vmem:[%s1 + $0x180] sm:$0xff]
  %v120 = vld [vmem:[%s1 + $0x188] sm:$0xff]
  %v121 = vld [vmem:[%s1 + $0x190] sm:$0xff]
  %v122 = vld [vmem:[%s1 + $0x198] sm:$0xff]
  %v123 = vld [vmem:[%s1 + $0x1a0] sm:$0xff]
  %v124 = vld [vmem:[%s1 + $0x1a8] sm:$0xff]
  %v125 = vld [vmem:[%s1 + $0x1b0] sm:$0xff]
  %v126 = vld [vmem:[%s1 + $0x1b8] sm:$0xff]
  %v127 = vld [vmem:[%s1 + $0x1c0] sm:$0xff]
  %v128 = vld [vmem:[%s1 + $0x1c8] sm:$0xff]
  %v129 = vld [vmem:[%s1 + $0x1d0] sm:$0xff]
  %v130 = vld [vmem:[%s1 + $0x1d8] sm:$0xff]
  %v131 = vld [vmem:[%s1 + $0x1e0] sm:$0xff]
  %v132 = vld [vmem:[%s1 + $0x1e8] sm:$0xff]
  %v133 = vld [vmem:[%s1 + $0x1f0] sm:$0xff]
  %v134 = vld [vmem:[%s1 + $0x1f8] sm:$0xff]
  %v135 = vld [vmem:[%s1 + $0x200] sm:$0xff]
  %v136 = vld [vmem:[%s1 + $0x208] sm:$0xff]
  %v137 = vld [vmem:[%s1 + $0x210] sm:$0xff]
  %v138 = vld [vmem:[%s1 + $0x218] sm:$0xff]
  %v139 = vld [vmem:[%s1 + $0x220] sm:$0xff]
  %v140 = vld [vmem:[%s1 + $0x228] sm:$0xff]
  %v141 = vld [vmem:[%s1 + $0x230] sm:$0xff]
  %v142 = vld [vmem:[%s1 + $0x238] sm:$0xff]
  %v143 = vld [vmem:[%s1 + $0x240] sm:$0xff]
  %v144 = vld [vmem:[%s1 + $0x248] sm:$0xff]
  %v145 = vld [vmem:[%s1 + $0x250] sm:$0xff]
  %v146 = vld [vmem:[%s1 + $0x258] sm:$0xff]
  %v147 = vld [vmem:[%s1 + $0x260] sm:$0xff]
  %v148 = vld [vmem:[%s1 + $0x268] sm:$0xff]
  %v149 = vld [vmem:[%s1 + $0x270] sm:$0xff]
  %v150 = vld [vmem:[%s1 + $0x278] sm:$0xff]
  %v151 = vld [vmem:[%s1 + $0x280] sm:$0xff]
  %v152 = vld [vmem:[%s1 + $0x288] sm:$0xff]
  %v153 = vld [vmem:[%s1 + $0x290] sm:$0xff]
  %v154 = vld [vmem:[%s1 + $0x298] sm:$0xff]
  %v155 = vld [vmem:[%s1 + $0x2a0] sm:$0xff]
  %v156 = vld [vmem:[%s1 + $0x2a8] sm:$0xff]
  %v157 = vld [vmem:[%s1 + $0x2b0] sm:$0xff]
  %v158 = vld [vmem:[%s1 + $0x2b8] sm:$0xff]
  %v159 = vld [vmem:[%s1 + $0x2c0] sm:$0xff]
  %v160 = vld [vmem:[%s1 + $0x2c8] sm:$0xff]
  %v161 = vld [vmem:[%s1 + $0x2d0] sm:$0xff]
  %v162 = vld [vmem:[%s1 + $0x2d8] sm:$0xff]
  %v163 = vld [vmem:[%s1 + $0x2e0] sm:$0xff]
  %v164 = vld [vmem:[%s1 + $0x2e8] sm:$0xff]
  %v165 = vld [vmem:[%s1 + $0x2f0] sm:$0xff]
  %v166 = vld [vmem:[%s1 + $0x2f8] sm:$0xff]
  %v167 = vld [vmem:[%s1 + $0x300] sm:$0xff]
  %v168 = vld [vmem:[%s1 + $0x308] sm:$0xff]
  %v169 = vld [vmem:[%s1 + $0x310] sm:$0xff]
  %v170 = vld [vmem:[%s1 + $0x318] sm:$0xff]
  %v171 = vld [vmem:[%s1 + $0x320] sm:$0xff]
  %v172 = vld [vmem:[%s1 + $0x328] sm:$0xff]
  %v173 = vld [vmem:[%s1 + $0x330] sm:$0xff]
  %v174 = vld [vmem:[%s1 + $0x338] sm:$0xff]
  %v175 = vld [vmem:[%s1 + $0x340] sm:$0xff]
  %v176 = vld [vmem:[%s1 + $0x348] sm:$0xff]
  %v177 = vld [vmem:[%s1 + $0x350] sm:$0xff]
  %v178 = vld [vmem:[%s1 + $0x358] sm:$0xff]
  %v179 = vld [vmem:[%s1 + $0x360] sm:$0xff]
  %v180 = vld [vmem:[%s1 + $0x368] sm:$0xff]
  %v181 = vld [vmem:[%s1 + $0x370] sm:$0xff]
  %v182 = vld [vmem:[%s1 + $0x378] sm:$0xff]
  %v183 = vld [vmem:[%s1 + $0x380] sm:$0xff]
  %v184 = vld [vmem:[%s1 + $0x388] sm:$0xff]
  %v185 = vld [vmem:[%s1 + $0x390] sm:$0xff]
  %v186 = vld [vmem:[%s1 + $0x398] sm:$0xff]
  %v187 = vld [vmem:[%s1 + $0x3a0] sm:$0xff]
  %v188 = vld [vmem:[%s1 + $0x3a8] sm:$0xff]
  %v189 = vld [vmem:[%s1 + $0x3b0] sm:$0xff]
  %v190 = vld [vmem:[%s1 + $0x3b8] sm:$0xff]
  %v191 = vld [vmem:[%s1 + $0x3c0] sm:$0xff]
  %v192 = vld [vmem:[%s1 + $0x3c8] sm:$0xff]
  %v193 = vld [vmem:[%s1 + $0x3d0] sm:$0xff]
  %v194 = vld [vmem:[%s1 + $0x3d8] sm:$0xff]
  %v195 = vld [vmem:[%s1 + $0x3e0] sm:$0xff]
  %v196 = vld [vmem:[%s1 + $0x3e8] sm:$0xff]
  %v197 = vld [vmem:[%s1 + $0x3f0] sm:$0xff]
  %v198 = vld [vmem:[%s1 + $0x3f8] sm:$0xff]
  %v199 = vld [vmem:[%s1 + $0x400] sm:$0xff]
  %v200 = vld [vmem:[%s1 + $0x408] sm:$0xff]
  %v201 = vld [vmem:[%s1 + $0x410] sm:$0xff]
  %v202 = vld [vmem:[%s1 + $0x418] sm:$0xff]
  %v203 = vld [vmem:[%s1 + $0x420] sm:$0xff]
  %v204 = vld [vmem:[%s1 + $0x428] sm:$0xff]
  %v205 = vld [vmem:[%s1 + $0x430] sm:$0xff]
  %v206 = vld [vmem:[%s1 + $0x438] sm:$0xff]
  %v207 = vld [vmem:[%s1 + $0x440] sm:$0xff]
  %v208 = vld [vmem:[%s1 + $0x448] sm:$0xff]
  %v209 = vld [vmem:[%s1 + $0x450] sm:$0xff]
  %v210 = vld [vmem:[%s1 + $0x458] sm:$0xff]
  %v211 = vld [vmem:[%s1 + $0x460] sm:$0xff]
  %v212 = vld [vmem:[%s1 + $0x468] sm:$0xff]
  %v213 = vld [vmem:[%s1 + $0x470] sm:$0xff]
  %v214 = vld [vmem:[%s1 + $0x478] sm:$0xff]
  %v215 = vld [vmem:[%s1 + $0x480] sm:$0xff]
  %v216 = vld [vmem:[%s1 + $0x488] sm:$0xff]
  %v217 = vld [vmem:[%s1 + $0x490] sm:$0xff]
  %v218 = vld [vmem:[%s1 + $0x498] sm:$0xff]
  %v219 = vld [vmem:[%s1 + $0x4a0] sm:$0xff]
  %v220 = vld [vmem:[%s1 + $0x4a8] sm:$0xff]
  %v221 = vld [vmem:[%s1 + $0x4b0] sm:$0xff]
  %v222 = vld [vmem:[%s1 + $0x4b8] sm:$0xff]
  %v223 = vld [vmem:[%s1 + $0x4c0] sm:$0xff]
  %v224 = vld [vmem:[%s1 + $0x4c8] sm:$0xff]
  %v225 = vld [vmem:[%s1 + $0x4d0] sm:$0xff]
  %v226 = vld [vmem:[%s1 + $0x4d8] sm:$0xff]
  %v227 = vld [vmem:[%s1 + $0x4e0] sm:$0xff]
  %v228 = vld [vmem:[%s1 + $0x4e8] sm:$0xff]
  %v229 = vld [vmem:[%s1 + $0x4f0] sm:$0xff]
  %v230 = vld [vmem:[%s1 + $0x4f8] sm:$0xff]
  %v231 = vld [vmem:[%s1 + $0x500] sm:$0xff]
  %v232 = vld [vmem:[%s1 + $0x508] sm:$0xff]
  %v233 = vld [vmem:[%s1 + $0x510] sm:$0xff]
  %v234 = vld [vmem:[%s1 + $0x518] sm:$0xff]
  %v235 = vld [vmem:[%s1 + $0x520] sm:$0xff]
  %v236 = vld [vmem:[%s1 + $0x528] sm:$0xff]
  %v237 = vld [vmem:[%s1 + $0x530] sm:$0xff]
  %v238 = vld [vmem:[%s1 + $0x538] sm:$0xff]
  %v239 = vld [vmem:[%s1 + $0x540] sm:$0xff]
  %v240 = vld [vmem:[%s1 + $0x548] sm:$0xff]
  %v241 = vld [vmem:[%s1 + $0x550] sm:$0xff]
  %v242 = vld [vmem:[%s1 + $0x558] sm:$0xff]
  %v243 = vld [vmem:[%s1 + $0x560] sm:$0xff]
  %v244 = vld [vmem:[%s1 + $0x568] sm:$0xff]
  %v245 = vld [vmem:[%s1 + $0x570] sm:$0xff]
  %v246 = vld [vmem:[%s1 + $0x578] sm:$0xff]
  %v247 = vld [vmem:[%s1 + $0x580] sm:$0xff]
  %v248 = vld [vmem:[%s1 + $0x588] sm:$0xff]
  %v249 = vld [vmem:[%s1 + $0x590] sm:$0xff]
  %v250 = vld [vmem:[%s1 + $0x598] sm:$0xff]
  %v251 = vld [vmem:[%s1 + $0x5a0] sm:$0xff]
  %v252 = vld [vmem:[%s1 + $0x5a8] sm:$0xff]
  %v253 = vld [vmem:[%s1 + $0x5b0] sm:$0xff]
  %v254 = vld [vmem:[%s1 + $0x5b8] sm:$0xff]
  %v255 = vld [vmem:[%s1 + $0x5c0] sm:$0xff]
  %v256 = vld [vmem:[%s1 + $0x5c8] sm:$0xff]
  %v257 = vld [vmem:[%s1 + $0x5d0] sm:$0xff]
  %v258 = vld [vmem:[%s1 + $0x5d8] sm:$0xff]
  %v259 = vld [vmem:[%s1 + $0x5e0] sm:$0xff]
  %v260 = vld [vmem:[%s1 + $0x5e8] sm:$0xff]
  %v261 = vld [vmem:[%s1 + $0x5f0] sm:$0xff]
  %v262 = vld [vmem:[%s1 + $0x5f8] sm:$0xff]
  %v263 = vld [vmem:[%s1 + $0x600] sm:$0xff]
  %v264 = vld [vmem:[%s1 + $0x608] sm:$0xff]
  %v265 = vld [vmem:[%s1 + $0x610] sm:$0xff]
  %v266 = vld [vmem:[%s1 + $0x618] sm:$0xff]
  %v267 = vld [vmem:[%s1 + $0x620] sm:$0xff]
  %v268 = vld [vmem:[%s1 + $0x628] sm:$0xff]
  %v269 = vld [vmem:[%s1 + $0x630] sm:$0xff]
  %v270 = vld [vmem:[%s1 + $0x638] sm:$0xff]
  %v271 = vld [vmem:[%s1 + $0x640] sm:$0xff]
  %v272 = vld [vmem:[%s1 + $0x648] sm:$0xff]
  %v273 = vld [vmem:[%s1 + $0x650] sm:$0xff]
  %v274 = vld [vmem:[%s1 + $0x658] sm:$0xff]
  %v275 = vld [vmem:[%s1 + $0x660] sm:$0xff]
  %v276 = vld [vmem:[%s1 + $0x668] sm:$0xff]
  %v277 = vld [vmem:[%s1 + $0x670] sm:$0xff]
  %v278 = vld [vmem:[%s1 + $0x678] sm:$0xff]
  %v279 = vld [vmem:[%s1 + $0x680] sm:$0xff]
  %v280 = vld [vmem:[%s1 + $0x688] sm:$0xff]
  %v281 = vld [vmem:[%s1 + $0x690] sm:$0xff]
  %v282 = vld [vmem:[%s1 + $0x698] sm:$0xff]
  %v283 = vld [vmem:[%s1 + $0x6a0] sm:$0xff]
  %v284 = vld [vmem:[%s1 + $0x6a8] sm:$0xff]
  %v285 = vld [vmem:[%s1 + $0x6b0] sm:$0xff]
  %v286 = vld [vmem:[%s1 + $0x6b8] sm:$0xff]
  %v287 = vld [vmem:[%s1 + $0x6c0] sm:$0xff]
  %v288 = vld [vmem:[%s1 + $0x6c8] sm:$0xff]
  %v289 = vld [vmem:[%s1 + $0x6d0] sm:$0xff]
  %v290 = vld [vmem:[%s1 + $0x6d8] sm:$0xff]
  %v291 = vld [vmem:[%s1 + $0x6e0] sm:$0xff]
  %v292 = vld [vmem:[%s1 + $0x6e8] sm:$0xff]
  %v293 = vld [vmem:[%s1 + $0x6f0] sm:$0xff]
  %v294 = vld [vmem:[%s1 + $0x6f8] sm:$0xff]
  %v295 = vld [vmem:[%s1 + $0x700] sm:$0xff]
  %v296 = vld [vmem:[%s1 + $0x708] sm:$0xff]
  %v297 = vld [vmem:[%s1 + $0x710] sm:$0xff]
  %v298 = vld [vmem:[%s1 + $0x718] sm:$0xff]
  %v299 = vld [vmem:[%s1 + $0x720] sm:$0xff]
  %v300 = vld [vmem:[%s1 + $0x728] sm:$0xff]
  %v301 = vld [vmem:[%s1 + $0x730] sm:$0xff]
  %v302 = vld [vmem:[%s1 + $0x738] sm:$0xff]
  %v303 = vld [vmem:[%s1 + $0x740] sm:$0xff]
  %v304 = vld [vmem:[%s1 + $0x748] sm:$0xff]
  %v305 = vld [vmem:[%s1 + $0x750] sm:$0xff]
  %v306 = vld [vmem:[%s1 + $0x758] sm:$0xff]
  %v307 = vld [vmem:[%s1 + $0x760] sm:$0xff]
  %v308 = vld [vmem:[%s1 + $0x768] sm:$0xff]
  %v309 = vld [vmem:[%s1 + $0x770] sm:$0xff]
  %v310 = vld [vmem:[%s1 + $0x778] sm:$0xff]
  %v311 = vld [vmem:[%s1 + $0x780] sm:$0xff]
  %v312 = vld [vmem:[%s1 + $0x788] sm:$0xff]
  %v313 = vld [vmem:[%s1 + $0x790] sm:$0xff]
  %v314 = vld [vmem:[%s1 + $0x798] sm:$0xff]
  %v315 = vld [vmem:[%s1 + $0x7a0] sm:$0xff]
  %v316 = vld [vmem:[%s1 + $0x7a8] sm:$0xff]
  %v317 = vld [vmem:[%s1 + $0x7b0] sm:$0xff]
  %v318 = vld [vmem:[%s1 + $0x7b8] sm:$0xff]
  %v319 = vld [vmem:[%s1 + $0x7c0] sm:$0xff]
  %v320 = vld [vmem:[%s1 + $0x7c8] sm:$0xff]
  %v321 = vld [vmem:[%s1 + $0x7d0] sm:$0xff]
  %v322 = vld [vmem:[%s1 + $0x7d8] sm:$0xff]
  %v323 = vld [vmem:[%s1 + $0x7e0] sm:$0xff]
  %v324 = vld [vmem:[%s1 + $0x7e8] sm:$0xff]
  %v325 = vld [vmem:[%s1 + $0x7f0] sm:$0xff]
  %v326 = vld [vmem:[%s1 + $0x7f8] sm:$0xff]
  %v327 = vld [vmem:[%s1 + $0x800] sm:$0xff]
  %v328 = vld [vmem:[%s1 + $0x808] sm:$0xff]
  %v329 = vld [vmem:[%s1 + $0x810] sm:$0xff]
  %v330 = vld [vmem:[%s1 + $0x818] sm:$0xff]
  %v331 = vld [vmem:[%s1 + $0x820] sm:$0xff]
  %v332 = vld [vmem:[%s1 + $0x828] sm:$0xff]
  %v333 = vld [vmem:[%s1 + $0x830] sm:$0xff]
  %v334 = vld [vmem:[%s1 + $0x838] sm:$0xff]
  %v335 = vld [vmem:[%s1 + $0x840] sm:$0xff]
  %v336 = vld [vmem:[%s1 + $0x848] sm:$0xff]
  %v337 = vld [vmem:[%s1 + $0x850] sm:$0xff]
  %v338 = vld [vmem:[%s1 + $0x858] sm:$0xff]
  %v339 = vld [vmem:[%s1 + $0x860] sm:$0xff]
  %v340 = vld [vmem:[%s1 + $0x868] sm:$0xff]
  %v341 = vld [vmem:[%s1 + $0x870] sm:$0xff]
  %v342 = vld [vmem:[%s1 + $0x878] sm:$0xff]
  %v343 = vld [vmem:[%s1 + $0x880] sm:$0xff]
  %v344 = vld [vmem:[%s1 + $0x888] sm:$0xff]
  %v345 = vld [vmem:[%s1 + $0x890] sm:$0xff]
  %v346 = vld [vmem:[%s1 + $0x898] sm:$0xff]
  %v347 = vld [vmem:[%s1 + $0x8a0] sm:$0xff]
  %v348 = vld [vmem:[%s1 + $0x8a8] sm:$0xff]
  %v349 = vld [vmem:[%s1 + $0x8b0] sm:$0xff]
  %v350 = vld [vmem:[%s1 + $0x8b8] sm:$0xff]
  %v351 = vld [vmem:[%s1 + $0x8c0] sm:$0xff]
  %v352 = vld [vmem:[%s1 + $0x8c8] sm:$0xff]
  %v353 = vld [vmem:[%s1 + $0x8d0] sm:$0xff]
  %v354 = vld [vmem:[%s1 + $0x8d8] sm:$0xff]
  %v355 = vld [vmem:[%s1 + $0x8e0] sm:$0xff]
  %v356 = vld [vmem:[%s1 + $0x8e8] sm:$0xff]
  %v357 = vld [vmem:[%s1 + $0x8f0] sm:$0xff]
  %v358 = vld [vmem:[%s1 + $0x8f8] sm:$0xff]
  %v359 = vld [vmem:[%s1 + $0x900] sm:$0xff]
  %v360 = vld [vmem:[%s1 + $0x908] sm:$0xff]
  %v361 = vld [vmem:[%s1 + $0x910] sm:$0xff]
  %v362 = vld [vmem:[%s1 + $0x918] sm:$0xff]
  %v363 = vld [vmem:[%s1 + $0x920] sm:$0xff]
  %v364 = vld [vmem:[%s1 + $0x928] sm:$0xff]
  %v365 = vld [vmem:[%s1 + $0x930] sm:$0xff]
  %v366 = vld [vmem:[%s1 + $0x938] sm:$0xff]
  %v367 = vld [vmem:[%s1 + $0x940] sm:$0xff]
  %v368 = vld [vmem:[%s1 + $0x948] sm:$0xff]
  %v369 = vld [vmem:[%s1 + $0x950] sm:$0xff]
  %v370 = vld [vmem:[%s1 + $0x958] sm:$0xff]
  %v371 = vld [vmem:[%s1 + $0x960] sm:$0xff]
  %v372 = vld [vmem:[%s1 + $0x968] sm:$0xff]
  %v373 = vld [vmem:[%s1 + $0x970] sm:$0xff]
  %v374 = vld [vmem:[%s1 + $0x978] sm:$0xff]
  %v375 = vld [vmem:[%s1 + $0x980] sm:$0xff]
  %v376 = vld [vmem:[%s1 + $0x988] sm:$0xff]
  %v377 = vld [vmem:[%s1 + $0x990] sm:$0xff]
  %v378 = vld [vmem:[%s1 + $0x998] sm:$0xff]
  %v379 = vld [vmem:[%s1 + $0x9a0] sm:$0xff]
  %v380 = vld [vmem:[%s1 + $0x9a8] sm:$0xff]
  %v381 = vld [vmem:[%s1 + $0x9b0] sm:$0xff]
  %v382 = vld [vmem:[%s1 + $0x9b8] sm:$0xff]
  %v383 = vld [vmem:[%s1 + $0x9c0] sm:$0xff]
  %v384 = vld [vmem:[%s1 + $0x9c8] sm:$0xff]
  %v385 = vld [vmem:[%s1 + $0x9d0] sm:$0xff]
  %v386 = vld [vmem:[%s1 + $0x9d8] sm:$0xff]
  %v387 = vld [vmem:[%s1 + $0x9e0] sm:$0xff]
  %v388 = vld [vmem:[%s1 + $0x9e8] sm:$0xff]
  %v389 = vld [vmem:[%s1 + $0x9f0] sm:$0xff]
  %v390 = vld [vmem:[%s1 + $0x9f8] sm:$0xff]
  %v391 = vld [vmem:[%s1 + $0xa00] sm:$0xff]
  %v392 = vld [vmem:[%s1 + $0xa08] sm:$0xff]
  %v393 = vld [vmem:[%s1 + $0xa10] sm:$0xff]
  %v394 = vld [vmem:[%s1 + $0xa18] sm:$0xff]
  %v395 = vld [vmem:[%s1 + $0xa20] sm:$0xff]
  %v396 = vld [vmem:[%s1 + $0xa28] sm:$0xff]
  %v397 = vld [vmem:[%s1 + $0xa30] sm:$0xff]
  %v398 = vld [vmem:[%s1 + $0xa38] sm:$0xff]
  %v399 = vld [vmem:[%s1 + $0xa40] sm:$0xff]
  %v400 = vld [vmem:[%s1 + $0xa48] sm:$0xff]
  %v401 = vld [vmem:[%s1 + $0xa50] sm:$0xff]
  %v402 = vld [vmem:[%s1 + $0xa58] sm:$0xff]
  %v403 = vld [vmem:[%s1 + $0xa60] sm:$0xff]
  %v404 = vld [vmem:[%s1 + $0xa68] sm:$0xff]
  %v405 = vld [vmem:[%s1 + $0xa70] sm:$0xff]
  %v406 = vld [vmem:[%s1 + $0xa78] sm:$0xff]
  %v407 = vld [vmem:[%s1 + $0xa80] sm:$0xff]
  %v408 = vld [vmem:[%s1 + $0xa88] sm:$0xff]
  %v409 = vld [vmem:[%s1 + $0xa90] sm:$0xff]
  %v410 = vld [vmem:[%s1 + $0xa98] sm:$0xff]
  %v411 = vld [vmem:[%s1 + $0xaa0] sm:$0xff]
  %v412 = vld [vmem:[%s1 + $0xaa8] sm:$0xff]
  %v413 = vld [vmem:[%s1 + $0xab0] sm:$0xff]
  %v414 = vld [vmem:[%s1 + $0xab8] sm:$0xff]
  %v415 = vld [vmem:[%s1 + $0xac0] sm:$0xff]
  %v416 = vld [vmem:[%s1 + $0xac8] sm:$0xff]
  %v417 = vld [vmem:[%s1 + $0xad0] sm:$0xff]
  %v418 = vld [vmem:[%s1 + $0xad8] sm:$0xff]
  %v419 = vld [vmem:[%s1 + $0xae0] sm:$0xff]
  %v420 = vld [vmem:[%s1 + $0xae8] sm:$0xff]
  %v421 = vld [vmem:[%s1 + $0xaf0] sm:$0xff]
  %v422 = vld [vmem:[%s1 + $0xaf8] sm:$0xff]
  %v423 = vld [vmem:[%s1 + $0xb00] sm:$0xff]
  %v424 = vld [vmem:[%s1 + $0xb08] sm:$0xff]
  %v425 = vld [vmem:[%s1 + $0xb10] sm:$0xff]
  %v426 = vld [vmem:[%s1 + $0xb18] sm:$0xff]
  %v427 = vld [vmem:[%s1 + $0xb20] sm:$0xff]
  %v428 = vld [vmem:[%s1 + $0xb28] sm:$0xff]
  %v429 = vld [vmem:[%s1 + $0xb30] sm:$0xff]
  %v430 = vld [vmem:[%s1 + $0xb38] sm:$0xff]
  %v431 = vld [vmem:[%s1 + $0xb40] sm:$0xff]
  %v432 = vld [vmem:[%s1 + $0xb48] sm:$0xff]
  %v433 = vld [vmem:[%s1 + $0xb50] sm:$0xff]
  %v434 = vld [vmem:[%s1 + $0xb58] sm:$0xff]
  %v435 = vld [vmem:[%s1 + $0xb60] sm:$0xff]
  %v436 = vld [vmem:[%s1 + $0xb68] sm:$0xff]
  %v437 = vld [vmem:[%s1 + $0xb70] sm:$0xff]
  %v438 = vld [vmem:[%s1 + $0xb78] sm:$0xff]
  %v439 = vld [vmem:[%s1 + $0xb80] sm:$0xff]
  %v440 = vld [vmem:[%s1 + $0xb88] sm:$0xff]
  %v441 = vld [vmem:[%s1 + $0xb90] sm:$0xff]
  %v442 = vld [vmem:[%s1 + $0xb98] sm:$0xff]
  %v443 = vld [vmem:[%s1 + $0xba0] sm:$0xff]
  %v444 = vld [vmem:[%s1 + $0xba8] sm:$0xff]
  %v445 = vld [vmem:[%s1 + $0xbb0] sm:$0xff]
  %v446 = vld [vmem:[%s1 + $0xbb8] sm:$0xff]
  %v447 = vld [vmem:[%s1 + $0xbc0] sm:$0xff]
  %v448 = vld [vmem:[%s1 + $0xbc8] sm:$0xff]
  %v449 = vld [vmem:[%s1 + $0xbd0] sm:$0xff]
  %v450 = vld [vmem:[%s1 + $0xbd8] sm:$0xff]
  %v451 = vld [vmem:[%s1 + $0xbe0] sm:$0xff]
  %v452 = vld [vmem:[%s1 + $0xbe8] sm:$0xff]
  %v453 = vld [vmem:[%s1 + $0xbf0] sm:$0xff]
  %v454 = vld [vmem:[%s1 + $0xbf8] sm:$0xff]
  %v455 = vld [vmem:[%s1 + $0xc00] sm:$0xff]
  %v456 = vld [vmem:[%s1 + $0xc08] sm:$0xff]
  %v457 = vld [vmem:[%s1 + $0xc10] sm:$0xff]
  %v458 = vld [vmem:[%s1 + $0xc18] sm:$0xff]
  %v459 = vld [vmem:[%s1 + $0xc20] sm:$0xff]
  %v460 = vld [vmem:[%s1 + $0xc28] sm:$0xff]
  %v461 = vld [vmem:[%s1 + $0xc30] sm:$0xff]
  %v462 = vld [vmem:[%s1 + $0xc38] sm:$0xff]
  %v463 = vld [vmem:[%s1 + $0xc40] sm:$0xff]
  %v464 = vld [vmem:[%s1 + $0xc48] sm:$0xff]
  %v465 = vld [vmem:[%s1 + $0xc50] sm:$0xff]
  %v466 = vld [vmem:[%s1 + $0xc58] sm:$0xff]
  %v467 = vld [vmem:[%s1 + $0xc60] sm:$0xff]
  %v468 = vld [vmem:[%s1 + $0xc68] sm:$0xff]
  %v469 = vld [vmem:[%s1 + $0xc70] sm:$0xff]
  %v470 = vld [vmem:[%s1 + $0xc78] sm:$0xff]
  %v471 = vld [vmem:[%s1 + $0xc80] sm:$0xff]
  %v472 = vld [vmem:[%s1 + $0xc88] sm:$0xff]
  %v473 = vld [vmem:[%s1 + $0xc90] sm:$0xff]
  %v474 = vld [vmem:[%s1 + $0xc98] sm:$0xff]
  %v475 = vld [vmem:[%s1 + $0xca0] sm:$0xff]
  %v476 = vld [vmem:[%s1 + $0xca8] sm:$0xff]
  %v477 = vld [vmem:[%s1 + $0xcb0] sm:$0xff]
  %v478 = vld [vmem:[%s1 + $0xcb8] sm:$0xff]
  %v479 = vld [vmem:[%s1 + $0xcc0] sm:$0xff]
  %v480 = vld [vmem:[%s1 + $0xcc8] sm:$0xff]
  %v481 = vld [vmem:[%s1 + $0xcd0] sm:$0xff]
  %v482 = vld [vmem:[%s1 + $0xcd8] sm:$0xff]
  %v483 = vld [vmem:[%s1 + $0xce0] sm:$0xff]
  %v484 = vld [vmem:[%s1 + $0xce8] sm:$0xff]
  %v485 = vld [vmem:[%s1 + $0xcf0] sm:$0xff]
  %v486 = vld [vmem:[%s1 + $0xcf8] sm:$0xff]
  %v487 = vld [vmem:[%s1 + $0xd00] sm:$0xff]
  %v488 = vld [vmem:[%s1 + $0xd08] sm:$0xff]
  %v489 = vld [vmem:[%s1 + $0xd10] sm:$0xff]
  %v490 = vld [vmem:[%s1 + $0xd18] sm:$0xff]
  %v491 = vld [vmem:[%s1 + $0xd20] sm:$0xff]
  %v492 = vld [vmem:[%s1 + $0xd28] sm:$0xff]
  %v493 = vld [vmem:[%s1 + $0xd30] sm:$0xff]
  %v494 = vld [vmem:[%s1 + $0xd38] sm:$0xff]
  %v495 = vld [vmem:[%s1 + $0xd40] sm:$0xff]
  %v496 = vld [vmem:[%s1 + $0xd48] sm:$0xff]
  %v497 = vld [vmem:[%s1 + $0xd50] sm:$0xff]
  %v498 = vld [vmem:[%s1 + $0xd58] sm:$0xff]
  %v499 = vld [vmem:[%s1 + $0xd60] sm:$0xff]
  %v500 = vld [vmem:[%s1 + $0xd68] sm:$0xff]
  %v501 = vld [vmem:[%s1 + $0xd70] sm:$0xff]
  %v502 = vld [vmem:[%s1 + $0xd78] sm:$0xff]
  %v503 = vld [vmem:[%s1 + $0xd80] sm:$0xff]
  %v504 = vld [vmem:[%s1 + $0xd88] sm:$0xff]
  %v505 = vld [vmem:[%s1 + $0xd90] sm:$0xff]
  %v506 = vld [vmem:[%s1 + $0xd98] sm:$0xff]
  %v507 = vld [vmem:[%s1 + $0xda0] sm:$0xff]
  %v508 = vld [vmem:[%s1 + $0xda8] sm:$0xff]
  %v509 = vld [vmem:[%s1 + $0xdb0] sm:$0xff]
  %v510 = vld [vmem:[%s1 + $0xdb8] sm:$0xff]
  %v511 = vld [vmem:[%s1 + $0xdc0] sm:$0xff]
  %v512 = vld [vmem:[%s1 + $0xdc8] sm:$0xff]
  %v513 = vld [vmem:[%s1 + $0xdd0] sm:$0xff]
  %v514 = vld [vmem:[%s1 + $0xdd8] sm:$0xff]
  %v515 = vld [vmem:[%s1 + $0xde0] sm:$0xff]
  %v516 = vld [vmem:[%s1 + $0xde8] sm:$0xff]
  %v517 = vld [vmem:[%s1 + $0xdf0] sm:$0xff]
  %v518 = vld [vmem:[%s1 + $0xdf8] sm:$0xff]
  %v519 = vld [vmem:[%s1 + $0xe00] sm:$0xff]
  %v520 = vld [vmem:[%s1 + $0xe08] sm:$0xff]
  %v521 = vld [vmem:[%s1 + $0xe10] sm:$0xff]
  %v522 = vld [vmem:[%s1 + $0xe18] sm:$0xff]
  %v523 = vld [vmem:[%s1 + $0xe20] sm:$0xff]
  %v524 = vld [vmem:[%s1 + $0xe28] sm:$0xff]
  %v525 = vld [vmem:[%s1 + $0xe30] sm:$0xff]
  %v526 = vld [vmem:[%s1 + $0xe38] sm:$0xff]
  %v527 = vld [vmem:[%s1 + $0xe40] sm:$0xff]
  %v528 = vld [vmem:[%s1 + $0xe48] sm:$0xff]
  %v529 = vld [vmem:[%s1 + $0xe50] sm:$0xff]
  %v530 = vld [vmem:[%s1 + $0xe58] sm:$0xff]
  %v531 = vld [vmem:[%s1 + $0xe60] sm:$0xff]
  %v532 = vld [vmem:[%s1 + $0xe68] sm:$0xff]
  %v533 = vld [vmem:[%s1 + $0xe70] sm:$0xff]
  %v534 = vld [vmem:[%s1 + $0xe78] sm:$0xff]
  %v535 = vld [vmem:[%s1 + $0xe80] sm:$0xff]
  %v536 = vld [vmem:[%s1 + $0xe88] sm:$0xff]
  %v537 = vld [vmem:[%s1 + $0xe90] sm:$0xff]
  %v538 = vld [vmem:[%s1 + $0xe98] sm:$0xff]
  %v539 = vld [vmem:[%s1 + $0xea0] sm:$0xff]
  %v540 = vld [vmem:[%s1 + $0xea8] sm:$0xff]
  %v541 = vld [vmem:[%s1 + $0xeb0] sm:$0xff]
  %v542 = vld [vmem:[%s1 + $0xeb8] sm:$0xff]
  %v543 = vld [vmem:[%s1 + $0xec0] sm:$0xff]
  %v544 = vld [vmem:[%s1 + $0xec8] sm:$0xff]
  %v545 = vld [vmem:[%s1 + $0xed0] sm:$0xff]
  %v546 = vld [vmem:[%s1 + $0xed8] sm:$0xff]
  %v547 = vld [vmem:[%s1 + $0xee0] sm:$0xff]
  %v548 = vld [vmem:[%s1 + $0xee8] sm:$0xff]
  %v549 = vld [vmem:[%s1 + $0xef0] sm:$0xff]
  %v550 = vld [vmem:[%s1 + $0xef8] sm:$0xff]
  %v551 = vld [vmem:[%s1 + $0xf00] sm:$0xff]
  %v552 = vld [vmem:[%s1 + $0xf08] sm:$0xff]
  %v553 = vld [vmem:[%s1 + $0xf10] sm:$0xff]
  %v554 = vld [vmem:[%s1 + $0xf18] sm:$0xff]
  %v555 = vld [vmem:[%s1 + $0xf20] sm:$0xff]
  %v556 = vld [vmem:[%s1 + $0xf28] sm:$0xff]
  %v557 = vld [vmem:[%s1 + $0xf30] sm:$0xff]
  %v558 = vld [vmem:[%s1 + $0xf38] sm:$0xff]
  %v559 = vld [vmem:[%s1 + $0xf40] sm:$0xff]
  %v560 = vld [vmem:[%s1 + $0xf48] sm:$0xff]
  %v561 = vld [vmem:[%s1 + $0xf50] sm:$0xff]
  %v562 = vld [vmem:[%s1 + $0xf58] sm:$0xff]
  %v563 = vld [vmem:[%s1 + $0xf60] sm:$0xff]
  %v564 = vld [vmem:[%s1 + $0xf68] sm:$0xff]
  %v565 = vld [vmem:[%s1 + $0xf70] sm:$0xff]
  %v566 = vld [vmem:[%s1 + $0xf78] sm:$0xff]
  %v567 = vld [vmem:[%s1 + $0xf80] sm:$0xff]
  %v568 = vld [vmem:[%s1 + $0xf88] sm:$0xff]
  %v569 = vld [vmem:[%s1 + $0xf90] sm:$0xff]
  %v570 = vld [vmem:[%s1 + $0xf98] sm:$0xff]
  %v571 = vld [vmem:[%s1 + $0xfa0] sm:$0xff]
  %v572 = vld [vmem:[%s1 + $0xfa8] sm:$0xff]
  %v573 = vld [vmem:[%s1 + $0xfb0] sm:$0xff]
  %v574 = vld [vmem:[%s1 + $0xfb8] sm:$0xff]
  %v575 = vld [vmem:[%s1 + $0xfc0] sm:$0xff]
  %v576 = vld [vmem:[%s1 + $0xfc8] sm:$0xff]
  %v577 = vld [vmem:[%s1 + $0xfd0] sm:$0xff]
  %v578 = vld [vmem:[%s1 + $0xfd8] sm:$0xff]
  %v579 = vld [vmem:[%s1 + $0xfe0] sm:$0xff]
  %v580 = vld [vmem:[%s1 + $0xfe8] sm:$0xff]
  %v581 = vld [vmem:[%s1 + $0xff0] sm:$0xff]
  %v582 = vld [vmem:[%s1 + $0xff8] sm:$0xff]
  %v583 = vld [vmem:[%s1 + $0x1000] sm:$0xff]
  %v584 = vld [vmem:[%s1 + $0x1008] sm:$0xff]
  %v585 = vld [vmem:[%s1 + $0x1010] sm:$0xff]
  %v586 = vld [vmem:[%s1 + $0x1018] sm:$0xff]
  %v587 = vld [vmem:[%s1 + $0x1020] sm:$0xff]
  %v588 = vld [vmem:[%s1 + $0x1028] sm:$0xff]
  %v589 = vld [vmem:[%s1 + $0x1030] sm:$0xff]
  %v590 = vld [vmem:[%s1 + $0x1038] sm:$0xff]
  %v591 = vld [vmem:[%s1 + $0x1040] sm:$0xff]
  %v592 = vld [vmem:[%s1 + $0x1048] sm:$0xff]
  %v593 = vld [vmem:[%s1 + $0x1050] sm:$0xff]
  %v594 = vld [vmem:[%s1 + $0x1058] sm:$0xff]
  %v595 = vld [vmem:[%s1 + $0x1060] sm:$0xff]
  %v596 = vld [vmem:[%s1 + $0x1068] sm:$0xff]
  %v597 = vld [vmem:[%s1 + $0x1070] sm:$0xff]
  %v598 = vld [vmem:[%s1 + $0x1078] sm:$0xff]
  %v599 = vld [vmem:[%s1 + $0x1080] sm:$0xff]
  %v600 = vld [vmem:[%s1 + $0x1088] sm:$0xff]
  %v601 = vld [vmem:[%s1 + $0x1090] sm:$0xff]
  %v602 = vld [vmem:[%s1 + $0x1098] sm:$0xff]
  %v603 = vld [vmem:[%s1 + $0x10a0] sm:$0xff]
  %v604 = vld [vmem:[%s1 + $0x10a8] sm:$0xff]
  %v605 = vld [vmem:[%s1 + $0x10b0] sm:$0xff]
  %v606 = vld [vmem:[%s1 + $0x10b8] sm:$0xff]
  %v607 = vld [vmem:[%s1 + $0x10c0] sm:$0xff]
  %v608 = vld [vmem:[%s1 + $0x10c8] sm:$0xff]
  %v609 = vld [vmem:[%s1 + $0x10d0] sm:$0xff]
  %v610 = vld [vmem:[%s1 + $0x10d8] sm:$0xff]
  %v611 = vld [vmem:[%s1 + $0x10e0] sm:$0xff]
  %v612 = vld [vmem:[%s1 + $0x10e8] sm:$0xff]
  %v613 = vld [vmem:[%s1 + $0x10f0] sm:$0xff]
  %v614 = vld [vmem:[%s1 + $0x10f8] sm:$0xff]
  %v615 = vld [vmem:[%s1 + $0x1100] sm:$0xff]
  %v616 = vld [vmem:[%s1 + $0x1108] sm:$0xff]
  %v617 = vld [vmem:[%s1 + $0x1110] sm:$0xff]
  %v618 = vld [vmem:[%s1 + $0x1118] sm:$0xff]
  %v619 = vld [vmem:[%s1 + $0x1120] sm:$0xff]
  %v620 = vld [vmem:[%s1 + $0x1128] sm:$0xff]
  %v621 = vld [vmem:[%s1 + $0x1130] sm:$0xff]
  %v622 = vld [vmem:[%s1 + $0x1138] sm:$0xff]
  %v623 = vld [vmem:[%s1 + $0x1140] sm:$0xff]
  %v624 = vld [vmem:[%s1 + $0x1148] sm:$0xff]
  %v625 = vld [vmem:[%s1 + $0x1150] sm:$0xff]
  %v626 = vld [vmem:[%s1 + $0x1158] sm:$0xff]
  %v627 = vld [vmem:[%s1 + $0x1160] sm:$0xff]
  %v628 = vld [vmem:[%s1 + $0x1168] sm:$0xff]
  %v629 = vld [vmem:[%s1 + $0x1170] sm:$0xff]
  %v630 = vld [vmem:[%s1 + $0x1178] sm:$0xff]
  %v631 = vld [vmem:[%s1 + $0x1180] sm:$0xff]
  %v632 = vld [vmem:[%s1 + $0x1188] sm:$0xff]
  %v633 = vld [vmem:[%s1 + $0x1190] sm:$0xff]
  %v634 = vld [vmem:[%s1 + $0x1198] sm:$0xff]
  %v635 = vld [vmem:[%s1 + $0x11a0] sm:$0xff]
  %v636 = vld [vmem:[%s1 + $0x11a8] sm:$0xff]
  %v637 = vld [vmem:[%s1 + $0x11b0] sm:$0xff]
  %v638 = vld [vmem:[%s1 + $0x11b8] sm:$0xff]
  %v639 = vld [vmem:[%s1 + $0x11c0] sm:$0xff]
  %v640 = vld [vmem:[%s1 + $0x11c8] sm:$0xff]
  %v641 = vld [vmem:[%s1 + $0x11d0] sm:$0xff]
  %v642 = vld [vmem:[%s1 + $0x11d8] sm:$0xff]
  %v643 = vld [vmem:[%s1 + $0x11e0] sm:$0xff]
  %v644 = vld [vmem:[%s1 + $0x11e8] sm:$0xff]
  %v645 = vld [vmem:[%s1 + $0x11f0] sm:$0xff]
  %v646 = vld [vmem:[%s1 + $0x11f8] sm:$0xff]
  %v701 = vunpack.c.l.b16 %v17
  %v702 = vunpack.c.h.b16 %v17
  %v703 = vunpack.c.l.b16 %v18
  %v704 = vunpack.c.h.b16 %v18
  %v705 = vunpack.c.l.b16 %v19
  %v706 = vunpack.c.h.b16 %v19
  %v707 = vunpack.c.l.b16 %v20
  %v708 = vunpack.c.h.b16 %v20
  %v709 = vunpack.c.l.b16 %v21
  %v710 = vunpack.c.h.b16 %v21
  %v711 = vunpack.c.l.b16 %v22
  %v712 = vunpack.c.h.b16 %v22
  %v713 = vunpack.c.l.b16 %v23
  %v714 = vunpack.c.h.b16 %v23
  %v715 = vunpack.c.l.b16 %v24
  %v716 = vunpack.c.h.b16 %v24
  %v717 = vunpack.c.l.b16 %v25
  %v718 = vunpack.c.h.b16 %v25
  %v719 = vunpack.c.l.b16 %v26
  %v720 = vunpack.c.h.b16 %v26
  %v721 = vunpack.c.l.b16 %v27
  %v722 = vunpack.c.h.b16 %v27
  %v723 = vunpack.c.l.b16 %v28
  %v724 = vunpack.c.h.b16 %v28
  %v725 = vunpack.c.l.b16 %v29
  %v726 = vunpack.c.h.b16 %v29
  %v727 = vunpack.c.l.b16 %v30
  %v728 = vunpack.c.h.b16 %v30
  %v729 = vunpack.c.l.b16 %v31
  %v730 = vunpack.c.h.b16 %v31
  %v731 = vunpack.c.l.b16 %v32
  %v732 = vunpack.c.h.b16 %v32
  %v733 = vunpack.c.l.b16 %v33
  %v734 = vunpack.c.h.b16 %v33
  %v735 = vunpack.c.l.b16 %v34
  %v736 = vunpack.c.h.b16 %v34
  %v737 = vunpack.c.l.b16 %v35
  %v738 = vunpack.c.h.b16 %v35
  %v739 = vunpack.c.l.b16 %v36
  %v740 = vunpack.c.h.b16 %v36
  %v741 = vunpack.c.l.b16 %v37
  %v742 = vunpack.c.h.b16 %v37
  %v743 = vunpack.c.l.b16 %v38
  %v744 = vunpack.c.h.b16 %v38
  %v745 = vunpack.c.l.b16 %v39
  %v746 = vunpack.c.h.b16 %v39
  %v747 = vunpack.c.l.b16 %v40
  %v748 = vunpack.c.h.b16 %v40
  %v749 = vunpack.c.l.b16 %v41
  %v750 = vunpack.c.h.b16 %v41
  %v751 = vunpack.c.l.b16 %v42
  %v752 = vunpack.c.h.b16 %v42
  %v753 = vunpack.c.l.b16 %v43
  %v754 = vunpack.c.h.b16 %v43
  %v755 = vunpack.c.l.b16 %v44
  %v756 = vunpack.c.h.b16 %v44
  %v757 = vunpack.c.l.b16 %v45
  %v758 = vunpack.c.h.b16 %v45
  %v759 = vunpack.c.l.b16 %v46
  %v760 = vunpack.c.h.b16 %v46
  %v761 = vunpack.c.l.b16 %v47
  %v762 = vunpack.c.h.b16 %v47
  %v763 = vunpack.c.l.b16 %v48
  %v764 = vunpack.c.h.b16 %v48
  %v765 = vunpack.c.l.b16 %v49
  %v766 = vunpack.c.h.b16 %v49
  %v767 = vunpack.c.l.b16 %v50
  %v768 = vunpack.c.h.b16 %v50
  %v769 = vunpack.c.l.b16 %v51
  %v770 = vunpack.c.h.b16 %v51
  %v771 = vunpack.c.l.b16 %v52
  %v772 = vunpack.c.h.b16 %v52
  %v773 = vunpack.c.l.b16 %v53
  %v774 = vunpack.c.h.b16 %v53
  %v775 = vunpack.c.l.b16 %v54
  %v776 = vunpack.c.h.b16 %v54
  %v777 = vunpack.c.l.b16 %v55
  %v778 = vunpack.c.h.b16 %v55
  %v779 = vunpack.c.l.b16 %v56
  %v780 = vunpack.c.h.b16 %v56
  %v781 = vunpack.c.l.b16 %v57
  %v782 = vunpack.c.h.b16 %v57
  %v783 = vunpack.c.l.b16 %v58
  %v784 = vunpack.c.h.b16 %v58
  %v785 = vunpack.c.l.b16 %v59
  %v786 = vunpack.c.h.b16 %v59
  %v787 = vunpack.c.l.b16 %v60
  %v788 = vunpack.c.h.b16 %v60
  %v789 = vunpack.c.l.b16 %v61
  %v790 = vunpack.c.h.b16 %v61
  %v791 = vunpack.c.l.b16 %v62
  %v792 = vunpack.c.h.b16 %v62
  %v793 = vunpack.c.l.b16 %v63
  %v794 = vunpack.c.h.b16 %v63
  %v795 = vunpack.c.l.b16 %v64
  %v796 = vunpack.c.h.b16 %v64
  %v797 = vunpack.c.l.b16 %v65
  %v798 = vunpack.c.h.b16 %v65
  %v799 = vunpack.c.l.b16 %v66
  %v800 = vunpack.c.h.b16 %v66
  %v801 = vunpack.c.l.b16 %v67
  %v802 = vunpack.c.h.b16 %v67
  %v803 = vunpack.c.l.b16 %v68
  %v804 = vunpack.c.h.b16 %v68
  %v805 = vunpack.c.l.b16 %v69
  %v806 = vunpack.c.h.b16 %v69
  %v807 = vunpack.c.l.b16 %v70
  %v808 = vunpack.c.h.b16 %v70
  %v809 = vpack.c.b16 %v719, %v701
  %v810 = vpack.c.b16 %v720, %v702
  %v811 = vpack.c.b16 %v721, %v703
  %v812 = vpack.c.b16 %v722, %v704
  %v813 = vpack.c.b16 %v723, %v705
  %v814 = vpack.c.b16 %v724, %v706
  %v815 = vpack.c.b16 %v725, %v707
  %v816 = vpack.c.b16 %v726, %v708
  %v817 = vpack.c.b16 %v727, %v709
  %v818 = vpack.c.b16 %v728, %v710
  %v819 = vpack.c.b16 %v729, %v711
  %v820 = vpack.c.b16 %v730, %v712
  %v821 = vpack.c.b16 %v731, %v713
  %v822 = vpack.c.b16 %v732, %v714
  %v823 = vpack.c.b16 %v733, %v715
  %v824 = vpack.c.b16 %v734, %v716
  %v825 = vpack.c.b16 %v735, %v717
  %v826 = vpack.c.b16 %v736, %v718
  %v827 = vpack.c.b16 %v755, %v737
  %v828 = vpack.c.b16 %v756, %v738
  %v829 = vpack.c.b16 %v757, %v739
  %v830 = vpack.c.b16 %v758, %v740
  %v831 = vpack.c.b16 %v759, %v741
  %v832 = vpack.c.b16 %v760, %v742
  %v833 = vpack.c.b16 %v761, %v743
  %v834 = vpack.c.b16 %v762, %v744
  %v835 = vpack.c.b16 %v763, %v745
  %v836 = vpack.c.b16 %v764, %v746
  %v837 = vpack.c.b16 %v765, %v747
  %v838 = vpack.c.b16 %v766, %v748
  %v839 = vpack.c.b16 %v767, %v749
  %v840 = vpack.c.b16 %v768, %v750
  %v841 = vpack.c.b16 %v769, %v751
  %v842 = vpack.c.b16 %v770, %v752
  %v843 = vpack.c.b16 %v771, %v753
  %v844 = vpack.c.b16 %v772, %v754
  %v845 = vpack.c.b16 %v791, %v773
  %v846 = vpack.c.b16 %v792, %v774
  %v847 = vpack.c.b16 %v793, %v775
  %v848 = vpack.c.b16 %v794, %v776
  %v849 = vpack.c.b16 %v795, %v777
  %v850 = vpack.c.b16 %v796, %v778
  %v851 = vpack.c.b16 %v797, %v779
  %v852 = vpack.c.b16 %v798, %v780
  %v853 = vpack.c.b16 %v799, %v781
  %v854 = vpack.c.b16 %v800, %v782
  %v855 = vpack.c.b16 %v801, %v783
  %v856 = vpack.c.b16 %v802, %v784
  %v857 = vpack.c.b16 %v803, %v785
  %v858 = vpack.c.b16 %v804, %v786
  %v859 = vpack.c.b16 %v805, %v787
  %v860 = vpack.c.b16 %v806, %v788
  %v861 = vpack.c.b16 %v807, %v789
  %v862 = vpack.c.b16 %v808, %v790
  %v1493 = vunpack.c.l.b16 %v71
  %v1494 = vunpack.c.h.b16 %v71
  %v1495 = vunpack.c.l.b16 %v72
  %v1496 = vunpack.c.h.b16 %v72
  %v1497 = vunpack.c.l.b16 %v73
  %v1498 = vunpack.c.h.b16 %v73
  %v1499 = vunpack.c.l.b16 %v74
  %v1500 = vunpack.c.h.b16 %v74
  %v1501 = vunpack.c.l.b16 %v75
  %v1502 = vunpack.c.h.b16 %v75
  %v1503 = vunpack.c.l.b16 %v76
  %v1504 = vunpack.c.h.b16 %v76
  %v1505 = vunpack.c.l.b16 %v77
  %v1506 = vunpack.c.h.b16 %v77
  %v1507 = vunpack.c.l.b16 %v78
  %v1508 = vunpack.c.h.b16 %v78
  %v1509 = vunpack.c.l.b16 %v79
  %v1510 = vunpack.c.h.b16 %v79
  %v1511 = vunpack.c.l.b16 %v80
  %v1512 = vunpack.c.h.b16 %v80
  %v1513 = vunpack.c.l.b16 %v81
  %v1514 = vunpack.c.h.b16 %v81
  %v1515 = vunpack.c.l.b16 %v82
  %v1516 = vunpack.c.h.b16 %v82
  %v1517 = vunpack.c.l.b16 %v83
  %v1518 = vunpack.c.h.b16 %v83
  %v1519 = vunpack.c.l.b16 %v84
  %v1520 = vunpack.c.h.b16 %v84
  %v1521 = vunpack.c.l.b16 %v85
  %v1522 = vunpack.c.h.b16 %v85
  %v1523 = vunpack.c.l.b16 %v86
  %v1524 = vunpack.c.h.b16 %v86
  %v1525 = vunpack.c.l.b16 %v87
  %v1526 = vunpack.c.h.b16 %v87
  %v1527 = vunpack.c.l.b16 %v88
  %v1528 = vunpack.c.h.b16 %v88
  %v1529 = vunpack.c.l.b16 %v89
  %v1530 = vunpack.c.h.b16 %v89
  %v1531 = vunpack.c.l.b16 %v90
  %v1532 = vunpack.c.h.b16 %v90
  %v1533 = vunpack.c.l.b16 %v91
  %v1534 = vunpack.c.h.b16 %v91
  %v1535 = vunpack.c.l.b16 %v92
  %v1536 = vunpack.c.h.b16 %v92
  %v1537 = vunpack.c.l.b16 %v93
  %v1538 = vunpack.c.h.b16 %v93
  %v1539 = vunpack.c.l.b16 %v94
  %v1540 = vunpack.c.h.b16 %v94
  %v1541 = vunpack.c.l.b16 %v95
  %v1542 = vunpack.c.h.b16 %v95
  %v1543 = vunpack.c.l.b16 %v96
  %v1544 = vunpack.c.h.b16 %v96
  %v1545 = vunpack.c.l.b16 %v97
  %v1546 = vunpack.c.h.b16 %v97
  %v1547 = vunpack.c.l.b16 %v98
  %v1548 = vunpack.c.h.b16 %v98
  %v1549 = vunpack.c.l.b16 %v99
  %v1550 = vunpack.c.h.b16 %v99
  %v1551 = vunpack.c.l.b16 %v100
  %v1552 = vunpack.c.h.b16 %v100
  %v1553 = vunpack.c.l.b16 %v101
  %v1554 = vunpack.c.h.b16 %v101
  %v1555 = vunpack.c.l.b16 %v102
  %v1556 = vunpack.c.h.b16 %v102
  %v1557 = vunpack.c.l.b16 %v103
  %v1558 = vunpack.c.h.b16 %v103
  %v1559 = vunpack.c.l.b16 %v104
  %v1560 = vunpack.c.h.b16 %v104
  %v1561 = vunpack.c.l.b16 %v105
  %v1562 = vunpack.c.h.b16 %v105
  %v1563 = vunpack.c.l.b16 %v106
  %v1564 = vunpack.c.h.b16 %v106
  %v1565 = vunpack.c.l.b16 %v107
  %v1566 = vunpack.c.h.b16 %v107
  %v1567 = vunpack.c.l.b16 %v108
  %v1568 = vunpack.c.h.b16 %v108
  %v1569 = vunpack.c.l.b16 %v109
  %v1570 = vunpack.c.h.b16 %v109
  %v1571 = vunpack.c.l.b16 %v110
  %v1572 = vunpack.c.h.b16 %v110
  %v1573 = vunpack.c.l.b16 %v111
  %v1574 = vunpack.c.h.b16 %v111
  %v1575 = vunpack.c.l.b16 %v112
  %v1576 = vunpack.c.h.b16 %v112
  %v1577 = vunpack.c.l.b16 %v113
  %v1578 = vunpack.c.h.b16 %v113
  %v1579 = vunpack.c.l.b16 %v114
  %v1580 = vunpack.c.h.b16 %v114
  %v1581 = vunpack.c.l.b16 %v115
  %v1582 = vunpack.c.h.b16 %v115
  %v1583 = vunpack.c.l.b16 %v116
  %v1584 = vunpack.c.h.b16 %v116
  %v1585 = vunpack.c.l.b16 %v117
  %v1586 = vunpack.c.h.b16 %v117
  %v1587 = vunpack.c.l.b16 %v118
  %v1588 = vunpack.c.h.b16 %v118
  %v1589 = vunpack.c.l.b16 %v119
  %v1590 = vunpack.c.h.b16 %v119
  %v1591 = vunpack.c.l.b16 %v120
  %v1592 = vunpack.c.h.b16 %v120
  %v1593 = vunpack.c.l.b16 %v121
  %v1594 = vunpack.c.h.b16 %v121
  %v1595 = vunpack.c.l.b16 %v122
  %v1596 = vunpack.c.h.b16 %v122
  %v1597 = vunpack.c.l.b16 %v123
  %v1598 = vunpack.c.h.b16 %v123
  %v1599 = vunpack.c.l.b16 %v124
  %v1600 = vunpack.c.h.b16 %v124
  %v1601 = vunpack.c.l.b16 %v125
  %v1602 = vunpack.c.h.b16 %v125
  %v1603 = vunpack.c.l.b16 %v126
  %v1604 = vunpack.c.h.b16 %v126
  %v1605 = vunpack.c.l.b16 %v127
  %v1606 = vunpack.c.h.b16 %v127
  %v1607 = vunpack.c.l.b16 %v128
  %v1608 = vunpack.c.h.b16 %v128
  %v1609 = vunpack.c.l.b16 %v129
  %v1610 = vunpack.c.h.b16 %v129
  %v1611 = vunpack.c.l.b16 %v130
  %v1612 = vunpack.c.h.b16 %v130
  %v1613 = vunpack.c.l.b16 %v131
  %v1614 = vunpack.c.h.b16 %v131
  %v1615 = vunpack.c.l.b16 %v132
  %v1616 = vunpack.c.h.b16 %v132
  %v1617 = vunpack.c.l.b16 %v133
  %v1618 = vunpack.c.h.b16 %v133
  %v1619 = vunpack.c.l.b16 %v134
  %v1620 = vunpack.c.h.b16 %v134
  %v1621 = vunpack.c.l.b16 %v135
  %v1622 = vunpack.c.h.b16 %v135
  %v1623 = vunpack.c.l.b16 %v136
  %v1624 = vunpack.c.h.b16 %v136
  %v1625 = vunpack.c.l.b16 %v137
  %v1626 = vunpack.c.h.b16 %v137
  %v1627 = vunpack.c.l.b16 %v138
  %v1628 = vunpack.c.h.b16 %v138
  %v1629 = vunpack.c.l.b16 %v139
  %v1630 = vunpack.c.h.b16 %v139
  %v1631 = vunpack.c.l.b16 %v140
  %v1632 = vunpack.c.h.b16 %v140
  %v1633 = vunpack.c.l.b16 %v141
  %v1634 = vunpack.c.h.b16 %v141
  %v1635 = vunpack.c.l.b16 %v142
  %v1636 = vunpack.c.h.b16 %v142
  %v1637 = vunpack.c.l.b16 %v143
  %v1638 = vunpack.c.h.b16 %v143
  %v1639 = vunpack.c.l.b16 %v144
  %v1640 = vunpack.c.h.b16 %v144
  %v1641 = vunpack.c.l.b16 %v145
  %v1642 = vunpack.c.h.b16 %v145
  %v1643 = vunpack.c.l.b16 %v146
  %v1644 = vunpack.c.h.b16 %v146
  %v1645 = vunpack.c.l.b16 %v147
  %v1646 = vunpack.c.h.b16 %v147
  %v1647 = vunpack.c.l.b16 %v148
  %v1648 = vunpack.c.h.b16 %v148
  %v1649 = vunpack.c.l.b16 %v149
  %v1650 = vunpack.c.h.b16 %v149
  %v1651 = vunpack.c.l.b16 %v150
  %v1652 = vunpack.c.h.b16 %v150
  %v1653 = vunpack.c.l.b16 %v151
  %v1654 = vunpack.c.h.b16 %v151
  %v1655 = vunpack.c.l.b16 %v152
  %v1656 = vunpack.c.h.b16 %v152
  %v1657 = vunpack.c.l.b16 %v153
  %v1658 = vunpack.c.h.b16 %v153
  %v1659 = vunpack.c.l.b16 %v154
  %v1660 = vunpack.c.h.b16 %v154
  %v1661 = vunpack.c.l.b16 %v155
  %v1662 = vunpack.c.h.b16 %v155
  %v1663 = vunpack.c.l.b16 %v156
  %v1664 = vunpack.c.h.b16 %v156
  %v1665 = vunpack.c.l.b16 %v157
  %v1666 = vunpack.c.h.b16 %v157
  %v1667 = vunpack.c.l.b16 %v158
  %v1668 = vunpack.c.h.b16 %v158
  %v1669 = vunpack.c.l.b16 %v159
  %v1670 = vunpack.c.h.b16 %v159
  %v1671 = vunpack.c.l.b16 %v160
  %v1672 = vunpack.c.h.b16 %v160
  %v1673 = vunpack.c.l.b16 %v161
  %v1674 = vunpack.c.h.b16 %v161
  %v1675 = vunpack.c.l.b16 %v162
  %v1676 = vunpack.c.h.b16 %v162
  %v1677 = vunpack.c.l.b16 %v163
  %v1678 = vunpack.c.h.b16 %v163
  %v1679 = vunpack.c.l.b16 %v164
  %v1680 = vunpack.c.h.b16 %v164
  %v1681 = vunpack.c.l.b16 %v165
  %v1682 = vunpack.c.h.b16 %v165
  %v1683 = vunpack.c.l.b16 %v166
  %v1684 = vunpack.c.h.b16 %v166
  %v1685 = vunpack.c.l.b16 %v167
  %v1686 = vunpack.c.h.b16 %v167
  %v1687 = vunpack.c.l.b16 %v168
  %v1688 = vunpack.c.h.b16 %v168
  %v1689 = vunpack.c.l.b16 %v169
  %v1690 = vunpack.c.h.b16 %v169
  %v1691 = vunpack.c.l.b16 %v170
  %v1692 = vunpack.c.h.b16 %v170
  %v1693 = vunpack.c.l.b16 %v171
  %v1694 = vunpack.c.h.b16 %v171
  %v1695 = vunpack.c.l.b16 %v172
  %v1696 = vunpack.c.h.b16 %v172
  %v1697 = vunpack.c.l.b16 %v173
  %v1698 = vunpack.c.h.b16 %v173
  %v1699 = vunpack.c.l.b16 %v174
  %v1700 = vunpack.c.h.b16 %v174
  %v1701 = vunpack.c.l.b16 %v175
  %v1702 = vunpack.c.h.b16 %v175
  %v1703 = vunpack.c.l.b16 %v176
  %v1704 = vunpack.c.h.b16 %v176
  %v1705 = vunpack.c.l.b16 %v177
  %v1706 = vunpack.c.h.b16 %v177
  %v1707 = vunpack.c.l.b16 %v178
  %v1708 = vunpack.c.h.b16 %v178
  %v1709 = vunpack.c.l.b16 %v179
  %v1710 = vunpack.c.h.b16 %v179
  %v1711 = vunpack.c.l.b16 %v180
  %v1712 = vunpack.c.h.b16 %v180
  %v1713 = vunpack.c.l.b16 %v181
  %v1714 = vunpack.c.h.b16 %v181
  %v1715 = vunpack.c.l.b16 %v182
  %v1716 = vunpack.c.h.b16 %v182
  %v1717 = vunpack.c.l.b16 %v183
  %v1718 = vunpack.c.h.b16 %v183
  %v1719 = vunpack.c.l.b16 %v184
  %v1720 = vunpack.c.h.b16 %v184
  %v1721 = vunpack.c.l.b16 %v185
  %v1722 = vunpack.c.h.b16 %v185
  %v1723 = vunpack.c.l.b16 %v186
  %v1724 = vunpack.c.h.b16 %v186
  %v1725 = vunpack.c.l.b16 %v187
  %v1726 = vunpack.c.h.b16 %v187
  %v1727 = vunpack.c.l.b16 %v188
  %v1728 = vunpack.c.h.b16 %v188
  %v1729 = vunpack.c.l.b16 %v189
  %v1730 = vunpack.c.h.b16 %v189
  %v1731 = vunpack.c.l.b16 %v190
  %v1732 = vunpack.c.h.b16 %v190
  %v1733 = vunpack.c.l.b16 %v191
  %v1734 = vunpack.c.h.b16 %v191
  %v1735 = vunpack.c.l.b16 %v192
  %v1736 = vunpack.c.h.b16 %v192
  %v1737 = vunpack.c.l.b16 %v193
  %v1738 = vunpack.c.h.b16 %v193
  %v1739 = vunpack.c.l.b16 %v194
  %v1740 = vunpack.c.h.b16 %v194
  %v1741 = vunpack.c.l.b16 %v195
  %v1742 = vunpack.c.h.b16 %v195
  %v1743 = vunpack.c.l.b16 %v196
  %v1744 = vunpack.c.h.b16 %v196
  %v1745 = vunpack.c.l.b16 %v197
  %v1746 = vunpack.c.h.b16 %v197
  %v1747 = vunpack.c.l.b16 %v198
  %v1748 = vunpack.c.h.b16 %v198
  %v1749 = vunpack.c.l.b16 %v199
  %v1750 = vunpack.c.h.b16 %v199
  %v1751 = vunpack.c.l.b16 %v200
  %v1752 = vunpack.c.h.b16 %v200
  %v1753 = vunpack.c.l.b16 %v201
  %v1754 = vunpack.c.h.b16 %v201
  %v1755 = vunpack.c.l.b16 %v202
  %v1756 = vunpack.c.h.b16 %v202
  %v1757 = vunpack.c.l.b16 %v203
  %v1758 = vunpack.c.h.b16 %v203
  %v1759 = vunpack.c.l.b16 %v204
  %v1760 = vunpack.c.h.b16 %v204
  %v1761 = vunpack.c.l.b16 %v205
  %v1762 = vunpack.c.h.b16 %v205
  %v1763 = vunpack.c.l.b16 %v206
  %v1764 = vunpack.c.h.b16 %v206
  %v1765 = vunpack.c.l.b16 %v207
  %v1766 = vunpack.c.h.b16 %v207
  %v1767 = vunpack.c.l.b16 %v208
  %v1768 = vunpack.c.h.b16 %v208
  %v1769 = vunpack.c.l.b16 %v209
  %v1770 = vunpack.c.h.b16 %v209
  %v1771 = vunpack.c.l.b16 %v210
  %v1772 = vunpack.c.h.b16 %v210
  %v1773 = vunpack.c.l.b16 %v211
  %v1774 = vunpack.c.h.b16 %v211
  %v1775 = vunpack.c.l.b16 %v212
  %v1776 = vunpack.c.h.b16 %v212
  %v1777 = vunpack.c.l.b16 %v213
  %v1778 = vunpack.c.h.b16 %v213
  %v1779 = vunpack.c.l.b16 %v214
  %v1780 = vunpack.c.h.b16 %v214
  %v1781 = vunpack.c.l.b16 %v215
  %v1782 = vunpack.c.h.b16 %v215
  %v1783 = vunpack.c.l.b16 %v216
  %v1784 = vunpack.c.h.b16 %v216
  %v1785 = vunpack.c.l.b16 %v217
  %v1786 = vunpack.c.h.b16 %v217
  %v1787 = vunpack.c.l.b16 %v218
  %v1788 = vunpack.c.h.b16 %v218
  %v1789 = vunpack.c.l.b16 %v219
  %v1790 = vunpack.c.h.b16 %v219
  %v1791 = vunpack.c.l.b16 %v220
  %v1792 = vunpack.c.h.b16 %v220
  %v1793 = vunpack.c.l.b16 %v221
  %v1794 = vunpack.c.h.b16 %v221
  %v1795 = vunpack.c.l.b16 %v222
  %v1796 = vunpack.c.h.b16 %v222
  %v1797 = vunpack.c.l.b16 %v223
  %v1798 = vunpack.c.h.b16 %v223
  %v1799 = vunpack.c.l.b16 %v224
  %v1800 = vunpack.c.h.b16 %v224
  %v1801 = vunpack.c.l.b16 %v225
  %v1802 = vunpack.c.h.b16 %v225
  %v1803 = vunpack.c.l.b16 %v226
  %v1804 = vunpack.c.h.b16 %v226
  %v1805 = vunpack.c.l.b16 %v227
  %v1806 = vunpack.c.h.b16 %v227
  %v1807 = vunpack.c.l.b16 %v228
  %v1808 = vunpack.c.h.b16 %v228
  %v1809 = vunpack.c.l.b16 %v229
  %v1810 = vunpack.c.h.b16 %v229
  %v1811 = vunpack.c.l.b16 %v230
  %v1812 = vunpack.c.h.b16 %v230
  %v1813 = vunpack.c.l.b16 %v231
  %v1814 = vunpack.c.h.b16 %v231
  %v1815 = vunpack.c.l.b16 %v232
  %v1816 = vunpack.c.h.b16 %v232
  %v1817 = vunpack.c.l.b16 %v233
  %v1818 = vunpack.c.h.b16 %v233
  %v1819 = vunpack.c.l.b16 %v234
  %v1820 = vunpack.c.h.b16 %v234
  %v1821 = vunpack.c.l.b16 %v235
  %v1822 = vunpack.c.h.b16 %v235
  %v1823 = vunpack.c.l.b16 %v236
  %v1824 = vunpack.c.h.b16 %v236
  %v1825 = vunpack.c.l.b16 %v237
  %v1826 = vunpack.c.h.b16 %v237
  %v1827 = vunpack.c.l.b16 %v238
  %v1828 = vunpack.c.h.b16 %v238
  %v1829 = vunpack.c.l.b16 %v239
  %v1830 = vunpack.c.h.b16 %v239
  %v1831 = vunpack.c.l.b16 %v240
  %v1832 = vunpack.c.h.b16 %v240
  %v1833 = vunpack.c.l.b16 %v241
  %v1834 = vunpack.c.h.b16 %v241
  %v1835 = vunpack.c.l.b16 %v242
  %v1836 = vunpack.c.h.b16 %v242
  %v1837 = vunpack.c.l.b16 %v243
  %v1838 = vunpack.c.h.b16 %v243
  %v1839 = vunpack.c.l.b16 %v244
  %v1840 = vunpack.c.h.b16 %v244
  %v1841 = vunpack.c.l.b16 %v245
  %v1842 = vunpack.c.h.b16 %v245
  %v1843 = vunpack.c.l.b16 %v246
  %v1844 = vunpack.c.h.b16 %v246
  %v1845 = vunpack.c.l.b16 %v247
  %v1846 = vunpack.c.h.b16 %v247
  %v1847 = vunpack.c.l.b16 %v248
  %v1848 = vunpack.c.h.b16 %v248
  %v1849 = vunpack.c.l.b16 %v249
  %v1850 = vunpack.c.h.b16 %v249
  %v1851 = vunpack.c.l.b16 %v250
  %v1852 = vunpack.c.h.b16 %v250
  %v1853 = vunpack.c.l.b16 %v251
  %v1854 = vunpack.c.h.b16 %v251
  %v1855 = vunpack.c.l.b16 %v252
  %v1856 = vunpack.c.h.b16 %v252
  %v1857 = vunpack.c.l.b16 %v253
  %v1858 = vunpack.c.h.b16 %v253
  %v1859 = vunpack.c.l.b16 %v254
  %v1860 = vunpack.c.h.b16 %v254
  %v1861 = vunpack.c.l.b16 %v255
  %v1862 = vunpack.c.h.b16 %v255
  %v1863 = vunpack.c.l.b16 %v256
  %v1864 = vunpack.c.h.b16 %v256
  %v1865 = vunpack.c.l.b16 %v257
  %v1866 = vunpack.c.h.b16 %v257
  %v1867 = vunpack.c.l.b16 %v258
  %v1868 = vunpack.c.h.b16 %v258
  %v1869 = vunpack.c.l.b16 %v259
  %v1870 = vunpack.c.h.b16 %v259
  %v1871 = vunpack.c.l.b16 %v260
  %v1872 = vunpack.c.h.b16 %v260
  %v1873 = vunpack.c.l.b16 %v261
  %v1874 = vunpack.c.h.b16 %v261
  %v1875 = vunpack.c.l.b16 %v262
  %v1876 = vunpack.c.h.b16 %v262
  %v1877 = vunpack.c.l.b16 %v263
  %v1878 = vunpack.c.h.b16 %v263
  %v1879 = vunpack.c.l.b16 %v264
  %v1880 = vunpack.c.h.b16 %v264
  %v1881 = vunpack.c.l.b16 %v265
  %v1882 = vunpack.c.h.b16 %v265
  %v1883 = vunpack.c.l.b16 %v266
  %v1884 = vunpack.c.h.b16 %v266
  %v1885 = vunpack.c.l.b16 %v267
  %v1886 = vunpack.c.h.b16 %v267
  %v1887 = vunpack.c.l.b16 %v268
  %v1888 = vunpack.c.h.b16 %v268
  %v1889 = vunpack.c.l.b16 %v269
  %v1890 = vunpack.c.h.b16 %v269
  %v1891 = vunpack.c.l.b16 %v270
  %v1892 = vunpack.c.h.b16 %v270
  %v1893 = vunpack.c.l.b16 %v271
  %v1894 = vunpack.c.h.b16 %v271
  %v1895 = vunpack.c.l.b16 %v272
  %v1896 = vunpack.c.h.b16 %v272
  %v1897 = vunpack.c.l.b16 %v273
  %v1898 = vunpack.c.h.b16 %v273
  %v1899 = vunpack.c.l.b16 %v274
  %v1900 = vunpack.c.h.b16 %v274
  %v1901 = vunpack.c.l.b16 %v275
  %v1902 = vunpack.c.h.b16 %v275
  %v1903 = vunpack.c.l.b16 %v276
  %v1904 = vunpack.c.h.b16 %v276
  %v1905 = vunpack.c.l.b16 %v277
  %v1906 = vunpack.c.h.b16 %v277
  %v1907 = vunpack.c.l.b16 %v278
  %v1908 = vunpack.c.h.b16 %v278
  %v1909 = vunpack.c.l.b16 %v279
  %v1910 = vunpack.c.h.b16 %v279
  %v1911 = vunpack.c.l.b16 %v280
  %v1912 = vunpack.c.h.b16 %v280
  %v1913 = vunpack.c.l.b16 %v281
  %v1914 = vunpack.c.h.b16 %v281
  %v1915 = vunpack.c.l.b16 %v282
  %v1916 = vunpack.c.h.b16 %v282
  %v1917 = vunpack.c.l.b16 %v283
  %v1918 = vunpack.c.h.b16 %v283
  %v1919 = vunpack.c.l.b16 %v284
  %v1920 = vunpack.c.h.b16 %v284
  %v1921 = vunpack.c.l.b16 %v285
  %v1922 = vunpack.c.h.b16 %v285
  %v1923 = vunpack.c.l.b16 %v286
  %v1924 = vunpack.c.h.b16 %v286
  %v1925 = vunpack.c.l.b16 %v287
  %v1926 = vunpack.c.h.b16 %v287
  %v1927 = vunpack.c.l.b16 %v288
  %v1928 = vunpack.c.h.b16 %v288
  %v1929 = vunpack.c.l.b16 %v289
  %v1930 = vunpack.c.h.b16 %v289
  %v1931 = vunpack.c.l.b16 %v290
  %v1932 = vunpack.c.h.b16 %v290
  %v1933 = vunpack.c.l.b16 %v291
  %v1934 = vunpack.c.h.b16 %v291
  %v1935 = vunpack.c.l.b16 %v292
  %v1936 = vunpack.c.h.b16 %v292
  %v1937 = vunpack.c.l.b16 %v293
  %v1938 = vunpack.c.h.b16 %v293
  %v1939 = vunpack.c.l.b16 %v294
  %v1940 = vunpack.c.h.b16 %v294
  %v1941 = vunpack.c.l.b16 %v295
  %v1942 = vunpack.c.h.b16 %v295
  %v1943 = vunpack.c.l.b16 %v296
  %v1944 = vunpack.c.h.b16 %v296
  %v1945 = vunpack.c.l.b16 %v297
  %v1946 = vunpack.c.h.b16 %v297
  %v1947 = vunpack.c.l.b16 %v298
  %v1948 = vunpack.c.h.b16 %v298
  %v1949 = vunpack.c.l.b16 %v299
  %v1950 = vunpack.c.h.b16 %v299
  %v1951 = vunpack.c.l.b16 %v300
  %v1952 = vunpack.c.h.b16 %v300
  %v1953 = vunpack.c.l.b16 %v301
  %v1954 = vunpack.c.h.b16 %v301
  %v1955 = vunpack.c.l.b16 %v302
  %v1956 = vunpack.c.h.b16 %v302
  %v1957 = vunpack.c.l.b16 %v303
  %v1958 = vunpack.c.h.b16 %v303
  %v1959 = vunpack.c.l.b16 %v304
  %v1960 = vunpack.c.h.b16 %v304
  %v1961 = vunpack.c.l.b16 %v305
  %v1962 = vunpack.c.h.b16 %v305
  %v1963 = vunpack.c.l.b16 %v306
  %v1964 = vunpack.c.h.b16 %v306
  %v1965 = vunpack.c.l.b16 %v307
  %v1966 = vunpack.c.h.b16 %v307
  %v1967 = vunpack.c.l.b16 %v308
  %v1968 = vunpack.c.h.b16 %v308
  %v1969 = vunpack.c.l.b16 %v309
  %v1970 = vunpack.c.h.b16 %v309
  %v1971 = vunpack.c.l.b16 %v310
  %v1972 = vunpack.c.h.b16 %v310
  %v1973 = vunpack.c.l.b16 %v311
  %v1974 = vunpack.c.h.b16 %v311
  %v1975 = vunpack.c.l.b16 %v312
  %v1976 = vunpack.c.h.b16 %v312
  %v1977 = vunpack.c.l.b16 %v313
  %v1978 = vunpack.c.h.b16 %v313
  %v1979 = vunpack.c.l.b16 %v314
  %v1980 = vunpack.c.h.b16 %v314
  %v1981 = vunpack.c.l.b16 %v315
  %v1982 = vunpack.c.h.b16 %v315
  %v1983 = vunpack.c.l.b16 %v316
  %v1984 = vunpack.c.h.b16 %v316
  %v1985 = vunpack.c.l.b16 %v317
  %v1986 = vunpack.c.h.b16 %v317
  %v1987 = vunpack.c.l.b16 %v318
  %v1988 = vunpack.c.h.b16 %v318
  %v1989 = vunpack.c.l.b16 %v319
  %v1990 = vunpack.c.h.b16 %v319
  %v1991 = vunpack.c.l.b16 %v320
  %v1992 = vunpack.c.h.b16 %v320
  %v1993 = vunpack.c.l.b16 %v321
  %v1994 = vunpack.c.h.b16 %v321
  %v1995 = vunpack.c.l.b16 %v322
  %v1996 = vunpack.c.h.b16 %v322
  %v1997 = vunpack.c.l.b16 %v323
  %v1998 = vunpack.c.h.b16 %v323
  %v1999 = vunpack.c.l.b16 %v324
  %v2000 = vunpack.c.h.b16 %v324
  %v2001 = vunpack.c.l.b16 %v325
  %v2002 = vunpack.c.h.b16 %v325
  %v2003 = vunpack.c.l.b16 %v326
  %v2004 = vunpack.c.h.b16 %v326
  %v2005 = vunpack.c.l.b16 %v327
  %v2006 = vunpack.c.h.b16 %v327
  %v2007 = vunpack.c.l.b16 %v328
  %v2008 = vunpack.c.h.b16 %v328
  %v2009 = vunpack.c.l.b16 %v329
  %v2010 = vunpack.c.h.b16 %v329
  %v2011 = vunpack.c.l.b16 %v330
  %v2012 = vunpack.c.h.b16 %v330
  %v2013 = vunpack.c.l.b16 %v331
  %v2014 = vunpack.c.h.b16 %v331
  %v2015 = vunpack.c.l.b16 %v332
  %v2016 = vunpack.c.h.b16 %v332
  %v2017 = vunpack.c.l.b16 %v333
  %v2018 = vunpack.c.h.b16 %v333
  %v2019 = vunpack.c.l.b16 %v334
  %v2020 = vunpack.c.h.b16 %v334
  %v2021 = vunpack.c.l.b16 %v335
  %v2022 = vunpack.c.h.b16 %v335
  %v2023 = vunpack.c.l.b16 %v336
  %v2024 = vunpack.c.h.b16 %v336
  %v2025 = vunpack.c.l.b16 %v337
  %v2026 = vunpack.c.h.b16 %v337
  %v2027 = vunpack.c.l.b16 %v338
  %v2028 = vunpack.c.h.b16 %v338
  %v2029 = vunpack.c.l.b16 %v339
  %v2030 = vunpack.c.h.b16 %v339
  %v2031 = vunpack.c.l.b16 %v340
  %v2032 = vunpack.c.h.b16 %v340
  %v2033 = vunpack.c.l.b16 %v341
  %v2034 = vunpack.c.h.b16 %v341
  %v2035 = vunpack.c.l.b16 %v342
  %v2036 = vunpack.c.h.b16 %v342
  %v2037 = vunpack.c.l.b16 %v343
  %v2038 = vunpack.c.h.b16 %v343
  %v2039 = vunpack.c.l.b16 %v344
  %v2040 = vunpack.c.h.b16 %v344
  %v2041 = vunpack.c.l.b16 %v345
  %v2042 = vunpack.c.h.b16 %v345
  %v2043 = vunpack.c.l.b16 %v346
  %v2044 = vunpack.c.h.b16 %v346
  %v2045 = vunpack.c.l.b16 %v347
  %v2046 = vunpack.c.h.b16 %v347
  %v2047 = vunpack.c.l.b16 %v348
  %v2048 = vunpack.c.h.b16 %v348
  %v2049 = vunpack.c.l.b16 %v349
  %v2050 = vunpack.c.h.b16 %v349
  %v2051 = vunpack.c.l.b16 %v350
  %v2052 = vunpack.c.h.b16 %v350
  %v2053 = vunpack.c.l.b16 %v351
  %v2054 = vunpack.c.h.b16 %v351
  %v2055 = vunpack.c.l.b16 %v352
  %v2056 = vunpack.c.h.b16 %v352
  %v2057 = vunpack.c.l.b16 %v353
  %v2058 = vunpack.c.h.b16 %v353
  %v2059 = vunpack.c.l.b16 %v354
  %v2060 = vunpack.c.h.b16 %v354
  %v2061 = vunpack.c.l.b16 %v355
  %v2062 = vunpack.c.h.b16 %v355
  %v2063 = vunpack.c.l.b16 %v356
  %v2064 = vunpack.c.h.b16 %v356
  %v2065 = vunpack.c.l.b16 %v357
  %v2066 = vunpack.c.h.b16 %v357
  %v2067 = vunpack.c.l.b16 %v358
  %v2068 = vunpack.c.h.b16 %v358
  %v2069 = vunpack.c.l.b16 %v359
  %v2070 = vunpack.c.h.b16 %v359
  %v2071 = vunpack.c.l.b16 %v360
  %v2072 = vunpack.c.h.b16 %v360
  %v2073 = vunpack.c.l.b16 %v361
  %v2074 = vunpack.c.h.b16 %v361
  %v2075 = vunpack.c.l.b16 %v362
  %v2076 = vunpack.c.h.b16 %v362
  %v2077 = vunpack.c.l.b16 %v363
  %v2078 = vunpack.c.h.b16 %v363
  %v2079 = vunpack.c.l.b16 %v364
  %v2080 = vunpack.c.h.b16 %v364
  %v2081 = vunpack.c.l.b16 %v365
  %v2082 = vunpack.c.h.b16 %v365
  %v2083 = vunpack.c.l.b16 %v366
  %v2084 = vunpack.c.h.b16 %v366
  %v2085 = vunpack.c.l.b16 %v367
  %v2086 = vunpack.c.h.b16 %v367
  %v2087 = vunpack.c.l.b16 %v368
  %v2088 = vunpack.c.h.b16 %v368
  %v2089 = vunpack.c.l.b16 %v369
  %v2090 = vunpack.c.h.b16 %v369
  %v2091 = vunpack.c.l.b16 %v370
  %v2092 = vunpack.c.h.b16 %v370
  %v2093 = vunpack.c.l.b16 %v371
  %v2094 = vunpack.c.h.b16 %v371
  %v2095 = vunpack.c.l.b16 %v372
  %v2096 = vunpack.c.h.b16 %v372
  %v2097 = vunpack.c.l.b16 %v373
  %v2098 = vunpack.c.h.b16 %v373
  %v2099 = vunpack.c.l.b16 %v374
  %v2100 = vunpack.c.h.b16 %v374
  %v2101 = vunpack.c.l.b16 %v375
  %v2102 = vunpack.c.h.b16 %v375
  %v2103 = vunpack.c.l.b16 %v376
  %v2104 = vunpack.c.h.b16 %v376
  %v2105 = vunpack.c.l.b16 %v377
  %v2106 = vunpack.c.h.b16 %v377
  %v2107 = vunpack.c.l.b16 %v378
  %v2108 = vunpack.c.h.b16 %v378
  %v2109 = vunpack.c.l.b16 %v379
  %v2110 = vunpack.c.h.b16 %v379
  %v2111 = vunpack.c.l.b16 %v380
  %v2112 = vunpack.c.h.b16 %v380
  %v2113 = vunpack.c.l.b16 %v381
  %v2114 = vunpack.c.h.b16 %v381
  %v2115 = vunpack.c.l.b16 %v382
  %v2116 = vunpack.c.h.b16 %v382
  %v2117 = vunpack.c.l.b16 %v383
  %v2118 = vunpack.c.h.b16 %v383
  %v2119 = vunpack.c.l.b16 %v384
  %v2120 = vunpack.c.h.b16 %v384
  %v2121 = vunpack.c.l.b16 %v385
  %v2122 = vunpack.c.h.b16 %v385
  %v2123 = vunpack.c.l.b16 %v386
  %v2124 = vunpack.c.h.b16 %v386
  %v2125 = vunpack.c.l.b16 %v387
  %v2126 = vunpack.c.h.b16 %v387
  %v2127 = vunpack.c.l.b16 %v388
  %v2128 = vunpack.c.h.b16 %v388
  %v2129 = vunpack.c.l.b16 %v389
  %v2130 = vunpack.c.h.b16 %v389
  %v2131 = vunpack.c.l.b16 %v390
  %v2132 = vunpack.c.h.b16 %v390
  %v2133 = vunpack.c.l.b16 %v391
  %v2134 = vunpack.c.h.b16 %v391
  %v2135 = vunpack.c.l.b16 %v392
  %v2136 = vunpack.c.h.b16 %v392
  %v2137 = vunpack.c.l.b16 %v393
  %v2138 = vunpack.c.h.b16 %v393
  %v2139 = vunpack.c.l.b16 %v394
  %v2140 = vunpack.c.h.b16 %v394
  %v2141 = vunpack.c.l.b16 %v395
  %v2142 = vunpack.c.h.b16 %v395
  %v2143 = vunpack.c.l.b16 %v396
  %v2144 = vunpack.c.h.b16 %v396
  %v2145 = vunpack.c.l.b16 %v397
  %v2146 = vunpack.c.h.b16 %v397
  %v2147 = vunpack.c.l.b16 %v398
  %v2148 = vunpack.c.h.b16 %v398
  %v2149 = vunpack.c.l.b16 %v399
  %v2150 = vunpack.c.h.b16 %v399
  %v2151 = vunpack.c.l.b16 %v400
  %v2152 = vunpack.c.h.b16 %v400
  %v2153 = vunpack.c.l.b16 %v401
  %v2154 = vunpack.c.h.b16 %v401
  %v2155 = vunpack.c.l.b16 %v402
  %v2156 = vunpack.c.h.b16 %v402
  %v2157 = vunpack.c.l.b16 %v403
  %v2158 = vunpack.c.h.b16 %v403
  %v2159 = vunpack.c.l.b16 %v404
  %v2160 = vunpack.c.h.b16 %v404
  %v2161 = vunpack.c.l.b16 %v405
  %v2162 = vunpack.c.h.b16 %v405
  %v2163 = vunpack.c.l.b16 %v406
  %v2164 = vunpack.c.h.b16 %v406
  %v2165 = vunpack.c.l.b16 %v407
  %v2166 = vunpack.c.h.b16 %v407
  %v2167 = vunpack.c.l.b16 %v408
  %v2168 = vunpack.c.h.b16 %v408
  %v2169 = vunpack.c.l.b16 %v409
  %v2170 = vunpack.c.h.b16 %v409
  %v2171 = vunpack.c.l.b16 %v410
  %v2172 = vunpack.c.h.b16 %v410
  %v2173 = vunpack.c.l.b16 %v411
  %v2174 = vunpack.c.h.b16 %v411
  %v2175 = vunpack.c.l.b16 %v412
  %v2176 = vunpack.c.h.b16 %v412
  %v2177 = vunpack.c.l.b16 %v413
  %v2178 = vunpack.c.h.b16 %v413
  %v2179 = vunpack.c.l.b16 %v414
  %v2180 = vunpack.c.h.b16 %v414
  %v2181 = vunpack.c.l.b16 %v415
  %v2182 = vunpack.c.h.b16 %v415
  %v2183 = vunpack.c.l.b16 %v416
  %v2184 = vunpack.c.h.b16 %v416
  %v2185 = vunpack.c.l.b16 %v417
  %v2186 = vunpack.c.h.b16 %v417
  %v2187 = vunpack.c.l.b16 %v418
  %v2188 = vunpack.c.h.b16 %v418
  %v2189 = vunpack.c.l.b16 %v419
  %v2190 = vunpack.c.h.b16 %v419
  %v2191 = vunpack.c.l.b16 %v420
  %v2192 = vunpack.c.h.b16 %v420
  %v2193 = vunpack.c.l.b16 %v421
  %v2194 = vunpack.c.h.b16 %v421
  %v2195 = vunpack.c.l.b16 %v422
  %v2196 = vunpack.c.h.b16 %v422
  %v2197 = vunpack.c.l.b16 %v423
  %v2198 = vunpack.c.h.b16 %v423
  %v2199 = vunpack.c.l.b16 %v424
  %v2200 = vunpack.c.h.b16 %v424
  %v2201 = vunpack.c.l.b16 %v425
  %v2202 = vunpack.c.h.b16 %v425
  %v2203 = vunpack.c.l.b16 %v426
  %v2204 = vunpack.c.h.b16 %v426
  %v2205 = vunpack.c.l.b16 %v427
  %v2206 = vunpack.c.h.b16 %v427
  %v2207 = vunpack.c.l.b16 %v428
  %v2208 = vunpack.c.h.b16 %v428
  %v2209 = vunpack.c.l.b16 %v429
  %v2210 = vunpack.c.h.b16 %v429
  %v2211 = vunpack.c.l.b16 %v430
  %v2212 = vunpack.c.h.b16 %v430
  %v2213 = vunpack.c.l.b16 %v431
  %v2214 = vunpack.c.h.b16 %v431
  %v2215 = vunpack.c.l.b16 %v432
  %v2216 = vunpack.c.h.b16 %v432
  %v2217 = vunpack.c.l.b16 %v433
  %v2218 = vunpack.c.h.b16 %v433
  %v2219 = vunpack.c.l.b16 %v434
  %v2220 = vunpack.c.h.b16 %v434
  %v2221 = vunpack.c.l.b16 %v435
  %v2222 = vunpack.c.h.b16 %v435
  %v2223 = vunpack.c.l.b16 %v436
  %v2224 = vunpack.c.h.b16 %v436
  %v2225 = vunpack.c.l.b16 %v437
  %v2226 = vunpack.c.h.b16 %v437
  %v2227 = vunpack.c.l.b16 %v438
  %v2228 = vunpack.c.h.b16 %v438
  %v2229 = vunpack.c.l.b16 %v439
  %v2230 = vunpack.c.h.b16 %v439
  %v2231 = vunpack.c.l.b16 %v440
  %v2232 = vunpack.c.h.b16 %v440
  %v2233 = vunpack.c.l.b16 %v441
  %v2234 = vunpack.c.h.b16 %v441
  %v2235 = vunpack.c.l.b16 %v442
  %v2236 = vunpack.c.h.b16 %v442
  %v2237 = vunpack.c.l.b16 %v443
  %v2238 = vunpack.c.h.b16 %v443
  %v2239 = vunpack.c.l.b16 %v444
  %v2240 = vunpack.c.h.b16 %v444
  %v2241 = vunpack.c.l.b16 %v445
  %v2242 = vunpack.c.h.b16 %v445
  %v2243 = vunpack.c.l.b16 %v446
  %v2244 = vunpack.c.h.b16 %v446
  %v2245 = vunpack.c.l.b16 %v447
  %v2246 = vunpack.c.h.b16 %v447
  %v2247 = vunpack.c.l.b16 %v448
  %v2248 = vunpack.c.h.b16 %v448
  %v2249 = vunpack.c.l.b16 %v449
  %v2250 = vunpack.c.h.b16 %v449
  %v2251 = vunpack.c.l.b16 %v450
  %v2252 = vunpack.c.h.b16 %v450
  %v2253 = vunpack.c.l.b16 %v451
  %v2254 = vunpack.c.h.b16 %v451
  %v2255 = vunpack.c.l.b16 %v452
  %v2256 = vunpack.c.h.b16 %v452
  %v2257 = vunpack.c.l.b16 %v453
  %v2258 = vunpack.c.h.b16 %v453
  %v2259 = vunpack.c.l.b16 %v454
  %v2260 = vunpack.c.h.b16 %v454
  %v2261 = vunpack.c.l.b16 %v455
  %v2262 = vunpack.c.h.b16 %v455
  %v2263 = vunpack.c.l.b16 %v456
  %v2264 = vunpack.c.h.b16 %v456
  %v2265 = vunpack.c.l.b16 %v457
  %v2266 = vunpack.c.h.b16 %v457
  %v2267 = vunpack.c.l.b16 %v458
  %v2268 = vunpack.c.h.b16 %v458
  %v2269 = vunpack.c.l.b16 %v459
  %v2270 = vunpack.c.h.b16 %v459
  %v2271 = vunpack.c.l.b16 %v460
  %v2272 = vunpack.c.h.b16 %v460
  %v2273 = vunpack.c.l.b16 %v461
  %v2274 = vunpack.c.h.b16 %v461
  %v2275 = vunpack.c.l.b16 %v462
  %v2276 = vunpack.c.h.b16 %v462
  %v2277 = vunpack.c.l.b16 %v463
  %v2278 = vunpack.c.h.b16 %v463
  %v2279 = vunpack.c.l.b16 %v464
  %v2280 = vunpack.c.h.b16 %v464
  %v2281 = vunpack.c.l.b16 %v465
  %v2282 = vunpack.c.h.b16 %v465
  %v2283 = vunpack.c.l.b16 %v466
  %v2284 = vunpack.c.h.b16 %v466
  %v2285 = vunpack.c.l.b16 %v467
  %v2286 = vunpack.c.h.b16 %v467
  %v2287 = vunpack.c.l.b16 %v468
  %v2288 = vunpack.c.h.b16 %v468
  %v2289 = vunpack.c.l.b16 %v469
  %v2290 = vunpack.c.h.b16 %v469
  %v2291 = vunpack.c.l.b16 %v470
  %v2292 = vunpack.c.h.b16 %v470
  %v2293 = vunpack.c.l.b16 %v471
  %v2294 = vunpack.c.h.b16 %v471
  %v2295 = vunpack.c.l.b16 %v472
  %v2296 = vunpack.c.h.b16 %v472
  %v2297 = vunpack.c.l.b16 %v473
  %v2298 = vunpack.c.h.b16 %v473
  %v2299 = vunpack.c.l.b16 %v474
  %v2300 = vunpack.c.h.b16 %v474
  %v2301 = vunpack.c.l.b16 %v475
  %v2302 = vunpack.c.h.b16 %v475
  %v2303 = vunpack.c.l.b16 %v476
  %v2304 = vunpack.c.h.b16 %v476
  %v2305 = vunpack.c.l.b16 %v477
  %v2306 = vunpack.c.h.b16 %v477
  %v2307 = vunpack.c.l.b16 %v478
  %v2308 = vunpack.c.h.b16 %v478
  %v2309 = vunpack.c.l.b16 %v479
  %v2310 = vunpack.c.h.b16 %v479
  %v2311 = vunpack.c.l.b16 %v480
  %v2312 = vunpack.c.h.b16 %v480
  %v2313 = vunpack.c.l.b16 %v481
  %v2314 = vunpack.c.h.b16 %v481
  %v2315 = vunpack.c.l.b16 %v482
  %v2316 = vunpack.c.h.b16 %v482
  %v2317 = vunpack.c.l.b16 %v483
  %v2318 = vunpack.c.h.b16 %v483
  %v2319 = vunpack.c.l.b16 %v484
  %v2320 = vunpack.c.h.b16 %v484
  %v2321 = vunpack.c.l.b16 %v485
  %v2322 = vunpack.c.h.b16 %v485
  %v2323 = vunpack.c.l.b16 %v486
  %v2324 = vunpack.c.h.b16 %v486
  %v2325 = vunpack.c.l.b16 %v487
  %v2326 = vunpack.c.h.b16 %v487
  %v2327 = vunpack.c.l.b16 %v488
  %v2328 = vunpack.c.h.b16 %v488
  %v2329 = vunpack.c.l.b16 %v489
  %v2330 = vunpack.c.h.b16 %v489
  %v2331 = vunpack.c.l.b16 %v490
  %v2332 = vunpack.c.h.b16 %v490
  %v2333 = vunpack.c.l.b16 %v491
  %v2334 = vunpack.c.h.b16 %v491
  %v2335 = vunpack.c.l.b16 %v492
  %v2336 = vunpack.c.h.b16 %v492
  %v2337 = vunpack.c.l.b16 %v493
  %v2338 = vunpack.c.h.b16 %v493
  %v2339 = vunpack.c.l.b16 %v494
  %v2340 = vunpack.c.h.b16 %v494
  %v2341 = vunpack.c.l.b16 %v495
  %v2342 = vunpack.c.h.b16 %v495
  %v2343 = vunpack.c.l.b16 %v496
  %v2344 = vunpack.c.h.b16 %v496
  %v2345 = vunpack.c.l.b16 %v497
  %v2346 = vunpack.c.h.b16 %v497
  %v2347 = vunpack.c.l.b16 %v498
  %v2348 = vunpack.c.h.b16 %v498
  %v2349 = vunpack.c.l.b16 %v499
  %v2350 = vunpack.c.h.b16 %v499
  %v2351 = vunpack.c.l.b16 %v500
  %v2352 = vunpack.c.h.b16 %v500
  %v2353 = vunpack.c.l.b16 %v501
  %v2354 = vunpack.c.h.b16 %v501
  %v2355 = vunpack.c.l.b16 %v502
  %v2356 = vunpack.c.h.b16 %v502
  %v2357 = vunpack.c.l.b16 %v503
  %v2358 = vunpack.c.h.b16 %v503
  %v2359 = vunpack.c.l.b16 %v504
  %v2360 = vunpack.c.h.b16 %v504
  %v2361 = vunpack.c.l.b16 %v505
  %v2362 = vunpack.c.h.b16 %v505
  %v2363 = vunpack.c.l.b16 %v506
  %v2364 = vunpack.c.h.b16 %v506
  %v2365 = vunpack.c.l.b16 %v507
  %v2366 = vunpack.c.h.b16 %v507
  %v2367 = vunpack.c.l.b16 %v508
  %v2368 = vunpack.c.h.b16 %v508
  %v2369 = vunpack.c.l.b16 %v509
  %v2370 = vunpack.c.h.b16 %v509
  %v2371 = vunpack.c.l.b16 %v510
  %v2372 = vunpack.c.h.b16 %v510
  %v2373 = vunpack.c.l.b16 %v511
  %v2374 = vunpack.c.h.b16 %v511
  %v2375 = vunpack.c.l.b16 %v512
  %v2376 = vunpack.c.h.b16 %v512
  %v2377 = vunpack.c.l.b16 %v513
  %v2378 = vunpack.c.h.b16 %v513
  %v2379 = vunpack.c.l.b16 %v514
  %v2380 = vunpack.c.h.b16 %v514
  %v2381 = vunpack.c.l.b16 %v515
  %v2382 = vunpack.c.h.b16 %v515
  %v2383 = vunpack.c.l.b16 %v516
  %v2384 = vunpack.c.h.b16 %v516
  %v2385 = vunpack.c.l.b16 %v517
  %v2386 = vunpack.c.h.b16 %v517
  %v2387 = vunpack.c.l.b16 %v518
  %v2388 = vunpack.c.h.b16 %v518
  %v2389 = vunpack.c.l.b16 %v519
  %v2390 = vunpack.c.h.b16 %v519
  %v2391 = vunpack.c.l.b16 %v520
  %v2392 = vunpack.c.h.b16 %v520
  %v2393 = vunpack.c.l.b16 %v521
  %v2394 = vunpack.c.h.b16 %v521
  %v2395 = vunpack.c.l.b16 %v522
  %v2396 = vunpack.c.h.b16 %v522
  %v2397 = vunpack.c.l.b16 %v523
  %v2398 = vunpack.c.h.b16 %v523
  %v2399 = vunpack.c.l.b16 %v524
  %v2400 = vunpack.c.h.b16 %v524
  %v2401 = vunpack.c.l.b16 %v525
  %v2402 = vunpack.c.h.b16 %v525
  %v2403 = vunpack.c.l.b16 %v526
  %v2404 = vunpack.c.h.b16 %v526
  %v2405 = vunpack.c.l.b16 %v527
  %v2406 = vunpack.c.h.b16 %v527
  %v2407 = vunpack.c.l.b16 %v528
  %v2408 = vunpack.c.h.b16 %v528
  %v2409 = vunpack.c.l.b16 %v529
  %v2410 = vunpack.c.h.b16 %v529
  %v2411 = vunpack.c.l.b16 %v530
  %v2412 = vunpack.c.h.b16 %v530
  %v2413 = vunpack.c.l.b16 %v531
  %v2414 = vunpack.c.h.b16 %v531
  %v2415 = vunpack.c.l.b16 %v532
  %v2416 = vunpack.c.h.b16 %v532
  %v2417 = vunpack.c.l.b16 %v533
  %v2418 = vunpack.c.h.b16 %v533
  %v2419 = vunpack.c.l.b16 %v534
  %v2420 = vunpack.c.h.b16 %v534
  %v2421 = vunpack.c.l.b16 %v535
  %v2422 = vunpack.c.h.b16 %v535
  %v2423 = vunpack.c.l.b16 %v536
  %v2424 = vunpack.c.h.b16 %v536
  %v2425 = vunpack.c.l.b16 %v537
  %v2426 = vunpack.c.h.b16 %v537
  %v2427 = vunpack.c.l.b16 %v538
  %v2428 = vunpack.c.h.b16 %v538
  %v2429 = vunpack.c.l.b16 %v539
  %v2430 = vunpack.c.h.b16 %v539
  %v2431 = vunpack.c.l.b16 %v540
  %v2432 = vunpack.c.h.b16 %v540
  %v2433 = vunpack.c.l.b16 %v541
  %v2434 = vunpack.c.h.b16 %v541
  %v2435 = vunpack.c.l.b16 %v542
  %v2436 = vunpack.c.h.b16 %v542
  %v2437 = vunpack.c.l.b16 %v543
  %v2438 = vunpack.c.h.b16 %v543
  %v2439 = vunpack.c.l.b16 %v544
  %v2440 = vunpack.c.h.b16 %v544
  %v2441 = vunpack.c.l.b16 %v545
  %v2442 = vunpack.c.h.b16 %v545
  %v2443 = vunpack.c.l.b16 %v546
  %v2444 = vunpack.c.h.b16 %v546
  %v2445 = vunpack.c.l.b16 %v547
  %v2446 = vunpack.c.h.b16 %v547
  %v2447 = vunpack.c.l.b16 %v548
  %v2448 = vunpack.c.h.b16 %v548
  %v2449 = vunpack.c.l.b16 %v549
  %v2450 = vunpack.c.h.b16 %v549
  %v2451 = vunpack.c.l.b16 %v550
  %v2452 = vunpack.c.h.b16 %v550
  %v2453 = vunpack.c.l.b16 %v551
  %v2454 = vunpack.c.h.b16 %v551
  %v2455 = vunpack.c.l.b16 %v552
  %v2456 = vunpack.c.h.b16 %v552
  %v2457 = vunpack.c.l.b16 %v553
  %v2458 = vunpack.c.h.b16 %v553
  %v2459 = vunpack.c.l.b16 %v554
  %v2460 = vunpack.c.h.b16 %v554
  %v2461 = vunpack.c.l.b16 %v555
  %v2462 = vunpack.c.h.b16 %v555
  %v2463 = vunpack.c.l.b16 %v556
  %v2464 = vunpack.c.h.b16 %v556
  %v2465 = vunpack.c.l.b16 %v557
  %v2466 = vunpack.c.h.b16 %v557
  %v2467 = vunpack.c.l.b16 %v558
  %v2468 = vunpack.c.h.b16 %v558
  %v2469 = vunpack.c.l.b16 %v559
  %v2470 = vunpack.c.h.b16 %v559
  %v2471 = vunpack.c.l.b16 %v560
  %v2472 = vunpack.c.h.b16 %v560
  %v2473 = vunpack.c.l.b16 %v561
  %v2474 = vunpack.c.h.b16 %v561
  %v2475 = vunpack.c.l.b16 %v562
  %v2476 = vunpack.c.h.b16 %v562
  %v2477 = vunpack.c.l.b16 %v563
  %v2478 = vunpack.c.h.b16 %v563
  %v2479 = vunpack.c.l.b16 %v564
  %v2480 = vunpack.c.h.b16 %v564
  %v2481 = vunpack.c.l.b16 %v565
  %v2482 = vunpack.c.h.b16 %v565
  %v2483 = vunpack.c.l.b16 %v566
  %v2484 = vunpack.c.h.b16 %v566
  %v2485 = vunpack.c.l.b16 %v567
  %v2486 = vunpack.c.h.b16 %v567
  %v2487 = vunpack.c.l.b16 %v568
  %v2488 = vunpack.c.h.b16 %v568
  %v2489 = vunpack.c.l.b16 %v569
  %v2490 = vunpack.c.h.b16 %v569
  %v2491 = vunpack.c.l.b16 %v570
  %v2492 = vunpack.c.h.b16 %v570
  %v2493 = vunpack.c.l.b16 %v571
  %v2494 = vunpack.c.h.b16 %v571
  %v2495 = vunpack.c.l.b16 %v572
  %v2496 = vunpack.c.h.b16 %v572
  %v2497 = vunpack.c.l.b16 %v573
  %v2498 = vunpack.c.h.b16 %v573
  %v2499 = vunpack.c.l.b16 %v574
  %v2500 = vunpack.c.h.b16 %v574
  %v2501 = vunpack.c.l.b16 %v575
  %v2502 = vunpack.c.h.b16 %v575
  %v2503 = vunpack.c.l.b16 %v576
  %v2504 = vunpack.c.h.b16 %v576
  %v2505 = vunpack.c.l.b16 %v577
  %v2506 = vunpack.c.h.b16 %v577
  %v2507 = vunpack.c.l.b16 %v578
  %v2508 = vunpack.c.h.b16 %v578
  %v2509 = vunpack.c.l.b16 %v579
  %v2510 = vunpack.c.h.b16 %v579
  %v2511 = vunpack.c.l.b16 %v580
  %v2512 = vunpack.c.h.b16 %v580
  %v2513 = vunpack.c.l.b16 %v581
  %v2514 = vunpack.c.h.b16 %v581
  %v2515 = vunpack.c.l.b16 %v582
  %v2516 = vunpack.c.h.b16 %v582
  %v2517 = vunpack.c.l.b16 %v583
  %v2518 = vunpack.c.h.b16 %v583
  %v2519 = vunpack.c.l.b16 %v584
  %v2520 = vunpack.c.h.b16 %v584
  %v2521 = vunpack.c.l.b16 %v585
  %v2522 = vunpack.c.h.b16 %v585
  %v2523 = vunpack.c.l.b16 %v586
  %v2524 = vunpack.c.h.b16 %v586
  %v2525 = vunpack.c.l.b16 %v587
  %v2526 = vunpack.c.h.b16 %v587
  %v2527 = vunpack.c.l.b16 %v588
  %v2528 = vunpack.c.h.b16 %v588
  %v2529 = vunpack.c.l.b16 %v589
  %v2530 = vunpack.c.h.b16 %v589
  %v2531 = vunpack.c.l.b16 %v590
  %v2532 = vunpack.c.h.b16 %v590
  %v2533 = vunpack.c.l.b16 %v591
  %v2534 = vunpack.c.h.b16 %v591
  %v2535 = vunpack.c.l.b16 %v592
  %v2536 = vunpack.c.h.b16 %v592
  %v2537 = vunpack.c.l.b16 %v593
  %v2538 = vunpack.c.h.b16 %v593
  %v2539 = vunpack.c.l.b16 %v594
  %v2540 = vunpack.c.h.b16 %v594
  %v2541 = vunpack.c.l.b16 %v595
  %v2542 = vunpack.c.h.b16 %v595
  %v2543 = vunpack.c.l.b16 %v596
  %v2544 = vunpack.c.h.b16 %v596
  %v2545 = vunpack.c.l.b16 %v597
  %v2546 = vunpack.c.h.b16 %v597
  %v2547 = vunpack.c.l.b16 %v598
  %v2548 = vunpack.c.h.b16 %v598
  %v2549 = vunpack.c.l.b16 %v599
  %v2550 = vunpack.c.h.b16 %v599
  %v2551 = vunpack.c.l.b16 %v600
  %v2552 = vunpack.c.h.b16 %v600
  %v2553 = vunpack.c.l.b16 %v601
  %v2554 = vunpack.c.h.b16 %v601
  %v2555 = vunpack.c.l.b16 %v602
  %v2556 = vunpack.c.h.b16 %v602
  %v2557 = vunpack.c.l.b16 %v603
  %v2558 = vunpack.c.h.b16 %v603
  %v2559 = vunpack.c.l.b16 %v604
  %v2560 = vunpack.c.h.b16 %v604
  %v2561 = vunpack.c.l.b16 %v605
  %v2562 = vunpack.c.h.b16 %v605
  %v2563 = vunpack.c.l.b16 %v606
  %v2564 = vunpack.c.h.b16 %v606
  %v2565 = vunpack.c.l.b16 %v607
  %v2566 = vunpack.c.h.b16 %v607
  %v2567 = vunpack.c.l.b16 %v608
  %v2568 = vunpack.c.h.b16 %v608
  %v2569 = vunpack.c.l.b16 %v609
  %v2570 = vunpack.c.h.b16 %v609
  %v2571 = vunpack.c.l.b16 %v610
  %v2572 = vunpack.c.h.b16 %v610
  %v2573 = vunpack.c.l.b16 %v611
  %v2574 = vunpack.c.h.b16 %v611
  %v2575 = vunpack.c.l.b16 %v612
  %v2576 = vunpack.c.h.b16 %v612
  %v2577 = vunpack.c.l.b16 %v613
  %v2578 = vunpack.c.h.b16 %v613
  %v2579 = vunpack.c.l.b16 %v614
  %v2580 = vunpack.c.h.b16 %v614
  %v2581 = vunpack.c.l.b16 %v615
  %v2582 = vunpack.c.h.b16 %v615
  %v2583 = vunpack.c.l.b16 %v616
  %v2584 = vunpack.c.h.b16 %v616
  %v2585 = vunpack.c.l.b16 %v617
  %v2586 = vunpack.c.h.b16 %v617
  %v2587 = vunpack.c.l.b16 %v618
  %v2588 = vunpack.c.h.b16 %v618
  %v2589 = vunpack.c.l.b16 %v619
  %v2590 = vunpack.c.h.b16 %v619
  %v2591 = vunpack.c.l.b16 %v620
  %v2592 = vunpack.c.h.b16 %v620
  %v2593 = vunpack.c.l.b16 %v621
  %v2594 = vunpack.c.h.b16 %v621
  %v2595 = vunpack.c.l.b16 %v622
  %v2596 = vunpack.c.h.b16 %v622
  %v2597 = vunpack.c.l.b16 %v623
  %v2598 = vunpack.c.h.b16 %v623
  %v2599 = vunpack.c.l.b16 %v624
  %v2600 = vunpack.c.h.b16 %v624
  %v2601 = vunpack.c.l.b16 %v625
  %v2602 = vunpack.c.h.b16 %v625
  %v2603 = vunpack.c.l.b16 %v626
  %v2604 = vunpack.c.h.b16 %v626
  %v2605 = vunpack.c.l.b16 %v627
  %v2606 = vunpack.c.h.b16 %v627
  %v2607 = vunpack.c.l.b16 %v628
  %v2608 = vunpack.c.h.b16 %v628
  %v2609 = vunpack.c.l.b16 %v629
  %v2610 = vunpack.c.h.b16 %v629
  %v2611 = vunpack.c.l.b16 %v630
  %v2612 = vunpack.c.h.b16 %v630
  %v2613 = vunpack.c.l.b16 %v631
  %v2614 = vunpack.c.h.b16 %v631
  %v2615 = vunpack.c.l.b16 %v632
  %v2616 = vunpack.c.h.b16 %v632
  %v2617 = vunpack.c.l.b16 %v633
  %v2618 = vunpack.c.h.b16 %v633
  %v2619 = vunpack.c.l.b16 %v634
  %v2620 = vunpack.c.h.b16 %v634
  %v2621 = vunpack.c.l.b16 %v635
  %v2622 = vunpack.c.h.b16 %v635
  %v2623 = vunpack.c.l.b16 %v636
  %v2624 = vunpack.c.h.b16 %v636
  %v2625 = vunpack.c.l.b16 %v637
  %v2626 = vunpack.c.h.b16 %v637
  %v2627 = vunpack.c.l.b16 %v638
  %v2628 = vunpack.c.h.b16 %v638
  %v2629 = vunpack.c.l.b16 %v639
  %v2630 = vunpack.c.h.b16 %v639
  %v2631 = vunpack.c.l.b16 %v640
  %v2632 = vunpack.c.h.b16 %v640
  %v2633 = vunpack.c.l.b16 %v641
  %v2634 = vunpack.c.h.b16 %v641
  %v2635 = vunpack.c.l.b16 %v642
  %v2636 = vunpack.c.h.b16 %v642
  %v2637 = vunpack.c.l.b16 %v643
  %v2638 = vunpack.c.h.b16 %v643
  %v2639 = vunpack.c.l.b16 %v644
  %v2640 = vunpack.c.h.b16 %v644
  %v2641 = vunpack.c.l.b16 %v645
  %v2642 = vunpack.c.h.b16 %v645
  %v2643 = vunpack.c.l.b16 %v646
  %v2644 = vunpack.c.h.b16 %v646
  %v2645 = vpack.c.b16 %v1497, %v1493
  %v2646 = vpack.c.b16 %v1498, %v1494
  %v2647 = vpack.c.b16 %v1499, %v1495
  %v2648 = vpack.c.b16 %v1500, %v1496
  %v2649 = vpack.c.b16 %v1505, %v1501
  %v2650 = vpack.c.b16 %v1506, %v1502
  %v2651 = vpack.c.b16 %v1507, %v1503
  %v2652 = vpack.c.b16 %v1508, %v1504
  %v2653 = vpack.c.b16 %v1513, %v1509
  %v2654 = vpack.c.b16 %v1514, %v1510
  %v2655 = vpack.c.b16 %v1515, %v1511
  %v2656 = vpack.c.b16 %v1516, %v1512
  %v2657 = vpack.c.b16 %v1521, %v1517
  %v2658 = vpack.c.b16 %v1522, %v1518
  %v2659 = vpack.c.b16 %v1523, %v1519
  %v2660 = vpack.c.b16 %v1524, %v1520
  %v2661 = vpack.c.b16 %v1529, %v1525
  %v2662 = vpack.c.b16 %v1530, %v1526
  %v2663 = vpack.c.b16 %v1531, %v1527
  %v2664 = vpack.c.b16 %v1532, %v1528
  %v2665 = vpack.c.b16 %v1537, %v1533
  %v2666 = vpack.c.b16 %v1538, %v1534
  %v2667 = vpack.c.b16 %v1539, %v1535
  %v2668 = vpack.c.b16 %v1540, %v1536
  %v2669 = vpack.c.b16 %v1545, %v1541
  %v2670 = vpack.c.b16 %v1546, %v1542
  %v2671 = vpack.c.b16 %v1547, %v1543
  %v2672 = vpack.c.b16 %v1548, %v1544
  %v2673 = vpack.c.b16 %v1553, %v1549
  %v2674 = vpack.c.b16 %v1554, %v1550
  %v2675 = vpack.c.b16 %v1555, %v1551
  %v2676 = vpack.c.b16 %v1556, %v1552
  %v2677 = vpack.c.b16 %v1561, %v1557
  %v2678 = vpack.c.b16 %v1562, %v1558
  %v2679 = vpack.c.b16 %v1563, %v1559
  %v2680 = vpack.c.b16 %v1564, %v1560
  %v2681 = vpack.c.b16 %v1569, %v1565
  %v2682 = vpack.c.b16 %v1570, %v1566
  %v2683 = vpack.c.b16 %v1571, %v1567
  %v2684 = vpack.c.b16 %v1572, %v1568
  %v2685 = vpack.c.b16 %v1577, %v1573
  %v2686 = vpack.c.b16 %v1578, %v1574
  %v2687 = vpack.c.b16 %v1579, %v1575
  %v2688 = vpack.c.b16 %v1580, %v1576
  %v2689 = vpack.c.b16 %v1585, %v1581
  %v2690 = vpack.c.b16 %v1586, %v1582
  %v2691 = vpack.c.b16 %v1587, %v1583
  %v2692 = vpack.c.b16 %v1588, %v1584
  %v2693 = vpack.c.b16 %v1593, %v1589
  %v2694 = vpack.c.b16 %v1594, %v1590
  %v2695 = vpack.c.b16 %v1595, %v1591
  %v2696 = vpack.c.b16 %v1596, %v1592
  %v2697 = vpack.c.b16 %v1601, %v1597
  %v2698 = vpack.c.b16 %v1602, %v1598
  %v2699 = vpack.c.b16 %v1603, %v1599
  %v2700 = vpack.c.b16 %v1604, %v1600
  %v2701 = vpack.c.b16 %v1609, %v1605
  %v2702 = vpack.c.b16 %v1610, %v1606
  %v2703 = vpack.c.b16 %v1611, %v1607
  %v2704 = vpack.c.b16 %v1612, %v1608
  %v2705 = vpack.c.b16 %v1617, %v1613
  %v2706 = vpack.c.b16 %v1618, %v1614
  %v2707 = vpack.c.b16 %v1619, %v1615
  %v2708 = vpack.c.b16 %v1620, %v1616
  %v2709 = vpack.c.b16 %v1625, %v1621
  %v2710 = vpack.c.b16 %v1626, %v1622
  %v2711 = vpack.c.b16 %v1627, %v1623
  %v2712 = vpack.c.b16 %v1628, %v1624
  %v2713 = vpack.c.b16 %v1633, %v1629
  %v2714 = vpack.c.b16 %v1634, %v1630
  %v2715 = vpack.c.b16 %v1635, %v1631
  %v2716 = vpack.c.b16 %v1636, %v1632
  %v2717 = vpack.c.b16 %v1641, %v1637
  %v2718 = vpack.c.b16 %v1642, %v1638
  %v2719 = vpack.c.b16 %v1643, %v1639
  %v2720 = vpack.c.b16 %v1644, %v1640
  %v2721 = vpack.c.b16 %v1649, %v1645
  %v2722 = vpack.c.b16 %v1650, %v1646
  %v2723 = vpack.c.b16 %v1651, %v1647
  %v2724 = vpack.c.b16 %v1652, %v1648
  %v2725 = vpack.c.b16 %v1657, %v1653
  %v2726 = vpack.c.b16 %v1658, %v1654
  %v2727 = vpack.c.b16 %v1659, %v1655
  %v2728 = vpack.c.b16 %v1660, %v1656
  %v2729 = vpack.c.b16 %v1665, %v1661
  %v2730 = vpack.c.b16 %v1666, %v1662
  %v2731 = vpack.c.b16 %v1667, %v1663
  %v2732 = vpack.c.b16 %v1668, %v1664
  %v2733 = vpack.c.b16 %v1673, %v1669
  %v2734 = vpack.c.b16 %v1674, %v1670
  %v2735 = vpack.c.b16 %v1675, %v1671
  %v2736 = vpack.c.b16 %v1676, %v1672
  %v2737 = vpack.c.b16 %v1681, %v1677
  %v2738 = vpack.c.b16 %v1682, %v1678
  %v2739 = vpack.c.b16 %v1683, %v1679
  %v2740 = vpack.c.b16 %v1684, %v1680
  %v2741 = vpack.c.b16 %v1689, %v1685
  %v2742 = vpack.c.b16 %v1690, %v1686
  %v2743 = vpack.c.b16 %v1691, %v1687
  %v2744 = vpack.c.b16 %v1692, %v1688
  %v2745 = vpack.c.b16 %v1697, %v1693
  %v2746 = vpack.c.b16 %v1698, %v1694
  %v2747 = vpack.c.b16 %v1699, %v1695
  %v2748 = vpack.c.b16 %v1700, %v1696
  %v2749 = vpack.c.b16 %v1705, %v1701
  %v2750 = vpack.c.b16 %v1706, %v1702
  %v2751 = vpack.c.b16 %v1707, %v1703
  %v2752 = vpack.c.b16 %v1708, %v1704
  %v2753 = vpack.c.b16 %v1713, %v1709
  %v2754 = vpack.c.b16 %v1714, %v1710
  %v2755 = vpack.c.b16 %v1715, %v1711
  %v2756 = vpack.c.b16 %v1716, %v1712
  %v2757 = vpack.c.b16 %v1721, %v1717
  %v2758 = vpack.c.b16 %v1722, %v1718
  %v2759 = vpack.c.b16 %v1723, %v1719
  %v2760 = vpack.c.b16 %v1724, %v1720
  %v2761 = vpack.c.b16 %v1729, %v1725
  %v2762 = vpack.c.b16 %v1730, %v1726
  %v2763 = vpack.c.b16 %v1731, %v1727
  %v2764 = vpack.c.b16 %v1732, %v1728
  %v2765 = vpack.c.b16 %v1737, %v1733
  %v2766 = vpack.c.b16 %v1738, %v1734
  %v2767 = vpack.c.b16 %v1739, %v1735
  %v2768 = vpack.c.b16 %v1740, %v1736
  %v2769 = vpack.c.b16 %v1745, %v1741
  %v2770 = vpack.c.b16 %v1746, %v1742
  %v2771 = vpack.c.b16 %v1747, %v1743
  %v2772 = vpack.c.b16 %v1748, %v1744
  %v2773 = vpack.c.b16 %v1753, %v1749
  %v2774 = vpack.c.b16 %v1754, %v1750
  %v2775 = vpack.c.b16 %v1755, %v1751
  %v2776 = vpack.c.b16 %v1756, %v1752
  %v2777 = vpack.c.b16 %v1761, %v1757
  %v2778 = vpack.c.b16 %v1762, %v1758
  %v2779 = vpack.c.b16 %v1763, %v1759
  %v2780 = vpack.c.b16 %v1764, %v1760
  %v2781 = vpack.c.b16 %v1769, %v1765
  %v2782 = vpack.c.b16 %v1770, %v1766
  %v2783 = vpack.c.b16 %v1771, %v1767
  %v2784 = vpack.c.b16 %v1772, %v1768
  %v2785 = vpack.c.b16 %v1777, %v1773
  %v2786 = vpack.c.b16 %v1778, %v1774
  %v2787 = vpack.c.b16 %v1779, %v1775
  %v2788 = vpack.c.b16 %v1780, %v1776
  %v2789 = vpack.c.b16 %v1785, %v1781
  %v2790 = vpack.c.b16 %v1786, %v1782
  %v2791 = vpack.c.b16 %v1787, %v1783
  %v2792 = vpack.c.b16 %v1788, %v1784
  %v2793 = vpack.c.b16 %v1793, %v1789
  %v2794 = vpack.c.b16 %v1794, %v1790
  %v2795 = vpack.c.b16 %v1795, %v1791
  %v2796 = vpack.c.b16 %v1796, %v1792
  %v2797 = vpack.c.b16 %v1801, %v1797
  %v2798 = vpack.c.b16 %v1802, %v1798
  %v2799 = vpack.c.b16 %v1803, %v1799
  %v2800 = vpack.c.b16 %v1804, %v1800
  %v2801 = vpack.c.b16 %v1809, %v1805
  %v2802 = vpack.c.b16 %v1810, %v1806
  %v2803 = vpack.c.b16 %v1811, %v1807
  %v2804 = vpack.c.b16 %v1812, %v1808
  %v2805 = vpack.c.b16 %v1817, %v1813
  %v2806 = vpack.c.b16 %v1818, %v1814
  %v2807 = vpack.c.b16 %v1819, %v1815
  %v2808 = vpack.c.b16 %v1820, %v1816
  %v2809 = vpack.c.b16 %v1825, %v1821
  %v2810 = vpack.c.b16 %v1826, %v1822
  %v2811 = vpack.c.b16 %v1827, %v1823
  %v2812 = vpack.c.b16 %v1828, %v1824
  %v2813 = vpack.c.b16 %v1833, %v1829
  %v2814 = vpack.c.b16 %v1834, %v1830
  %v2815 = vpack.c.b16 %v1835, %v1831
  %v2816 = vpack.c.b16 %v1836, %v1832
  %v2817 = vpack.c.b16 %v1841, %v1837
  %v2818 = vpack.c.b16 %v1842, %v1838
  %v2819 = vpack.c.b16 %v1843, %v1839
  %v2820 = vpack.c.b16 %v1844, %v1840
  %v2821 = vpack.c.b16 %v1849, %v1845
  %v2822 = vpack.c.b16 %v1850, %v1846
  %v2823 = vpack.c.b16 %v1851, %v1847
  %v2824 = vpack.c.b16 %v1852, %v1848
  %v2825 = vpack.c.b16 %v1857, %v1853
  %v2826 = vpack.c.b16 %v1858, %v1854
  %v2827 = vpack.c.b16 %v1859, %v1855
  %v2828 = vpack.c.b16 %v1860, %v1856
  %v2829 = vpack.c.b16 %v1865, %v1861
  %v2830 = vpack.c.b16 %v1866, %v1862
  %v2831 = vpack.c.b16 %v1867, %v1863
  %v2832 = vpack.c.b16 %v1868, %v1864
  %v2833 = vpack.c.b16 %v1873, %v1869
  %v2834 = vpack.c.b16 %v1874, %v1870
  %v2835 = vpack.c.b16 %v1875, %v1871
  %v2836 = vpack.c.b16 %v1876, %v1872
  %v2837 = vpack.c.b16 %v1881, %v1877
  %v2838 = vpack.c.b16 %v1882, %v1878
  %v2839 = vpack.c.b16 %v1883, %v1879
  %v2840 = vpack.c.b16 %v1884, %v1880
  %v2841 = vpack.c.b16 %v1889, %v1885
  %v2842 = vpack.c.b16 %v1890, %v1886
  %v2843 = vpack.c.b16 %v1891, %v1887
  %v2844 = vpack.c.b16 %v1892, %v1888
  %v2845 = vpack.c.b16 %v1897, %v1893
  %v2846 = vpack.c.b16 %v1898, %v1894
  %v2847 = vpack.c.b16 %v1899, %v1895
  %v2848 = vpack.c.b16 %v1900, %v1896
  %v2849 = vpack.c.b16 %v1905, %v1901
  %v2850 = vpack.c.b16 %v1906, %v1902
  %v2851 = vpack.c.b16 %v1907, %v1903
  %v2852 = vpack.c.b16 %v1908, %v1904
  %v2853 = vpack.c.b16 %v1913, %v1909
  %v2854 = vpack.c.b16 %v1914, %v1910
  %v2855 = vpack.c.b16 %v1915, %v1911
  %v2856 = vpack.c.b16 %v1916, %v1912
  %v2857 = vpack.c.b16 %v1921, %v1917
  %v2858 = vpack.c.b16 %v1922, %v1918
  %v2859 = vpack.c.b16 %v1923, %v1919
  %v2860 = vpack.c.b16 %v1924, %v1920
  %v2861 = vpack.c.b16 %v1929, %v1925
  %v2862 = vpack.c.b16 %v1930, %v1926
  %v2863 = vpack.c.b16 %v1931, %v1927
  %v2864 = vpack.c.b16 %v1932, %v1928
  %v2865 = vpack.c.b16 %v1937, %v1933
  %v2866 = vpack.c.b16 %v1938, %v1934
  %v2867 = vpack.c.b16 %v1939, %v1935
  %v2868 = vpack.c.b16 %v1940, %v1936
  %v2869 = vpack.c.b16 %v1945, %v1941
  %v2870 = vpack.c.b16 %v1946, %v1942
  %v2871 = vpack.c.b16 %v1947, %v1943
  %v2872 = vpack.c.b16 %v1948, %v1944
  %v2873 = vpack.c.b16 %v1953, %v1949
  %v2874 = vpack.c.b16 %v1954, %v1950
  %v2875 = vpack.c.b16 %v1955, %v1951
  %v2876 = vpack.c.b16 %v1956, %v1952
  %v2877 = vpack.c.b16 %v1961, %v1957
  %v2878 = vpack.c.b16 %v1962, %v1958
  %v2879 = vpack.c.b16 %v1963, %v1959
  %v2880 = vpack.c.b16 %v1964, %v1960
  %v2881 = vpack.c.b16 %v1969, %v1965
  %v2882 = vpack.c.b16 %v1970, %v1966
  %v2883 = vpack.c.b16 %v1971, %v1967
  %v2884 = vpack.c.b16 %v1972, %v1968
  %v2885 = vpack.c.b16 %v1977, %v1973
  %v2886 = vpack.c.b16 %v1978, %v1974
  %v2887 = vpack.c.b16 %v1979, %v1975
  %v2888 = vpack.c.b16 %v1980, %v1976
  %v2889 = vpack.c.b16 %v1985, %v1981
  %v2890 = vpack.c.b16 %v1986, %v1982
  %v2891 = vpack.c.b16 %v1987, %v1983
  %v2892 = vpack.c.b16 %v1988, %v1984
  %v2893 = vpack.c.b16 %v1993, %v1989
  %v2894 = vpack.c.b16 %v1994, %v1990
  %v2895 = vpack.c.b16 %v1995, %v1991
  %v2896 = vpack.c.b16 %v1996, %v1992
  %v2897 = vpack.c.b16 %v2001, %v1997
  %v2898 = vpack.c.b16 %v2002, %v1998
  %v2899 = vpack.c.b16 %v2003, %v1999
  %v2900 = vpack.c.b16 %v2004, %v2000
  %v2901 = vpack.c.b16 %v2009, %v2005
  %v2902 = vpack.c.b16 %v2010, %v2006
  %v2903 = vpack.c.b16 %v2011, %v2007
  %v2904 = vpack.c.b16 %v2012, %v2008
  %v2905 = vpack.c.b16 %v2017, %v2013
  %v2906 = vpack.c.b16 %v2018, %v2014
  %v2907 = vpack.c.b16 %v2019, %v2015
  %v2908 = vpack.c.b16 %v2020, %v2016
  %v2909 = vpack.c.b16 %v2025, %v2021
  %v2910 = vpack.c.b16 %v2026, %v2022
  %v2911 = vpack.c.b16 %v2027, %v2023
  %v2912 = vpack.c.b16 %v2028, %v2024
  %v2913 = vpack.c.b16 %v2033, %v2029
  %v2914 = vpack.c.b16 %v2034, %v2030
  %v2915 = vpack.c.b16 %v2035, %v2031
  %v2916 = vpack.c.b16 %v2036, %v2032
  %v2917 = vpack.c.b16 %v2041, %v2037
  %v2918 = vpack.c.b16 %v2042, %v2038
  %v2919 = vpack.c.b16 %v2043, %v2039
  %v2920 = vpack.c.b16 %v2044, %v2040
  %v2921 = vpack.c.b16 %v2049, %v2045
  %v2922 = vpack.c.b16 %v2050, %v2046
  %v2923 = vpack.c.b16 %v2051, %v2047
  %v2924 = vpack.c.b16 %v2052, %v2048
  %v2925 = vpack.c.b16 %v2057, %v2053
  %v2926 = vpack.c.b16 %v2058, %v2054
  %v2927 = vpack.c.b16 %v2059, %v2055
  %v2928 = vpack.c.b16 %v2060, %v2056
  %v2929 = vpack.c.b16 %v2065, %v2061
  %v2930 = vpack.c.b16 %v2066, %v2062
  %v2931 = vpack.c.b16 %v2067, %v2063
  %v2932 = vpack.c.b16 %v2068, %v2064
  %v2933 = vpack.c.b16 %v2073, %v2069
  %v2934 = vpack.c.b16 %v2074, %v2070
  %v2935 = vpack.c.b16 %v2075, %v2071
  %v2936 = vpack.c.b16 %v2076, %v2072
  %v2937 = vpack.c.b16 %v2081, %v2077
  %v2938 = vpack.c.b16 %v2082, %v2078
  %v2939 = vpack.c.b16 %v2083, %v2079
  %v2940 = vpack.c.b16 %v2084, %v2080
  %v2941 = vpack.c.b16 %v2089, %v2085
  %v2942 = vpack.c.b16 %v2090, %v2086
  %v2943 = vpack.c.b16 %v2091, %v2087
  %v2944 = vpack.c.b16 %v2092, %v2088
  %v2945 = vpack.c.b16 %v2097, %v2093
  %v2946 = vpack.c.b16 %v2098, %v2094
  %v2947 = vpack.c.b16 %v2099, %v2095
  %v2948 = vpack.c.b16 %v2100, %v2096
  %v2949 = vpack.c.b16 %v2105, %v2101
  %v2950 = vpack.c.b16 %v2106, %v2102
  %v2951 = vpack.c.b16 %v2107, %v2103
  %v2952 = vpack.c.b16 %v2108, %v2104
  %v2953 = vpack.c.b16 %v2113, %v2109
  %v2954 = vpack.c.b16 %v2114, %v2110
  %v2955 = vpack.c.b16 %v2115, %v2111
  %v2956 = vpack.c.b16 %v2116, %v2112
  %v2957 = vpack.c.b16 %v2121, %v2117
  %v2958 = vpack.c.b16 %v2122, %v2118
  %v2959 = vpack.c.b16 %v2123, %v2119
  %v2960 = vpack.c.b16 %v2124, %v2120
  %v2961 = vpack.c.b16 %v2129, %v2125
  %v2962 = vpack.c.b16 %v2130, %v2126
  %v2963 = vpack.c.b16 %v2131, %v2127
  %v2964 = vpack.c.b16 %v2132, %v2128
  %v2965 = vpack.c.b16 %v2137, %v2133
  %v2966 = vpack.c.b16 %v2138, %v2134
  %v2967 = vpack.c.b16 %v2139, %v2135
  %v2968 = vpack.c.b16 %v2140, %v2136
  %v2969 = vpack.c.b16 %v2145, %v2141
  %v2970 = vpack.c.b16 %v2146, %v2142
  %v2971 = vpack.c.b16 %v2147, %v2143
  %v2972 = vpack.c.b16 %v2148, %v2144
  %v2973 = vpack.c.b16 %v2153, %v2149
  %v2974 = vpack.c.b16 %v2154, %v2150
  %v2975 = vpack.c.b16 %v2155, %v2151
  %v2976 = vpack.c.b16 %v2156, %v2152
  %v2977 = vpack.c.b16 %v2161, %v2157
  %v2978 = vpack.c.b16 %v2162, %v2158
  %v2979 = vpack.c.b16 %v2163, %v2159
  %v2980 = vpack.c.b16 %v2164, %v2160
  %v2981 = vpack.c.b16 %v2169, %v2165
  %v2982 = vpack.c.b16 %v2170, %v2166
  %v2983 = vpack.c.b16 %v2171, %v2167
  %v2984 = vpack.c.b16 %v2172, %v2168
  %v2985 = vpack.c.b16 %v2177, %v2173
  %v2986 = vpack.c.b16 %v2178, %v2174
  %v2987 = vpack.c.b16 %v2179, %v2175
  %v2988 = vpack.c.b16 %v2180, %v2176
  %v2989 = vpack.c.b16 %v2185, %v2181
  %v2990 = vpack.c.b16 %v2186, %v2182
  %v2991 = vpack.c.b16 %v2187, %v2183
  %v2992 = vpack.c.b16 %v2188, %v2184
  %v2993 = vpack.c.b16 %v2193, %v2189
  %v2994 = vpack.c.b16 %v2194, %v2190
  %v2995 = vpack.c.b16 %v2195, %v2191
  %v2996 = vpack.c.b16 %v2196, %v2192
  %v2997 = vpack.c.b16 %v2201, %v2197
  %v2998 = vpack.c.b16 %v2202, %v2198
  %v2999 = vpack.c.b16 %v2203, %v2199
  %v3000 = vpack.c.b16 %v2204, %v2200
  %v3001 = vpack.c.b16 %v2209, %v2205
  %v3002 = vpack.c.b16 %v2210, %v2206
  %v3003 = vpack.c.b16 %v2211, %v2207
  %v3004 = vpack.c.b16 %v2212, %v2208
  %v3005 = vpack.c.b16 %v2217, %v2213
  %v3006 = vpack.c.b16 %v2218, %v2214
  %v3007 = vpack.c.b16 %v2219, %v2215
  %v3008 = vpack.c.b16 %v2220, %v2216
  %v3009 = vpack.c.b16 %v2225, %v2221
  %v3010 = vpack.c.b16 %v2226, %v2222
  %v3011 = vpack.c.b16 %v2227, %v2223
  %v3012 = vpack.c.b16 %v2228, %v2224
  %v3013 = vpack.c.b16 %v2233, %v2229
  %v3014 = vpack.c.b16 %v2234, %v2230
  %v3015 = vpack.c.b16 %v2235, %v2231
  %v3016 = vpack.c.b16 %v2236, %v2232
  %v3017 = vpack.c.b16 %v2241, %v2237
  %v3018 = vpack.c.b16 %v2242, %v2238
  %v3019 = vpack.c.b16 %v2243, %v2239
  %v3020 = vpack.c.b16 %v2244, %v2240
  %v3021 = vpack.c.b16 %v2249, %v2245
  %v3022 = vpack.c.b16 %v2250, %v2246
  %v3023 = vpack.c.b16 %v2251, %v2247
  %v3024 = vpack.c.b16 %v2252, %v2248
  %v3025 = vpack.c.b16 %v2257, %v2253
  %v3026 = vpack.c.b16 %v2258, %v2254
  %v3027 = vpack.c.b16 %v2259, %v2255
  %v3028 = vpack.c.b16 %v2260, %v2256
  %v3029 = vpack.c.b16 %v2265, %v2261
  %v3030 = vpack.c.b16 %v2266, %v2262
  %v3031 = vpack.c.b16 %v2267, %v2263
  %v3032 = vpack.c.b16 %v2268, %v2264
  %v3033 = vpack.c.b16 %v2273, %v2269
  %v3034 = vpack.c.b16 %v2274, %v2270
  %v3035 = vpack.c.b16 %v2275, %v2271
  %v3036 = vpack.c.b16 %v2276, %v2272
  %v3037 = vpack.c.b16 %v2281, %v2277
  %v3038 = vpack.c.b16 %v2282, %v2278
  %v3039 = vpack.c.b16 %v2283, %v2279
  %v3040 = vpack.c.b16 %v2284, %v2280
  %v3041 = vpack.c.b16 %v2289, %v2285
  %v3042 = vpack.c.b16 %v2290, %v2286
  %v3043 = vpack.c.b16 %v2291, %v2287
  %v3044 = vpack.c.b16 %v2292, %v2288
  %v3045 = vpack.c.b16 %v2297, %v2293
  %v3046 = vpack.c.b16 %v2298, %v2294
  %v3047 = vpack.c.b16 %v2299, %v2295
  %v3048 = vpack.c.b16 %v2300, %v2296
  %v3049 = vpack.c.b16 %v2305, %v2301
  %v3050 = vpack.c.b16 %v2306, %v2302
  %v3051 = vpack.c.b16 %v2307, %v2303
  %v3052 = vpack.c.b16 %v2308, %v2304
  %v3053 = vpack.c.b16 %v2313, %v2309
  %v3054 = vpack.c.b16 %v2314, %v2310
  %v3055 = vpack.c.b16 %v2315, %v2311
  %v3056 = vpack.c.b16 %v2316, %v2312
  %v3057 = vpack.c.b16 %v2321, %v2317
  %v3058 = vpack.c.b16 %v2322, %v2318
  %v3059 = vpack.c.b16 %v2323, %v2319
  %v3060 = vpack.c.b16 %v2324, %v2320
  %v3061 = vpack.c.b16 %v2329, %v2325
  %v3062 = vpack.c.b16 %v2330, %v2326
  %v3063 = vpack.c.b16 %v2331, %v2327
  %v3064 = vpack.c.b16 %v2332, %v2328
  %v3065 = vpack.c.b16 %v2337, %v2333
  %v3066 = vpack.c.b16 %v2338, %v2334
  %v3067 = vpack.c.b16 %v2339, %v2335
  %v3068 = vpack.c.b16 %v2340, %v2336
  %v3069 = vpack.c.b16 %v2345, %v2341
  %v3070 = vpack.c.b16 %v2346, %v2342
  %v3071 = vpack.c.b16 %v2347, %v2343
  %v3072 = vpack.c.b16 %v2348, %v2344
  %v3073 = vpack.c.b16 %v2353, %v2349
  %v3074 = vpack.c.b16 %v2354, %v2350
  %v3075 = vpack.c.b16 %v2355, %v2351
  %v3076 = vpack.c.b16 %v2356, %v2352
  %v3077 = vpack.c.b16 %v2361, %v2357
  %v3078 = vpack.c.b16 %v2362, %v2358
  %v3079 = vpack.c.b16 %v2363, %v2359
  %v3080 = vpack.c.b16 %v2364, %v2360
  %v3081 = vpack.c.b16 %v2369, %v2365
  %v3082 = vpack.c.b16 %v2370, %v2366
  %v3083 = vpack.c.b16 %v2371, %v2367
  %v3084 = vpack.c.b16 %v2372, %v2368
  %v3085 = vpack.c.b16 %v2377, %v2373
  %v3086 = vpack.c.b16 %v2378, %v2374
  %v3087 = vpack.c.b16 %v2379, %v2375
  %v3088 = vpack.c.b16 %v2380, %v2376
  %v3089 = vpack.c.b16 %v2385, %v2381
  %v3090 = vpack.c.b16 %v2386, %v2382
  %v3091 = vpack.c.b16 %v2387, %v2383
  %v3092 = vpack.c.b16 %v2388, %v2384
  %v3093 = vpack.c.b16 %v2393, %v2389
  %v3094 = vpack.c.b16 %v2394, %v2390
  %v3095 = vpack.c.b16 %v2395, %v2391
  %v3096 = vpack.c.b16 %v2396, %v2392
  %v3097 = vpack.c.b16 %v2401, %v2397
  %v3098 = vpack.c.b16 %v2402, %v2398
  %v3099 = vpack.c.b16 %v2403, %v2399
  %v3100 = vpack.c.b16 %v2404, %v2400
  %v3101 = vpack.c.b16 %v2409, %v2405
  %v3102 = vpack.c.b16 %v2410, %v2406
  %v3103 = vpack.c.b16 %v2411, %v2407
  %v3104 = vpack.c.b16 %v2412, %v2408
  %v3105 = vpack.c.b16 %v2417, %v2413
  %v3106 = vpack.c.b16 %v2418, %v2414
  %v3107 = vpack.c.b16 %v2419, %v2415
  %v3108 = vpack.c.b16 %v2420, %v2416
  %v3109 = vpack.c.b16 %v2425, %v2421
  %v3110 = vpack.c.b16 %v2426, %v2422
  %v3111 = vpack.c.b16 %v2427, %v2423
  %v3112 = vpack.c.b16 %v2428, %v2424
  %v3113 = vpack.c.b16 %v2433, %v2429
  %v3114 = vpack.c.b16 %v2434, %v2430
  %v3115 = vpack.c.b16 %v2435, %v2431
  %v3116 = vpack.c.b16 %v2436, %v2432
  %v3117 = vpack.c.b16 %v2441, %v2437
  %v3118 = vpack.c.b16 %v2442, %v2438
  %v3119 = vpack.c.b16 %v2443, %v2439
  %v3120 = vpack.c.b16 %v2444, %v2440
  %v3121 = vpack.c.b16 %v2449, %v2445
  %v3122 = vpack.c.b16 %v2450, %v2446
  %v3123 = vpack.c.b16 %v2451, %v2447
  %v3124 = vpack.c.b16 %v2452, %v2448
  %v3125 = vpack.c.b16 %v2457, %v2453
  %v3126 = vpack.c.b16 %v2458, %v2454
  %v3127 = vpack.c.b16 %v2459, %v2455
  %v3128 = vpack.c.b16 %v2460, %v2456
  %v3129 = vpack.c.b16 %v2465, %v2461
  %v3130 = vpack.c.b16 %v2466, %v2462
  %v3131 = vpack.c.b16 %v2467, %v2463
  %v3132 = vpack.c.b16 %v2468, %v2464
  %v3133 = vpack.c.b16 %v2473, %v2469
  %v3134 = vpack.c.b16 %v2474, %v2470
  %v3135 = vpack.c.b16 %v2475, %v2471
  %v3136 = vpack.c.b16 %v2476, %v2472
  %v3137 = vpack.c.b16 %v2481, %v2477
  %v3138 = vpack.c.b16 %v2482, %v2478
  %v3139 = vpack.c.b16 %v2483, %v2479
  %v3140 = vpack.c.b16 %v2484, %v2480
  %v3141 = vpack.c.b16 %v2489, %v2485
  %v3142 = vpack.c.b16 %v2490, %v2486
  %v3143 = vpack.c.b16 %v2491, %v2487
  %v3144 = vpack.c.b16 %v2492, %v2488
  %v3145 = vpack.c.b16 %v2497, %v2493
  %v3146 = vpack.c.b16 %v2498, %v2494
  %v3147 = vpack.c.b16 %v2499, %v2495
  %v3148 = vpack.c.b16 %v2500, %v2496
  %v3149 = vpack.c.b16 %v2505, %v2501
  %v3150 = vpack.c.b16 %v2506, %v2502
  %v3151 = vpack.c.b16 %v2507, %v2503
  %v3152 = vpack.c.b16 %v2508, %v2504
  %v3153 = vpack.c.b16 %v2513, %v2509
  %v3154 = vpack.c.b16 %v2514, %v2510
  %v3155 = vpack.c.b16 %v2515, %v2511
  %v3156 = vpack.c.b16 %v2516, %v2512
  %v3157 = vpack.c.b16 %v2521, %v2517
  %v3158 = vpack.c.b16 %v2522, %v2518
  %v3159 = vpack.c.b16 %v2523, %v2519
  %v3160 = vpack.c.b16 %v2524, %v2520
  %v3161 = vpack.c.b16 %v2529, %v2525
  %v3162 = vpack.c.b16 %v2530, %v2526
  %v3163 = vpack.c.b16 %v2531, %v2527
  %v3164 = vpack.c.b16 %v2532, %v2528
  %v3165 = vpack.c.b16 %v2537, %v2533
  %v3166 = vpack.c.b16 %v2538, %v2534
  %v3167 = vpack.c.b16 %v2539, %v2535
  %v3168 = vpack.c.b16 %v2540, %v2536
  %v3169 = vpack.c.b16 %v2545, %v2541
  %v3170 = vpack.c.b16 %v2546, %v2542
  %v3171 = vpack.c.b16 %v2547, %v2543
  %v3172 = vpack.c.b16 %v2548, %v2544
  %v3173 = vpack.c.b16 %v2553, %v2549
  %v3174 = vpack.c.b16 %v2554, %v2550
  %v3175 = vpack.c.b16 %v2555, %v2551
  %v3176 = vpack.c.b16 %v2556, %v2552
  %v3177 = vpack.c.b16 %v2561, %v2557
  %v3178 = vpack.c.b16 %v2562, %v2558
  %v3179 = vpack.c.b16 %v2563, %v2559
  %v3180 = vpack.c.b16 %v2564, %v2560
  %v3181 = vpack.c.b16 %v2569, %v2565
  %v3182 = vpack.c.b16 %v2570, %v2566
  %v3183 = vpack.c.b16 %v2571, %v2567
  %v3184 = vpack.c.b16 %v2572, %v2568
  %v3185 = vpack.c.b16 %v2577, %v2573
  %v3186 = vpack.c.b16 %v2578, %v2574
  %v3187 = vpack.c.b16 %v2579, %v2575
  %v3188 = vpack.c.b16 %v2580, %v2576
  %v3189 = vpack.c.b16 %v2585, %v2581
  %v3190 = vpack.c.b16 %v2586, %v2582
  %v3191 = vpack.c.b16 %v2587, %v2583
  %v3192 = vpack.c.b16 %v2588, %v2584
  %v3193 = vpack.c.b16 %v2593, %v2589
  %v3194 = vpack.c.b16 %v2594, %v2590
  %v3195 = vpack.c.b16 %v2595, %v2591
  %v3196 = vpack.c.b16 %v2596, %v2592
  %v3197 = vpack.c.b16 %v2601, %v2597
  %v3198 = vpack.c.b16 %v2602, %v2598
  %v3199 = vpack.c.b16 %v2603, %v2599
  %v3200 = vpack.c.b16 %v2604, %v2600
  %v3201 = vpack.c.b16 %v2609, %v2605
  %v3202 = vpack.c.b16 %v2610, %v2606
  %v3203 = vpack.c.b16 %v2611, %v2607
  %v3204 = vpack.c.b16 %v2612, %v2608
  %v3205 = vpack.c.b16 %v2617, %v2613
  %v3206 = vpack.c.b16 %v2618, %v2614
  %v3207 = vpack.c.b16 %v2619, %v2615
  %v3208 = vpack.c.b16 %v2620, %v2616
  %v3209 = vpack.c.b16 %v2625, %v2621
  %v3210 = vpack.c.b16 %v2626, %v2622
  %v3211 = vpack.c.b16 %v2627, %v2623
  %v3212 = vpack.c.b16 %v2628, %v2624
  %v3213 = vpack.c.b16 %v2633, %v2629
  %v3214 = vpack.c.b16 %v2634, %v2630
  %v3215 = vpack.c.b16 %v2635, %v2631
  %v3216 = vpack.c.b16 %v2636, %v2632
  %v3217 = vpack.c.b16 %v2641, %v2637
  %v3218 = vpack.c.b16 %v2642, %v2638
  %v3219 = vpack.c.b16 %v2643, %v2639
  %v3220 = vpack.c.b16 %v2644, %v2640
  %3797 = vmatprep.subr.bf16.mxu0 %v2646
  %3798 = vmatpush1.bf16.msra.mxu0 %v2645
  %3799 = vmatprep.subr.bf16.mxu0 %v2650
  %3800 = vmatpush1.bf16.msra.mxu0 %v2649
  %3801 = vmatprep.subr.bf16.mxu0 %v2654
  %3802 = vmatpush1.bf16.msra.mxu0 %v2653
  %3803 = vmatprep.subr.bf16.mxu0 %v2658
  %3804 = vmatpush1.bf16.msra.mxu0 %v2657
  %3805 = vmatprep.subr.bf16.mxu0 %v2662
  %3806 = vmatpush1.bf16.msra.mxu0 %v2661
  %3807 = vmatprep.subr.bf16.mxu0 %v2666
  %3808 = vmatpush1.bf16.msra.mxu0 %v2665
  %3809 = vmatprep.subr.bf16.mxu0 %v2670
  %3810 = vmatpush1.bf16.msra.mxu0 %v2669
  %3811 = vmatprep.subr.bf16.mxu0 %v2674
  %3812 = vmatpush1.bf16.msra.mxu0 %v2673
  %3813 = vmatprep.subr.bf16.mxu0 %v2678
  %3814 = vmatpush1.bf16.msra.mxu0 %v2677
  %3815 = vmatprep.subr.bf16.mxu0 %v2682
  %3816 = vmatpush1.bf16.msra.mxu0 %v2681
  %3817 = vmatprep.subr.bf16.mxu0 %v2686
  %3818 = vmatpush1.bf16.msra.mxu0 %v2685
  %3819 = vmatprep.subr.bf16.mxu0 %v2690
  %3820 = vmatpush1.bf16.msra.mxu0 %v2689
  %3821 = vmatprep.subr.bf16.mxu0 %v2694
  %3822 = vmatpush1.bf16.msra.mxu0 %v2693
  %3823 = vmatprep.subr.bf16.mxu0 %v2698
  %3824 = vmatpush1.bf16.msra.mxu0 %v2697
  %3825 = vmatprep.subr.bf16.mxu0 %v2702
  %3826 = vmatpush1.bf16.msra.mxu0 %v2701
  %3827 = vmatprep.subr.bf16.mxu0 %v2706
  %3828 = vmatpush1.bf16.msra.mxu0 %v2705
  %3829 = vmatprep.mubr.bf16.mxu0 %v810
  %3830 = vmatmul.mubr.bf16.gmra.mrb[0].mxu0 %v809
  %v3831 = vpop.f32.mrb[0].mxu0
  %v3832 = vadd.f32 0.0, %v3831
  %v3833 = vpop.f32.mrb[0].mxu0
  %v3834 = vadd.f32 0.0, %v3833
  %v3835 = vpop.f32.mrb[0].mxu0
  %v3836 = vadd.f32 0.0, %v3835
  %v3837 = vpop.f32.mrb[0].mxu0
  %v3838 = vadd.f32 0.0, %v3837
  %3839 = vmatprep.mubr.bf16.mxu0 %v828
  %3840 = vmatmul.mubr.bf16.gmra.mrb[0].mxu0 %v827
  %v3841 = vpop.f32.mrb[0].mxu0
  %v3842 = vadd.f32 0.0, %v3841
  %v3843 = vpop.f32.mrb[0].mxu0
  %v3844 = vadd.f32 0.0, %v3843
  %v3845 = vpop.f32.mrb[0].mxu0
  %v3846 = vadd.f32 0.0, %v3845
  %v3847 = vpop.f32.mrb[0].mxu0
  %v3848 = vadd.f32 0.0, %v3847
  %3849 = vmatprep.mubr.bf16.mxu0 %v846
  %3850 = vmatmul.mubr.bf16.gmra.mrb[0].mxu0 %v845
  %v3851 = vpop.f32.mrb[0].mxu0
  %v3852 = vadd.f32 0.0, %v3851
  %v3853 = vpop.f32.mrb[0].mxu0
  %v3854 = vadd.f32 0.0, %v3853
  %v3855 = vpop.f32.mrb[0].mxu0
  %v3856 = vadd.f32 0.0, %v3855
  %v3857 = vpop.f32.mrb[0].mxu0
  %v3858 = vadd.f32 0.0, %v3857
  %3859 = vdwg.mxu0
  %3860 = vmatprep.subr.bf16.mxu0 %v2710
  %3861 = vmatpush1.bf16.msra.mxu0 %v2709
  %3862 = vmatprep.subr.bf16.mxu0 %v2714
  %3863 = vmatpush1.bf16.msra.mxu0 %v2713
  %3864 = vmatprep.subr.bf16.mxu0 %v2718
  %3865 = vmatpush1.bf16.msra.mxu0 %v2717
  %3866 = vmatprep.subr.bf16.mxu0 %v2722
  %3867 = vmatpush1.bf16.msra.mxu0 %v2721
  %3868 = vmatprep.subr.bf16.mxu0 %v2726
  %3869 = vmatpush1.bf16.msra.mxu0 %v2725
  %3870 = vmatprep.subr.bf16.mxu0 %v2730
  %3871 = vmatpush1.bf16.msra.mxu0 %v2729
  %3872 = vmatprep.subr.bf16.mxu0 %v2734
  %3873 = vmatpush1.bf16.msra.mxu0 %v2733
  %3874 = vmatprep.subr.bf16.mxu0 %v2738
  %3875 = vmatpush1.bf16.msra.mxu0 %v2737
  %3876 = vmatprep.subr.bf16.mxu0 %v2742
  %3877 = vmatpush1.bf16.msra.mxu0 %v2741
  %3878 = vmatprep.subr.bf16.mxu0 %v2746
  %3879 = vmatpush1.bf16.msra.mxu0 %v2745
  %3880 = vmatprep.subr.bf16.mxu0 %v2750
  %3881 = vmatpush1.bf16.msra.mxu0 %v2749
  %3882 = vmatprep.subr.bf16.mxu0 %v2754
  %3883 = vmatpush1.bf16.msra.mxu0 %v2753
  %3884 = vmatprep.subr.bf16.mxu0 %v2758
  %3885 = vmatpush1.bf16.msra.mxu0 %v2757
  %3886 = vmatprep.subr.bf16.mxu0 %v2762
  %3887 = vmatpush1.bf16.msra.mxu0 %v2761
  %3888 = vmatprep.subr.bf16.mxu0 %v2766
  %3889 = vmatpush1.bf16.msra.mxu0 %v2765
  %3890 = vmatprep.subr.bf16.mxu0 %v2770
  %3891 = vmatpush1.bf16.msra.mxu0 %v2769
  %3892 = vmatprep.mubr.bf16.mxu0 %v812
  %3893 = vmatmul.mubr.bf16.gmra.mrb[0].mxu0 %v811
  %v3894 = vpop.f32.mrb[0].mxu0
  %v3895 = vadd.f32 %v3832, %v3894
  %v3896 = vpop.f32.mrb[0].mxu0
  %v3897 = vadd.f32 %v3834, %v3896
  %v3898 = vpop.f32.mrb[0].mxu0
  %v3899 = vadd.f32 %v3836, %v3898
  %v3900 = vpop.f32.mrb[0].mxu0
  %v3901 = vadd.f32 %v3838, %v3900
  %3902 = vmatprep.mubr.bf16.mxu0 %v830
  %3903 = vmatmul.mubr.bf16.gmra.mrb[0].mxu0 %v829
  %v3904 = vpop.f32.mrb[0].mxu0
  %v3905 = vadd.f32 %v3842, %v3904
  %v3906 = vpop.f32.mrb[0].mxu0
  %v3907 = vadd.f32 %v3844, %v3906
  %v3908 = vpop.f32.mrb[0].mxu0
  %v3909 = vadd.f32 %v3846, %v3908
  %v3910 = vpop.f32.mrb[0].mxu0
  %v3911 = vadd.f32 %v3848, %v3910
  %3912 = vmatprep.mubr.bf16.mxu0 %v848
  %3913 = vmatmul.mubr.bf16.gmra.mrb[0].mxu0 %v847
  %v3914 = vpop.f32.mrb[0].mxu0
  %v3915 = vadd.f32 %v3852, %v3914
  %v3916 = vpop.f32.mrb[0].mxu0
  %v3917 = vadd.f32 %v3854, %v3916
  %v3918 = vpop.f32.mrb[0].mxu0
  %v3919 = vadd.f32 %v3856, %v3918
  %v3920 = vpop.f32.mrb[0].mxu0
  %v3921 = vadd.f32 %v3858, %v3920
  %3922 = vdwg.mxu0
  %3923 = vmatprep.subr.bf16.mxu0 %v2774
  %3924 = vmatpush1.bf16.msra.mxu0 %v2773
  %3925 = vmatprep.subr.bf16.mxu0 %v2778
  %3926 = vmatpush1.bf16.msra.mxu0 %v2777
  %3927 = vmatprep.subr.bf16.mxu0 %v2782
  %3928 = vmatpush1.bf16.msra.mxu0 %v2781
  %3929 = vmatprep.subr.bf16.mxu0 %v2786
  %3930 = vmatpush1.bf16.msra.mxu0 %v2785
  %3931 = vmatprep.subr.bf16.mxu0 %v2790
  %3932 = vmatpush1.bf16.msra.mxu0 %v2789
  %3933 = vmatprep.subr.bf16.mxu0 %v2794
  %3934 = vmatpush1.bf16.msra.mxu0 %v2793
  %3935 = vmatprep.subr.bf16.mxu0 %v2798
  %3936 = vmatpush1.bf16.msra.mxu0 %v2797
  %3937 = vmatprep.subr.bf16.mxu0 %v2802
  %3938 = vmatpush1.bf16.msra.mxu0 %v2801
  %3939 = vmatprep.subr.bf16.mxu0 %v2806
  %3940 = vmatpush1.bf16.msra.mxu0 %v2805
  %3941 = vmatprep.subr.bf16.mxu0 %v2810
  %3942 = vmatpush1.bf16.msra.mxu0 %v2809
  %3943 = vmatprep.subr.bf16.mxu0 %v2814
  %3944 = vmatpush1.bf16.msra.mxu0 %v2813
  %3945 = vmatprep.subr.bf16.mxu0 %v2818
  %3946 = vmatpush1.bf16.msra.mxu0 %v2817
  %3947 = vmatprep.subr.bf16.mxu0 %v2822
  %3948 = vmatpush1.bf16.msra.mxu0 %v2821
  %3949 = vmatprep.subr.bf16.mxu0 %v2826
  %3950 = vmatpush1.bf16.msra.mxu0 %v2825
  %3951 = vmatprep.subr.bf16.mxu0 %v2830
  %3952 = vmatpush1.bf16.msra.mxu0 %v2829
  %3953 = vmatprep.subr.bf16.mxu0 %v2834
  %3954 = vmatpush1.bf16.msra.mxu0 %v2833
  %3955 = vmatprep.mubr.bf16.mxu0 %v814
  %3956 = vmatmul.mubr.bf16.gmra.mrb[0].mxu0 %v813
  %v3957 = vpop.f32.mrb[0].mxu0
  %v3958 = vadd.f32 %v3895, %v3957
  %v3959 = vpop.f32.mrb[0].mxu0
  %v3960 = vadd.f32 %v3897, %v3959
  %v3961 = vpop.f32.mrb[0].mxu0
  %v3962 = vadd.f32 %v3899, %v3961
  %v3963 = vpop.f32.mrb[0].mxu0
  %v3964 = vadd.f32 %v3901, %v3963
  %3965 = vmatprep.mubr.bf16.mxu0 %v832
  %3966 = vmatmul.mubr.bf16.gmra.mrb[0].mxu0 %v831
  %v3967 = vpop.f32.mrb[0].mxu0
  %v3968 = vadd.f32 %v3905, %v3967
  %v3969 = vpop.f32.mrb[0].mxu0
  %v3970 = vadd.f32 %v3907, %v3969
  %v3971 = vpop.f32.mrb[0].mxu0
  %v3972 = vadd.f32 %v3909, %v3971
  %v3973 = vpop.f32.mrb[0].mxu0
  %v3974 = vadd.f32 %v3911, %v3973
  %3975 = vmatprep.mubr.bf16.mxu0 %v850
  %3976 = vmatmul.mubr.bf16.gmra.mrb[0].mxu0 %v849
  %v3977 = vpop.f32.mrb[0].mxu0
  %v3978 = vadd.f32 %v3915, %v3977
  %v3979 = vpop.f32.mrb[0].mxu0
  %v3980 = vadd.f32 %v3917, %v3979
  %v3981 = vpop.f32.mrb[0].mxu0
  %v3982 = vadd.f32 %v3919, %v3981
  %v3983 = vpop.f32.mrb[0].mxu0
  %v3984 = vadd.f32 %v3921, %v3983
  %3985 = vdwg.mxu0
  %3986 = vmatprep.subr.bf16.mxu0 %v2838
  %3987 = vmatpush1.bf16.msra.mxu0 %v2837
  %3988 = vmatprep.subr.bf16.mxu0 %v2842
  %3989 = vmatpush1.bf16.msra.mxu0 %v2841
  %3990 = vmatprep.subr.bf16.mxu0 %v2846
  %3991 = vmatpush1.bf16.msra.mxu0 %v2845
  %3992 = vmatprep.subr.bf16.mxu0 %v2850
  %3993 = vmatpush1.bf16.msra.mxu0 %v2849
  %3994 = vmatprep.subr.bf16.mxu0 %v2854
  %3995 = vmatpush1.bf16.msra.mxu0 %v2853
  %3996 = vmatprep.subr.bf16.mxu0 %v2858
  %3997 = vmatpush1.bf16.msra.mxu0 %v2857
  %3998 = vmatprep.subr.bf16.mxu0 %v2862
  %3999 = vmatpush1.bf16.msra.mxu0 %v2861
  %4000 = vmatprep.subr.bf16.mxu0 %v2866
  %4001 = vmatpush1.bf16.msra.mxu0 %v2865
  %4002 = vmatprep.subr.bf16.mxu0 %v2870
  %4003 = vmatpush1.bf16.msra.mxu0 %v2869
  %4004 = vmatprep.subr.bf16.mxu0 %v2874
  %4005 = vmatpush1.bf16.msra.mxu0 %v2873
  %4006 = vmatprep.subr.bf16.mxu0 %v2878
  %4007 = vmatpush1.bf16.msra.mxu0 %v2877
  %4008 = vmatprep.subr.bf16.mxu0 %v2882
  %4009 = vmatpush1.bf16.msra.mxu0 %v2881
  %4010 = vmatprep.subr.bf16.mxu0 %v2886
  %4011 = vmatpush1.bf16.msra.mxu0 %v2885
  %4012 = vmatprep.subr.bf16.mxu0 %v2890
  %4013 = vmatpush1.bf16.msra.mxu0 %v2889
  %4014 = vmatprep.subr.bf16.mxu0 %v2894
  %4015 = vmatpush1.bf16.msra.mxu0 %v2893
  %4016 = vmatprep.subr.bf16.mxu0 %v2898
  %4017 = vmatpush1.bf16.msra.mxu0 %v2897
  %4018 = vmatprep.mubr.bf16.mxu0 %v816
  %4019 = vmatmul.mubr.bf16.gmra.mrb[0].mxu0 %v815
  %v4020 = vpop.f32.mrb[0].mxu0
  %v4021 = vadd.f32 %v3958, %v4020
  %v4022 = vpop.f32.mrb[0].mxu0
  %v4023 = vadd.f32 %v3960, %v4022
  %v4024 = vpop.f32.mrb[0].mxu0
  %v4025 = vadd.f32 %v3962, %v4024
  %v4026 = vpop.f32.mrb[0].mxu0
  %v4027 = vadd.f32 %v3964, %v4026
  %4028 = vmatprep.mubr.bf16.mxu0 %v834
  %4029 = vmatmul.mubr.bf16.gmra.mrb[0].mxu0 %v833
  %v4030 = vpop.f32.mrb[0].mxu0
  %v4031 = vadd.f32 %v3968, %v4030
  %v4032 = vpop.f32.mrb[0].mxu0
  %v4033 = vadd.f32 %v3970, %v4032
  %v4034 = vpop.f32.mrb[0].mxu0
  %v4035 = vadd.f32 %v3972, %v4034
  %v4036 = vpop.f32.mrb[0].mxu0
  %v4037 = vadd.f32 %v3974, %v4036
  %4038 = vmatprep.mubr.bf16.mxu0 %v852
  %4039 = vmatmul.mubr.bf16.gmra.mrb[0].mxu0 %v851
  %v4040 = vpop.f32.mrb[0].mxu0
  %v4041 = vadd.f32 %v3978, %v4040
  %v4042 = vpop.f32.mrb[0].mxu0
  %v4043 = vadd.f32 %v3980, %v4042
  %v4044 = vpop.f32.mrb[0].mxu0
  %v4045 = vadd.f32 %v3982, %v4044
  %v4046 = vpop.f32.mrb[0].mxu0
  %v4047 = vadd.f32 %v3984, %v4046
  %4048 = vdwg.mxu0
  %4049 = vmatprep.subr.bf16.mxu0 %v2902
  %4050 = vmatpush1.bf16.msra.mxu0 %v2901
  %4051 = vmatprep.subr.bf16.mxu0 %v2906
  %4052 = vmatpush1.bf16.msra.mxu0 %v2905
  %4053 = vmatprep.subr.bf16.mxu0 %v2910
  %4054 = vmatpush1.bf16.msra.mxu0 %v2909
  %4055 = vmatprep.subr.bf16.mxu0 %v2914
  %4056 = vmatpush1.bf16.msra.mxu0 %v2913
  %4057 = vmatprep.subr.bf16.mxu0 %v2918
  %4058 = vmatpush1.bf16.msra.mxu0 %v2917
  %4059 = vmatprep.subr.bf16.mxu0 %v2922
  %4060 = vmatpush1.bf16.msra.mxu0 %v2921
  %4061 = vmatprep.subr.bf16.mxu0 %v2926
  %4062 = vmatpush1.bf16.msra.mxu0 %v2925
  %4063 = vmatprep.subr.bf16.mxu0 %v2930
  %4064 = vmatpush1.bf16.msra.mxu0 %v2929
  %4065 = vmatprep.subr.bf16.mxu0 %v2934
  %4066 = vmatpush1.bf16.msra.mxu0 %v2933
  %4067 = vmatprep.subr.bf16.mxu0 %v2938
  %4068 = vmatpush1.bf16.msra.mxu0 %v2937
  %4069 = vmatprep.subr.bf16.mxu0 %v2942
  %4070 = vmatpush1.bf16.msra.mxu0 %v2941
  %4071 = vmatprep.subr.bf16.mxu0 %v2946
  %4072 = vmatpush1.bf16.msra.mxu0 %v2945
  %4073 = vmatprep.subr.bf16.mxu0 %v2950
  %4074 = vmatpush1.bf16.msra.mxu0 %v2949
  %4075 = vmatprep.subr.bf16.mxu0 %v2954
  %4076 = vmatpush1.bf16.msra.mxu0 %v2953
  %4077 = vmatprep.subr.bf16.mxu0 %v2958
  %4078 = vmatpush1.bf16.msra.mxu0 %v2957
  %4079 = vmatprep.subr.bf16.mxu0 %v2962
  %4080 = vmatpush1.bf16.msra.mxu0 %v2961
  %4081 = vmatprep.mubr.bf16.mxu0 %v818
  %4082 = vmatmul.mubr.bf16.gmra.mrb[0].mxu0 %v817
  %v4083 = vpop.f32.mrb[0].mxu0
  %v4084 = vadd.f32 %v4021, %v4083
  %v4085 = vpop.f32.mrb[0].mxu0
  %v4086 = vadd.f32 %v4023, %v4085
  %v4087 = vpop.f32.mrb[0].mxu0
  %v4088 = vadd.f32 %v4025, %v4087
  %v4089 = vpop.f32.mrb[0].mxu0
  %v4090 = vadd.f32 %v4027, %v4089
  %4091 = vmatprep.mubr.bf16.mxu0 %v836
  %4092 = vmatmul.mubr.bf16.gmra.mrb[0].mxu0 %v835
  %v4093 = vpop.f32.mrb[0].mxu0
  %v4094 = vadd.f32 %v4031, %v4093
  %v4095 = vpop.f32.mrb[0].mxu0
  %v4096 = vadd.f32 %v4033, %v4095
  %v4097 = vpop.f32.mrb[0].mxu0
  %v4098 = vadd.f32 %v4035, %v4097
  %v4099 = vpop.f32.mrb[0].mxu0
  %v4100 = vadd.f32 %v4037, %v4099
  %4101 = vmatprep.mubr.bf16.mxu0 %v854
  %4102 = vmatmul.mubr.bf16.gmra.mrb[0].mxu0 %v853
  %v4103 = vpop.f32.mrb[0].mxu0
  %v4104 = vadd.f32 %v4041, %v4103
  %v4105 = vpop.f32.mrb[0].mxu0
  %v4106 = vadd.f32 %v4043, %v4105
  %v4107 = vpop.f32.mrb[0].mxu0
  %v4108 = vadd.f32 %v4045, %v4107
  %v4109 = vpop.f32.mrb[0].mxu0
  %v4110 = vadd.f32 %v4047, %v4109
  %4111 = vdwg.mxu0
  %4112 = vmatprep.subr.bf16.mxu0 %v2966
  %4113 = vmatpush1.bf16.msra.mxu0 %v2965
  %4114 = vmatprep.subr.bf16.mxu0 %v2970
  %4115 = vmatpush1.bf16.msra.mxu0 %v2969
  %4116 = vmatprep.subr.bf16.mxu0 %v2974
  %4117 = vmatpush1.bf16.msra.mxu0 %v2973
  %4118 = vmatprep.subr.bf16.mxu0 %v2978
  %4119 = vmatpush1.bf16.msra.mxu0 %v2977
  %4120 = vmatprep.subr.bf16.mxu0 %v2982
  %4121 = vmatpush1.bf16.msra.mxu0 %v2981
  %4122 = vmatprep.subr.bf16.mxu0 %v2986
  %4123 = vmatpush1.bf16.msra.mxu0 %v2985
  %4124 = vmatprep.subr.bf16.mxu0 %v2990
  %4125 = vmatpush1.bf16.msra.mxu0 %v2989
  %4126 = vmatprep.subr.bf16.mxu0 %v2994
  %4127 = vmatpush1.bf16.msra.mxu0 %v2993
  %4128 = vmatprep.subr.bf16.mxu0 %v2998
  %4129 = vmatpush1.bf16.msra.mxu0 %v2997
  %4130 = vmatprep.subr.bf16.mxu0 %v3002
  %4131 = vmatpush1.bf16.msra.mxu0 %v3001
  %4132 = vmatprep.subr.bf16.mxu0 %v3006
  %4133 = vmatpush1.bf16.msra.mxu0 %v3005
  %4134 = vmatprep.subr.bf16.mxu0 %v3010
  %4135 = vmatpush1.bf16.msra.mxu0 %v3009
  %4136 = vmatprep.subr.bf16.mxu0 %v3014
  %4137 = vmatpush1.bf16.msra.mxu0 %v3013
  %4138 = vmatprep.subr.bf16.mxu0 %v3018
  %4139 = vmatpush1.bf16.msra.mxu0 %v3017
  %4140 = vmatprep.subr.bf16.mxu0 %v3022
  %4141 = vmatpush1.bf16.msra.mxu0 %v3021
  %4142 = vmatprep.subr.bf16.mxu0 %v3026
  %4143 = vmatpush1.bf16.msra.mxu0 %v3025
  %4144 = vmatprep.mubr.bf16.mxu0 %v820
  %4145 = vmatmul.mubr.bf16.gmra.mrb[0].mxu0 %v819
  %v4146 = vpop.f32.mrb[0].mxu0
  %v4147 = vadd.f32 %v4084, %v4146
  %v4148 = vpop.f32.mrb[0].mxu0
  %v4149 = vadd.f32 %v4086, %v4148
  %v4150 = vpop.f32.mrb[0].mxu0
  %v4151 = vadd.f32 %v4088, %v4150
  %v4152 = vpop.f32.mrb[0].mxu0
  %v4153 = vadd.f32 %v4090, %v4152
  %4154 = vmatprep.mubr.bf16.mxu0 %v838
  %4155 = vmatmul.mubr.bf16.gmra.mrb[0].mxu0 %v837
  %v4156 = vpop.f32.mrb[0].mxu0
  %v4157 = vadd.f32 %v4094, %v4156
  %v4158 = vpop.f32.mrb[0].mxu0
  %v4159 = vadd.f32 %v4096, %v4158
  %v4160 = vpop.f32.mrb[0].mxu0
  %v4161 = vadd.f32 %v4098, %v4160
  %v4162 = vpop.f32.mrb[0].mxu0
  %v4163 = vadd.f32 %v4100, %v4162
  %4164 = vmatprep.mubr.bf16.mxu0 %v856
  %4165 = vmatmul.mubr.bf16.gmra.mrb[0].mxu0 %v855
  %v4166 = vpop.f32.mrb[0].mxu0
  %v4167 = vadd.f32 %v4104, %v4166
  %v4168 = vpop.f32.mrb[0].mxu0
  %v4169 = vadd.f32 %v4106, %v4168
  %v4170 = vpop.f32.mrb[0].mxu0
  %v4171 = vadd.f32 %v4108, %v4170
  %v4172 = vpop.f32.mrb[0].mxu0
  %v4173 = vadd.f32 %v4110, %v4172
  %4174 = vdwg.mxu0
  %4175 = vmatprep.subr.bf16.mxu0 %v3030
  %4176 = vmatpush1.bf16.msra.mxu0 %v3029
  %4177 = vmatprep.subr.bf16.mxu0 %v3034
  %4178 = vmatpush1.bf16.msra.mxu0 %v3033
  %4179 = vmatprep.subr.bf16.mxu0 %v3038
  %4180 = vmatpush1.bf16.msra.mxu0 %v3037
  %4181 = vmatprep.subr.bf16.mxu0 %v3042
  %4182 = vmatpush1.bf16.msra.mxu0 %v3041
  %4183 = vmatprep.subr.bf16.mxu0 %v3046
  %4184 = vmatpush1.bf16.msra.mxu0 %v3045
  %4185 = vmatprep.subr.bf16.mxu0 %v3050
  %4186 = vmatpush1.bf16.msra.mxu0 %v3049
  %4187 = vmatprep.subr.bf16.mxu0 %v3054
  %4188 = vmatpush1.bf16.msra.mxu0 %v3053
  %4189 = vmatprep.subr.bf16.mxu0 %v3058
  %4190 = vmatpush1.bf16.msra.mxu0 %v3057
  %4191 = vmatprep.subr.bf16.mxu0 %v3062
  %4192 = vmatpush1.bf16.msra.mxu0 %v3061
  %4193 = vmatprep.subr.bf16.mxu0 %v3066
  %4194 = vmatpush1.bf16.msra.mxu0 %v3065
  %4195 = vmatprep.subr.bf16.mxu0 %v3070
  %4196 = vmatpush1.bf16.msra.mxu0 %v3069
  %4197 = vmatprep.subr.bf16.mxu0 %v3074
  %4198 = vmatpush1.bf16.msra.mxu0 %v3073
  %4199 = vmatprep.subr.bf16.mxu0 %v3078
  %4200 = vmatpush1.bf16.msra.mxu0 %v3077
  %4201 = vmatprep.subr.bf16.mxu0 %v3082
  %4202 = vmatpush1.bf16.msra.mxu0 %v3081
  %4203 = vmatprep.subr.bf16.mxu0 %v3086
  %4204 = vmatpush1.bf16.msra.mxu0 %v3085
  %4205 = vmatprep.subr.bf16.mxu0 %v3090
  %4206 = vmatpush1.bf16.msra.mxu0 %v3089
  %4207 = vmatprep.mubr.bf16.mxu0 %v822
  %4208 = vmatmul.mubr.bf16.gmra.mrb[0].mxu0 %v821
  %v4209 = vpop.f32.mrb[0].mxu0
  %v4210 = vadd.f32 %v4147, %v4209
  %v4211 = vpop.f32.mrb[0].mxu0
  %v4212 = vadd.f32 %v4149, %v4211
  %v4213 = vpop.f32.mrb[0].mxu0
  %v4214 = vadd.f32 %v4151, %v4213
  %v4215 = vpop.f32.mrb[0].mxu0
  %v4216 = vadd.f32 %v4153, %v4215
  %4217 = vmatprep.mubr.bf16.mxu0 %v840
  %4218 = vmatmul.mubr.bf16.gmra.mrb[0].mxu0 %v839
  %v4219 = vpop.f32.mrb[0].mxu0
  %v4220 = vadd.f32 %v4157, %v4219
  %v4221 = vpop.f32.mrb[0].mxu0
  %v4222 = vadd.f32 %v4159, %v4221
  %v4223 = vpop.f32.mrb[0].mxu0
  %v4224 = vadd.f32 %v4161, %v4223
  %v4225 = vpop.f32.mrb[0].mxu0
  %v4226 = vadd.f32 %v4163, %v4225
  %4227 = vmatprep.mubr.bf16.mxu0 %v858
  %4228 = vmatmul.mubr.bf16.gmra.mrb[0].mxu0 %v857
  %v4229 = vpop.f32.mrb[0].mxu0
  %v4230 = vadd.f32 %v4167, %v4229
  %v4231 = vpop.f32.mrb[0].mxu0
  %v4232 = vadd.f32 %v4169, %v4231
  %v4233 = vpop.f32.mrb[0].mxu0
  %v4234 = vadd.f32 %v4171, %v4233
  %v4235 = vpop.f32.mrb[0].mxu0
  %v4236 = vadd.f32 %v4173, %v4235
  %4237 = vdwg.mxu0
  %4238 = vmatprep.subr.bf16.mxu0 %v3094
  %4239 = vmatpush1.bf16.msra.mxu0 %v3093
  %4240 = vmatprep.subr.bf16.mxu0 %v3098
  %4241 = vmatpush1.bf16.msra.mxu0 %v3097
  %4242 = vmatprep.subr.bf16.mxu0 %v3102
  %4243 = vmatpush1.bf16.msra.mxu0 %v3101
  %4244 = vmatprep.subr.bf16.mxu0 %v3106
  %4245 = vmatpush1.bf16.msra.mxu0 %v3105
  %4246 = vmatprep.subr.bf16.mxu0 %v3110
  %4247 = vmatpush1.bf16.msra.mxu0 %v3109
  %4248 = vmatprep.subr.bf16.mxu0 %v3114
  %4249 = vmatpush1.bf16.msra.mxu0 %v3113
  %4250 = vmatprep.subr.bf16.mxu0 %v3118
  %4251 = vmatpush1.bf16.msra.mxu0 %v3117
  %4252 = vmatprep.subr.bf16.mxu0 %v3122
  %4253 = vmatpush1.bf16.msra.mxu0 %v3121
  %4254 = vmatprep.subr.bf16.mxu0 %v3126
  %4255 = vmatpush1.bf16.msra.mxu0 %v3125
  %4256 = vmatprep.subr.bf16.mxu0 %v3130
  %4257 = vmatpush1.bf16.msra.mxu0 %v3129
  %4258 = vmatprep.subr.bf16.mxu0 %v3134
  %4259 = vmatpush1.bf16.msra.mxu0 %v3133
  %4260 = vmatprep.subr.bf16.mxu0 %v3138
  %4261 = vmatpush1.bf16.msra.mxu0 %v3137
  %4262 = vmatprep.subr.bf16.mxu0 %v3142
  %4263 = vmatpush1.bf16.msra.mxu0 %v3141
  %4264 = vmatprep.subr.bf16.mxu0 %v3146
  %4265 = vmatpush1.bf16.msra.mxu0 %v3145
  %4266 = vmatprep.subr.bf16.mxu0 %v3150
  %4267 = vmatpush1.bf16.msra.mxu0 %v3149
  %4268 = vmatprep.subr.bf16.mxu0 %v3154
  %4269 = vmatpush1.bf16.msra.mxu0 %v3153
  %4270 = vmatprep.mubr.bf16.mxu0 %v824
  %4271 = vmatmul.mubr.bf16.gmra.mrb[0].mxu0 %v823
  %v4272 = vpop.f32.mrb[0].mxu0
  %v4273 = vadd.f32 %v4210, %v4272
  %v4274 = vpop.f32.mrb[0].mxu0
  %v4275 = vadd.f32 %v4212, %v4274
  %v4276 = vpop.f32.mrb[0].mxu0
  %v4277 = vadd.f32 %v4214, %v4276
  %v4278 = vpop.f32.mrb[0].mxu0
  %v4279 = vadd.f32 %v4216, %v4278
  %4280 = vmatprep.mubr.bf16.mxu0 %v842
  %4281 = vmatmul.mubr.bf16.gmra.mrb[0].mxu0 %v841
  %v4282 = vpop.f32.mrb[0].mxu0
  %v4283 = vadd.f32 %v4220, %v4282
  %v4284 = vpop.f32.mrb[0].mxu0
  %v4285 = vadd.f32 %v4222, %v4284
  %v4286 = vpop.f32.mrb[0].mxu0
  %v4287 = vadd.f32 %v4224, %v4286
  %v4288 = vpop.f32.mrb[0].mxu0
  %v4289 = vadd.f32 %v4226, %v4288
  %4290 = vmatprep.mubr.bf16.mxu0 %v860
  %4291 = vmatmul.mubr.bf16.gmra.mrb[0].mxu0 %v859
  %v4292 = vpop.f32.mrb[0].mxu0
  %v4293 = vadd.f32 %v4230, %v4292
  %v4294 = vpop.f32.mrb[0].mxu0
  %v4295 = vadd.f32 %v4232, %v4294
  %v4296 = vpop.f32.mrb[0].mxu0
  %v4297 = vadd.f32 %v4234, %v4296
  %v4298 = vpop.f32.mrb[0].mxu0
  %v4299 = vadd.f32 %v4236, %v4298
  %4300 = vdwg.mxu0
  %4301 = vmatprep.subr.bf16.mxu0 %v3158
  %4302 = vmatpush1.bf16.msra.mxu0 %v3157
  %4303 = vmatprep.subr.bf16.mxu0 %v3162
  %4304 = vmatpush1.bf16.msra.mxu0 %v3161
  %4305 = vmatprep.subr.bf16.mxu0 %v3166
  %4306 = vmatpush1.bf16.msra.mxu0 %v3165
  %4307 = vmatprep.subr.bf16.mxu0 %v3170
  %4308 = vmatpush1.bf16.msra.mxu0 %v3169
  %4309 = vmatprep.subr.bf16.mxu0 %v3174
  %4310 = vmatpush1.bf16.msra.mxu0 %v3173
  %4311 = vmatprep.subr.bf16.mxu0 %v3178
  %4312 = vmatpush1.bf16.msra.mxu0 %v3177
  %4313 = vmatprep.subr.bf16.mxu0 %v3182
  %4314 = vmatpush1.bf16.msra.mxu0 %v3181
  %4315 = vmatprep.subr.bf16.mxu0 %v3186
  %4316 = vmatpush1.bf16.msra.mxu0 %v3185
  %4317 = vmatprep.subr.bf16.mxu0 %v3190
  %4318 = vmatpush1.bf16.msra.mxu0 %v3189
  %4319 = vmatprep.subr.bf16.mxu0 %v3194
  %4320 = vmatpush1.bf16.msra.mxu0 %v3193
  %4321 = vmatprep.subr.bf16.mxu0 %v3198
  %4322 = vmatpush1.bf16.msra.mxu0 %v3197
  %4323 = vmatprep.subr.bf16.mxu0 %v3202
  %4324 = vmatpush1.bf16.msra.mxu0 %v3201
  %4325 = vmatprep.subr.bf16.mxu0 %v3206
  %4326 = vmatpush1.bf16.msra.mxu0 %v3205
  %4327 = vmatprep.subr.bf16.mxu0 %v3210
  %4328 = vmatpush1.bf16.msra.mxu0 %v3209
  %4329 = vmatprep.subr.bf16.mxu0 %v3214
  %4330 = vmatpush1.bf16.msra.mxu0 %v3213
  %4331 = vmatprep.subr.bf16.mxu0 %v3218
  %4332 = vmatpush1.bf16.msra.mxu0 %v3217
  %4333 = vmatprep.mubr.bf16.mxu0 %v826
  %4334 = vmatmul.mubr.bf16.gmra.mrb[0].mxu0 %v825
  %v4335 = vpop.f32.mrb[0].mxu0
  %v4336 = vadd.f32 %v4273, %v4335
  %v4337 = vpop.f32.mrb[0].mxu0
  %v4338 = vadd.f32 %v4275, %v4337
  %v4339 = vpop.f32.mrb[0].mxu0
  %v4340 = vadd.f32 %v4277, %v4339
  %v4341 = vpop.f32.mrb[0].mxu0
  %v4342 = vadd.f32 %v4279, %v4341
  %4343 = vmatprep.mubr.bf16.mxu0 %v844
  %4344 = vmatmul.mubr.bf16.gmra.mrb[0].mxu0 %v843
  %v4345 = vpop.f32.mrb[0].mxu0
  %v4346 = vadd.f32 %v4283, %v4345
  %v4347 = vpop.f32.mrb[0].mxu0
  %v4348 = vadd.f32 %v4285, %v4347
  %v4349 = vpop.f32.mrb[0].mxu0
  %v4350 = vadd.f32 %v4287, %v4349
  %v4351 = vpop.f32.mrb[0].mxu0
  %v4352 = vadd.f32 %v4289, %v4351
  %4353 = vmatprep.mubr.bf16.mxu0 %v862
  %4354 = vmatmul.mubr.bf16.gmra.mrb[0].mxu0 %v861
  %v4355 = vpop.f32.mrb[0].mxu0
  %v4356 = vadd.f32 %v4293, %v4355
  %v4357 = vpop.f32.mrb[0].mxu0
  %v4358 = vadd.f32 %v4295, %v4357
  %v4359 = vpop.f32.mrb[0].mxu0
  %v4360 = vadd.f32 %v4297, %v4359
  %v4361 = vpop.f32.mrb[0].mxu0
  %v4362 = vadd.f32 %v4299, %v4361
  %4363 = vdwg.mxu0
  %4364 = vmatprep.subr.bf16.mxu0 %v2648
  %4365 = vmatpush1.bf16.msra.mxu0 %v2647
  %4366 = vmatprep.subr.bf16.mxu0 %v2652
  %4367 = vmatpush1.bf16.msra.mxu0 %v2651
  %4368 = vmatprep.subr.bf16.mxu0 %v2656
  %4369 = vmatpush1.bf16.msra.mxu0 %v2655
  %4370 = vmatprep.subr.bf16.mxu0 %v2660
  %4371 = vmatpush1.bf16.msra.mxu0 %v2659
  %4372 = vmatprep.subr.bf16.mxu0 %v2664
  %4373 = vmatpush1.bf16.msra.mxu0 %v2663
  %4374 = vmatprep.subr.bf16.mxu0 %v2668
  %4375 = vmatpush1.bf16.msra.mxu0 %v2667
  %4376 = vmatprep.subr.bf16.mxu0 %v2672
  %4377 = vmatpush1.bf16.msra.mxu0 %v2671
  %4378 = vmatprep.subr.bf16.mxu0 %v2676
  %4379 = vmatpush1.bf16.msra.mxu0 %v2675
  %4380 = vmatprep.subr.bf16.mxu0 %v2680
  %4381 = vmatpush1.bf16.msra.mxu0 %v2679
  %4382 = vmatprep.subr.bf16.mxu0 %v2684
  %4383 = vmatpush1.bf16.msra.mxu0 %v2683
  %4384 = vmatprep.subr.bf16.mxu0 %v2688
  %4385 = vmatpush1.bf16.msra.mxu0 %v2687
  %4386 = vmatprep.subr.bf16.mxu0 %v2692
  %4387 = vmatpush1.bf16.msra.mxu0 %v2691
  %4388 = vmatprep.subr.bf16.mxu0 %v2696
  %4389 = vmatpush1.bf16.msra.mxu0 %v2695
  %4390 = vmatprep.subr.bf16.mxu0 %v2700
  %4391 = vmatpush1.bf16.msra.mxu0 %v2699
  %4392 = vmatprep.subr.bf16.mxu0 %v2704
  %4393 = vmatpush1.bf16.msra.mxu0 %v2703
  %4394 = vmatprep.subr.bf16.mxu0 %v2708
  %4395 = vmatpush1.bf16.msra.mxu0 %v2707
  %4396 = vmatprep.mubr.bf16.mxu0 %v810
  %4397 = vmatmul.mubr.bf16.gmra.mrb[0].mxu0 %v809
  %v4398 = vpop.f32.mrb[0].mxu0
  %v4399 = vadd.f32 0.0, %v4398
  %v4400 = vpop.f32.mrb[0].mxu0
  %v4401 = vadd.f32 0.0, %v4400
  %v4402 = vpop.f32.mrb[0].mxu0
  %v4403 = vadd.f32 0.0, %v4402
  %v4404 = vpop.f32.mrb[0].mxu0
  %v4405 = vadd.f32 0.0, %v4404
  %4406 = vmatprep.mubr.bf16.mxu0 %v828
  %4407 = vmatmul.mubr.bf16.gmra.mrb[0].mxu0 %v827
  %v4408 = vpop.f32.mrb[0].mxu0
  %v4409 = vadd.f32 0.0, %v4408
  %v4410 = vpop.f32.mrb[0].mxu0
  %v4411 = vadd.f32 0.0, %v4410
  %v4412 = vpop.f32.mrb[0].mxu0
  %v4413 = vadd.f32 0.0, %v4412
  %v4414 = vpop.f32.mrb[0].mxu0
  %v4415 = vadd.f32 0.0, %v4414
  %4416 = vmatprep.mubr.bf16.mxu0 %v846
  %4417 = vmatmul.mubr.bf16.gmra.mrb[0].mxu0 %v845
  %v4418 = vpop.f32.mrb[0].mxu0
  %v4419 = vadd.f32 0.0, %v4418
  %v4420 = vpop.f32.mrb[0].mxu0
  %v4421 = vadd.f32 0.0, %v4420
  %v4422 = vpop.f32.mrb[0].mxu0
  %v4423 = vadd.f32 0.0, %v4422
  %v4424 = vpop.f32.mrb[0].mxu0
  %v4425 = vadd.f32 0.0, %v4424
  %4426 = vdwg.mxu0
  %4427 = vmatprep.subr.bf16.mxu0 %v2712
  %4428 = vmatpush1.bf16.msra.mxu0 %v2711
  %4429 = vmatprep.subr.bf16.mxu0 %v2716
  %4430 = vmatpush1.bf16.msra.mxu0 %v2715
  %4431 = vmatprep.subr.bf16.mxu0 %v2720
  %4432 = vmatpush1.bf16.msra.mxu0 %v2719
  %4433 = vmatprep.subr.bf16.mxu0 %v2724
  %4434 = vmatpush1.bf16.msra.mxu0 %v2723
  %4435 = vmatprep.subr.bf16.mxu0 %v2728
  %4436 = vmatpush1.bf16.msra.mxu0 %v2727
  %4437 = vmatprep.subr.bf16.mxu0 %v2732
  %4438 = vmatpush1.bf16.msra.mxu0 %v2731
  %4439 = vmatprep.subr.bf16.mxu0 %v2736
  %4440 = vmatpush1.bf16.msra.mxu0 %v2735
  %4441 = vmatprep.subr.bf16.mxu0 %v2740
  %4442 = vmatpush1.bf16.msra.mxu0 %v2739
  %4443 = vmatprep.subr.bf16.mxu0 %v2744
  %4444 = vmatpush1.bf16.msra.mxu0 %v2743
  %4445 = vmatprep.subr.bf16.mxu0 %v2748
  %4446 = vmatpush1.bf16.msra.mxu0 %v2747
  %4447 = vmatprep.subr.bf16.mxu0 %v2752
  %4448 = vmatpush1.bf16.msra.mxu0 %v2751
  %4449 = vmatprep.subr.bf16.mxu0 %v2756
  %4450 = vmatpush1.bf16.msra.mxu0 %v2755
  %4451 = vmatprep.subr.bf16.mxu0 %v2760
  %4452 = vmatpush1.bf16.msra.mxu0 %v2759
  %4453 = vmatprep.subr.bf16.mxu0 %v2764
  %4454 = vmatpush1.bf16.msra.mxu0 %v2763
  %4455 = vmatprep.subr.bf16.mxu0 %v2768
  %4456 = vmatpush1.bf16.msra.mxu0 %v2767
  %4457 = vmatprep.subr.bf16.mxu0 %v2772
  %4458 = vmatpush1.bf16.msra.mxu0 %v2771
  %4459 = vmatprep.mubr.bf16.mxu0 %v812
  %4460 = vmatmul.mubr.bf16.gmra.mrb[0].mxu0 %v811
  %v4461 = vpop.f32.mrb[0].mxu0
  %v4462 = vadd.f32 %v4399, %v4461
  %v4463 = vpop.f32.mrb[0].mxu0
  %v4464 = vadd.f32 %v4401, %v4463
  %v4465 = vpop.f32.mrb[0].mxu0
  %v4466 = vadd.f32 %v4403, %v4465
  %v4467 = vpop.f32.mrb[0].mxu0
  %v4468 = vadd.f32 %v4405, %v4467
  %4469 = vmatprep.mubr.bf16.mxu0 %v830
  %4470 = vmatmul.mubr.bf16.gmra.mrb[0].mxu0 %v829
  %v4471 = vpop.f32.mrb[0].mxu0
  %v4472 = vadd.f32 %v4409, %v4471
  %v4473 = vpop.f32.mrb[0].mxu0
  %v4474 = vadd.f32 %v4411, %v4473
  %v4475 = vpop.f32.mrb[0].mxu0
  %v4476 = vadd.f32 %v4413, %v4475
  %v4477 = vpop.f32.mrb[0].mxu0
  %v4478 = vadd.f32 %v4415, %v4477
  %4479 = vmatprep.mubr.bf16.mxu0 %v848
  %4480 = vmatmul.mubr.bf16.gmra.mrb[0].mxu0 %v847
  %v4481 = vpop.f32.mrb[0].mxu0
  %v4482 = vadd.f32 %v4419, %v4481
  %v4483 = vpop.f32.mrb[0].mxu0
  %v4484 = vadd.f32 %v4421, %v4483
  %v4485 = vpop.f32.mrb[0].mxu0
  %v4486 = vadd.f32 %v4423, %v4485
  %v4487 = vpop.f32.mrb[0].mxu0
  %v4488 = vadd.f32 %v4425, %v4487
  %4489 = vdwg.mxu0
  %4490 = vmatprep.subr.bf16.mxu0 %v2776
  %4491 = vmatpush1.bf16.msra.mxu0 %v2775
  %4492 = vmatprep.subr.bf16.mxu0 %v2780
  %4493 = vmatpush1.bf16.msra.mxu0 %v2779
  %4494 = vmatprep.subr.bf16.mxu0 %v2784
  %4495 = vmatpush1.bf16.msra.mxu0 %v2783
  %4496 = vmatprep.subr.bf16.mxu0 %v2788
  %4497 = vmatpush1.bf16.msra.mxu0 %v2787
  %4498 = vmatprep.subr.bf16.mxu0 %v2792
  %4499 = vmatpush1.bf16.msra.mxu0 %v2791
  %4500 = vmatprep.subr.bf16.mxu0 %v2796
  %4501 = vmatpush1.bf16.msra.mxu0 %v2795
  %4502 = vmatprep.subr.bf16.mxu0 %v2800
  %4503 = vmatpush1.bf16.msra.mxu0 %v2799
  %4504 = vmatprep.subr.bf16.mxu0 %v2804
  %4505 = vmatpush1.bf16.msra.mxu0 %v2803
  %4506 = vmatprep.subr.bf16.mxu0 %v2808
  %4507 = vmatpush1.bf16.msra.mxu0 %v2807
  %4508 = vmatprep.subr.bf16.mxu0 %v2812
  %4509 = vmatpush1.bf16.msra.mxu0 %v2811
  %4510 = vmatprep.subr.bf16.mxu0 %v2816
  %4511 = vmatpush1.bf16.msra.mxu0 %v2815
  %4512 = vmatprep.subr.bf16.mxu0 %v2820
  %4513 = vmatpush1.bf16.msra.mxu0 %v2819
  %4514 = vmatprep.subr.bf16.mxu0 %v2824
  %4515 = vmatpush1.bf16.msra.mxu0 %v2823
  %4516 = vmatprep.subr.bf16.mxu0 %v2828
  %4517 = vmatpush1.bf16.msra.mxu0 %v2827
  %4518 = vmatprep.subr.bf16.mxu0 %v2832
  %4519 = vmatpush1.bf16.msra.mxu0 %v2831
  %4520 = vmatprep.subr.bf16.mxu0 %v2836
  %4521 = vmatpush1.bf16.msra.mxu0 %v2835
  %4522 = vmatprep.mubr.bf16.mxu0 %v814
  %4523 = vmatmul.mubr.bf16.gmra.mrb[0].mxu0 %v813
  %v4524 = vpop.f32.mrb[0].mxu0
  %v4525 = vadd.f32 %v4462, %v4524
  %v4526 = vpop.f32.mrb[0].mxu0
  %v4527 = vadd.f32 %v4464, %v4526
  %v4528 = vpop.f32.mrb[0].mxu0
  %v4529 = vadd.f32 %v4466, %v4528
  %v4530 = vpop.f32.mrb[0].mxu0
  %v4531 = vadd.f32 %v4468, %v4530
  %4532 = vmatprep.mubr.bf16.mxu0 %v832
  %4533 = vmatmul.mubr.bf16.gmra.mrb[0].mxu0 %v831
  %v4534 = vpop.f32.mrb[0].mxu0
  %v4535 = vadd.f32 %v4472, %v4534
  %v4536 = vpop.f32.mrb[0].mxu0
  %v4537 = vadd.f32 %v4474, %v4536
  %v4538 = vpop.f32.mrb[0].mxu0
  %v4539 = vadd.f32 %v4476, %v4538
  %v4540 = vpop.f32.mrb[0].mxu0
  %v4541 = vadd.f32 %v4478, %v4540
  %4542 = vmatprep.mubr.bf16.mxu0 %v850
  %4543 = vmatmul.mubr.bf16.gmra.mrb[0].mxu0 %v849
  %v4544 = vpop.f32.mrb[0].mxu0
  %v4545 = vadd.f32 %v4482, %v4544
  %v4546 = vpop.f32.mrb[0].mxu0
  %v4547 = vadd.f32 %v4484, %v4546
  %v4548 = vpop.f32.mrb[0].mxu0
  %v4549 = vadd.f32 %v4486, %v4548
  %v4550 = vpop.f32.mrb[0].mxu0
  %v4551 = vadd.f32 %v4488, %v4550
  %4552 = vdwg.mxu0
  %4553 = vmatprep.subr.bf16.mxu0 %v2840
  %4554 = vmatpush1.bf16.msra.mxu0 %v2839
  %4555 = vmatprep.subr.bf16.mxu0 %v2844
  %4556 = vmatpush1.bf16.msra.mxu0 %v2843
  %4557 = vmatprep.subr.bf16.mxu0 %v2848
  %4558 = vmatpush1.bf16.msra.mxu0 %v2847
  %4559 = vmatprep.subr.bf16.mxu0 %v2852
  %4560 = vmatpush1.bf16.msra.mxu0 %v2851
  %4561 = vmatprep.subr.bf16.mxu0 %v2856
  %4562 = vmatpush1.bf16.msra.mxu0 %v2855
  %4563 = vmatprep.subr.bf16.mxu0 %v2860
  %4564 = vmatpush1.bf16.msra.mxu0 %v2859
  %4565 = vmatprep.subr.bf16.mxu0 %v2864
  %4566 = vmatpush1.bf16.msra.mxu0 %v2863
  %4567 = vmatprep.subr.bf16.mxu0 %v2868
  %4568 = vmatpush1.bf16.msra.mxu0 %v2867
  %4569 = vmatprep.subr.bf16.mxu0 %v2872
  %4570 = vmatpush1.bf16.msra.mxu0 %v2871
  %4571 = vmatprep.subr.bf16.mxu0 %v2876
  %4572 = vmatpush1.bf16.msra.mxu0 %v2875
  %4573 = vmatprep.subr.bf16.mxu0 %v2880
  %4574 = vmatpush1.bf16.msra.mxu0 %v2879
  %4575 = vmatprep.subr.bf16.mxu0 %v2884
  %4576 = vmatpush1.bf16.msra.mxu0 %v2883
  %4577 = vmatprep.subr.bf16.mxu0 %v2888
  %4578 = vmatpush1.bf16.msra.mxu0 %v2887
  %4579 = vmatprep.subr.bf16.mxu0 %v2892
  %4580 = vmatpush1.bf16.msra.mxu0 %v2891
  %4581 = vmatprep.subr.bf16.mxu0 %v2896
  %4582 = vmatpush1.bf16.msra.mxu0 %v2895
  %4583 = vmatprep.subr.bf16.mxu0 %v2900
  %4584 = vmatpush1.bf16.msra.mxu0 %v2899
  %4585 = vmatprep.mubr.bf16.mxu0 %v816
  %4586 = vmatmul.mubr.bf16.gmra.mrb[0].mxu0 %v815
  %v4587 = vpop.f32.mrb[0].mxu0
  %v4588 = vadd.f32 %v4525, %v4587
  %v4589 = vpop.f32.mrb[0].mxu0
  %v4590 = vadd.f32 %v4527, %v4589
  %v4591 = vpop.f32.mrb[0].mxu0
  %v4592 = vadd.f32 %v4529, %v4591
  %v4593 = vpop.f32.mrb[0].mxu0
  %v4594 = vadd.f32 %v4531, %v4593
  %4595 = vmatprep.mubr.bf16.mxu0 %v834
  %4596 = vmatmul.mubr.bf16.gmra.mrb[0].mxu0 %v833
  %v4597 = vpop.f32.mrb[0].mxu0
  %v4598 = vadd.f32 %v4535, %v4597
  %v4599 = vpop.f32.mrb[0].mxu0
  %v4600 = vadd.f32 %v4537, %v4599
  %v4601 = vpop.f32.mrb[0].mxu0
  %v4602 = vadd.f32 %v4539, %v4601
  %v4603 = vpop.f32.mrb[0].mxu0
  %v4604 = vadd.f32 %v4541, %v4603
  %4605 = vmatprep.mubr.bf16.mxu0 %v852
  %4606 = vmatmul.mubr.bf16.gmra.mrb[0].mxu0 %v851
  %v4607 = vpop.f32.mrb[0].mxu0
  %v4608 = vadd.f32 %v4545, %v4607
  %v4609 = vpop.f32.mrb[0].mxu0
  %v4610 = vadd.f32 %v4547, %v4609
  %v4611 = vpop.f32.mrb[0].mxu0
  %v4612 = vadd.f32 %v4549, %v4611
  %v4613 = vpop.f32.mrb[0].mxu0
  %v4614 = vadd.f32 %v4551, %v4613
  %4615 = vdwg.mxu0
  %4616 = vmatprep.subr.bf16.mxu0 %v2904
  %4617 = vmatpush1.bf16.msra.mxu0 %v2903
  %4618 = vmatprep.subr.bf16.mxu0 %v2908
  %4619 = vmatpush1.bf16.msra.mxu0 %v2907
  %4620 = vmatprep.subr.bf16.mxu0 %v2912
  %4621 = vmatpush1.bf16.msra.mxu0 %v2911
  %4622 = vmatprep.subr.bf16.mxu0 %v2916
  %4623 = vmatpush1.bf16.msra.mxu0 %v2915
  %4624 = vmatprep.subr.bf16.mxu0 %v2920
  %4625 = vmatpush1.bf16.msra.mxu0 %v2919
  %4626 = vmatprep.subr.bf16.mxu0 %v2924
  %4627 = vmatpush1.bf16.msra.mxu0 %v2923
  %4628 = vmatprep.subr.bf16.mxu0 %v2928
  %4629 = vmatpush1.bf16.msra.mxu0 %v2927
  %4630 = vmatprep.subr.bf16.mxu0 %v2932
  %4631 = vmatpush1.bf16.msra.mxu0 %v2931
  %4632 = vmatprep.subr.bf16.mxu0 %v2936
  %4633 = vmatpush1.bf16.msra.mxu0 %v2935
  %4634 = vmatprep.subr.bf16.mxu0 %v2940
  %4635 = vmatpush1.bf16.msra.mxu0 %v2939
  %4636 = vmatprep.subr.bf16.mxu0 %v2944
  %4637 = vmatpush1.bf16.msra.mxu0 %v2943
  %4638 = vmatprep.subr.bf16.mxu0 %v2948
  %4639 = vmatpush1.bf16.msra.mxu0 %v2947
  %4640 = vmatprep.subr.bf16.mxu0 %v2952
  %4641 = vmatpush1.bf16.msra.mxu0 %v2951
  %4642 = vmatprep.subr.bf16.mxu0 %v2956
  %4643 = vmatpush1.bf16.msra.mxu0 %v2955
  %4644 = vmatprep.subr.bf16.mxu0 %v2960
  %4645 = vmatpush1.bf16.msra.mxu0 %v2959
  %4646 = vmatprep.subr.bf16.mxu0 %v2964
  %4647 = vmatpush1.bf16.msra.mxu0 %v2963
  %4648 = vmatprep.mubr.bf16.mxu0 %v818
  %4649 = vmatmul.mubr.bf16.gmra.mrb[0].mxu0 %v817
  %v4650 = vpop.f32.mrb[0].mxu0
  %v4651 = vadd.f32 %v4588, %v4650
  %v4652 = vpop.f32.mrb[0].mxu0
  %v4653 = vadd.f32 %v4590, %v4652
  %v4654 = vpop.f32.mrb[0].mxu0
  %v4655 = vadd.f32 %v4592, %v4654
  %v4656 = vpop.f32.mrb[0].mxu0
  %v4657 = vadd.f32 %v4594, %v4656
  %4658 = vmatprep.mubr.bf16.mxu0 %v836
  %4659 = vmatmul.mubr.bf16.gmra.mrb[0].mxu0 %v835
  %v4660 = vpop.f32.mrb[0].mxu0
  %v4661 = vadd.f32 %v4598, %v4660
  %v4662 = vpop.f32.mrb[0].mxu0
  %v4663 = vadd.f32 %v4600, %v4662
  %v4664 = vpop.f32.mrb[0].mxu0
  %v4665 = vadd.f32 %v4602, %v4664
  %v4666 = vpop.f32.mrb[0].mxu0
  %v4667 = vadd.f32 %v4604, %v4666
  %4668 = vmatprep.mubr.bf16.mxu0 %v854
  %4669 = vmatmul.mubr.bf16.gmra.mrb[0].mxu0 %v853
  %v4670 = vpop.f32.mrb[0].mxu0
  %v4671 = vadd.f32 %v4608, %v4670
  %v4672 = vpop.f32.mrb[0].mxu0
  %v4673 = vadd.f32 %v4610, %v4672
  %v4674 = vpop.f32.mrb[0].mxu0
  %v4675 = vadd.f32 %v4612, %v4674
  %v4676 = vpop.f32.mrb[0].mxu0
  %v4677 = vadd.f32 %v4614, %v4676
  %4678 = vdwg.mxu0
  %4679 = vmatprep.subr.bf16.mxu0 %v2968
  %4680 = vmatpush1.bf16.msra.mxu0 %v2967
  %4681 = vmatprep.subr.bf16.mxu0 %v2972
  %4682 = vmatpush1.bf16.msra.mxu0 %v2971
  %4683 = vmatprep.subr.bf16.mxu0 %v2976
  %4684 = vmatpush1.bf16.msra.mxu0 %v2975
  %4685 = vmatprep.subr.bf16.mxu0 %v2980
  %4686 = vmatpush1.bf16.msra.mxu0 %v2979
  %4687 = vmatprep.subr.bf16.mxu0 %v2984
  %4688 = vmatpush1.bf16.msra.mxu0 %v2983
  %4689 = vmatprep.subr.bf16.mxu0 %v2988
  %4690 = vmatpush1.bf16.msra.mxu0 %v2987
  %4691 = vmatprep.subr.bf16.mxu0 %v2992
  %4692 = vmatpush1.bf16.msra.mxu0 %v2991
  %4693 = vmatprep.subr.bf16.mxu0 %v2996
  %4694 = vmatpush1.bf16.msra.mxu0 %v2995
  %4695 = vmatprep.subr.bf16.mxu0 %v3000
  %4696 = vmatpush1.bf16.msra.mxu0 %v2999
  %4697 = vmatprep.subr.bf16.mxu0 %v3004
  %4698 = vmatpush1.bf16.msra.mxu0 %v3003
  %4699 = vmatprep.subr.bf16.mxu0 %v3008
  %4700 = vmatpush1.bf16.msra.mxu0 %v3007
  %4701 = vmatprep.subr.bf16.mxu0 %v3012
  %4702 = vmatpush1.bf16.msra.mxu0 %v3011
  %4703 = vmatprep.subr.bf16.mxu0 %v3016
  %4704 = vmatpush1.bf16.msra.mxu0 %v3015
  %4705 = vmatprep.subr.bf16.mxu0 %v3020
  %4706 = vmatpush1.bf16.msra.mxu0 %v3019
  %4707 = vmatprep.subr.bf16.mxu0 %v3024
  %4708 = vmatpush1.bf16.msra.mxu0 %v3023
  %4709 = vmatprep.subr.bf16.mxu0 %v3028
  %4710 = vmatpush1.bf16.msra.mxu0 %v3027
  %4711 = vmatprep.mubr.bf16.mxu0 %v820
  %4712 = vmatmul.mubr.bf16.gmra.mrb[0].mxu0 %v819
  %v4713 = vpop.f32.mrb[0].mxu0
  %v4714 = vadd.f32 %v4651, %v4713
  %v4715 = vpop.f32.mrb[0].mxu0
  %v4716 = vadd.f32 %v4653, %v4715
  %v4717 = vpop.f32.mrb[0].mxu0
  %v4718 = vadd.f32 %v4655, %v4717
  %v4719 = vpop.f32.mrb[0].mxu0
  %v4720 = vadd.f32 %v4657, %v4719
  %4721 = vmatprep.mubr.bf16.mxu0 %v838
  %4722 = vmatmul.mubr.bf16.gmra.mrb[0].mxu0 %v837
  %v4723 = vpop.f32.mrb[0].mxu0
  %v4724 = vadd.f32 %v4661, %v4723
  %v4725 = vpop.f32.mrb[0].mxu0
  %v4726 = vadd.f32 %v4663, %v4725
  %v4727 = vpop.f32.mrb[0].mxu0
  %v4728 = vadd.f32 %v4665, %v4727
  %v4729 = vpop.f32.mrb[0].mxu0
  %v4730 = vadd.f32 %v4667, %v4729
  %4731 = vmatprep.mubr.bf16.mxu0 %v856
  %4732 = vmatmul.mubr.bf16.gmra.mrb[0].mxu0 %v855
  %v4733 = vpop.f32.mrb[0].mxu0
  %v4734 = vadd.f32 %v4671, %v4733
  %v4735 = vpop.f32.mrb[0].mxu0
  %v4736 = vadd.f32 %v4673, %v4735
  %v4737 = vpop.f32.mrb[0].mxu0
  %v4738 = vadd.f32 %v4675, %v4737
  %v4739 = vpop.f32.mrb[0].mxu0
  %v4740 = vadd.f32 %v4677, %v4739
  %4741 = vdwg.mxu0
  %4742 = vmatprep.subr.bf16.mxu0 %v3032
  %4743 = vmatpush1.bf16.msra.mxu0 %v3031
  %4744 = vmatprep.subr.bf16.mxu0 %v3036
  %4745 = vmatpush1.bf16.msra.mxu0 %v3035
  %4746 = vmatprep.subr.bf16.mxu0 %v3040
  %4747 = vmatpush1.bf16.msra.mxu0 %v3039
  %4748 = vmatprep.subr.bf16.mxu0 %v3044
  %4749 = vmatpush1.bf16.msra.mxu0 %v3043
  %4750 = vmatprep.subr.bf16.mxu0 %v3048
  %4751 = vmatpush1.bf16.msra.mxu0 %v3047
  %4752 = vmatprep.subr.bf16.mxu0 %v3052
  %4753 = vmatpush1.bf16.msra.mxu0 %v3051
  %4754 = vmatprep.subr.bf16.mxu0 %v3056
  %4755 = vmatpush1.bf16.msra.mxu0 %v3055
  %4756 = vmatprep.subr.bf16.mxu0 %v3060
  %4757 = vmatpush1.bf16.msra.mxu0 %v3059
  %4758 = vmatprep.subr.bf16.mxu0 %v3064
  %4759 = vmatpush1.bf16.msra.mxu0 %v3063
  %4760 = vmatprep.subr.bf16.mxu0 %v3068
  %4761 = vmatpush1.bf16.msra.mxu0 %v3067
  %4762 = vmatprep.subr.bf16.mxu0 %v3072
  %4763 = vmatpush1.bf16.msra.mxu0 %v3071
  %4764 = vmatprep.subr.bf16.mxu0 %v3076
  %4765 = vmatpush1.bf16.msra.mxu0 %v3075
  %4766 = vmatprep.subr.bf16.mxu0 %v3080
  %4767 = vmatpush1.bf16.msra.mxu0 %v3079
  %4768 = vmatprep.subr.bf16.mxu0 %v3084
  %4769 = vmatpush1.bf16.msra.mxu0 %v3083
  %4770 = vmatprep.subr.bf16.mxu0 %v3088
  %4771 = vmatpush1.bf16.msra.mxu0 %v3087
  %4772 = vmatprep.subr.bf16.mxu0 %v3092
  %4773 = vmatpush1.bf16.msra.mxu0 %v3091
  %4774 = vmatprep.mubr.bf16.mxu0 %v822
  %4775 = vmatmul.mubr.bf16.gmra.mrb[0].mxu0 %v821
  %v4776 = vpop.f32.mrb[0].mxu0
  %v4777 = vadd.f32 %v4714, %v4776
  %v4778 = vpop.f32.mrb[0].mxu0
  %v4779 = vadd.f32 %v4716, %v4778
  %v4780 = vpop.f32.mrb[0].mxu0
  %v4781 = vadd.f32 %v4718, %v4780
  %v4782 = vpop.f32.mrb[0].mxu0
  %v4783 = vadd.f32 %v4720, %v4782
  %4784 = vmatprep.mubr.bf16.mxu0 %v840
  %4785 = vmatmul.mubr.bf16.gmra.mrb[0].mxu0 %v839
  %v4786 = vpop.f32.mrb[0].mxu0
  %v4787 = vadd.f32 %v4724, %v4786
  %v4788 = vpop.f32.mrb[0].mxu0
  %v4789 = vadd.f32 %v4726, %v4788
  %v4790 = vpop.f32.mrb[0].mxu0
  %v4791 = vadd.f32 %v4728, %v4790
  %v4792 = vpop.f32.mrb[0].mxu0
  %v4793 = vadd.f32 %v4730, %v4792
  %4794 = vmatprep.mubr.bf16.mxu0 %v858
  %4795 = vmatmul.mubr.bf16.gmra.mrb[0].mxu0 %v857
  %v4796 = vpop.f32.mrb[0].mxu0
  %v4797 = vadd.f32 %v4734, %v4796
  %v4798 = vpop.f32.mrb[0].mxu0
  %v4799 = vadd.f32 %v4736, %v4798
  %v4800 = vpop.f32.mrb[0].mxu0
  %v4801 = vadd.f32 %v4738, %v4800
  %v4802 = vpop.f32.mrb[0].mxu0
  %v4803 = vadd.f32 %v4740, %v4802
  %4804 = vdwg.mxu0
  %4805 = vmatprep.subr.bf16.mxu0 %v3096
  %4806 = vmatpush1.bf16.msra.mxu0 %v3095
  %4807 = vmatprep.subr.bf16.mxu0 %v3100
  %4808 = vmatpush1.bf16.msra.mxu0 %v3099
  %4809 = vmatprep.subr.bf16.mxu0 %v3104
  %4810 = vmatpush1.bf16.msra.mxu0 %v3103
  %4811 = vmatprep.subr.bf16.mxu0 %v3108
  %4812 = vmatpush1.bf16.msra.mxu0 %v3107
  %4813 = vmatprep.subr.bf16.mxu0 %v3112
  %4814 = vmatpush1.bf16.msra.mxu0 %v3111
  %4815 = vmatprep.subr.bf16.mxu0 %v3116
  %4816 = vmatpush1.bf16.msra.mxu0 %v3115
  %4817 = vmatprep.subr.bf16.mxu0 %v3120
  %4818 = vmatpush1.bf16.msra.mxu0 %v3119
  %4819 = vmatprep.subr.bf16.mxu0 %v3124
  %4820 = vmatpush1.bf16.msra.mxu0 %v3123
  %4821 = vmatprep.subr.bf16.mxu0 %v3128
  %4822 = vmatpush1.bf16.msra.mxu0 %v3127
  %4823 = vmatprep.subr.bf16.mxu0 %v3132
  %4824 = vmatpush1.bf16.msra.mxu0 %v3131
  %4825 = vmatprep.subr.bf16.mxu0 %v3136
  %4826 = vmatpush1.bf16.msra.mxu0 %v3135
  %4827 = vmatprep.subr.bf16.mxu0 %v3140
  %4828 = vmatpush1.bf16.msra.mxu0 %v3139
  %4829 = vmatprep.subr.bf16.mxu0 %v3144
  %4830 = vmatpush1.bf16.msra.mxu0 %v3143
  %4831 = vmatprep.subr.bf16.mxu0 %v3148
  %4832 = vmatpush1.bf16.msra.mxu0 %v3147
  %4833 = vmatprep.subr.bf16.mxu0 %v3152
  %4834 = vmatpush1.bf16.msra.mxu0 %v3151
  %4835 = vmatprep.subr.bf16.mxu0 %v3156
  %4836 = vmatpush1.bf16.msra.mxu0 %v3155
  %4837 = vmatprep.mubr.bf16.mxu0 %v824
  %4838 = vmatmul.mubr.bf16.gmra.mrb[0].mxu0 %v823
  %v4839 = vpop.f32.mrb[0].mxu0
  %v4840 = vadd.f32 %v4777, %v4839
  %v4841 = vpop.f32.mrb[0].mxu0
  %v4842 = vadd.f32 %v4779, %v4841
  %v4843 = vpop.f32.mrb[0].mxu0
  %v4844 = vadd.f32 %v4781, %v4843
  %v4845 = vpop.f32.mrb[0].mxu0
  %v4846 = vadd.f32 %v4783, %v4845
  %4847 = vmatprep.mubr.bf16.mxu0 %v842
  %4848 = vmatmul.mubr.bf16.gmra.mrb[0].mxu0 %v841
  %v4849 = vpop.f32.mrb[0].mxu0
  %v4850 = vadd.f32 %v4787, %v4849
  %v4851 = vpop.f32.mrb[0].mxu0
  %v4852 = vadd.f32 %v4789, %v4851
  %v4853 = vpop.f32.mrb[0].mxu0
  %v4854 = vadd.f32 %v4791, %v4853
  %v4855 = vpop.f32.mrb[0].mxu0
  %v4856 = vadd.f32 %v4793, %v4855
  %4857 = vmatprep.mubr.bf16.mxu0 %v860
  %4858 = vmatmul.mubr.bf16.gmra.mrb[0].mxu0 %v859
  %v4859 = vpop.f32.mrb[0].mxu0
  %v4860 = vadd.f32 %v4797, %v4859
  %v4861 = vpop.f32.mrb[0].mxu0
  %v4862 = vadd.f32 %v4799, %v4861
  %v4863 = vpop.f32.mrb[0].mxu0
  %v4864 = vadd.f32 %v4801, %v4863
  %v4865 = vpop.f32.mrb[0].mxu0
  %v4866 = vadd.f32 %v4803, %v4865
  %4867 = vdwg.mxu0
  %4868 = vmatprep.subr.bf16.mxu0 %v3160
  %4869 = vmatpush1.bf16.msra.mxu0 %v3159
  %4870 = vmatprep.subr.bf16.mxu0 %v3164
  %4871 = vmatpush1.bf16.msra.mxu0 %v3163
  %4872 = vmatprep.subr.bf16.mxu0 %v3168
  %4873 = vmatpush1.bf16.msra.mxu0 %v3167
  %4874 = vmatprep.subr.bf16.mxu0 %v3172
  %4875 = vmatpush1.bf16.msra.mxu0 %v3171
  %4876 = vmatprep.subr.bf16.mxu0 %v3176
  %4877 = vmatpush1.bf16.msra.mxu0 %v3175
  %4878 = vmatprep.subr.bf16.mxu0 %v3180
  %4879 = vmatpush1.bf16.msra.mxu0 %v3179
  %4880 = vmatprep.subr.bf16.mxu0 %v3184
  %4881 = vmatpush1.bf16.msra.mxu0 %v3183
  %4882 = vmatprep.subr.bf16.mxu0 %v3188
  %4883 = vmatpush1.bf16.msra.mxu0 %v3187
  %4884 = vmatprep.subr.bf16.mxu0 %v3192
  %4885 = vmatpush1.bf16.msra.mxu0 %v3191
  %4886 = vmatprep.subr.bf16.mxu0 %v3196
  %4887 = vmatpush1.bf16.msra.mxu0 %v3195
  %4888 = vmatprep.subr.bf16.mxu0 %v3200
  %4889 = vmatpush1.bf16.msra.mxu0 %v3199
  %4890 = vmatprep.subr.bf16.mxu0 %v3204
  %4891 = vmatpush1.bf16.msra.mxu0 %v3203
  %4892 = vmatprep.subr.bf16.mxu0 %v3208
  %4893 = vmatpush1.bf16.msra.mxu0 %v3207
  %4894 = vmatprep.subr.bf16.mxu0 %v3212
  %4895 = vmatpush1.bf16.msra.mxu0 %v3211
  %4896 = vmatprep.subr.bf16.mxu0 %v3216
  %4897 = vmatpush1.bf16.msra.mxu0 %v3215
  %4898 = vmatprep.subr.bf16.mxu0 %v3220
  %4899 = vmatpush1.bf16.msra.mxu0 %v3219
  %4900 = vmatprep.mubr.bf16.mxu0 %v826
  %4901 = vmatmul.mubr.bf16.gmra.mrb[0].mxu0 %v825
  %v4902 = vpop.f32.mrb[0].mxu0
  %v4903 = vadd.f32 %v4840, %v4902
  %v4904 = vpop.f32.mrb[0].mxu0
  %v4905 = vadd.f32 %v4842, %v4904
  %v4906 = vpop.f32.mrb[0].mxu0
  %v4907 = vadd.f32 %v4844, %v4906
  %v4908 = vpop.f32.mrb[0].mxu0
  %v4909 = vadd.f32 %v4846, %v4908
  %4910 = vmatprep.mubr.bf16.mxu0 %v844
  %4911 = vmatmul.mubr.bf16.gmra.mrb[0].mxu0 %v843
  %v4912 = vpop.f32.mrb[0].mxu0
  %v4913 = vadd.f32 %v4850, %v4912
  %v4914 = vpop.f32.mrb[0].mxu0
  %v4915 = vadd.f32 %v4852, %v4914
  %v4916 = vpop.f32.mrb[0].mxu0
  %v4917 = vadd.f32 %v4854, %v4916
  %v4918 = vpop.f32.mrb[0].mxu0
  %v4919 = vadd.f32 %v4856, %v4918
  %4920 = vmatprep.mubr.bf16.mxu0 %v862
  %4921 = vmatmul.mubr.bf16.gmra.mrb[0].mxu0 %v861
  %v4922 = vpop.f32.mrb[0].mxu0
  %v4923 = vadd.f32 %v4860, %v4922
  %v4924 = vpop.f32.mrb[0].mxu0
  %v4925 = vadd.f32 %v4862, %v4924
  %v4926 = vpop.f32.mrb[0].mxu0
  %v4927 = vadd.f32 %v4864, %v4926
  %v4928 = vpop.f32.mrb[0].mxu0
  %v4929 = vadd.f32 %v4866, %v4928
  %4930 = vdwg.mxu0
  %v4931 = vld [vmem:[%s2] sm:$0xf]
  %v4933 = vlaneseq
  %v4934 = vshrl.u32 %v4933, 7
  %v4935 = vsub.s32 0, %v4934
  %v4936 = vrot.slane %v4931, %v4935
  %v4937 = vlaneseq
  %v4938 = vshrl.u32 %v4937, 7
  %v4939 = vsub.s32 1, %v4938
  %v4940 = vrot.slane %v4931, %v4939
  %v4941 = vlaneseq
  %v4942 = vshrl.u32 %v4941, 7
  %v4943 = vsub.s32 2, %v4942
  %v4944 = vrot.slane %v4931, %v4943
  %v4945 = vlaneseq
  %v4946 = vshrl.u32 %v4945, 7
  %v4947 = vsub.s32 3, %v4946
  %v4948 = vrot.slane %v4931, %v4947
  %v4953 = vmul.f32 %v4336, %v4936
  %v4954 = vmul.f32 %v4338, %v4940
  %v4955 = vmul.f32 %v4903, %v4944
  %v4956 = vmul.f32 %v4905, %v4948
  %v4957 = vmul.f32 %v4340, %v4936
  %v4958 = vmul.f32 %v4342, %v4940
  %v4959 = vmul.f32 %v4907, %v4944
  %v4960 = vmul.f32 %v4909, %v4948
  %v4961 = vmul.f32 %v4346, %v4936
  %v4962 = vmul.f32 %v4348, %v4940
  %v4963 = vmul.f32 %v4913, %v4944
  %v4964 = vmul.f32 %v4915, %v4948
  %v4965 = vmul.f32 %v4350, %v4936
  %v4966 = vmul.f32 %v4352, %v4940
  %v4967 = vmul.f32 %v4917, %v4944
  %v4968 = vmul.f32 %v4919, %v4948
  %v4969 = vmul.f32 %v4356, %v4936
  %v4970 = vmul.f32 %v4358, %v4940
  %v4971 = vmul.f32 %v4923, %v4944
  %v4972 = vmul.f32 %v4925, %v4948
  %v4973 = vmul.f32 %v4360, %v4936
  %v4974 = vmul.f32 %v4362, %v4940
  %v4975 = vmul.f32 %v4927, %v4944
  %v4976 = vmul.f32 %v4929, %v4948
  %v4977 = vld [vmem:[%s3] sm:$0xf]
  %v4979 = vlaneseq
  %v4980 = vshrl.u32 %v4979, 7
  %v4981 = vsub.s32 0, %v4980
  %v4982 = vrot.slane %v4977, %v4981
  %v4983 = vlaneseq
  %v4984 = vshrl.u32 %v4983, 7
  %v4985 = vsub.s32 1, %v4984
  %v4986 = vrot.slane %v4977, %v4985
  %v4987 = vlaneseq
  %v4988 = vshrl.u32 %v4987, 7
  %v4989 = vsub.s32 2, %v4988
  %v4990 = vrot.slane %v4977, %v4989
  %v4991 = vlaneseq
  %v4992 = vshrl.u32 %v4991, 7
  %v4993 = vsub.s32 3, %v4992
  %v4994 = vrot.slane %v4977, %v4993
  %v4999 = vadd.f32 %v4953, %v4982
  %v5000 = vadd.f32 %v4954, %v4986
  %v5001 = vadd.f32 %v4955, %v4990
  %v5002 = vadd.f32 %v4956, %v4994
  %v5003 = vadd.f32 %v4957, %v4982
  %v5004 = vadd.f32 %v4958, %v4986
  %v5005 = vadd.f32 %v4959, %v4990
  %v5006 = vadd.f32 %v4960, %v4994
  %v5007 = vadd.f32 %v4961, %v4982
  %v5008 = vadd.f32 %v4962, %v4986
  %v5009 = vadd.f32 %v4963, %v4990
  %v5010 = vadd.f32 %v4964, %v4994
  %v5011 = vadd.f32 %v4965, %v4982
  %v5012 = vadd.f32 %v4966, %v4986
  %v5013 = vadd.f32 %v4967, %v4990
  %v5014 = vadd.f32 %v4968, %v4994
  %v5015 = vadd.f32 %v4969, %v4982
  %v5016 = vadd.f32 %v4970, %v4986
  %v5017 = vadd.f32 %v4971, %v4990
  %v5018 = vadd.f32 %v4972, %v4994
  %v5019 = vadd.f32 %v4973, %v4982
  %v5020 = vadd.f32 %v4974, %v4986
  %v5021 = vadd.f32 %v4975, %v4990
  %v5022 = vadd.f32 %v4976, %v4994
  %v5023 = vmax.f32 %v4999, 0.0
  %v5024 = vmax.f32 %v5000, 0.0
  %v5025 = vmax.f32 %v5001, 0.0
  %v5026 = vmax.f32 %v5002, 0.0
  %v5027 = vmax.f32 %v5003, 0.0
  %v5028 = vmax.f32 %v5004, 0.0
  %v5029 = vmax.f32 %v5005, 0.0
  %v5030 = vmax.f32 %v5006, 0.0
  %v5031 = vmax.f32 %v5007, 0.0
  %v5032 = vmax.f32 %v5008, 0.0
  %v5033 = vmax.f32 %v5009, 0.0
  %v5034 = vmax.f32 %v5010, 0.0
  %v5035 = vmax.f32 %v5011, 0.0
  %v5036 = vmax.f32 %v5012, 0.0
  %v5037 = vmax.f32 %v5013, 0.0
  %v5038 = vmax.f32 %v5014, 0.0
  %v5039 = vmax.f32 %v5015, 0.0
  %v5040 = vmax.f32 %v5016, 0.0
  %v5041 = vmax.f32 %v5017, 0.0
  %v5042 = vmax.f32 %v5018, 0.0
  %v5043 = vmax.f32 %v5019, 0.0
  %v5044 = vmax.f32 %v5020, 0.0
  %v5045 = vmax.f32 %v5021, 0.0
  %v5046 = vmax.f32 %v5022, 0.0
  %v5047 = vpack.c.bf16 %v5027, %v5023
  %v5048 = vpack.c.bf16 %v5028, %v5024
  %v5049 = vpack.c.bf16 %v5029, %v5025
  %v5050 = vpack.c.bf16 %v5030, %v5026
  %v5051 = vpack.c.bf16 %v5035, %v5031
  %v5052 = vpack.c.bf16 %v5036, %v5032
  %v5053 = vpack.c.bf16 %v5037, %v5033
  %v5054 = vpack.c.bf16 %v5038, %v5034
  %v5055 = vpack.c.bf16 %v5043, %v5039
  %v5056 = vpack.c.bf16 %v5044, %v5040
  %v5057 = vpack.c.bf16 %v5045, %v5041
  %v5058 = vpack.c.bf16 %v5046, %v5042
  %v5071 = vunpack.c.l.b16 %v5047
  %v5072 = vunpack.c.l.b16 %v5048
  %v5073 = vunpack.c.l.b16 %v5049
  %v5074 = vunpack.c.l.b16 %v5050
  %v5075 = vunpack.c.h.b16 %v5047
  %v5076 = vunpack.c.h.b16 %v5048
  %v5077 = vunpack.c.h.b16 %v5049
  %v5078 = vunpack.c.h.b16 %v5050
  %v5079 = vunpack.c.l.b16 %v5051
  %v5080 = vunpack.c.l.b16 %v5052
  %v5081 = vunpack.c.l.b16 %v5053
  %v5082 = vunpack.c.l.b16 %v5054
  %v5083 = vunpack.c.h.b16 %v5051
  %v5084 = vunpack.c.h.b16 %v5052
  %v5085 = vunpack.c.h.b16 %v5053
  %v5086 = vunpack.c.h.b16 %v5054
  %v5087 = vunpack.c.l.b16 %v5055
  %v5088 = vunpack.c.l.b16 %v5056
  %v5089 = vunpack.c.l.b16 %v5057
  %v5090 = vunpack.c.l.b16 %v5058
  %v5091 = vunpack.c.h.b16 %v5055
  %v5092 = vunpack.c.h.b16 %v5056
  %v5093 = vunpack.c.h.b16 %v5057
  %v5094 = vunpack.c.h.b16 %v5058
  %v5095 = vpack.c.b16 %v5072, %v5071
  %v5096 = vpack.c.b16 %v5074, %v5073
  %v5097 = vpack.c.b16 %v5076, %v5075
  %v5098 = vpack.c.b16 %v5078, %v5077
  %v5099 = vpack.c.b16 %v5080, %v5079
  %v5100 = vpack.c.b16 %v5082, %v5081
  %v5101 = vpack.c.b16 %v5084, %v5083
  %v5102 = vpack.c.b16 %v5086, %v5085
  %v5103 = vpack.c.b16 %v5088, %v5087
  %v5104 = vpack.c.b16 %v5090, %v5089
  %v5105 = vpack.c.b16 %v5092, %v5091
  %v5106 = vpack.c.b16 %v5094, %v5093
  %5119 = vst [vmem:[%s4] sm:$0xff] %v5095
  %5120 = vst [vmem:[%s4 + $0x8] sm:$0xff] %v5096
  %5121 = vst [vmem:[%s4 + $0x10] sm:$0xff] %v5097
  %5122 = vst [vmem:[%s4 + $0x18] sm:$0xff] %v5098
  %5123 = vst [vmem:[%s4 + $0x20] sm:$0xff] %v5099
  %5124 = vst [vmem:[%s4 + $0x28] sm:$0xff] %v5100
  %5125 = vst [vmem:[%s4 + $0x30] sm:$0xff] %v5101
  %5126 = vst [vmem:[%s4 + $0x38] sm:$0xff] %v5102
  %5127 = vst [vmem:[%s4 + $0x40] sm:$0xff] %v5103
  %5128 = vst [vmem:[%s4 + $0x48] sm:$0xff] %v5104
  %5129 = vst [vmem:[%s4 + $0x50] sm:$0xff] %v5105
  %5130 = vst [vmem:[%s4 + $0x58] sm:$0xff] %v5106
  // Predicated region
  $region18: #{_lambda_.8} parent=0 // pred_check
    _
  $region19: #{_lambda_.8} parent=0 // pred_check_branch
    %5132 = sbr.rel (0) target = $region21
  $region20: #{_lambda_.8} parent=0 // pred_region
    _
  $region21: #{_lambda_.8} parent=0 // pred_fallthru
    _
  // Predicated region
  $region22: #{_lambda_.8} parent=0 // pred_check
    _
  $region23: #{_lambda_.8} parent=0 // pred_check_branch
    %5134 = sbr.rel (0) target = $region25
  $region24: #{_lambda_.8} parent=0 // pred_region
    _
  $region25: #{_lambda_.8} parent=0 // pred_fallthru
    _

// kernel: _lambda_.9
$region0: #{_lambda_.9}
  #allocation0 [shape = 'u32[]', space=smem, size = 0x4, offset = 0x4, fixed_abs, tag = 'smem constant byte address 0x4 - core index']
  #allocation1 [shape = 'u32[144,128]{1,0:T(1,128)}', space=vmem, size = 0x12000, scoped, tag = 'internal scratch']
  %s0 = inlined_call_operand.vmem [shape: bf16[16,2048], index: 0, kind: input, shape index: {}]
  %s1 = inlined_call_operand.vmem [shape: bf16[2048,256], index: 1, kind: input, shape index: {}]
  %s2 = inlined_call_operand.vmem [shape: f32[1,256], index: 2, kind: input, shape index: {}]
  %s3 = inlined_call_operand.vmem [shape: f32[1,256], index: 3, kind: input, shape index: {}]
  %s4 = inlined_call_operand.vmem [shape: bf16[256,256], index: 4, kind: input, shape index: {}]
  %s5 = inlined_call_operand.vmem [shape: f32[1,256], index: 5, kind: input, shape index: {}]
  %s6 = inlined_call_operand.vmem [shape: f32[1,256], index: 6, kind: input, shape index: {}]
  %s7 = inlined_call_operand.vmem [shape: bf16[256,128], index: 7, kind: input, shape index: {}]
  %s8 = inlined_call_operand.vmem [shape: f32[1,128], index: 8, kind: input, shape index: {}]
  %s9 = inlined_call_operand.vmem [shape: f32[1,128], index: 9, kind: input, shape index: {}]
  %s10 = inlined_call_operand.vmem [shape: f32[16,128], index: 10, kind: output, shape index: {}]
  %s11 = sld [smem:[#allocation0]]
  $region50: #{_lambda_.9} parent=0
    _
  %s13 = ssub.s32 1, %s11
  %s14 = scalar_select 0, %s13, %s11
  // Predicated region
  $region2: #{_lambda_.9} parent=0 // pred_check
    _
  $region3: #{_lambda_.9} parent=0 // pred_check_branch
    %16 = sbr.rel (0) target = $region5
  $region4: #{_lambda_.9} parent=0 // pred_region
    _
  $region5: #{_lambda_.9} parent=0 // pred_fallthru
    _
  // Predicated region
  $region6: #{_lambda_.9} parent=0 // pred_check
    _
  $region7: #{_lambda_.9} parent=0 // pred_check_branch
    %18 = sbr.rel (0) target = $region9
  $region8: #{_lambda_.9} parent=0 // pred_region
    _
  $region9: #{_lambda_.9} parent=0 // pred_fallthru
    _
  // Predicated region
  $region10: #{_lambda_.9} parent=0 // pred_check
    _
  $region11: #{_lambda_.9} parent=0 // pred_check_branch
    %20 = sbr.rel (0) target = $region13
  $region12: #{_lambda_.9} parent=0 // pred_region
    _
  $region13: #{_lambda_.9} parent=0 // pred_fallthru
    _
  // Predicated region
  $region14: #{_lambda_.9} parent=0 // pred_check
    _
  $region15: #{_lambda_.9} parent=0 // pred_check_branch
    %22 = sbr.rel (0) target = $region17
  $region16: #{_lambda_.9} parent=0 // pred_region
    _
  $region17: #{_lambda_.9} parent=0 // pred_fallthru
    _
  // Predicated region
  $region18: #{_lambda_.9} parent=0 // pred_check
    _
  $region19: #{_lambda_.9} parent=0 // pred_check_branch
    %24 = sbr.rel (0) target = $region21
  $region20: #{_lambda_.9} parent=0 // pred_region
    _
  $region21: #{_lambda_.9} parent=0 // pred_fallthru
    _
  // Predicated region
  $region22: #{_lambda_.9} parent=0 // pred_check
    _
  $region23: #{_lambda_.9} parent=0 // pred_check_branch
    %26 = sbr.rel (0) target = $region25
  $region24: #{_lambda_.9} parent=0 // pred_region
    _
  $region25: #{_lambda_.9} parent=0 // pred_fallthru
    _
  // Predicated region
  $region26: #{_lambda_.9} parent=0 // pred_check
    _
  $region27: #{_lambda_.9} parent=0 // pred_check_branch
    %28 = sbr.rel (0) target = $region29
  $region28: #{_lambda_.9} parent=0 // pred_region
    _
  $region29: #{_lambda_.9} parent=0 // pred_fallthru
    _
  // Predicated region
  $region30: #{_lambda_.9} parent=0 // pred_check
    _
  $region31: #{_lambda_.9} parent=0 // pred_check_branch
    %30 = sbr.rel (0) target = $region33
  $region32: #{_lambda_.9} parent=0 // pred_region
    _
  $region33: #{_lambda_.9} parent=0 // pred_fallthru
    _
  // Predicated region
  $region34: #{_lambda_.9} parent=0 // pred_check
    _
  $region35: #{_lambda_.9} parent=0 // pred_check_branch
    %32 = sbr.rel (0) target = $region37
  $region36: #{_lambda_.9} parent=0 // pred_region
    _
  $region37: #{_lambda_.9} parent=0 // pred_fallthru
    _
  // Predicated region
  $region38: #{_lambda_.9} parent=0 // pred_check
    _
  $region39: #{_lambda_.9} parent=0 // pred_check_branch
    %34 = sbr.rel (0) target = $region41
  $region40: #{_lambda_.9} parent=0 // pred_region
    _
  $region41: #{_lambda_.9} parent=0 // pred_fallthru
    _
  %v36 = vld [vmem:[%s0] sm:$0xff]
  %v37 = vld [vmem:[%s0 + $0x8] sm:$0xff]
  %v38 = vld [vmem:[%s0 + $0x10] sm:$0xff]
  %v39 = vld [vmem:[%s0 + $0x18] sm:$0xff]
  %v40 = vld [vmem:[%s0 + $0x20] sm:$0xff]
  %v41 = vld [vmem:[%s0 + $0x28] sm:$0xff]
  %v42 = vld [vmem:[%s0 + $0x30] sm:$0xff]
  %v43 = vld [vmem:[%s0 + $0x38] sm:$0xff]
  %v44 = vld [vmem:[%s0 + $0x40] sm:$0xff]
  %v45 = vld [vmem:[%s0 + $0x48] sm:$0xff]
  %v46 = vld [vmem:[%s0 + $0x50] sm:$0xff]
  %v47 = vld [vmem:[%s0 + $0x58] sm:$0xff]
  %v48 = vld [vmem:[%s0 + $0x60] sm:$0xff]
  %v49 = vld [vmem:[%s0 + $0x68] sm:$0xff]
  %v50 = vld [vmem:[%s0 + $0x70] sm:$0xff]
  %v51 = vld [vmem:[%s0 + $0x78] sm:$0xff]
  %v52 = vld [vmem:[%s1] sm:$0xff]
  %v53 = vld [vmem:[%s1 + $0x8] sm:$0xff]
  %v54 = vld [vmem:[%s1 + $0x10] sm:$0xff]
  %v55 = vld [vmem:[%s1 + $0x18] sm:$0xff]
  %v56 = vld [vmem:[%s1 + $0x20] sm:$0xff]
  %v57 = vld [vmem:[%s1 + $0x28] sm:$0xff]
  %v58 = vld [vmem:[%s1 + $0x30] sm:$0xff]
  %v59 = vld [vmem:[%s1 + $0x38] sm:$0xff]
  %v60 = vld [vmem:[%s1 + $0x40] sm:$0xff]
  %v61 = vld [vmem:[%s1 + $0x48] sm:$0xff]
  %v62 = vld [vmem:[%s1 + $0x50] sm:$0xff]
  %v63 = vld [vmem:[%s1 + $0x58] sm:$0xff]
  %v64 = vld [vmem:[%s1 + $0x60] sm:$0xff]
  %v65 = vld [vmem:[%s1 + $0x68] sm:$0xff]
  %v66 = vld [vmem:[%s1 + $0x70] sm:$0xff]
  %v67 = vld [vmem:[%s1 + $0x78] sm:$0xff]
  %v68 = vld [vmem:[%s1 + $0x80] sm:$0xff]
  %v69 = vld [vmem:[%s1 + $0x88] sm:$0xff]
  %v70 = vld [vmem:[%s1 + $0x90] sm:$0xff]
  %v71 = vld [vmem:[%s1 + $0x98] sm:$0xff]
  %v72 = vld [vmem:[%s1 + $0xa0] sm:$0xff]
  %v73 = vld [vmem:[%s1 + $0xa8] sm:$0xff]
  %v74 = vld [vmem:[%s1 + $0xb0] sm:$0xff]
  %v75 = vld [vmem:[%s1 + $0xb8] sm:$0xff]
  %v76 = vld [vmem:[%s1 + $0xc0] sm:$0xff]
  %v77 = vld [vmem:[%s1 + $0xc8] sm:$0xff]
  %v78 = vld [vmem:[%s1 + $0xd0] sm:$0xff]
  %v79 = vld [vmem:[%s1 + $0xd8] sm:$0xff]
  %v80 = vld [vmem:[%s1 + $0xe0] sm:$0xff]
  %v81 = vld [vmem:[%s1 + $0xe8] sm:$0xff]
  %v82 = vld [vmem:[%s1 + $0xf0] sm:$0xff]
  %v83 = vld [vmem:[%s1 + $0xf8] sm:$0xff]
  %v84 = vld [vmem:[%s1 + $0x100] sm:$0xff]
  %v85 = vld [vmem:[%s1 + $0x108] sm:$0xff]
  %v86 = vld [vmem:[%s1 + $0x110] sm:$0xff]
  %v87 = vld [vmem:[%s1 + $0x118] sm:$0xff]
  %v88 = vld [vmem:[%s1 + $0x120] sm:$0xff]
  %v89 = vld [vmem:[%s1 + $0x128] sm:$0xff]
  %v90 = vld [vmem:[%s1 + $0x130] sm:$0xff]
  %v91 = vld [vmem:[%s1 + $0x138] sm:$0xff]
  %v92 = vld [vmem:[%s1 + $0x140] sm:$0xff]
  %v93 = vld [vmem:[%s1 + $0x148] sm:$0xff]
  %v94 = vld [vmem:[%s1 + $0x150] sm:$0xff]
  %v95 = vld [vmem:[%s1 + $0x158] sm:$0xff]
  %v96 = vld [vmem:[%s1 + $0x160] sm:$0xff]
  %v97 = vld [vmem:[%s1 + $0x168] sm:$0xff]
  %v98 = vld [vmem:[%s1 + $0x170] sm:$0xff]
  %v99 = vld [vmem:[%s1 + $0x178] sm:$0xff]
  %v100 = vld [vmem:[%s1 + $0x180] sm:$0xff]
  %v101 = vld [vmem:[%s1 + $0x188] sm:$0xff]
  %v102 = vld [vmem:[%s1 + $0x190] sm:$0xff]
  %v103 = vld [vmem:[%s1 + $0x198] sm:$0xff]
  %v104 = vld [vmem:[%s1 + $0x1a0] sm:$0xff]
  %v105 = vld [vmem:[%s1 + $0x1a8] sm:$0xff]
  %v106 = vld [vmem:[%s1 + $0x1b0] sm:$0xff]
  %v107 = vld [vmem:[%s1 + $0x1b8] sm:$0xff]
  %v108 = vld [vmem:[%s1 + $0x1c0] sm:$0xff]
  %v109 = vld [vmem:[%s1 + $0x1c8] sm:$0xff]
  %v110 = vld [vmem:[%s1 + $0x1d0] sm:$0xff]
  %v111 = vld [vmem:[%s1 + $0x1d8] sm:$0xff]
  %v112 = vld [vmem:[%s1 + $0x1e0] sm:$0xff]
  %v113 = vld [vmem:[%s1 + $0x1e8] sm:$0xff]
  %v114 = vld [vmem:[%s1 + $0x1f0] sm:$0xff]
  %v115 = vld [vmem:[%s1 + $0x1f8] sm:$0xff]
  %v116 = vld [vmem:[%s1 + $0x200] sm:$0xff]
  %v117 = vld [vmem:[%s1 + $0x208] sm:$0xff]
  %v118 = vld [vmem:[%s1 + $0x210] sm:$0xff]
  %v119 = vld [vmem:[%s1 + $0x218] sm:$0xff]
  %v120 = vld [vmem:[%s1 + $0x220] sm:$0xff]
  %v121 = vld [vmem:[%s1 + $0x228] sm:$0xff]
  %v122 = vld [vmem:[%s1 + $0x230] sm:$0xff]
  %v123 = vld [vmem:[%s1 + $0x238] sm:$0xff]
  %v124 = vld [vmem:[%s1 + $0x240] sm:$0xff]
  %v125 = vld [vmem:[%s1 + $0x248] sm:$0xff]
  %v126 = vld [vmem:[%s1 + $0x250] sm:$0xff]
  %v127 = vld [vmem:[%s1 + $0x258] sm:$0xff]
  %v128 = vld [vmem:[%s1 + $0x260] sm:$0xff]
  %v129 = vld [vmem:[%s1 + $0x268] sm:$0xff]
  %v130 = vld [vmem:[%s1 + $0x270] sm:$0xff]
  %v131 = vld [vmem:[%s1 + $0x278] sm:$0xff]
  %v132 = vld [vmem:[%s1 + $0x280] sm:$0xff]
  %v133 = vld [vmem:[%s1 + $0x288] sm:$0xff]
  %v134 = vld [vmem:[%s1 + $0x290] sm:$0xff]
  %v135 = vld [vmem:[%s1 + $0x298] sm:$0xff]
  %v136 = vld [vmem:[%s1 + $0x2a0] sm:$0xff]
  %v137 = vld [vmem:[%s1 + $0x2a8] sm:$0xff]
  %v138 = vld [vmem:[%s1 + $0x2b0] sm:$0xff]
  %v139 = vld [vmem:[%s1 + $0x2b8] sm:$0xff]
  %v140 = vld [vmem:[%s1 + $0x2c0] sm:$0xff]
  %v141 = vld [vmem:[%s1 + $0x2c8] sm:$0xff]
  %v142 = vld [vmem:[%s1 + $0x2d0] sm:$0xff]
  %v143 = vld [vmem:[%s1 + $0x2d8] sm:$0xff]
  %v144 = vld [vmem:[%s1 + $0x2e0] sm:$0xff]
  %v145 = vld [vmem:[%s1 + $0x2e8] sm:$0xff]
  %v146 = vld [vmem:[%s1 + $0x2f0] sm:$0xff]
  %v147 = vld [vmem:[%s1 + $0x2f8] sm:$0xff]
  %v148 = vld [vmem:[%s1 + $0x300] sm:$0xff]
  %v149 = vld [vmem:[%s1 + $0x308] sm:$0xff]
  %v150 = vld [vmem:[%s1 + $0x310] sm:$0xff]
  %v151 = vld [vmem:[%s1 + $0x318] sm:$0xff]
  %v152 = vld [vmem:[%s1 + $0x320] sm:$0xff]
  %v153 = vld [vmem:[%s1 + $0x328] sm:$0xff]
  %v154 = vld [vmem:[%s1 + $0x330] sm:$0xff]
  %v155 = vld [vmem:[%s1 + $0x338] sm:$0xff]
  %v156 = vld [vmem:[%s1 + $0x340] sm:$0xff]
  %v157 = vld [vmem:[%s1 + $0x348] sm:$0xff]
  %v158 = vld [vmem:[%s1 + $0x350] sm:$0xff]
  %v159 = vld [vmem:[%s1 + $0x358] sm:$0xff]
  %v160 = vld [vmem:[%s1 + $0x360] sm:$0xff]
  %v161 = vld [vmem:[%s1 + $0x368] sm:$0xff]
  %v162 = vld [vmem:[%s1 + $0x370] sm:$0xff]
  %v163 = vld [vmem:[%s1 + $0x378] sm:$0xff]
  %v164 = vld [vmem:[%s1 + $0x380] sm:$0xff]
  %v165 = vld [vmem:[%s1 + $0x388] sm:$0xff]
  %v166 = vld [vmem:[%s1 + $0x390] sm:$0xff]
  %v167 = vld [vmem:[%s1 + $0x398] sm:$0xff]
  %v168 = vld [vmem:[%s1 + $0x3a0] sm:$0xff]
  %v169 = vld [vmem:[%s1 + $0x3a8] sm:$0xff]
  %v170 = vld [vmem:[%s1 + $0x3b0] sm:$0xff]
  %v171 = vld [vmem:[%s1 + $0x3b8] sm:$0xff]
  %v172 = vld [vmem:[%s1 + $0x3c0] sm:$0xff]
  %v173 = vld [vmem:[%s1 + $0x3c8] sm:$0xff]
  %v174 = vld [vmem:[%s1 + $0x3d0] sm:$0xff]
  %v175 = vld [vmem:[%s1 + $0x3d8] sm:$0xff]
  %v176 = vld [vmem:[%s1 + $0x3e0] sm:$0xff]
  %v177 = vld [vmem:[%s1 + $0x3e8] sm:$0xff]
  %v178 = vld [vmem:[%s1 + $0x3f0] sm:$0xff]
  %v179 = vld [vmem:[%s1 + $0x3f8] sm:$0xff]
  %v180 = vld [vmem:[%s1 + $0x400] sm:$0xff]
  %v181 = vld [vmem:[%s1 + $0x408] sm:$0xff]
  %v182 = vld [vmem:[%s1 + $0x410] sm:$0xff]
  %v183 = vld [vmem:[%s1 + $0x418] sm:$0xff]
  %v184 = vld [vmem:[%s1 + $0x420] sm:$0xff]
  %v185 = vld [vmem:[%s1 + $0x428] sm:$0xff]
  %v186 = vld [vmem:[%s1 + $0x430] sm:$0xff]
  %v187 = vld [vmem:[%s1 + $0x438] sm:$0xff]
  %v188 = vld [vmem:[%s1 + $0x440] sm:$0xff]
  %v189 = vld [vmem:[%s1 + $0x448] sm:$0xff]
  %v190 = vld [vmem:[%s1 + $0x450] sm:$0xff]
  %v191 = vld [vmem:[%s1 + $0x458] sm:$0xff]
  %v192 = vld [vmem:[%s1 + $0x460] sm:$0xff]
  %v193 = vld [vmem:[%s1 + $0x468] sm:$0xff]
  %v194 = vld [vmem:[%s1 + $0x470] sm:$0xff]
  %v195 = vld [vmem:[%s1 + $0x478] sm:$0xff]
  %v196 = vld [vmem:[%s1 + $0x480] sm:$0xff]
  %v197 = vld [vmem:[%s1 + $0x488] sm:$0xff]
  %v198 = vld [vmem:[%s1 + $0x490] sm:$0xff]
  %v199 = vld [vmem:[%s1 + $0x498] sm:$0xff]
  %v200 = vld [vmem:[%s1 + $0x4a0] sm:$0xff]
  %v201 = vld [vmem:[%s1 + $0x4a8] sm:$0xff]
  %v202 = vld [vmem:[%s1 + $0x4b0] sm:$0xff]
  %v203 = vld [vmem:[%s1 + $0x4b8] sm:$0xff]
  %v204 = vld [vmem:[%s1 + $0x4c0] sm:$0xff]
  %v205 = vld [vmem:[%s1 + $0x4c8] sm:$0xff]
  %v206 = vld [vmem:[%s1 + $0x4d0] sm:$0xff]
  %v207 = vld [vmem:[%s1 + $0x4d8] sm:$0xff]
  %v208 = vld [vmem:[%s1 + $0x4e0] sm:$0xff]
  %v209 = vld [vmem:[%s1 + $0x4e8] sm:$0xff]
  %v210 = vld [vmem:[%s1 + $0x4f0] sm:$0xff]
  %v211 = vld [vmem:[%s1 + $0x4f8] sm:$0xff]
  %v212 = vld [vmem:[%s1 + $0x500] sm:$0xff]
  %v213 = vld [vmem:[%s1 + $0x508] sm:$0xff]
  %v214 = vld [vmem:[%s1 + $0x510] sm:$0xff]
  %v215 = vld [vmem:[%s1 + $0x518] sm:$0xff]
  %v216 = vld [vmem:[%s1 + $0x520] sm:$0xff]
  %v217 = vld [vmem:[%s1 + $0x528] sm:$0xff]
  %v218 = vld [vmem:[%s1 + $0x530] sm:$0xff]
  %v219 = vld [vmem:[%s1 + $0x538] sm:$0xff]
  %v220 = vld [vmem:[%s1 + $0x540] sm:$0xff]
  %v221 = vld [vmem:[%s1 + $0x548] sm:$0xff]
  %v222 = vld [vmem:[%s1 + $0x550] sm:$0xff]
  %v223 = vld [vmem:[%s1 + $0x558] sm:$0xff]
  %v224 = vld [vmem:[%s1 + $0x560] sm:$0xff]
  %v225 = vld [vmem:[%s1 + $0x568] sm:$0xff]
  %v226 = vld [vmem:[%s1 + $0x570] sm:$0xff]
  %v227 = vld [vmem:[%s1 + $0x578] sm:$0xff]
  %v228 = vld [vmem:[%s1 + $0x580] sm:$0xff]
  %v229 = vld [vmem:[%s1 + $0x588] sm:$0xff]
  %v230 = vld [vmem:[%s1 + $0x590] sm:$0xff]
  %v231 = vld [vmem:[%s1 + $0x598] sm:$0xff]
  %v232 = vld [vmem:[%s1 + $0x5a0] sm:$0xff]
  %v233 = vld [vmem:[%s1 + $0x5a8] sm:$0xff]
  %v234 = vld [vmem:[%s1 + $0x5b0] sm:$0xff]
  %v235 = vld [vmem:[%s1 + $0x5b8] sm:$0xff]
  %v236 = vld [vmem:[%s1 + $0x5c0] sm:$0xff]
  %v237 = vld [vmem:[%s1 + $0x5c8] sm:$0xff]
  %v238 = vld [vmem:[%s1 + $0x5d0] sm:$0xff]
  %v239 = vld [vmem:[%s1 + $0x5d8] sm:$0xff]
  %v240 = vld [vmem:[%s1 + $0x5e0] sm:$0xff]
  %v241 = vld [vmem:[%s1 + $0x5e8] sm:$0xff]
  %v242 = vld [vmem:[%s1 + $0x5f0] sm:$0xff]
  %v243 = vld [vmem:[%s1 + $0x5f8] sm:$0xff]
  %v244 = vld [vmem:[%s1 + $0x600] sm:$0xff]
  %v245 = vld [vmem:[%s1 + $0x608] sm:$0xff]
  %v246 = vld [vmem:[%s1 + $0x610] sm:$0xff]
  %v247 = vld [vmem:[%s1 + $0x618] sm:$0xff]
  %v248 = vld [vmem:[%s1 + $0x620] sm:$0xff]
  %v249 = vld [vmem:[%s1 + $0x628] sm:$0xff]
  %v250 = vld [vmem:[%s1 + $0x630] sm:$0xff]
  %v251 = vld [vmem:[%s1 + $0x638] sm:$0xff]
  %v252 = vld [vmem:[%s1 + $0x640] sm:$0xff]
  %v253 = vld [vmem:[%s1 + $0x648] sm:$0xff]
  %v254 = vld [vmem:[%s1 + $0x650] sm:$0xff]
  %v255 = vld [vmem:[%s1 + $0x658] sm:$0xff]
  %v256 = vld [vmem:[%s1 + $0x660] sm:$0xff]
  %v257 = vld [vmem:[%s1 + $0x668] sm:$0xff]
  %v258 = vld [vmem:[%s1 + $0x670] sm:$0xff]
  %v259 = vld [vmem:[%s1 + $0x678] sm:$0xff]
  %v260 = vld [vmem:[%s1 + $0x680] sm:$0xff]
  %v261 = vld [vmem:[%s1 + $0x688] sm:$0xff]
  %v262 = vld [vmem:[%s1 + $0x690] sm:$0xff]
  %v263 = vld [vmem:[%s1 + $0x698] sm:$0xff]
  %v264 = vld [vmem:[%s1 + $0x6a0] sm:$0xff]
  %v265 = vld [vmem:[%s1 + $0x6a8] sm:$0xff]
  %v266 = vld [vmem:[%s1 + $0x6b0] sm:$0xff]
  %v267 = vld [vmem:[%s1 + $0x6b8] sm:$0xff]
  %v268 = vld [vmem:[%s1 + $0x6c0] sm:$0xff]
  %v269 = vld [vmem:[%s1 + $0x6c8] sm:$0xff]
  %v270 = vld [vmem:[%s1 + $0x6d0] sm:$0xff]
  %v271 = vld [vmem:[%s1 + $0x6d8] sm:$0xff]
  %v272 = vld [vmem:[%s1 + $0x6e0] sm:$0xff]
  %v273 = vld [vmem:[%s1 + $0x6e8] sm:$0xff]
  %v274 = vld [vmem:[%s1 + $0x6f0] sm:$0xff]
  %v275 = vld [vmem:[%s1 + $0x6f8] sm:$0xff]
  %v276 = vld [vmem:[%s1 + $0x700] sm:$0xff]
  %v277 = vld [vmem:[%s1 + $0x708] sm:$0xff]
  %v278 = vld [vmem:[%s1 + $0x710] sm:$0xff]
  %v279 = vld [vmem:[%s1 + $0x718] sm:$0xff]
  %v280 = vld [vmem:[%s1 + $0x720] sm:$0xff]
  %v281 = vld [vmem:[%s1 + $0x728] sm:$0xff]
  %v282 = vld [vmem:[%s1 + $0x730] sm:$0xff]
  %v283 = vld [vmem:[%s1 + $0x738] sm:$0xff]
  %v284 = vld [vmem:[%s1 + $0x740] sm:$0xff]
  %v285 = vld [vmem:[%s1 + $0x748] sm:$0xff]
  %v286 = vld [vmem:[%s1 + $0x750] sm:$0xff]
  %v287 = vld [vmem:[%s1 + $0x758] sm:$0xff]
  %v288 = vld [vmem:[%s1 + $0x760] sm:$0xff]
  %v289 = vld [vmem:[%s1 + $0x768] sm:$0xff]
  %v290 = vld [vmem:[%s1 + $0x770] sm:$0xff]
  %v291 = vld [vmem:[%s1 + $0x778] sm:$0xff]
  %v292 = vld [vmem:[%s1 + $0x780] sm:$0xff]
  %v293 = vld [vmem:[%s1 + $0x788] sm:$0xff]
  %v294 = vld [vmem:[%s1 + $0x790] sm:$0xff]
  %v295 = vld [vmem:[%s1 + $0x798] sm:$0xff]
  %v296 = vld [vmem:[%s1 + $0x7a0] sm:$0xff]
  %v297 = vld [vmem:[%s1 + $0x7a8] sm:$0xff]
  %v298 = vld [vmem:[%s1 + $0x7b0] sm:$0xff]
  %v299 = vld [vmem:[%s1 + $0x7b8] sm:$0xff]
  %v300 = vld [vmem:[%s1 + $0x7c0] sm:$0xff]
  %v301 = vld [vmem:[%s1 + $0x7c8] sm:$0xff]
  %v302 = vld [vmem:[%s1 + $0x7d0] sm:$0xff]
  %v303 = vld [vmem:[%s1 + $0x7d8] sm:$0xff]
  %v304 = vld [vmem:[%s1 + $0x7e0] sm:$0xff]
  %v305 = vld [vmem:[%s1 + $0x7e8] sm:$0xff]
  %v306 = vld [vmem:[%s1 + $0x7f0] sm:$0xff]
  %v307 = vld [vmem:[%s1 + $0x7f8] sm:$0xff]
  %v324 = vunpack.c.l.b16 %v36
  %v325 = vunpack.c.h.b16 %v36
  %v326 = vunpack.c.l.b16 %v37
  %v327 = vunpack.c.h.b16 %v37
  %v328 = vunpack.c.l.b16 %v38
  %v329 = vunpack.c.h.b16 %v38
  %v330 = vunpack.c.l.b16 %v39
  %v331 = vunpack.c.h.b16 %v39
  %v332 = vunpack.c.l.b16 %v40
  %v333 = vunpack.c.h.b16 %v40
  %v334 = vunpack.c.l.b16 %v41
  %v335 = vunpack.c.h.b16 %v41
  %v336 = vunpack.c.l.b16 %v42
  %v337 = vunpack.c.h.b16 %v42
  %v338 = vunpack.c.l.b16 %v43
  %v339 = vunpack.c.h.b16 %v43
  %v340 = vunpack.c.l.b16 %v44
  %v341 = vunpack.c.h.b16 %v44
  %v342 = vunpack.c.l.b16 %v45
  %v343 = vunpack.c.h.b16 %v45
  %v344 = vunpack.c.l.b16 %v46
  %v345 = vunpack.c.h.b16 %v46
  %v346 = vunpack.c.l.b16 %v47
  %v347 = vunpack.c.h.b16 %v47
  %v348 = vunpack.c.l.b16 %v48
  %v349 = vunpack.c.h.b16 %v48
  %v350 = vunpack.c.l.b16 %v49
  %v351 = vunpack.c.h.b16 %v49
  %v352 = vunpack.c.l.b16 %v50
  %v353 = vunpack.c.h.b16 %v50
  %v354 = vunpack.c.l.b16 %v51
  %v355 = vunpack.c.h.b16 %v51
  %v356 = vpack.c.b16 %v340, %v324
  %v357 = vpack.c.b16 %v341, %v325
  %v358 = vpack.c.b16 %v342, %v326
  %v359 = vpack.c.b16 %v343, %v327
  %v360 = vpack.c.b16 %v344, %v328
  %v361 = vpack.c.b16 %v345, %v329
  %v362 = vpack.c.b16 %v346, %v330
  %v363 = vpack.c.b16 %v347, %v331
  %v364 = vpack.c.b16 %v348, %v332
  %v365 = vpack.c.b16 %v349, %v333
  %v366 = vpack.c.b16 %v350, %v334
  %v367 = vpack.c.b16 %v351, %v335
  %v368 = vpack.c.b16 %v352, %v336
  %v369 = vpack.c.b16 %v353, %v337
  %v370 = vpack.c.b16 %v354, %v338
  %v371 = vpack.c.b16 %v355, %v339
  %v644 = vunpack.c.l.b16 %v52
  %v645 = vunpack.c.h.b16 %v52
  %v646 = vunpack.c.l.b16 %v53
  %v647 = vunpack.c.h.b16 %v53
  %v648 = vunpack.c.l.b16 %v54
  %v649 = vunpack.c.h.b16 %v54
  %v650 = vunpack.c.l.b16 %v55
  %v651 = vunpack.c.h.b16 %v55
  %v652 = vunpack.c.l.b16 %v56
  %v653 = vunpack.c.h.b16 %v56
  %v654 = vunpack.c.l.b16 %v57
  %v655 = vunpack.c.h.b16 %v57
  %v656 = vunpack.c.l.b16 %v58
  %v657 = vunpack.c.h.b16 %v58
  %v658 = vunpack.c.l.b16 %v59
  %v659 = vunpack.c.h.b16 %v59
  %v660 = vunpack.c.l.b16 %v60
  %v661 = vunpack.c.h.b16 %v60
  %v662 = vunpack.c.l.b16 %v61
  %v663 = vunpack.c.h.b16 %v61
  %v664 = vunpack.c.l.b16 %v62
  %v665 = vunpack.c.h.b16 %v62
  %v666 = vunpack.c.l.b16 %v63
  %v667 = vunpack.c.h.b16 %v63
  %v668 = vunpack.c.l.b16 %v64
  %v669 = vunpack.c.h.b16 %v64
  %v670 = vunpack.c.l.b16 %v65
  %v671 = vunpack.c.h.b16 %v65
  %v672 = vunpack.c.l.b16 %v66
  %v673 = vunpack.c.h.b16 %v66
  %v674 = vunpack.c.l.b16 %v67
  %v675 = vunpack.c.h.b16 %v67
  %v676 = vunpack.c.l.b16 %v68
  %v677 = vunpack.c.h.b16 %v68
  %v678 = vunpack.c.l.b16 %v69
  %v679 = vunpack.c.h.b16 %v69
  %v680 = vunpack.c.l.b16 %v70
  %v681 = vunpack.c.h.b16 %v70
  %v682 = vunpack.c.l.b16 %v71
  %v683 = vunpack.c.h.b16 %v71
  %v684 = vunpack.c.l.b16 %v72
  %v685 = vunpack.c.h.b16 %v72
  %v686 = vunpack.c.l.b16 %v73
  %v687 = vunpack.c.h.b16 %v73
  %v688 = vunpack.c.l.b16 %v74
  %v689 = vunpack.c.h.b16 %v74
  %v690 = vunpack.c.l.b16 %v75
  %v691 = vunpack.c.h.b16 %v75
  %v692 = vunpack.c.l.b16 %v76
  %v693 = vunpack.c.h.b16 %v76
  %v694 = vunpack.c.l.b16 %v77
  %v695 = vunpack.c.h.b16 %v77
  %v696 = vunpack.c.l.b16 %v78
  %v697 = vunpack.c.h.b16 %v78
  %v698 = vunpack.c.l.b16 %v79
  %v699 = vunpack.c.h.b16 %v79
  %v700 = vunpack.c.l.b16 %v80
  %v701 = vunpack.c.h.b16 %v80
  %v702 = vunpack.c.l.b16 %v81
  %v703 = vunpack.c.h.b16 %v81
  %v704 = vunpack.c.l.b16 %v82
  %v705 = vunpack.c.h.b16 %v82
  %v706 = vunpack.c.l.b16 %v83
  %v707 = vunpack.c.h.b16 %v83
  %v708 = vunpack.c.l.b16 %v84
  %v709 = vunpack.c.h.b16 %v84
  %v710 = vunpack.c.l.b16 %v85
  %v711 = vunpack.c.h.b16 %v85
  %v712 = vunpack.c.l.b16 %v86
  %v713 = vunpack.c.h.b16 %v86
  %v714 = vunpack.c.l.b16 %v87
  %v715 = vunpack.c.h.b16 %v87
  %v716 = vunpack.c.l.b16 %v88
  %v717 = vunpack.c.h.b16 %v88
  %v718 = vunpack.c.l.b16 %v89
  %v719 = vunpack.c.h.b16 %v89
  %v720 = vunpack.c.l.b16 %v90
  %v721 = vunpack.c.h.b16 %v90
  %v722 = vunpack.c.l.b16 %v91
  %v723 = vunpack.c.h.b16 %v91
  %v724 = vunpack.c.l.b16 %v92
  %v725 = vunpack.c.h.b16 %v92
  %v726 = vunpack.c.l.b16 %v93
  %v727 = vunpack.c.h.b16 %v93
  %v728 = vunpack.c.l.b16 %v94
  %v729 = vunpack.c.h.b16 %v94
  %v730 = vunpack.c.l.b16 %v95
  %v731 = vunpack.c.h.b16 %v95
  %v732 = vunpack.c.l.b16 %v96
  %v733 = vunpack.c.h.b16 %v96
  %v734 = vunpack.c.l.b16 %v97
  %v735 = vunpack.c.h.b16 %v97
  %v736 = vunpack.c.l.b16 %v98
  %v737 = vunpack.c.h.b16 %v98
  %v738 = vunpack.c.l.b16 %v99
  %v739 = vunpack.c.h.b16 %v99
  %v740 = vunpack.c.l.b16 %v100
  %v741 = vunpack.c.h.b16 %v100
  %v742 = vunpack.c.l.b16 %v101
  %v743 = vunpack.c.h.b16 %v101
  %v744 = vunpack.c.l.b16 %v102
  %v745 = vunpack.c.h.b16 %v102
  %v746 = vunpack.c.l.b16 %v103
  %v747 = vunpack.c.h.b16 %v103
  %v748 = vunpack.c.l.b16 %v104
  %v749 = vunpack.c.h.b16 %v104
  %v750 = vunpack.c.l.b16 %v105
  %v751 = vunpack.c.h.b16 %v105
  %v752 = vunpack.c.l.b16 %v106
  %v753 = vunpack.c.h.b16 %v106
  %v754 = vunpack.c.l.b16 %v107
  %v755 = vunpack.c.h.b16 %v107
  %v756 = vunpack.c.l.b16 %v108
  %v757 = vunpack.c.h.b16 %v108
  %v758 = vunpack.c.l.b16 %v109
  %v759 = vunpack.c.h.b16 %v109
  %v760 = vunpack.c.l.b16 %v110
  %v761 = vunpack.c.h.b16 %v110
  %v762 = vunpack.c.l.b16 %v111
  %v763 = vunpack.c.h.b16 %v111
  %v764 = vunpack.c.l.b16 %v112
  %v765 = vunpack.c.h.b16 %v112
  %v766 = vunpack.c.l.b16 %v113
  %v767 = vunpack.c.h.b16 %v113
  %v768 = vunpack.c.l.b16 %v114
  %v769 = vunpack.c.h.b16 %v114
  %v770 = vunpack.c.l.b16 %v115
  %v771 = vunpack.c.h.b16 %v115
  %v772 = vunpack.c.l.b16 %v116
  %v773 = vunpack.c.h.b16 %v116
  %v774 = vunpack.c.l.b16 %v117
  %v775 = vunpack.c.h.b16 %v117
  %v776 = vunpack.c.l.b16 %v118
  %v777 = vunpack.c.h.b16 %v118
  %v778 = vunpack.c.l.b16 %v119
  %v779 = vunpack.c.h.b16 %v119
  %v780 = vunpack.c.l.b16 %v120
  %v781 = vunpack.c.h.b16 %v120
  %v782 = vunpack.c.l.b16 %v121
  %v783 = vunpack.c.h.b16 %v121
  %v784 = vunpack.c.l.b16 %v122
  %v785 = vunpack.c.h.b16 %v122
  %v786 = vunpack.c.l.b16 %v123
  %v787 = vunpack.c.h.b16 %v123
  %v788 = vunpack.c.l.b16 %v124
  %v789 = vunpack.c.h.b16 %v124
  %v790 = vunpack.c.l.b16 %v125
  %v791 = vunpack.c.h.b16 %v125
  %v792 = vunpack.c.l.b16 %v126
  %v793 = vunpack.c.h.b16 %v126
  %v794 = vunpack.c.l.b16 %v127
  %v795 = vunpack.c.h.b16 %v127
  %v796 = vunpack.c.l.b16 %v128
  %v797 = vunpack.c.h.b16 %v128
  %v798 = vunpack.c.l.b16 %v129
  %v799 = vunpack.c.h.b16 %v129
  %v800 = vunpack.c.l.b16 %v130
  %v801 = vunpack.c.h.b16 %v130
  %v802 = vunpack.c.l.b16 %v131
  %v803 = vunpack.c.h.b16 %v131
  %v804 = vunpack.c.l.b16 %v132
  %v805 = vunpack.c.h.b16 %v132
  %v806 = vunpack.c.l.b16 %v133
  %v807 = vunpack.c.h.b16 %v133
  %v808 = vunpack.c.l.b16 %v134
  %v809 = vunpack.c.h.b16 %v134
  %v810 = vunpack.c.l.b16 %v135
  %v811 = vunpack.c.h.b16 %v135
  %v812 = vunpack.c.l.b16 %v136
  %v813 = vunpack.c.h.b16 %v136
  %v814 = vunpack.c.l.b16 %v137
  %v815 = vunpack.c.h.b16 %v137
  %v816 = vunpack.c.l.b16 %v138
  %v817 = vunpack.c.h.b16 %v138
  %v818 = vunpack.c.l.b16 %v139
  %v819 = vunpack.c.h.b16 %v139
  %v820 = vunpack.c.l.b16 %v140
  %v821 = vunpack.c.h.b16 %v140
  %v822 = vunpack.c.l.b16 %v141
  %v823 = vunpack.c.h.b16 %v141
  %v824 = vunpack.c.l.b16 %v142
  %v825 = vunpack.c.h.b16 %v142
  %v826 = vunpack.c.l.b16 %v143
  %v827 = vunpack.c.h.b16 %v143
  %v828 = vunpack.c.l.b16 %v144
  %v829 = vunpack.c.h.b16 %v144
  %v830 = vunpack.c.l.b16 %v145
  %v831 = vunpack.c.h.b16 %v145
  %v832 = vunpack.c.l.b16 %v146
  %v833 = vunpack.c.h.b16 %v146
  %v834 = vunpack.c.l.b16 %v147
  %v835 = vunpack.c.h.b16 %v147
  %v836 = vunpack.c.l.b16 %v148
  %v837 = vunpack.c.h.b16 %v148
  %v838 = vunpack.c.l.b16 %v149
  %v839 = vunpack.c.h.b16 %v149
  %v840 = vunpack.c.l.b16 %v150
  %v841 = vunpack.c.h.b16 %v150
  %v842 = vunpack.c.l.b16 %v151
  %v843 = vunpack.c.h.b16 %v151
  %v844 = vunpack.c.l.b16 %v152
  %v845 = vunpack.c.h.b16 %v152
  %v846 = vunpack.c.l.b16 %v153
  %v847 = vunpack.c.h.b16 %v153
  %v848 = vunpack.c.l.b16 %v154
  %v849 = vunpack.c.h.b16 %v154
  %v850 = vunpack.c.l.b16 %v155
  %v851 = vunpack.c.h.b16 %v155
  %v852 = vunpack.c.l.b16 %v156
  %v853 = vunpack.c.h.b16 %v156
  %v854 = vunpack.c.l.b16 %v157
  %v855 = vunpack.c.h.b16 %v157
  %v856 = vunpack.c.l.b16 %v158
  %v857 = vunpack.c.h.b16 %v158
  %v858 = vunpack.c.l.b16 %v159
  %v859 = vunpack.c.h.b16 %v159
  %v860 = vunpack.c.l.b16 %v160
  %v861 = vunpack.c.h.b16 %v160
  %v862 = vunpack.c.l.b16 %v161
  %v863 = vunpack.c.h.b16 %v161
  %v864 = vunpack.c.l.b16 %v162
  %v865 = vunpack.c.h.b16 %v162
  %v866 = vunpack.c.l.b16 %v163
  %v867 = vunpack.c.h.b16 %v163
  %v868 = vunpack.c.l.b16 %v164
  %v869 = vunpack.c.h.b16 %v164
  %v870 = vunpack.c.l.b16 %v165
  %v871 = vunpack.c.h.b16 %v165
  %v872 = vunpack.c.l.b16 %v166
  %v873 = vunpack.c.h.b16 %v166
  %v874 = vunpack.c.l.b16 %v167
  %v875 = vunpack.c.h.b16 %v167
  %v876 = vunpack.c.l.b16 %v168
  %v877 = vunpack.c.h.b16 %v168
  %v878 = vunpack.c.l.b16 %v169
  %v879 = vunpack.c.h.b16 %v169
  %v880 = vunpack.c.l.b16 %v170
  %v881 = vunpack.c.h.b16 %v170
  %v882 = vunpack.c.l.b16 %v171
  %v883 = vunpack.c.h.b16 %v171
  %v884 = vunpack.c.l.b16 %v172
  %v885 = vunpack.c.h.b16 %v172
  %v886 = vunpack.c.l.b16 %v173
  %v887 = vunpack.c.h.b16 %v173
  %v888 = vunpack.c.l.b16 %v174
  %v889 = vunpack.c.h.b16 %v174
  %v890 = vunpack.c.l.b16 %v175
  %v891 = vunpack.c.h.b16 %v175
  %v892 = vunpack.c.l.b16 %v176
  %v893 = vunpack.c.h.b16 %v176
  %v894 = vunpack.c.l.b16 %v177
  %v895 = vunpack.c.h.b16 %v177
  %v896 = vunpack.c.l.b16 %v178
  %v897 = vunpack.c.h.b16 %v178
  %v898 = vunpack.c.l.b16 %v179
  %v899 = vunpack.c.h.b16 %v179
  %v900 = vunpack.c.l.b16 %v180
  %v901 = vunpack.c.h.b16 %v180
  %v902 = vunpack.c.l.b16 %v181
  %v903 = vunpack.c.h.b16 %v181
  %v904 = vunpack.c.l.b16 %v182
  %v905 = vunpack.c.h.b16 %v182
  %v906 = vunpack.c.l.b16 %v183
  %v907 = vunpack.c.h.b16 %v183
  %v908 = vunpack.c.l.b16 %v184
  %v909 = vunpack.c.h.b16 %v184
  %v910 = vunpack.c.l.b16 %v185
  %v911 = vunpack.c.h.b16 %v185
  %v912 = vunpack.c.l.b16 %v186
  %v913 = vunpack.c.h.b16 %v186
  %v914 = vunpack.c.l.b16 %v187
  %v915 = vunpack.c.h.b16 %v187
  %v916 = vunpack.c.l.b16 %v188
  %v917 = vunpack.c.h.b16 %v188
  %v918 = vunpack.c.l.b16 %v189
  %v919 = vunpack.c.h.b16 %v189
  %v920 = vunpack.c.l.b16 %v190
  %v921 = vunpack.c.h.b16 %v190
  %v922 = vunpack.c.l.b16 %v191
  %v923 = vunpack.c.h.b16 %v191
  %v924 = vunpack.c.l.b16 %v192
  %v925 = vunpack.c.h.b16 %v192
  %v926 = vunpack.c.l.b16 %v193
  %v927 = vunpack.c.h.b16 %v193
  %v928 = vunpack.c.l.b16 %v194
  %v929 = vunpack.c.h.b16 %v194
  %v930 = vunpack.c.l.b16 %v195
  %v931 = vunpack.c.h.b16 %v195
  %v932 = vunpack.c.l.b16 %v196
  %v933 = vunpack.c.h.b16 %v196
  %v934 = vunpack.c.l.b16 %v197
  %v935 = vunpack.c.h.b16 %v197
  %v936 = vunpack.c.l.b16 %v198
  %v937 = vunpack.c.h.b16 %v198
  %v938 = vunpack.c.l.b16 %v199
  %v939 = vunpack.c.h.b16 %v199
  %v940 = vunpack.c.l.b16 %v200
  %v941 = vunpack.c.h.b16 %v200
  %v942 = vunpack.c.l.b16 %v201
  %v943 = vunpack.c.h.b16 %v201
  %v944 = vunpack.c.l.b16 %v202
  %v945 = vunpack.c.h.b16 %v202
  %v946 = vunpack.c.l.b16 %v203
  %v947 = vunpack.c.h.b16 %v203
  %v948 = vunpack.c.l.b16 %v204
  %v949 = vunpack.c.h.b16 %v204
  %v950 = vunpack.c.l.b16 %v205
  %v951 = vunpack.c.h.b16 %v205
  %v952 = vunpack.c.l.b16 %v206
  %v953 = vunpack.c.h.b16 %v206
  %v954 = vunpack.c.l.b16 %v207
  %v955 = vunpack.c.h.b16 %v207
  %v956 = vunpack.c.l.b16 %v208
  %v957 = vunpack.c.h.b16 %v208
  %v958 = vunpack.c.l.b16 %v209
  %v959 = vunpack.c.h.b16 %v209
  %v960 = vunpack.c.l.b16 %v210
  %v961 = vunpack.c.h.b16 %v210
  %v962 = vunpack.c.l.b16 %v211
  %v963 = vunpack.c.h.b16 %v211
  %v964 = vunpack.c.l.b16 %v212
  %v965 = vunpack.c.h.b16 %v212
  %v966 = vunpack.c.l.b16 %v213
  %v967 = vunpack.c.h.b16 %v213
  %v968 = vunpack.c.l.b16 %v214
  %v969 = vunpack.c.h.b16 %v214
  %v970 = vunpack.c.l.b16 %v215
  %v971 = vunpack.c.h.b16 %v215
  %v972 = vunpack.c.l.b16 %v216
  %v973 = vunpack.c.h.b16 %v216
  %v974 = vunpack.c.l.b16 %v217
  %v975 = vunpack.c.h.b16 %v217
  %v976 = vunpack.c.l.b16 %v218
  %v977 = vunpack.c.h.b16 %v218
  %v978 = vunpack.c.l.b16 %v219
  %v979 = vunpack.c.h.b16 %v219
  %v980 = vunpack.c.l.b16 %v220
  %v981 = vunpack.c.h.b16 %v220
  %v982 = vunpack.c.l.b16 %v221
  %v983 = vunpack.c.h.b16 %v221
  %v984 = vunpack.c.l.b16 %v222
  %v985 = vunpack.c.h.b16 %v222
  %v986 = vunpack.c.l.b16 %v223
  %v987 = vunpack.c.h.b16 %v223
  %v988 = vunpack.c.l.b16 %v224
  %v989 = vunpack.c.h.b16 %v224
  %v990 = vunpack.c.l.b16 %v225
  %v991 = vunpack.c.h.b16 %v225
  %v992 = vunpack.c.l.b16 %v226
  %v993 = vunpack.c.h.b16 %v226
  %v994 = vunpack.c.l.b16 %v227
  %v995 = vunpack.c.h.b16 %v227
  %v996 = vunpack.c.l.b16 %v228
  %v997 = vunpack.c.h.b16 %v228
  %v998 = vunpack.c.l.b16 %v229
  %v999 = vunpack.c.h.b16 %v229
  %v1000 = vunpack.c.l.b16 %v230
  %v1001 = vunpack.c.h.b16 %v230
  %v1002 = vunpack.c.l.b16 %v231
  %v1003 = vunpack.c.h.b16 %v231
  %v1004 = vunpack.c.l.b16 %v232
  %v1005 = vunpack.c.h.b16 %v232
  %v1006 = vunpack.c.l.b16 %v233
  %v1007 = vunpack.c.h.b16 %v233
  %v1008 = vunpack.c.l.b16 %v234
  %v1009 = vunpack.c.h.b16 %v234
  %v1010 = vunpack.c.l.b16 %v235
  %v1011 = vunpack.c.h.b16 %v235
  %v1012 = vunpack.c.l.b16 %v236
  %v1013 = vunpack.c.h.b16 %v236
  %v1014 = vunpack.c.l.b16 %v237
  %v1015 = vunpack.c.h.b16 %v237
  %v1016 = vunpack.c.l.b16 %v238
  %v1017 = vunpack.c.h.b16 %v238
  %v1018 = vunpack.c.l.b16 %v239
  %v1019 = vunpack.c.h.b16 %v239
  %v1020 = vunpack.c.l.b16 %v240
  %v1021 = vunpack.c.h.b16 %v240
  %v1022 = vunpack.c.l.b16 %v241
  %v1023 = vunpack.c.h.b16 %v241
  %v1024 = vunpack.c.l.b16 %v242
  %v1025 = vunpack.c.h.b16 %v242
  %v1026 = vunpack.c.l.b16 %v243
  %v1027 = vunpack.c.h.b16 %v243
  %v1028 = vunpack.c.l.b16 %v244
  %v1029 = vunpack.c.h.b16 %v244
  %v1030 = vunpack.c.l.b16 %v245
  %v1031 = vunpack.c.h.b16 %v245
  %v1032 = vunpack.c.l.b16 %v246
  %v1033 = vunpack.c.h.b16 %v246
  %v1034 = vunpack.c.l.b16 %v247
  %v1035 = vunpack.c.h.b16 %v247
  %v1036 = vunpack.c.l.b16 %v248
  %v1037 = vunpack.c.h.b16 %v248
  %v1038 = vunpack.c.l.b16 %v249
  %v1039 = vunpack.c.h.b16 %v249
  %v1040 = vunpack.c.l.b16 %v250
  %v1041 = vunpack.c.h.b16 %v250
  %v1042 = vunpack.c.l.b16 %v251
  %v1043 = vunpack.c.h.b16 %v251
  %v1044 = vunpack.c.l.b16 %v252
  %v1045 = vunpack.c.h.b16 %v252
  %v1046 = vunpack.c.l.b16 %v253
  %v1047 = vunpack.c.h.b16 %v253
  %v1048 = vunpack.c.l.b16 %v254
  %v1049 = vunpack.c.h.b16 %v254
  %v1050 = vunpack.c.l.b16 %v255
  %v1051 = vunpack.c.h.b16 %v255
  %v1052 = vunpack.c.l.b16 %v256
  %v1053 = vunpack.c.h.b16 %v256
  %v1054 = vunpack.c.l.b16 %v257
  %v1055 = vunpack.c.h.b16 %v257
  %v1056 = vunpack.c.l.b16 %v258
  %v1057 = vunpack.c.h.b16 %v258
  %v1058 = vunpack.c.l.b16 %v259
  %v1059 = vunpack.c.h.b16 %v259
  %v1060 = vunpack.c.l.b16 %v260
  %v1061 = vunpack.c.h.b16 %v260
  %v1062 = vunpack.c.l.b16 %v261
  %v1063 = vunpack.c.h.b16 %v261
  %v1064 = vunpack.c.l.b16 %v262
  %v1065 = vunpack.c.h.b16 %v262
  %v1066 = vunpack.c.l.b16 %v263
  %v1067 = vunpack.c.h.b16 %v263
  %v1068 = vunpack.c.l.b16 %v264
  %v1069 = vunpack.c.h.b16 %v264
  %v1070 = vunpack.c.l.b16 %v265
  %v1071 = vunpack.c.h.b16 %v265
  %v1072 = vunpack.c.l.b16 %v266
  %v1073 = vunpack.c.h.b16 %v266
  %v1074 = vunpack.c.l.b16 %v267
  %v1075 = vunpack.c.h.b16 %v267
  %v1076 = vunpack.c.l.b16 %v268
  %v1077 = vunpack.c.h.b16 %v268
  %v1078 = vunpack.c.l.b16 %v269
  %v1079 = vunpack.c.h.b16 %v269
  %v1080 = vunpack.c.l.b16 %v270
  %v1081 = vunpack.c.h.b16 %v270
  %v1082 = vunpack.c.l.b16 %v271
  %v1083 = vunpack.c.h.b16 %v271
  %v1084 = vunpack.c.l.b16 %v272
  %v1085 = vunpack.c.h.b16 %v272
  %v1086 = vunpack.c.l.b16 %v273
  %v1087 = vunpack.c.h.b16 %v273
  %v1088 = vunpack.c.l.b16 %v274
  %v1089 = vunpack.c.h.b16 %v274
  %v1090 = vunpack.c.l.b16 %v275
  %v1091 = vunpack.c.h.b16 %v275
  %v1092 = vunpack.c.l.b16 %v276
  %v1093 = vunpack.c.h.b16 %v276
  %v1094 = vunpack.c.l.b16 %v277
  %v1095 = vunpack.c.h.b16 %v277
  %v1096 = vunpack.c.l.b16 %v278
  %v1097 = vunpack.c.h.b16 %v278
  %v1098 = vunpack.c.l.b16 %v279
  %v1099 = vunpack.c.h.b16 %v279
  %v1100 = vunpack.c.l.b16 %v280
  %v1101 = vunpack.c.h.b16 %v280
  %v1102 = vunpack.c.l.b16 %v281
  %v1103 = vunpack.c.h.b16 %v281
  %v1104 = vunpack.c.l.b16 %v282
  %v1105 = vunpack.c.h.b16 %v282
  %v1106 = vunpack.c.l.b16 %v283
  %v1107 = vunpack.c.h.b16 %v283
  %v1108 = vunpack.c.l.b16 %v284
  %v1109 = vunpack.c.h.b16 %v284
  %v1110 = vunpack.c.l.b16 %v285
  %v1111 = vunpack.c.h.b16 %v285
  %v1112 = vunpack.c.l.b16 %v286
  %v1113 = vunpack.c.h.b16 %v286
  %v1114 = vunpack.c.l.b16 %v287
  %v1115 = vunpack.c.h.b16 %v287
  %v1116 = vunpack.c.l.b16 %v288
  %v1117 = vunpack.c.h.b16 %v288
  %v1118 = vunpack.c.l.b16 %v289
  %v1119 = vunpack.c.h.b16 %v289
  %v1120 = vunpack.c.l.b16 %v290
  %v1121 = vunpack.c.h.b16 %v290
  %v1122 = vunpack.c.l.b16 %v291
  %v1123 = vunpack.c.h.b16 %v291
  %v1124 = vunpack.c.l.b16 %v292
  %v1125 = vunpack.c.h.b16 %v292
  %v1126 = vunpack.c.l.b16 %v293
  %v1127 = vunpack.c.h.b16 %v293
  %v1128 = vunpack.c.l.b16 %v294
  %v1129 = vunpack.c.h.b16 %v294
  %v1130 = vunpack.c.l.b16 %v295
  %v1131 = vunpack.c.h.b16 %v295
  %v1132 = vunpack.c.l.b16 %v296
  %v1133 = vunpack.c.h.b16 %v296
  %v1134 = vunpack.c.l.b16 %v297
  %v1135 = vunpack.c.h.b16 %v297
  %v1136 = vunpack.c.l.b16 %v298
  %v1137 = vunpack.c.h.b16 %v298
  %v1138 = vunpack.c.l.b16 %v299
  %v1139 = vunpack.c.h.b16 %v299
  %v1140 = vunpack.c.l.b16 %v300
  %v1141 = vunpack.c.h.b16 %v300
  %v1142 = vunpack.c.l.b16 %v301
  %v1143 = vunpack.c.h.b16 %v301
  %v1144 = vunpack.c.l.b16 %v302
  %v1145 = vunpack.c.h.b16 %v302
  %v1146 = vunpack.c.l.b16 %v303
  %v1147 = vunpack.c.h.b16 %v303
  %v1148 = vunpack.c.l.b16 %v304
  %v1149 = vunpack.c.h.b16 %v304
  %v1150 = vunpack.c.l.b16 %v305
  %v1151 = vunpack.c.h.b16 %v305
  %v1152 = vunpack.c.l.b16 %v306
  %v1153 = vunpack.c.h.b16 %v306
  %v1154 = vunpack.c.l.b16 %v307
  %v1155 = vunpack.c.h.b16 %v307
  %v1156 = vpack.c.b16 %v646, %v644
  %v1157 = vpack.c.b16 %v647, %v645
  %v1158 = vpack.c.b16 %v650, %v648
  %v1159 = vpack.c.b16 %v651, %v649
  %v1160 = vpack.c.b16 %v654, %v652
  %v1161 = vpack.c.b16 %v655, %v653
  %v1162 = vpack.c.b16 %v658, %v656
  %v1163 = vpack.c.b16 %v659, %v657
  %v1164 = vpack.c.b16 %v662, %v660
  %v1165 = vpack.c.b16 %v663, %v661
  %v1166 = vpack.c.b16 %v666, %v664
  %v1167 = vpack.c.b16 %v667, %v665
  %v1168 = vpack.c.b16 %v670, %v668
  %v1169 = vpack.c.b16 %v671, %v669
  %v1170 = vpack.c.b16 %v674, %v672
  %v1171 = vpack.c.b16 %v675, %v673
  %v1172 = vpack.c.b16 %v678, %v676
  %v1173 = vpack.c.b16 %v679, %v677
  %v1174 = vpack.c.b16 %v682, %v680
  %v1175 = vpack.c.b16 %v683, %v681
  %v1176 = vpack.c.b16 %v686, %v684
  %v1177 = vpack.c.b16 %v687, %v685
  %v1178 = vpack.c.b16 %v690, %v688
  %v1179 = vpack.c.b16 %v691, %v689
  %v1180 = vpack.c.b16 %v694, %v692
  %v1181 = vpack.c.b16 %v695, %v693
  %v1182 = vpack.c.b16 %v698, %v696
  %v1183 = vpack.c.b16 %v699, %v697
  %v1184 = vpack.c.b16 %v702, %v700
  %v1185 = vpack.c.b16 %v703, %v701
  %v1186 = vpack.c.b16 %v706, %v704
  %v1187 = vpack.c.b16 %v707, %v705
  %v1188 = vpack.c.b16 %v710, %v708
  %v1189 = vpack.c.b16 %v711, %v709
  %v1190 = vpack.c.b16 %v714, %v712
  %v1191 = vpack.c.b16 %v715, %v713
  %v1192 = vpack.c.b16 %v718, %v716
  %v1193 = vpack.c.b16 %v719, %v717
  %v1194 = vpack.c.b16 %v722, %v720
  %v1195 = vpack.c.b16 %v723, %v721
  %v1196 = vpack.c.b16 %v726, %v724
  %v1197 = vpack.c.b16 %v727, %v725
  %v1198 = vpack.c.b16 %v730, %v728
  %v1199 = vpack.c.b16 %v731, %v729
  %v1200 = vpack.c.b16 %v734, %v732
  %v1201 = vpack.c.b16 %v735, %v733
  %v1202 = vpack.c.b16 %v738, %v736
  %v1203 = vpack.c.b16 %v739, %v737
  %v1204 = vpack.c.b16 %v742, %v740
  %v1205 = vpack.c.b16 %v743, %v741
  %v1206 = vpack.c.b16 %v746, %v744
  %v1207 = vpack.c.b16 %v747, %v745
  %v1208 = vpack.c.b16 %v750, %v748
  %v1209 = vpack.c.b16 %v751, %v749
  %v1210 = vpack.c.b16 %v754, %v752
  %v1211 = vpack.c.b16 %v755, %v753
  %v1212 = vpack.c.b16 %v758, %v756
  %v1213 = vpack.c.b16 %v759, %v757
  %v1214 = vpack.c.b16 %v762, %v760
  %v1215 = vpack.c.b16 %v763, %v761
  %v1216 = vpack.c.b16 %v766, %v764
  %v1217 = vpack.c.b16 %v767, %v765
  %v1218 = vpack.c.b16 %v770, %v768
  %v1219 = vpack.c.b16 %v771, %v769
  %v1220 = vpack.c.b16 %v774, %v772
  %v1221 = vpack.c.b16 %v775, %v773
  %v1222 = vpack.c.b16 %v778, %v776
  %v1223 = vpack.c.b16 %v779, %v777
  %v1224 = vpack.c.b16 %v782, %v780
  %v1225 = vpack.c.b16 %v783, %v781
  %v1226 = vpack.c.b16 %v786, %v784
  %v1227 = vpack.c.b16 %v787, %v785
  %v1228 = vpack.c.b16 %v790, %v788
  %v1229 = vpack.c.b16 %v791, %v789
  %v1230 = vpack.c.b16 %v794, %v792
  %v1231 = vpack.c.b16 %v795, %v793
  %v1232 = vpack.c.b16 %v798, %v796
  %v1233 = vpack.c.b16 %v799, %v797
  %v1234 = vpack.c.b16 %v802, %v800
  %v1235 = vpack.c.b16 %v803, %v801
  %v1236 = vpack.c.b16 %v806, %v804
  %v1237 = vpack.c.b16 %v807, %v805
  %v1238 = vpack.c.b16 %v810, %v808
  %v1239 = vpack.c.b16 %v811, %v809
  %v1240 = vpack.c.b16 %v814, %v812
  %v1241 = vpack.c.b16 %v815, %v813
  %v1242 = vpack.c.b16 %v818, %v816
  %v1243 = vpack.c.b16 %v819, %v817
  %v1244 = vpack.c.b16 %v822, %v820
  %v1245 = vpack.c.b16 %v823, %v821
  %v1246 = vpack.c.b16 %v826, %v824
  %v1247 = vpack.c.b16 %v827, %v825
  %v1248 = vpack.c.b16 %v830, %v828
  %v1249 = vpack.c.b16 %v831, %v829
  %v1250 = vpack.c.b16 %v834, %v832
  %v1251 = vpack.c.b16 %v835, %v833
  %v1252 = vpack.c.b16 %v838, %v836
  %v1253 = vpack.c.b16 %v839, %v837
  %v1254 = vpack.c.b16 %v842, %v840
  %v1255 = vpack.c.b16 %v843, %v841
  %v1256 = vpack.c.b16 %v846, %v844
  %v1257 = vpack.c.b16 %v847, %v845
  %v1258 = vpack.c.b16 %v850, %v848
  %v1259 = vpack.c.b16 %v851, %v849
  %v1260 = vpack.c.b16 %v854, %v852
  %v1261 = vpack.c.b16 %v855, %v853
  %v1262 = vpack.c.b16 %v858, %v856
  %v1263 = vpack.c.b16 %v859, %v857
  %v1264 = vpack.c.b16 %v862, %v860
  %v1265 = vpack.c.b16 %v863, %v861
  %v1266 = vpack.c.b16 %v866, %v864
  %v1267 = vpack.c.b16 %v867, %v865
  %v1268 = vpack.c.b16 %v870, %v868
  %v1269 = vpack.c.b16 %v871, %v869
  %v1270 = vpack.c.b16 %v874, %v872
  %v1271 = vpack.c.b16 %v875, %v873
  %v1272 = vpack.c.b16 %v878, %v876
  %v1273 = vpack.c.b16 %v879, %v877
  %v1274 = vpack.c.b16 %v882, %v880
  %v1275 = vpack.c.b16 %v883, %v881
  %v1276 = vpack.c.b16 %v886, %v884
  %v1277 = vpack.c.b16 %v887, %v885
  %v1278 = vpack.c.b16 %v890, %v888
  %v1279 = vpack.c.b16 %v891, %v889
  %v1280 = vpack.c.b16 %v894, %v892
  %v1281 = vpack.c.b16 %v895, %v893
  %v1282 = vpack.c.b16 %v898, %v896
  %v1283 = vpack.c.b16 %v899, %v897
  %v1284 = vpack.c.b16 %v902, %v900
  %v1285 = vpack.c.b16 %v903, %v901
  %v1286 = vpack.c.b16 %v906, %v904
  %v1287 = vpack.c.b16 %v907, %v905
  %v1288 = vpack.c.b16 %v910, %v908
  %v1289 = vpack.c.b16 %v911, %v909
  %v1290 = vpack.c.b16 %v914, %v912
  %v1291 = vpack.c.b16 %v915, %v913
  %v1292 = vpack.c.b16 %v918, %v916
  %v1293 = vpack.c.b16 %v919, %v917
  %v1294 = vpack.c.b16 %v922, %v920
  %v1295 = vpack.c.b16 %v923, %v921
  %v1296 = vpack.c.b16 %v926, %v924
  %v1297 = vpack.c.b16 %v927, %v925
  %v1298 = vpack.c.b16 %v930, %v928
  %v1299 = vpack.c.b16 %v931, %v929
  %v1300 = vpack.c.b16 %v934, %v932
  %v1301 = vpack.c.b16 %v935, %v933
  %v1302 = vpack.c.b16 %v938, %v936
  %v1303 = vpack.c.b16 %v939, %v937
  %v1304 = vpack.c.b16 %v942, %v940
  %v1305 = vpack.c.b16 %v943, %v941
  %v1306 = vpack.c.b16 %v946, %v944
  %v1307 = vpack.c.b16 %v947, %v945
  %v1308 = vpack.c.b16 %v950, %v948
  %v1309 = vpack.c.b16 %v951, %v949
  %v1310 = vpack.c.b16 %v954, %v952
  %v1311 = vpack.c.b16 %v955, %v953
  %v1312 = vpack.c.b16 %v958, %v956
  %v1313 = vpack.c.b16 %v959, %v957
  %v1314 = vpack.c.b16 %v962, %v960
  %v1315 = vpack.c.b16 %v963, %v961
  %v1316 = vpack.c.b16 %v966, %v964
  %v1317 = vpack.c.b16 %v967, %v965
  %v1318 = vpack.c.b16 %v970, %v968
  %v1319 = vpack.c.b16 %v971, %v969
  %v1320 = vpack.c.b16 %v974, %v972
  %v1321 = vpack.c.b16 %v975, %v973
  %v1322 = vpack.c.b16 %v978, %v976
  %v1323 = vpack.c.b16 %v979, %v977
  %v1324 = vpack.c.b16 %v982, %v980
  %v1325 = vpack.c.b16 %v983, %v981
  %v1326 = vpack.c.b16 %v986, %v984
  %v1327 = vpack.c.b16 %v987, %v985
  %v1328 = vpack.c.b16 %v990, %v988
  %v1329 = vpack.c.b16 %v991, %v989
  %v1330 = vpack.c.b16 %v994, %v992
  %v1331 = vpack.c.b16 %v995, %v993
  %v1332 = vpack.c.b16 %v998, %v996
  %v1333 = vpack.c.b16 %v999, %v997
  %v1334 = vpack.c.b16 %v1002, %v1000
  %v1335 = vpack.c.b16 %v1003, %v1001
  %v1336 = vpack.c.b16 %v1006, %v1004
  %v1337 = vpack.c.b16 %v1007, %v1005
  %v1338 = vpack.c.b16 %v1010, %v1008
  %v1339 = vpack.c.b16 %v1011, %v1009
  %v1340 = vpack.c.b16 %v1014, %v1012
  %v1341 = vpack.c.b16 %v1015, %v1013
  %v1342 = vpack.c.b16 %v1018, %v1016
  %v1343 = vpack.c.b16 %v1019, %v1017
  %v1344 = vpack.c.b16 %v1022, %v1020
  %v1345 = vpack.c.b16 %v1023, %v1021
  %v1346 = vpack.c.b16 %v1026, %v1024
  %v1347 = vpack.c.b16 %v1027, %v1025
  %v1348 = vpack.c.b16 %v1030, %v1028
  %v1349 = vpack.c.b16 %v1031, %v1029
  %v1350 = vpack.c.b16 %v1034, %v1032
  %v1351 = vpack.c.b16 %v1035, %v1033
  %v1352 = vpack.c.b16 %v1038, %v1036
  %v1353 = vpack.c.b16 %v1039, %v1037
  %v1354 = vpack.c.b16 %v1042, %v1040
  %v1355 = vpack.c.b16 %v1043, %v1041
  %v1356 = vpack.c.b16 %v1046, %v1044
  %v1357 = vpack.c.b16 %v1047, %v1045
  %v1358 = vpack.c.b16 %v1050, %v1048
  %v1359 = vpack.c.b16 %v1051, %v1049
  %v1360 = vpack.c.b16 %v1054, %v1052
  %v1361 = vpack.c.b16 %v1055, %v1053
  %v1362 = vpack.c.b16 %v1058, %v1056
  %v1363 = vpack.c.b16 %v1059, %v1057
  %v1364 = vpack.c.b16 %v1062, %v1060
  %v1365 = vpack.c.b16 %v1063, %v1061
  %v1366 = vpack.c.b16 %v1066, %v1064
  %v1367 = vpack.c.b16 %v1067, %v1065
  %v1368 = vpack.c.b16 %v1070, %v1068
  %v1369 = vpack.c.b16 %v1071, %v1069
  %v1370 = vpack.c.b16 %v1074, %v1072
  %v1371 = vpack.c.b16 %v1075, %v1073
  %v1372 = vpack.c.b16 %v1078, %v1076
  %v1373 = vpack.c.b16 %v1079, %v1077
  %v1374 = vpack.c.b16 %v1082, %v1080
  %v1375 = vpack.c.b16 %v1083, %v1081
  %v1376 = vpack.c.b16 %v1086, %v1084
  %v1377 = vpack.c.b16 %v1087, %v1085
  %v1378 = vpack.c.b16 %v1090, %v1088
  %v1379 = vpack.c.b16 %v1091, %v1089
  %v1380 = vpack.c.b16 %v1094, %v1092
  %v1381 = vpack.c.b16 %v1095, %v1093
  %v1382 = vpack.c.b16 %v1098, %v1096
  %v1383 = vpack.c.b16 %v1099, %v1097
  %v1384 = vpack.c.b16 %v1102, %v1100
  %v1385 = vpack.c.b16 %v1103, %v1101
  %v1386 = vpack.c.b16 %v1106, %v1104
  %v1387 = vpack.c.b16 %v1107, %v1105
  %v1388 = vpack.c.b16 %v1110, %v1108
  %v1389 = vpack.c.b16 %v1111, %v1109
  %v1390 = vpack.c.b16 %v1114, %v1112
  %v1391 = vpack.c.b16 %v1115, %v1113
  %v1392 = vpack.c.b16 %v1118, %v1116
  %v1393 = vpack.c.b16 %v1119, %v1117
  %v1394 = vpack.c.b16 %v1122, %v1120
  %v1395 = vpack.c.b16 %v1123, %v1121
  %v1396 = vpack.c.b16 %v1126, %v1124
  %v1397 = vpack.c.b16 %v1127, %v1125
  %v1398 = vpack.c.b16 %v1130, %v1128
  %v1399 = vpack.c.b16 %v1131, %v1129
  %v1400 = vpack.c.b16 %v1134, %v1132
  %v1401 = vpack.c.b16 %v1135, %v1133
  %v1402 = vpack.c.b16 %v1138, %v1136
  %v1403 = vpack.c.b16 %v1139, %v1137
  %v1404 = vpack.c.b16 %v1142, %v1140
  %v1405 = vpack.c.b16 %v1143, %v1141
  %v1406 = vpack.c.b16 %v1146, %v1144
  %v1407 = vpack.c.b16 %v1147, %v1145
  %v1408 = vpack.c.b16 %v1150, %v1148
  %v1409 = vpack.c.b16 %v1151, %v1149
  %v1410 = vpack.c.b16 %v1154, %v1152
  %v1411 = vpack.c.b16 %v1155, %v1153
  %1668 = vmatprep.subr.bf16.mxu0 %v1157
  %1669 = vmatpush1.bf16.msra.mxu0 %v1156
  %1670 = vmatprep.subr.bf16.mxu0 %v1159
  %1671 = vmatpush1.bf16.msra.mxu0 %v1158
  %1672 = vmatprep.subr.bf16.mxu0 %v1161
  %1673 = vmatpush1.bf16.msra.mxu0 %v1160
  %1674 = vmatprep.subr.bf16.mxu0 %v1163
  %1675 = vmatpush1.bf16.msra.mxu0 %v1162
  %1676 = vmatprep.subr.bf16.mxu0 %v1165
  %1677 = vmatpush1.bf16.msra.mxu0 %v1164
  %1678 = vmatprep.subr.bf16.mxu0 %v1167
  %1679 = vmatpush1.bf16.msra.mxu0 %v1166
  %1680 = vmatprep.subr.bf16.mxu0 %v1169
  %1681 = vmatpush1.bf16.msra.mxu0 %v1168
  %1682 = vmatprep.subr.bf16.mxu0 %v1171
  %1683 = vmatpush1.bf16.msra.mxu0 %v1170
  %1684 = vmatprep.subr.bf16.mxu0 %v1173
  %1685 = vmatpush1.bf16.msra.mxu0 %v1172
  %1686 = vmatprep.subr.bf16.mxu0 %v1175
  %1687 = vmatpush1.bf16.msra.mxu0 %v1174
  %1688 = vmatprep.subr.bf16.mxu0 %v1177
  %1689 = vmatpush1.bf16.msra.mxu0 %v1176
  %1690 = vmatprep.subr.bf16.mxu0 %v1179
  %1691 = vmatpush1.bf16.msra.mxu0 %v1178
  %1692 = vmatprep.subr.bf16.mxu0 %v1181
  %1693 = vmatpush1.bf16.msra.mxu0 %v1180
  %1694 = vmatprep.subr.bf16.mxu0 %v1183
  %1695 = vmatpush1.bf16.msra.mxu0 %v1182
  %1696 = vmatprep.subr.bf16.mxu0 %v1185
  %1697 = vmatpush1.bf16.msra.mxu0 %v1184
  %1698 = vmatprep.subr.bf16.mxu0 %v1187
  %1699 = vmatpush1.bf16.msra.mxu0 %v1186
  %1700 = vmatprep.mubr.bf16.mxu0 %v357
  %1701 = vmatmul.mubr.bf16.gmra.mrb[0].mxu0 %v356
  %v1702 = vpop.f32.mrb[0].mxu0
  %v1703 = vadd.f32 0.0, %v1702
  %v1704 = vpop.f32.mrb[0].mxu0
  %v1705 = vadd.f32 0.0, %v1704
  %v1706 = vpop.f32.mrb[0].mxu0
  %v1707 = vadd.f32 0.0, %v1706
  %v1708 = vpop.f32.mrb[0].mxu0
  %v1709 = vadd.f32 0.0, %v1708
  %1710 = vdwg.mxu0
  %1711 = vmatprep.subr.bf16.mxu0 %v1189
  %1712 = vmatpush1.bf16.msra.mxu0 %v1188
  %1713 = vmatprep.subr.bf16.mxu0 %v1191
  %1714 = vmatpush1.bf16.msra.mxu0 %v1190
  %1715 = vmatprep.subr.bf16.mxu0 %v1193
  %1716 = vmatpush1.bf16.msra.mxu0 %v1192
  %1717 = vmatprep.subr.bf16.mxu0 %v1195
  %1718 = vmatpush1.bf16.msra.mxu0 %v1194
  %1719 = vmatprep.subr.bf16.mxu0 %v1197
  %1720 = vmatpush1.bf16.msra.mxu0 %v1196
  %1721 = vmatprep.subr.bf16.mxu0 %v1199
  %1722 = vmatpush1.bf16.msra.mxu0 %v1198
  %1723 = vmatprep.subr.bf16.mxu0 %v1201
  %1724 = vmatpush1.bf16.msra.mxu0 %v1200
  %1725 = vmatprep.subr.bf16.mxu0 %v1203
  %1726 = vmatpush1.bf16.msra.mxu0 %v1202
  %1727 = vmatprep.subr.bf16.mxu0 %v1205
  %1728 = vmatpush1.bf16.msra.mxu0 %v1204
  %1729 = vmatprep.subr.bf16.mxu0 %v1207
  %1730 = vmatpush1.bf16.msra.mxu0 %v1206
  %1731 = vmatprep.subr.bf16.mxu0 %v1209
  %1732 = vmatpush1.bf16.msra.mxu0 %v1208
  %1733 = vmatprep.subr.bf16.mxu0 %v1211
  %1734 = vmatpush1.bf16.msra.mxu0 %v1210
  %1735 = vmatprep.subr.bf16.mxu0 %v1213
  %1736 = vmatpush1.bf16.msra.mxu0 %v1212
  %1737 = vmatprep.subr.bf16.mxu0 %v1215
  %1738 = vmatpush1.bf16.msra.mxu0 %v1214
  %1739 = vmatprep.subr.bf16.mxu0 %v1217
  %1740 = vmatpush1.bf16.msra.mxu0 %v1216
  %1741 = vmatprep.subr.bf16.mxu0 %v1219
  %1742 = vmatpush1.bf16.msra.mxu0 %v1218
  %1743 = vmatprep.mubr.bf16.mxu0 %v359
  %1744 = vmatmul.mubr.bf16.gmra.mrb[0].mxu0 %v358
  %v1745 = vpop.f32.mrb[0].mxu0
  %v1746 = vadd.f32 %v1703, %v1745
  %v1747 = vpop.f32.mrb[0].mxu0
  %v1748 = vadd.f32 %v1705, %v1747
  %v1749 = vpop.f32.mrb[0].mxu0
  %v1750 = vadd.f32 %v1707, %v1749
  %v1751 = vpop.f32.mrb[0].mxu0
  %v1752 = vadd.f32 %v1709, %v1751
  %1753 = vdwg.mxu0
  %1754 = vmatprep.subr.bf16.mxu0 %v1221
  %1755 = vmatpush1.bf16.msra.mxu0 %v1220
  %1756 = vmatprep.subr.bf16.mxu0 %v1223
  %1757 = vmatpush1.bf16.msra.mxu0 %v1222
  %1758 = vmatprep.subr.bf16.mxu0 %v1225
  %1759 = vmatpush1.bf16.msra.mxu0 %v1224
  %1760 = vmatprep.subr.bf16.mxu0 %v1227
  %1761 = vmatpush1.bf16.msra.mxu0 %v1226
  %1762 = vmatprep.subr.bf16.mxu0 %v1229
  %1763 = vmatpush1.bf16.msra.mxu0 %v1228
  %1764 = vmatprep.subr.bf16.mxu0 %v1231
  %1765 = vmatpush1.bf16.msra.mxu0 %v1230
  %1766 = vmatprep.subr.bf16.mxu0 %v1233
  %1767 = vmatpush1.bf16.msra.mxu0 %v1232
  %1768 = vmatprep.subr.bf16.mxu0 %v1235
  %1769 = vmatpush1.bf16.msra.mxu0 %v1234
  %1770 = vmatprep.subr.bf16.mxu0 %v1237
  %1771 = vmatpush1.bf16.msra.mxu0 %v1236
  %1772 = vmatprep.subr.bf16.mxu0 %v1239
  %1773 = vmatpush1.bf16.msra.mxu0 %v1238
  %1774 = vmatprep.subr.bf16.mxu0 %v1241
  %1775 = vmatpush1.bf16.msra.mxu0 %v1240
  %1776 = vmatprep.subr.bf16.mxu0 %v1243
  %1777 = vmatpush1.bf16.msra.mxu0 %v1242
  %1778 = vmatprep.subr.bf16.mxu0 %v1245
  %1779 = vmatpush1.bf16.msra.mxu0 %v1244
  %1780 = vmatprep.subr.bf16.mxu0 %v1247
  %1781 = vmatpush1.bf16.msra.mxu0 %v1246
  %1782 = vmatprep.subr.bf16.mxu0 %v1249
  %1783 = vmatpush1.bf16.msra.mxu0 %v1248
  %1784 = vmatprep.subr.bf16.mxu0 %v1251
  %1785 = vmatpush1.bf16.msra.mxu0 %v1250
  %1786 = vmatprep.mubr.bf16.mxu0 %v361
  %1787 = vmatmul.mubr.bf16.gmra.mrb[0].mxu0 %v360
  %v1788 = vpop.f32.mrb[0].mxu0
  %v1789 = vadd.f32 %v1746, %v1788
  %v1790 = vpop.f32.mrb[0].mxu0
  %v1791 = vadd.f32 %v1748, %v1790
  %v1792 = vpop.f32.mrb[0].mxu0
  %v1793 = vadd.f32 %v1750, %v1792
  %v1794 = vpop.f32.mrb[0].mxu0
  %v1795 = vadd.f32 %v1752, %v1794
  %1796 = vdwg.mxu0
  %1797 = vmatprep.subr.bf16.mxu0 %v1253
  %1798 = vmatpush1.bf16.msra.mxu0 %v1252
  %1799 = vmatprep.subr.bf16.mxu0 %v1255
  %1800 = vmatpush1.bf16.msra.mxu0 %v1254
  %1801 = vmatprep.subr.bf16.mxu0 %v1257
  %1802 = vmatpush1.bf16.msra.mxu0 %v1256
  %1803 = vmatprep.subr.bf16.mxu0 %v1259
  %1804 = vmatpush1.bf16.msra.mxu0 %v1258
  %1805 = vmatprep.subr.bf16.mxu0 %v1261
  %1806 = vmatpush1.bf16.msra.mxu0 %v1260
  %1807 = vmatprep.subr.bf16.mxu0 %v1263
  %1808 = vmatpush1.bf16.msra.mxu0 %v1262
  %1809 = vmatprep.subr.bf16.mxu0 %v1265
  %1810 = vmatpush1.bf16.msra.mxu0 %v1264
  %1811 = vmatprep.subr.bf16.mxu0 %v1267
  %1812 = vmatpush1.bf16.msra.mxu0 %v1266
  %1813 = vmatprep.subr.bf16.mxu0 %v1269
  %1814 = vmatpush1.bf16.msra.mxu0 %v1268
  %1815 = vmatprep.subr.bf16.mxu0 %v1271
  %1816 = vmatpush1.bf16.msra.mxu0 %v1270
  %1817 = vmatprep.subr.bf16.mxu0 %v1273
  %1818 = vmatpush1.bf16.msra.mxu0 %v1272
  %1819 = vmatprep.subr.bf16.mxu0 %v1275
  %1820 = vmatpush1.bf16.msra.mxu0 %v1274
  %1821 = vmatprep.subr.bf16.mxu0 %v1277
  %1822 = vmatpush1.bf16.msra.mxu0 %v1276
  %1823 = vmatprep.subr.bf16.mxu0 %v1279
  %1824 = vmatpush1.bf16.msra.mxu0 %v1278
  %1825 = vmatprep.subr.bf16.mxu0 %v1281
  %1826 = vmatpush1.bf16.msra.mxu0 %v1280
  %1827 = vmatprep.subr.bf16.mxu0 %v1283
  %1828 = vmatpush1.bf16.msra.mxu0 %v1282
  %1829 = vmatprep.mubr.bf16.mxu0 %v363
  %1830 = vmatmul.mubr.bf16.gmra.mrb[0].mxu0 %v362
  %v1831 = vpop.f32.mrb[0].mxu0
  %v1832 = vadd.f32 %v1789, %v1831
  %v1833 = vpop.f32.mrb[0].mxu0
  %v1834 = vadd.f32 %v1791, %v1833
  %v1835 = vpop.f32.mrb[0].mxu0
  %v1836 = vadd.f32 %v1793, %v1835
  %v1837 = vpop.f32.mrb[0].mxu0
  %v1838 = vadd.f32 %v1795, %v1837
  %1839 = vdwg.mxu0
  %1840 = vmatprep.subr.bf16.mxu0 %v1285
  %1841 = vmatpush1.bf16.msra.mxu0 %v1284
  %1842 = vmatprep.subr.bf16.mxu0 %v1287
  %1843 = vmatpush1.bf16.msra.mxu0 %v1286
  %1844 = vmatprep.subr.bf16.mxu0 %v1289
  %1845 = vmatpush1.bf16.msra.mxu0 %v1288
  %1846 = vmatprep.subr.bf16.mxu0 %v1291
  %1847 = vmatpush1.bf16.msra.mxu0 %v1290
  %1848 = vmatprep.subr.bf16.mxu0 %v1293
  %1849 = vmatpush1.bf16.msra.mxu0 %v1292
  %1850 = vmatprep.subr.bf16.mxu0 %v1295
  %1851 = vmatpush1.bf16.msra.mxu0 %v1294
  %1852 = vmatprep.subr.bf16.mxu0 %v1297
  %1853 = vmatpush1.bf16.msra.mxu0 %v1296
  %1854 = vmatprep.subr.bf16.mxu0 %v1299
  %1855 = vmatpush1.bf16.msra.mxu0 %v1298
  %1856 = vmatprep.subr.bf16.mxu0 %v1301
  %1857 = vmatpush1.bf16.msra.mxu0 %v1300
  %1858 = vmatprep.subr.bf16.mxu0 %v1303
  %1859 = vmatpush1.bf16.msra.mxu0 %v1302
  %1860 = vmatprep.subr.bf16.mxu0 %v1305
  %1861 = vmatpush1.bf16.msra.mxu0 %v1304
  %1862 = vmatprep.subr.bf16.mxu0 %v1307
  %1863 = vmatpush1.bf16.msra.mxu0 %v1306
  %1864 = vmatprep.subr.bf16.mxu0 %v1309
  %1865 = vmatpush1.bf16.msra.mxu0 %v1308
  %1866 = vmatprep.subr.bf16.mxu0 %v1311
  %1867 = vmatpush1.bf16.msra.mxu0 %v1310
  %1868 = vmatprep.subr.bf16.mxu0 %v1313
  %1869 = vmatpush1.bf16.msra.mxu0 %v1312
  %1870 = vmatprep.subr.bf16.mxu0 %v1315
  %1871 = vmatpush1.bf16.msra.mxu0 %v1314
  %1872 = vmatprep.mubr.bf16.mxu0 %v365
  %1873 = vmatmul.mubr.bf16.gmra.mrb[0].mxu0 %v364
  %v1874 = vpop.f32.mrb[0].mxu0
  %v1875 = vadd.f32 %v1832, %v1874
  %v1876 = vpop.f32.mrb[0].mxu0
  %v1877 = vadd.f32 %v1834, %v1876
  %v1878 = vpop.f32.mrb[0].mxu0
  %v1879 = vadd.f32 %v1836, %v1878
  %v1880 = vpop.f32.mrb[0].mxu0
  %v1881 = vadd.f32 %v1838, %v1880
  %1882 = vdwg.mxu0
  %1883 = vmatprep.subr.bf16.mxu0 %v1317
  %1884 = vmatpush1.bf16.msra.mxu0 %v1316
  %1885 = vmatprep.subr.bf16.mxu0 %v1319
  %1886 = vmatpush1.bf16.msra.mxu0 %v1318
  %1887 = vmatprep.subr.bf16.mxu0 %v1321
  %1888 = vmatpush1.bf16.msra.mxu0 %v1320
  %1889 = vmatprep.subr.bf16.mxu0 %v1323
  %1890 = vmatpush1.bf16.msra.mxu0 %v1322
  %1891 = vmatprep.subr.bf16.mxu0 %v1325
  %1892 = vmatpush1.bf16.msra.mxu0 %v1324
  %1893 = vmatprep.subr.bf16.mxu0 %v1327
  %1894 = vmatpush1.bf16.msra.mxu0 %v1326
  %1895 = vmatprep.subr.bf16.mxu0 %v1329
  %1896 = vmatpush1.bf16.msra.mxu0 %v1328
  %1897 = vmatprep.subr.bf16.mxu0 %v1331
  %1898 = vmatpush1.bf16.msra.mxu0 %v1330
  %1899 = vmatprep.subr.bf16.mxu0 %v1333
  %1900 = vmatpush1.bf16.msra.mxu0 %v1332
  %1901 = vmatprep.subr.bf16.mxu0 %v1335
  %1902 = vmatpush1.bf16.msra.mxu0 %v1334
  %1903 = vmatprep.subr.bf16.mxu0 %v1337
  %1904 = vmatpush1.bf16.msra.mxu0 %v1336
  %1905 = vmatprep.subr.bf16.mxu0 %v1339
  %1906 = vmatpush1.bf16.msra.mxu0 %v1338
  %1907 = vmatprep.subr.bf16.mxu0 %v1341
  %1908 = vmatpush1.bf16.msra.mxu0 %v1340
  %1909 = vmatprep.subr.bf16.mxu0 %v1343
  %1910 = vmatpush1.bf16.msra.mxu0 %v1342
  %1911 = vmatprep.subr.bf16.mxu0 %v1345
  %1912 = vmatpush1.bf16.msra.mxu0 %v1344
  %1913 = vmatprep.subr.bf16.mxu0 %v1347
  %1914 = vmatpush1.bf16.msra.mxu0 %v1346
  %1915 = vmatprep.mubr.bf16.mxu0 %v367
  %1916 = vmatmul.mubr.bf16.gmra.mrb[0].mxu0 %v366
  %v1917 = vpop.f32.mrb[0].mxu0
  %v1918 = vadd.f32 %v1875, %v1917
  %v1919 = vpop.f32.mrb[0].mxu0
  %v1920 = vadd.f32 %v1877, %v1919
  %v1921 = vpop.f32.mrb[0].mxu0
  %v1922 = vadd.f32 %v1879, %v1921
  %v1923 = vpop.f32.mrb[0].mxu0
  %v1924 = vadd.f32 %v1881, %v1923
  %1925 = vdwg.mxu0
  %1926 = vmatprep.subr.bf16.mxu0 %v1349
  %1927 = vmatpush1.bf16.msra.mxu0 %v1348
  %1928 = vmatprep.subr.bf16.mxu0 %v1351
  %1929 = vmatpush1.bf16.msra.mxu0 %v1350
  %1930 = vmatprep.subr.bf16.mxu0 %v1353
  %1931 = vmatpush1.bf16.msra.mxu0 %v1352
  %1932 = vmatprep.subr.bf16.mxu0 %v1355
  %1933 = vmatpush1.bf16.msra.mxu0 %v1354
  %1934 = vmatprep.subr.bf16.mxu0 %v1357
  %1935 = vmatpush1.bf16.msra.mxu0 %v1356
  %1936 = vmatprep.subr.bf16.mxu0 %v1359
  %1937 = vmatpush1.bf16.msra.mxu0 %v1358
  %1938 = vmatprep.subr.bf16.mxu0 %v1361
  %1939 = vmatpush1.bf16.msra.mxu0 %v1360
  %1940 = vmatprep.subr.bf16.mxu0 %v1363
  %1941 = vmatpush1.bf16.msra.mxu0 %v1362
  %1942 = vmatprep.subr.bf16.mxu0 %v1365
  %1943 = vmatpush1.bf16.msra.mxu0 %v1364
  %1944 = vmatprep.subr.bf16.mxu0 %v1367
  %1945 = vmatpush1.bf16.msra.mxu0 %v1366
  %1946 = vmatprep.subr.bf16.mxu0 %v1369
  %1947 = vmatpush1.bf16.msra.mxu0 %v1368
  %1948 = vmatprep.subr.bf16.mxu0 %v1371
  %1949 = vmatpush1.bf16.msra.mxu0 %v1370
  %1950 = vmatprep.subr.bf16.mxu0 %v1373
  %1951 = vmatpush1.bf16.msra.mxu0 %v1372
  %1952 = vmatprep.subr.bf16.mxu0 %v1375
  %1953 = vmatpush1.bf16.msra.mxu0 %v1374
  %1954 = vmatprep.subr.bf16.mxu0 %v1377
  %1955 = vmatpush1.bf16.msra.mxu0 %v1376
  %1956 = vmatprep.subr.bf16.mxu0 %v1379
  %1957 = vmatpush1.bf16.msra.mxu0 %v1378
  %1958 = vmatprep.mubr.bf16.mxu0 %v369
  %1959 = vmatmul.mubr.bf16.gmra.mrb[0].mxu0 %v368
  %v1960 = vpop.f32.mrb[0].mxu0
  %v1961 = vadd.f32 %v1918, %v1960
  %v1962 = vpop.f32.mrb[0].mxu0
  %v1963 = vadd.f32 %v1920, %v1962
  %v1964 = vpop.f32.mrb[0].mxu0
  %v1965 = vadd.f32 %v1922, %v1964
  %v1966 = vpop.f32.mrb[0].mxu0
  %v1967 = vadd.f32 %v1924, %v1966
  %1968 = vdwg.mxu0
  %1969 = vmatprep.subr.bf16.mxu0 %v1381
  %1970 = vmatpush1.bf16.msra.mxu0 %v1380
  %1971 = vmatprep.subr.bf16.mxu0 %v1383
  %1972 = vmatpush1.bf16.msra.mxu0 %v1382
  %1973 = vmatprep.subr.bf16.mxu0 %v1385
  %1974 = vmatpush1.bf16.msra.mxu0 %v1384
  %1975 = vmatprep.subr.bf16.mxu0 %v1387
  %1976 = vmatpush1.bf16.msra.mxu0 %v1386
  %1977 = vmatprep.subr.bf16.mxu0 %v1389
  %1978 = vmatpush1.bf16.msra.mxu0 %v1388
  %1979 = vmatprep.subr.bf16.mxu0 %v1391
  %1980 = vmatpush1.bf16.msra.mxu0 %v1390
  %1981 = vmatprep.subr.bf16.mxu0 %v1393
  %1982 = vmatpush1.bf16.msra.mxu0 %v1392
  %1983 = vmatprep.subr.bf16.mxu0 %v1395
  %1984 = vmatpush1.bf16.msra.mxu0 %v1394
  %1985 = vmatprep.subr.bf16.mxu0 %v1397
  %1986 = vmatpush1.bf16.msra.mxu0 %v1396
  %1987 = vmatprep.subr.bf16.mxu0 %v1399
  %1988 = vmatpush1.bf16.msra.mxu0 %v1398
  %1989 = vmatprep.subr.bf16.mxu0 %v1401
  %1990 = vmatpush1.bf16.msra.mxu0 %v1400
  %1991 = vmatprep.subr.bf16.mxu0 %v1403
  %1992 = vmatpush1.bf16.msra.mxu0 %v1402
  %1993 = vmatprep.subr.bf16.mxu0 %v1405
  %1994 = vmatpush1.bf16.msra.mxu0 %v1404
  %1995 = vmatprep.subr.bf16.mxu0 %v1407
  %1996 = vmatpush1.bf16.msra.mxu0 %v1406
  %1997 = vmatprep.subr.bf16.mxu0 %v1409
  %1998 = vmatpush1.bf16.msra.mxu0 %v1408
  %1999 = vmatprep.subr.bf16.mxu0 %v1411
  %2000 = vmatpush1.bf16.msra.mxu0 %v1410
  %2001 = vmatprep.mubr.bf16.mxu0 %v371
  %2002 = vmatmul.mubr.bf16.gmra.mrb[0].mxu0 %v370
  %v2003 = vpop.f32.mrb[0].mxu0
  %v2004 = vadd.f32 %v1961, %v2003
  %v2005 = vpop.f32.mrb[0].mxu0
  %v2006 = vadd.f32 %v1963, %v2005
  %v2007 = vpop.f32.mrb[0].mxu0
  %v2008 = vadd.f32 %v1965, %v2007
  %v2009 = vpop.f32.mrb[0].mxu0
  %v2010 = vadd.f32 %v1967, %v2009
  %2011 = vdwg.mxu0
  %v2012 = vld [vmem:[%s2] sm:$0x3]
  %v2014 = vlaneseq
  %v2015 = vshrl.u32 %v2014, 7
  %v2016 = vsub.s32 0, %v2015
  %v2017 = vrot.slane %v2012, %v2016
  %v2018 = vlaneseq
  %v2019 = vshrl.u32 %v2018, 7
  %v2020 = vsub.s32 1, %v2019
  %v2021 = vrot.slane %v2012, %v2020
  %v2024 = vmul.f32 %v2004, %v2017
  %v2025 = vmul.f32 %v2006, %v2021
  %v2026 = vmul.f32 %v2008, %v2017
  %v2027 = vmul.f32 %v2010, %v2021
  %v2028 = vld [vmem:[%s3] sm:$0x3]
  %v2030 = vlaneseq
  %v2031 = vshrl.u32 %v2030, 7
  %v2032 = vsub.s32 0, %v2031
  %v2033 = vrot.slane %v2028, %v2032
  %v2034 = vlaneseq
  %v2035 = vshrl.u32 %v2034, 7
  %v2036 = vsub.s32 1, %v2035
  %v2037 = vrot.slane %v2028, %v2036
  %v2040 = vadd.f32 %v2024, %v2033
  %v2041 = vadd.f32 %v2025, %v2037
  %v2042 = vadd.f32 %v2026, %v2033
  %v2043 = vadd.f32 %v2027, %v2037
  %v2044 = vmax.f32 %v2040, 0.0
  %v2045 = vmax.f32 %v2041, 0.0
  %v2046 = vmax.f32 %v2042, 0.0
  %v2047 = vmax.f32 %v2043, 0.0
  %v2048 = vpack.c.bf16 %v2046, %v2044
  %v2049 = vpack.c.bf16 %v2047, %v2045
  %v2050 = vld [vmem:[%s4] sm:$0xff]
  %v2051 = vld [vmem:[%s4 + $0x8] sm:$0xff]
  %v2052 = vld [vmem:[%s4 + $0x10] sm:$0xff]
  %v2053 = vld [vmem:[%s4 + $0x18] sm:$0xff]
  %v2054 = vld [vmem:[%s4 + $0x20] sm:$0xff]
  %v2055 = vld [vmem:[%s4 + $0x28] sm:$0xff]
  %v2056 = vld [vmem:[%s4 + $0x30] sm:$0xff]
  %v2057 = vld [vmem:[%s4 + $0x38] sm:$0xff]
  %v2058 = vld [vmem:[%s4 + $0x40] sm:$0xff]
  %v2059 = vld [vmem:[%s4 + $0x48] sm:$0xff]
  %v2060 = vld [vmem:[%s4 + $0x50] sm:$0xff]
  %v2061 = vld [vmem:[%s4 + $0x58] sm:$0xff]
  %v2062 = vld [vmem:[%s4 + $0x60] sm:$0xff]
  %v2063 = vld [vmem:[%s4 + $0x68] sm:$0xff]
  %v2064 = vld [vmem:[%s4 + $0x70] sm:$0xff]
  %v2065 = vld [vmem:[%s4 + $0x78] sm:$0xff]
  %v2066 = vld [vmem:[%s4 + $0x80] sm:$0xff]
  %v2067 = vld [vmem:[%s4 + $0x88] sm:$0xff]
  %v2068 = vld [vmem:[%s4 + $0x90] sm:$0xff]
  %v2069 = vld [vmem:[%s4 + $0x98] sm:$0xff]
  %v2070 = vld [vmem:[%s4 + $0xa0] sm:$0xff]
  %v2071 = vld [vmem:[%s4 + $0xa8] sm:$0xff]
  %v2072 = vld [vmem:[%s4 + $0xb0] sm:$0xff]
  %v2073 = vld [vmem:[%s4 + $0xb8] sm:$0xff]
  %v2074 = vld [vmem:[%s4 + $0xc0] sm:$0xff]
  %v2075 = vld [vmem:[%s4 + $0xc8] sm:$0xff]
  %v2076 = vld [vmem:[%s4 + $0xd0] sm:$0xff]
  %v2077 = vld [vmem:[%s4 + $0xd8] sm:$0xff]
  %v2078 = vld [vmem:[%s4 + $0xe0] sm:$0xff]
  %v2079 = vld [vmem:[%s4 + $0xe8] sm:$0xff]
  %v2080 = vld [vmem:[%s4 + $0xf0] sm:$0xff]
  %v2081 = vld [vmem:[%s4 + $0xf8] sm:$0xff]
  %v2114 = vunpack.c.l.b16 %v2050
  %v2115 = vunpack.c.h.b16 %v2050
  %v2116 = vunpack.c.l.b16 %v2051
  %v2117 = vunpack.c.h.b16 %v2051
  %v2118 = vunpack.c.l.b16 %v2052
  %v2119 = vunpack.c.h.b16 %v2052
  %v2120 = vunpack.c.l.b16 %v2053
  %v2121 = vunpack.c.h.b16 %v2053
  %v2122 = vunpack.c.l.b16 %v2054
  %v2123 = vunpack.c.h.b16 %v2054
  %v2124 = vunpack.c.l.b16 %v2055
  %v2125 = vunpack.c.h.b16 %v2055
  %v2126 = vunpack.c.l.b16 %v2056
  %v2127 = vunpack.c.h.b16 %v2056
  %v2128 = vunpack.c.l.b16 %v2057
  %v2129 = vunpack.c.h.b16 %v2057
  %v2130 = vunpack.c.l.b16 %v2058
  %v2131 = vunpack.c.h.b16 %v2058
  %v2132 = vunpack.c.l.b16 %v2059
  %v2133 = vunpack.c.h.b16 %v2059
  %v2134 = vunpack.c.l.b16 %v2060
  %v2135 = vunpack.c.h.b16 %v2060
  %v2136 = vunpack.c.l.b16 %v2061
  %v2137 = vunpack.c.h.b16 %v2061
  %v2138 = vunpack.c.l.b16 %v2062
  %v2139 = vunpack.c.h.b16 %v2062
  %v2140 = vunpack.c.l.b16 %v2063
  %v2141 = vunpack.c.h.b16 %v2063
  %v2142 = vunpack.c.l.b16 %v2064
  %v2143 = vunpack.c.h.b16 %v2064
  %v2144 = vunpack.c.l.b16 %v2065
  %v2145 = vunpack.c.h.b16 %v2065
  %v2146 = vunpack.c.l.b16 %v2066
  %v2147 = vunpack.c.h.b16 %v2066
  %v2148 = vunpack.c.l.b16 %v2067
  %v2149 = vunpack.c.h.b16 %v2067
  %v2150 = vunpack.c.l.b16 %v2068
  %v2151 = vunpack.c.h.b16 %v2068
  %v2152 = vunpack.c.l.b16 %v2069
  %v2153 = vunpack.c.h.b16 %v2069
  %v2154 = vunpack.c.l.b16 %v2070
  %v2155 = vunpack.c.h.b16 %v2070
  %v2156 = vunpack.c.l.b16 %v2071
  %v2157 = vunpack.c.h.b16 %v2071
  %v2158 = vunpack.c.l.b16 %v2072
  %v2159 = vunpack.c.h.b16 %v2072
  %v2160 = vunpack.c.l.b16 %v2073
  %v2161 = vunpack.c.h.b16 %v2073
  %v2162 = vunpack.c.l.b16 %v2074
  %v2163 = vunpack.c.h.b16 %v2074
  %v2164 = vunpack.c.l.b16 %v2075
  %v2165 = vunpack.c.h.b16 %v2075
  %v2166 = vunpack.c.l.b16 %v2076
  %v2167 = vunpack.c.h.b16 %v2076
  %v2168 = vunpack.c.l.b16 %v2077
  %v2169 = vunpack.c.h.b16 %v2077
  %v2170 = vunpack.c.l.b16 %v2078
  %v2171 = vunpack.c.h.b16 %v2078
  %v2172 = vunpack.c.l.b16 %v2079
  %v2173 = vunpack.c.h.b16 %v2079
  %v2174 = vunpack.c.l.b16 %v2080
  %v2175 = vunpack.c.h.b16 %v2080
  %v2176 = vunpack.c.l.b16 %v2081
  %v2177 = vunpack.c.h.b16 %v2081
  %v2178 = vpack.c.b16 %v2116, %v2114
  %v2179 = vpack.c.b16 %v2117, %v2115
  %v2180 = vpack.c.b16 %v2120, %v2118
  %v2181 = vpack.c.b16 %v2121, %v2119
  %v2182 = vpack.c.b16 %v2124, %v2122
  %v2183 = vpack.c.b16 %v2125, %v2123
  %v2184 = vpack.c.b16 %v2128, %v2126
  %v2185 = vpack.c.b16 %v2129, %v2127
  %v2186 = vpack.c.b16 %v2132, %v2130
  %v2187 = vpack.c.b16 %v2133, %v2131
  %v2188 = vpack.c.b16 %v2136, %v2134
  %v2189 = vpack.c.b16 %v2137, %v2135
  %v2190 = vpack.c.b16 %v2140, %v2138
  %v2191 = vpack.c.b16 %v2141, %v2139
  %v2192 = vpack.c.b16 %v2144, %v2142
  %v2193 = vpack.c.b16 %v2145, %v2143
  %v2194 = vpack.c.b16 %v2148, %v2146
  %v2195 = vpack.c.b16 %v2149, %v2147
  %v2196 = vpack.c.b16 %v2152, %v2150
  %v2197 = vpack.c.b16 %v2153, %v2151
  %v2198 = vpack.c.b16 %v2156, %v2154
  %v2199 = vpack.c.b16 %v2157, %v2155
  %v2200 = vpack.c.b16 %v2160, %v2158
  %v2201 = vpack.c.b16 %v2161, %v2159
  %v2202 = vpack.c.b16 %v2164, %v2162
  %v2203 = vpack.c.b16 %v2165, %v2163
  %v2204 = vpack.c.b16 %v2168, %v2166
  %v2205 = vpack.c.b16 %v2169, %v2167
  %v2206 = vpack.c.b16 %v2172, %v2170
  %v2207 = vpack.c.b16 %v2173, %v2171
  %v2208 = vpack.c.b16 %v2176, %v2174
  %v2209 = vpack.c.b16 %v2177, %v2175
  %2242 = vmatprep.subr.bf16.mxu0 %v2179
  %2243 = vmatpush1.bf16.msra.mxu0 %v2178
  %2244 = vmatprep.subr.bf16.mxu0 %v2181
  %2245 = vmatpush1.bf16.msra.mxu0 %v2180
  %2246 = vmatprep.subr.bf16.mxu0 %v2183
  %2247 = vmatpush1.bf16.msra.mxu0 %v2182
  %2248 = vmatprep.subr.bf16.mxu0 %v2185
  %2249 = vmatpush1.bf16.msra.mxu0 %v2184
  %2250 = vmatprep.subr.bf16.mxu0 %v2187
  %2251 = vmatpush1.bf16.msra.mxu0 %v2186
  %2252 = vmatprep.subr.bf16.mxu0 %v2189
  %2253 = vmatpush1.bf16.msra.mxu0 %v2188
  %2254 = vmatprep.subr.bf16.mxu0 %v2191
  %2255 = vmatpush1.bf16.msra.mxu0 %v2190
  %2256 = vmatprep.subr.bf16.mxu0 %v2193
  %2257 = vmatpush1.bf16.msra.mxu0 %v2192
  %2258 = vmatprep.subr.bf16.mxu0 %v2195
  %2259 = vmatpush1.bf16.msra.mxu0 %v2194
  %2260 = vmatprep.subr.bf16.mxu0 %v2197
  %2261 = vmatpush1.bf16.msra.mxu0 %v2196
  %2262 = vmatprep.subr.bf16.mxu0 %v2199
  %2263 = vmatpush1.bf16.msra.mxu0 %v2198
  %2264 = vmatprep.subr.bf16.mxu0 %v2201
  %2265 = vmatpush1.bf16.msra.mxu0 %v2200
  %2266 = vmatprep.subr.bf16.mxu0 %v2203
  %2267 = vmatpush1.bf16.msra.mxu0 %v2202
  %2268 = vmatprep.subr.bf16.mxu0 %v2205
  %2269 = vmatpush1.bf16.msra.mxu0 %v2204
  %2270 = vmatprep.subr.bf16.mxu0 %v2207
  %2271 = vmatpush1.bf16.msra.mxu0 %v2206
  %2272 = vmatprep.subr.bf16.mxu0 %v2209
  %2273 = vmatpush1.bf16.msra.mxu0 %v2208
  %2274 = vmatprep.mubr.bf16.mxu0 %v2049
  %2275 = vmatmul.mubr.bf16.gmra.mrb[0].mxu0 %v2048
  %v2276 = vpop.f32.mrb[0].mxu0
  %v2277 = vadd.f32 0.0, %v2276
  %v2278 = vpop.f32.mrb[0].mxu0
  %v2279 = vadd.f32 0.0, %v2278
  %v2280 = vpop.f32.mrb[0].mxu0
  %v2281 = vadd.f32 0.0, %v2280
  %v2282 = vpop.f32.mrb[0].mxu0
  %v2283 = vadd.f32 0.0, %v2282
  %2284 = vdwg.mxu0
  %v2285 = vld [vmem:[%s5] sm:$0x3]
  %v2287 = vlaneseq
  %v2288 = vshrl.u32 %v2287, 7
  %v2289 = vsub.s32 0, %v2288
  %v2290 = vrot.slane %v2285, %v2289
  %v2291 = vlaneseq
  %v2292 = vshrl.u32 %v2291, 7
  %v2293 = vsub.s32 1, %v2292
  %v2294 = vrot.slane %v2285, %v2293
  %v2297 = vmul.f32 %v2277, %v2290
  %v2298 = vmul.f32 %v2279, %v2294
  %v2299 = vmul.f32 %v2281, %v2290
  %v2300 = vmul.f32 %v2283, %v2294
  %v2301 = vld [vmem:[%s6] sm:$0x3]
  %v2303 = vlaneseq
  %v2304 = vshrl.u32 %v2303, 7
  %v2305 = vsub.s32 0, %v2304
  %v2306 = vrot.slane %v2301, %v2305
  %v2307 = vlaneseq
  %v2308 = vshrl.u32 %v2307, 7
  %v2309 = vsub.s32 1, %v2308
  %v2310 = vrot.slane %v2301, %v2309
  %v2313 = vadd.f32 %v2297, %v2306
  %v2314 = vadd.f32 %v2298, %v2310
  %v2315 = vadd.f32 %v2299, %v2306
  %v2316 = vadd.f32 %v2300, %v2310
  %v2317 = vmax.f32 %v2313, 0.0
  %v2318 = vmax.f32 %v2314, 0.0
  %v2319 = vmax.f32 %v2315, 0.0
  %v2320 = vmax.f32 %v2316, 0.0
  %v2321 = vpack.c.bf16 %v2319, %v2317
  %v2322 = vpack.c.bf16 %v2320, %v2318
  %v2323 = vld [vmem:[%s7] sm:$0xf]
  %v2324 = vld [vmem:[%s7 + $0x4] sm:$0xf]
  %v2325 = vld [vmem:[%s7 + $0x8] sm:$0xf]
  %v2326 = vld [vmem:[%s7 + $0xc] sm:$0xf]
  %v2327 = vld [vmem:[%s7 + $0x10] sm:$0xf]
  %v2328 = vld [vmem:[%s7 + $0x14] sm:$0xf]
  %v2329 = vld [vmem:[%s7 + $0x18] sm:$0xf]
  %v2330 = vld [vmem:[%s7 + $0x1c] sm:$0xf]
  %v2331 = vld [vmem:[%s7 + $0x20] sm:$0xf]
  %v2332 = vld [vmem:[%s7 + $0x24] sm:$0xf]
  %v2333 = vld [vmem:[%s7 + $0x28] sm:$0xf]
  %v2334 = vld [vmem:[%s7 + $0x2c] sm:$0xf]
  %v2335 = vld [vmem:[%s7 + $0x30] sm:$0xf]
  %v2336 = vld [vmem:[%s7 + $0x34] sm:$0xf]
  %v2337 = vld [vmem:[%s7 + $0x38] sm:$0xf]
  %v2338 = vld [vmem:[%s7 + $0x3c] sm:$0xf]
  %v2339 = vld [vmem:[%s7 + $0x40] sm:$0xf]
  %v2340 = vld [vmem:[%s7 + $0x44] sm:$0xf]
  %v2341 = vld [vmem:[%s7 + $0x48] sm:$0xf]
  %v2342 = vld [vmem:[%s7 + $0x4c] sm:$0xf]
  %v2343 = vld [vmem:[%s7 + $0x50] sm:$0xf]
  %v2344 = vld [vmem:[%s7 + $0x54] sm:$0xf]
  %v2345 = vld [vmem:[%s7 + $0x58] sm:$0xf]
  %v2346 = vld [vmem:[%s7 + $0x5c] sm:$0xf]
  %v2347 = vld [vmem:[%s7 + $0x60] sm:$0xf]
  %v2348 = vld [vmem:[%s7 + $0x64] sm:$0xf]
  %v2349 = vld [vmem:[%s7 + $0x68] sm:$0xf]
  %v2350 = vld [vmem:[%s7 + $0x6c] sm:$0xf]
  %v2351 = vld [vmem:[%s7 + $0x70] sm:$0xf]
  %v2352 = vld [vmem:[%s7 + $0x74] sm:$0xf]
  %v2353 = vld [vmem:[%s7 + $0x78] sm:$0xf]
  %v2354 = vld [vmem:[%s7 + $0x7c] sm:$0xf]
  %v2387 = vunpack.c.l.b16 %v2323
  %v2388 = vunpack.c.l.b16 %v2324
  %v2389 = vunpack.c.l.b16 %v2325
  %v2390 = vunpack.c.l.b16 %v2326
  %v2391 = vunpack.c.l.b16 %v2327
  %v2392 = vunpack.c.l.b16 %v2328
  %v2393 = vunpack.c.l.b16 %v2329
  %v2394 = vunpack.c.l.b16 %v2330
  %v2395 = vunpack.c.l.b16 %v2331
  %v2396 = vunpack.c.l.b16 %v2332
  %v2397 = vunpack.c.l.b16 %v2333
  %v2398 = vunpack.c.l.b16 %v2334
  %v2399 = vunpack.c.l.b16 %v2335
  %v2400 = vunpack.c.l.b16 %v2336
  %v2401 = vunpack.c.l.b16 %v2337
  %v2402 = vunpack.c.l.b16 %v2338
  %v2403 = vunpack.c.l.b16 %v2339
  %v2404 = vunpack.c.l.b16 %v2340
  %v2405 = vunpack.c.l.b16 %v2341
  %v2406 = vunpack.c.l.b16 %v2342
  %v2407 = vunpack.c.l.b16 %v2343
  %v2408 = vunpack.c.l.b16 %v2344
  %v2409 = vunpack.c.l.b16 %v2345
  %v2410 = vunpack.c.l.b16 %v2346
  %v2411 = vunpack.c.l.b16 %v2347
  %v2412 = vunpack.c.l.b16 %v2348
  %v2413 = vunpack.c.l.b16 %v2349
  %v2414 = vunpack.c.l.b16 %v2350
  %v2415 = vunpack.c.l.b16 %v2351
  %v2416 = vunpack.c.l.b16 %v2352
  %v2417 = vunpack.c.l.b16 %v2353
  %v2418 = vunpack.c.l.b16 %v2354
  %v2419 = vpack.c.b16 %v2388, %v2387
  %v2420 = vpack.c.b16 %v2390, %v2389
  %v2421 = vpack.c.b16 %v2392, %v2391
  %v2422 = vpack.c.b16 %v2394, %v2393
  %v2423 = vpack.c.b16 %v2396, %v2395
  %v2424 = vpack.c.b16 %v2398, %v2397
  %v2425 = vpack.c.b16 %v2400, %v2399
  %v2426 = vpack.c.b16 %v2402, %v2401
  %v2427 = vpack.c.b16 %v2404, %v2403
  %v2428 = vpack.c.b16 %v2406, %v2405
  %v2429 = vpack.c.b16 %v2408, %v2407
  %v2430 = vpack.c.b16 %v2410, %v2409
  %v2431 = vpack.c.b16 %v2412, %v2411
  %v2432 = vpack.c.b16 %v2414, %v2413
  %v2433 = vpack.c.b16 %v2416, %v2415
  %v2434 = vpack.c.b16 %v2418, %v2417
  %2451 = vmatprep.subr.bf16.mxu0 0
  %2452 = vmatpush1.bf16.msra.mxu0 %v2419
  %2453 = vmatprep.subr.bf16.mxu0 0
  %2454 = vmatpush1.bf16.msra.mxu0 %v2420
  %2455 = vmatprep.subr.bf16.mxu0 0
  %2456 = vmatpush1.bf16.msra.mxu0 %v2421
  %2457 = vmatprep.subr.bf16.mxu0 0
  %2458 = vmatpush1.bf16.msra.mxu0 %v2422
  %2459 = vmatprep.subr.bf16.mxu0 0
  %2460 = vmatpush1.bf16.msra.mxu0 %v2423
  %2461 = vmatprep.subr.bf16.mxu0 0
  %2462 = vmatpush1.bf16.msra.mxu0 %v2424
  %2463 = vmatprep.subr.bf16.mxu0 0
  %2464 = vmatpush1.bf16.msra.mxu0 %v2425
  %2465 = vmatprep.subr.bf16.mxu0 0
  %2466 = vmatpush1.bf16.msra.mxu0 %v2426
  %2467 = vmatprep.subr.bf16.mxu0 0
  %2468 = vmatpush1.bf16.msra.mxu0 %v2427
  %2469 = vmatprep.subr.bf16.mxu0 0
  %2470 = vmatpush1.bf16.msra.mxu0 %v2428
  %2471 = vmatprep.subr.bf16.mxu0 0
  %2472 = vmatpush1.bf16.msra.mxu0 %v2429
  %2473 = vmatprep.subr.bf16.mxu0 0
  %2474 = vmatpush1.bf16.msra.mxu0 %v2430
  %2475 = vmatprep.subr.bf16.mxu0 0
  %2476 = vmatpush1.bf16.msra.mxu0 %v2431
  %2477 = vmatprep.subr.bf16.mxu0 0
  %2478 = vmatpush1.bf16.msra.mxu0 %v2432
  %2479 = vmatprep.subr.bf16.mxu0 0
  %2480 = vmatpush1.bf16.msra.mxu0 %v2433
  %2481 = vmatprep.subr.bf16.mxu0 0
  %2482 = vmatpush1.bf16.msra.mxu0 %v2434
  %2483 = vmatprep.mubr.bf16.mxu0 %v2322
  %2484 = vmatmul.mubr.bf16.gmra.mrb[0].mxu0 %v2321
  %v2485 = vpop.f32.mrb[0].mxu0
  %v2486 = vadd.f32 0.0, %v2485
  %v2487 = vpop.f32.mrb[0].mxu0
  %v2488 = vpop.f32.mrb[0].mxu0
  %v2489 = vadd.f32 0.0, %v2488
  %v2490 = vpop.f32.mrb[0].mxu0
  %2491 = vdwg.mxu0
  %v2492 = vld [vmem:[%s8] sm:$0x1]
  %v2494 = vlaneseq
  %v2495 = vshrl.u32 %v2494, 7
  %v2496 = vsub.s32 0, %v2495
  %v2497 = vrot.slane %v2492, %v2496
  %v2499 = vmul.f32 %v2486, %v2497
  %v2500 = vmul.f32 %v2489, %v2497
  %v2501 = vld [vmem:[%s9] sm:$0x1]
  %v2503 = vlaneseq
  %v2504 = vshrl.u32 %v2503, 7
  %v2505 = vsub.s32 0, %v2504
  %v2506 = vrot.slane %v2501, %v2505
  %v2508 = vadd.f32 %v2499, %v2506
  %v2509 = vadd.f32 %v2500, %v2506
  %v2510 = vlaneseq
  %v2511 = vand.u32 %v2510, 127
  %vm2512 = vcmp.lt.s32.totalorder %v2511, 4
  %v2513 = vsel %vm2512, %v2508, -1e+30
  %v2514 = vsel %vm2512, %v2509, -1e+30
  %2515 = vmax.xlane.f32.xlu0 %v2513
  %v2516 = vpop.xlane.xlu0 %2515
  %2517 = vmax.xlane.f32.xlu0 %v2514
  %v2518 = vpop.xlane.xlu0 %2517
  %v2519 = vsub.f32 %v2513, %v2516
  %v2520 = vsub.f32 %v2514, %v2518
  %v2521 = vmul.f32 %v2519, 1.442695
  %v2522 = vpow.pop %v2521
  %v2523 = vmul.f32 %v2520, 1.442695
  %v2524 = vpow.pop %v2523
  %2525 = vadd.xlane.f32.xlu0 %v2522
  %v2526 = vpop.xlane.xlu0 %2525
  %2527 = vadd.xlane.f32.xlu0 %v2524
  %v2528 = vpop.xlane.xlu0 %2527
  %v2529 = vrcp.pop %v2526
  %v2530 = vmul.f32 %v2522, %v2529
  %v2531 = vrcp.pop %v2528
  %v2532 = vmul.f32 %v2524, %v2531
  %2533 = vst [vmem:[%s10] sm:$0xff] %v2530
  %2534 = vst [vmem:[%s10 + $0x8] sm:$0xff] %v2532
  // Predicated region
  $region42: #{_lambda_.9} parent=0 // pred_check
    _
  $region43: #{_lambda_.9} parent=0 // pred_check_branch
    %2536 = sbr.rel (0) target = $region45
  $region44: #{_lambda_.9} parent=0 // pred_region
    _
  $region45: #{_lambda_.9} parent=0 // pred_fallthru
    _
  // Predicated region
  $region46: #{_lambda_.9} parent=0 // pred_check
    _
  $region47: #{_lambda_.9} parent=0 // pred_check_branch
    %2538 = sbr.rel (0) target = $region49
  $region48: #{_lambda_.9} parent=0 // pred_region
    _
  $region49: #{_lambda_.9} parent=0 // pred_fallthru
    _

</llo_original>
